<compile_context>
chip_gen: v6e
topology: v6e:2x2x1
jax: 0.10.0
libtpu: 0.0.40
codegen_flags: <defaults>
</compile_context>

<pallas_src>
import math

import jax
import jax.numpy as jnp
from jax import lax
from jax.experimental import pallas as pl
from jax.experimental.pallas import tpu as pltpu

EPS = 1e-5          # PyTorch GroupNorm default eps
GROUPS = 32
IM2COL_MAX_C = 256  # use the big-K im2col matmul only while K=C under-fills the MXU


def _silu(x):
    # sigmoid = exp (EUP) + approximate reciprocal (EUP) -> keeps the divide off the VPU
    return x * pl.reciprocal(1.0 + jnp.exp(-x), approx=True)


def _group_norm(x2, a_cg, a_gc, gamma, beta):
    """GroupNorm on a (HW, C) tile.

    a_cg: (C, G) channel->group averaging matrix (columns sum a group, scaled 1/cpg)
    a_gc: (G, C) 0/1 group->channel broadcast matrix
    """
    mean_c = jnp.mean(x2, axis=0, keepdims=True)                        # (1, C) spatial mean
    mean_g = jnp.dot(jnp.dot(mean_c, a_cg, preferred_element_type=jnp.float32),
                     a_gc, preferred_element_type=jnp.float32)          # group mean -> (1, C)
    xc = x2 - mean_g
    var_c = jnp.mean(xc * xc, axis=0, keepdims=True)                    # centered variance
    var_g = jnp.dot(jnp.dot(var_c, a_cg, preferred_element_type=jnp.float32),
                    a_gc, preferred_element_type=jnp.float32)
    rstd = lax.rsqrt(var_g + EPS)
    return xc * (rstd * gamma) + beta


def _shift1(x, off, axis):
    """y[i] = x[i + off] along `axis` (off in {-1, 0, 1}); zero at the out-of-range edge."""
    if off == 0:
        return x
    n = x.shape[axis]
    zshape = list(x.shape)
    zshape[axis] = 1
    z = jnp.zeros(zshape, x.dtype)
    if off > 0:
        return jnp.concatenate([lax.slice_in_dim(x, 1, n, axis=axis), z], axis=axis)
    return jnp.concatenate([z, lax.slice_in_dim(x, 0, n - 1, axis=axis)], axis=axis)


def _im2col_fill(col_ref, xg):
    """Write the 9 zero-padded shifted 3x3 taps of xg (H, W, C) into the bf16 scratch.

    Every tap block is written over its full (H, W) extent each call (border zeros are
    composed in registers), so the scratch carries no state across grid steps or
    TensorCores (megacore-safe, no one-shot init needed).
    """
    H, W, C = xg.shape
    for dh in range(3):
        xh = _shift1(xg, dh - 1, axis=0)
        for dw in range(3):
            xv = _shift1(xh, dw - 1, axis=1)
            col_ref[:, :, pl.ds((dh * 3 + dw) * C, C)] = xv.astype(jnp.bfloat16)


def _conv3x3_dots(xg, w_ref):
    """3x3 same-padding conv as 9 accumulating K=C MXU matmuls (no im2col scratch).

    xg: (H, W, C) f32;  w_ref: (9, C, C_out) bf16.  Returns (H*W, C_out) f32.
    """
    H, W, C = xg.shape
    acc = None
    for dh in range(3):
        xh = _shift1(xg, dh - 1, axis=0)
        for dw in range(3):
            xv = jnp.reshape(_shift1(xh, dw - 1, axis=1), (H * W, C)).astype(jnp.bfloat16)
            p = jnp.dot(xv, w_ref[dh * 3 + dw], preferred_element_type=jnp.float32)
            acc = p if acc is None else acc + p
    return acc


def _make_kernel(H, W, C_in, C_out, skip_is_identity, conv1_im2col, conv2_im2col):
    HW = H * W
    separate_skip = (not skip_is_identity) and (not conv2_im2col)

    def kernel(*refs):
        it = iter(refs)
        x_ref = next(it)
        t_ref = next(it)
        gn1_g = next(it); gn1_b = next(it); a1_cg = next(it); a1_gc = next(it)
        w1 = next(it); b1 = next(it)
        gn2_g = next(it); gn2_b = next(it); a2_cg = next(it); a2_gc = next(it)
        w2 = next(it); b2 = next(it)
        skip_w = next(it) if separate_skip else None
        out_ref = next(it)
        col1 = next(it) if conv1_im2col else None
        col2 = next(it) if conv2_im2col else None

        x2 = x_ref[...]                                                 # (HW, C_in) f32

        # ---- GroupNorm1 -> conv1 (3x3, pad 1) -> SiLU --------------------------------
        h2 = _group_norm(x2, a1_cg[...], a1_gc[...], gn1_g[...], gn1_b[...])
        hg = jnp.reshape(h2, (H, W, C_in))
        if conv1_im2col:
            _im2col_fill(col1, hg)
            conv1 = jnp.dot(jnp.reshape(col1[...], (HW, 9 * C_in)), w1[...],
                            preferred_element_type=jnp.float32)
        else:
            conv1 = _conv3x3_dots(hg, w1)
        h = _silu(conv1 + b1[...])                                      # (HW, C_out) f32

        # ---- + time embedding (silu(Linear(time)) precomputed in the wrapper) --------
        merged = h + t_ref[...]

        # ---- GroupNorm2 -> conv_merged (3x3) with the 1x1 skip fused in --------------
        m2 = _group_norm(merged, a2_cg[...], a2_gc[...], gn2_g[...], gn2_b[...])
        mg = jnp.reshape(m2, (H, W, C_out))
        if conv2_im2col:
            _im2col_fill(col2, mg)
            if not skip_is_identity:
                # residual 1x1 conv rides along as extra K rows of the same matmul
                col2[:, :, pl.ds(9 * C_out, C_in)] = (
                    jnp.reshape(x2, (H, W, C_in)).astype(jnp.bfloat16))
            k2 = 9 * C_out + (0 if skip_is_identity else C_in)
            y = jnp.dot(jnp.reshape(col2[...], (HW, k2)), w2[...],
                        preferred_element_type=jnp.float32)
        else:
            y = _conv3x3_dots(mg, w2)
            if not skip_is_identity:
                # residual 1x1 conv as a 10th accumulating dot
                y = y + jnp.dot(x2.astype(jnp.bfloat16), skip_w[...],
                                preferred_element_type=jnp.float32)

        y = y + b2[...]                         # conv2 bias (+ folded skip bias)
        if skip_is_identity:
            y = y + x2                          # exact f32 residual
        out_ref[...] = y.astype(out_ref.dtype)

    return kernel


def _group_matrices(C):
    cpg = C // GROUPS
    gid = jnp.arange(C) // cpg
    onehot = (gid[:, None] == jnp.arange(GROUPS)[None, :]).astype(jnp.float32)   # (C, G)
    return onehot / float(cpg), jnp.transpose(onehot)                            # (C,G), (G,C)


def unet_residual_block(x_nchw, time, params, conv_mode="auto"):
    """x_nchw: (B, C_in, H, W) f32, time: (1, n_time) f32 -> (B, C_out, H, W) f32."""
    B, C_in, H, W = x_nchw.shape
    C_out = params["conv1_w"].shape[-1]
    HW = H * W
    skip_is_identity = "skip_w" not in params
    if C_in % GROUPS or C_out % GROUPS:
        raise ValueError("GroupNorm(32, C) requires channel counts divisible by 32")
    if HW % 8:
        raise ValueError("H*W must be a multiple of 8")

    if conv_mode == "auto":             # big-K im2col only while K=C under-fills the MXU
        conv1_im2col, conv2_im2col = C_in < IM2COL_MAX_C, C_out < IM2COL_MAX_C
    elif conv_mode == "im2col":
        conv1_im2col = conv2_im2col = True
    elif conv_mode == "dots":
        conv1_im2col = conv2_im2col = False
    else:
        raise ValueError(f"unknown conv_mode {conv_mode!r}")

    # NCHW -> lane-friendly (B*H*W, C); all layout plumbing stays in the wrapper.
    # TODO(synk): optionally accept/emit bf16 activations here to halve the x/out DMAs.
    x2 = jnp.transpose(x_nchw, (0, 2, 3, 1)).reshape(B * HW, C_in)

    # Batch-invariant time embedding hoisted out of the kernel (was a per-step M=1 matmul).
    t = time @ params["time_w"] + params["time_b"]
    t = t * jax.nn.sigmoid(t)                                          # (1, C_out)

    # MXU-ready bf16 conv weights: tap-major rows (im2col) or tap-indexed (dots).
    w1_hwio, w2_hwio = params["conv1_w"], params["conv2_w"]
    w1 = (w1_hwio.reshape(9 * C_in, C_out) if conv1_im2col
          else w1_hwio.reshape(9, C_in, C_out)).astype(jnp.bfloat16)
    b2 = params["conv2_b"]
    extra_inputs = []
    if conv2_im2col:
        w2 = w2_hwio.reshape(9 * C_out, C_out).astype(jnp.bfloat16)
        if not skip_is_identity:        # 1x1 skip conv as extra contraction rows of conv2
            w2 = jnp.concatenate([w2, params["skip_w"].astype(jnp.bfloat16)], axis=0)
    else:
        w2 = w2_hwio.reshape(9, C_out, C_out).astype(jnp.bfloat16)
        if not skip_is_identity:        # 1x1 skip conv as a 10th accumulating dot
            extra_inputs.append(params["skip_w"].astype(jnp.bfloat16))
    if not skip_is_identity:
        b2 = b2 + params["skip_b"]      # fold the skip bias into conv2's bias

    a1_cg, a1_gc = _group_matrices(C_in)
    a2_cg, a2_gc = _group_matrices(C_out)

    inputs = (x2, t,
              params["gn1_gamma"], params["gn1_beta"], a1_cg, a1_gc, w1, params["conv1_b"],
              params["gn2_gamma"], params["gn2_beta"], a2_cg, a2_gc, w2, b2,
              *extra_inputs)

    def const_spec(a):
        # Grid-invariant parameter: constant index_map (never re-fetched) and a single
        # VMEM buffer instead of the default double buffer (halves parameter VMEM).
        return pl.BlockSpec(a.shape, lambda b, _nd=a.ndim: (0,) * _nd,
                            pipeline_mode=pl.Buffered(1))

    in_specs = [pl.BlockSpec((HW, C_in), lambda b: (b, 0))]
    in_specs += [const_spec(a) for a in inputs[1:]]

    scratch_shapes = []
    bytes_scratch = 0
    if conv1_im2col:
        scratch_shapes.append(pltpu.VMEM((H, W, 9 * C_in), jnp.bfloat16))
        bytes_scratch += HW * 9 * C_in * 2
    if conv2_im2col:
        k2 = 9 * C_out + (0 if skip_is_identity else C_in)
        scratch_shapes.append(pltpu.VMEM((H, W, k2), jnp.bfloat16))
        bytes_scratch += HW * k2 * 2

    # Scoped-VMEM budget from the actual buffers (defaults of 16/32 MiB reject real SD
    # sizes): double-buffered activation I/O + single-buffered params + scratches +
    # headroom for the compiler's in-register/VMEM conv temporaries.
    bytes_io = 2 * (HW * C_in + HW * C_out) * 4
    bytes_const = sum(int(a.size) * a.dtype.itemsize for a in inputs[1:])
    bytes_tmp = 8 * HW * max(C_in, C_out) * 4
    vmem_limit = int(1.25 * (bytes_io + bytes_const + bytes_scratch + bytes_tmp)) + (4 << 20)
    vmem_limit = max(32 << 20, min(vmem_limit, 100 << 20))

    out = pl.pallas_call(
        _make_kernel(H, W, C_in, C_out, skip_is_identity, conv1_im2col, conv2_im2col),
        out_shape=jax.ShapeDtypeStruct((B * HW, C_out), jnp.float32),
        grid_spec=pltpu.PrefetchScalarGridSpec(
            num_scalar_prefetch=0,
            grid=(B,),
            in_specs=in_specs,
            out_specs=pl.BlockSpec((HW, C_out), lambda b: (b, 0)),
            scratch_shapes=scratch_shapes,
        ),
        compiler_params=pltpu.CompilerParams(
            dimension_semantics=("parallel",),
            vmem_limit_bytes=vmem_limit),
    )(*inputs)

    return jnp.transpose(out.reshape(B, H, W, C_out), (0, 3, 1, 2))


def init_params(key, C_in, C_out, n_time):
    ks = jax.random.split(key, 8)

    def u(k, shape, fan_in):
        bound = 1.0 / math.sqrt(fan_in)
        return jax.random.uniform(k, shape, jnp.float32, -bound, bound)

    params = dict(
        gn1_gamma=jnp.ones((1, C_in), jnp.float32),
        gn1_beta=jnp.zeros((1, C_in), jnp.float32),
        conv1_w=u(ks[0], (3, 3, C_in, C_out), 9 * C_in),        # HWIO
        conv1_b=u(ks[1], (1, C_out), 9 * C_in),
        time_w=u(ks[2], (n_time, C_out), n_time),
        time_b=u(ks[3], (1, C_out), n_time),
        gn2_gamma=jnp.ones((1, C_out), jnp.float32),
        gn2_beta=jnp.zeros((1, C_out), jnp.float32),
        conv2_w=u(ks[4], (3, 3, C_out, C_out), 9 * C_out),      # HWIO
        conv2_b=u(ks[5], (1, C_out), 9 * C_out),
    )
    if C_in != C_out:
        # 1x1 conv stored matmul-ready as (C_in, C_out); identity case has no skip params
        params["skip_w"] = u(ks[6], (C_in, C_out), C_in)
        params["skip_b"] = u(ks[7], (1, C_out), C_in)
    return params


def reference(x_nchw, time, params, conv_dtype=jnp.float32):
    """Pure-JAX reference mirroring the PyTorch forward.

    conv_dtype=f32 reproduces the module's full-f32 math; conv_dtype=bf16 mirrors the
    kernel's bf16-operand / f32-accumulate MXU matmuls for a tight comparison.
    """
    x = jnp.transpose(x_nchw, (0, 2, 3, 1))  # NHWC

    def gn(v, gamma, beta):
        B, H, W, C = v.shape
        vg = v.reshape(B, H, W, GROUPS, C // GROUPS)
        mean = vg.mean(axis=(1, 2, 4), keepdims=True)
        var = vg.var(axis=(1, 2, 4), keepdims=True)
        vn = ((vg - mean) / jnp.sqrt(var + EPS)).reshape(B, H, W, C)
        return vn * gamma.reshape(1, 1, 1, C) + beta.reshape(1, 1, 1, C)

    def conv3(v, w, b):
        y = lax.conv_general_dilated(
            v.astype(conv_dtype), w.astype(conv_dtype), (1, 1), "SAME",
            dimension_numbers=("NHWC", "HWIO", "NHWC"),
            preferred_element_type=jnp.float32)
        return y + b.reshape(1, 1, 1, -1)

    silu = lambda z: z * jax.nn.sigmoid(z)

    h = gn(x, params["gn1_gamma"], params["gn1_beta"])
    h = silu(conv3(h, params["conv1_w"], params["conv1_b"]))
    t = silu(time @ params["time_w"] + params["time_b"])            # (1, C_out)
    merged = h + t[:, None, None, :]
    m = gn(merged, params["gn2_gamma"], params["gn2_beta"])
    m = conv3(m, params["conv2_w"], params["conv2_b"])
    if "skip_w" in params:
        skip = jnp.einsum("bhwc,cd->bhwd", x.astype(conv_dtype),
                          params["skip_w"].astype(conv_dtype),
                          preferred_element_type=jnp.float32)
        skip = skip + params["skip_b"].reshape(1, 1, 1, -1)
    else:
        skip = x
    return jnp.transpose(m + skip, (0, 3, 1, 2))


if __name__ == "__main__":
    key = jax.random.PRNGKey(0)
    H = W = 16
    n_time = 128
    cases = [(2, 32, 64, "im2col"),   # channel-changing block, big-K im2col path (fused skip)
             (2, 32, 64, "dots"),     # channel-changing block, 9-accumulating-dots path
             (2, 64, 64, "im2col"),   # identity-skip block, im2col path
             (2, 64, 64, "dots")]     # identity-skip block, dots path
    failures = []
    for (B, C_in, C_out, mode) in cases:
        key, kx, kt, kp = jax.random.split(key, 4)
        x = jax.random.normal(kx, (B, C_in, H, W), jnp.float32)
        time = jax.random.normal(kt, (1, n_time), jnp.float32)
        params = init_params(kp, C_in, C_out, n_time)

        out = jax.block_until_ready(unet_residual_block(x, time, params, conv_mode=mode))
        assert out.shape == (B, C_out, H, W)

        ref_bf16 = reference(x, time, params, conv_dtype=jnp.bfloat16)  # same MXU numerics
        ref_f32 = reference(x, time, params, conv_dtype=jnp.float32)    # full-f32 module math
        err_bf16 = float(jnp.max(jnp.abs(out - ref_bf16)))
        err_f32 = float(jnp.max(jnp.abs(out - ref_f32)))
        finite = bool(jnp.all(jnp.isfinite(out)))
        if not finite or err_bf16 > 3e-2 or err_f32 > 1.5e-1:
            failures.append(dict(C_in=C_in, C_out=C_out, mode=mode, finite=finite,
                                 err_vs_bf16_ref=err_bf16, err_vs_f32_ref=err_f32))

    if failures:
        raise SystemExit(f"mismatch vs reference: {failures}")
    print("KERNEL_OK")
</pallas_src>

<mosaic_0001>
module attributes {stable_mosaic.version = 11 : i64} {
  func.func @kernel(%arg0: i32, %arg1: memref<256x32xf32, #tpu.memory_space<vmem>>, %arg2: memref<1x64xf32, #tpu.memory_space<vmem>>, %arg3: memref<1x32xf32, #tpu.memory_space<vmem>>, %arg4: memref<1x32xf32, #tpu.memory_space<vmem>>, %arg5: memref<32x32xf32, #tpu.memory_space<vmem>>, %arg6: memref<32x32xf32, #tpu.memory_space<vmem>>, %arg7: memref<288x64xbf16, #tpu.memory_space<vmem>>, %arg8: memref<1x64xf32, #tpu.memory_space<vmem>>, %arg9: memref<1x64xf32, #tpu.memory_space<vmem>>, %arg10: memref<1x64xf32, #tpu.memory_space<vmem>>, %arg11: memref<64x32xf32, #tpu.memory_space<vmem>>, %arg12: memref<32x64xf32, #tpu.memory_space<vmem>>, %arg13: memref<608x64xbf16, #tpu.memory_space<vmem>>, %arg14: memref<1x64xf32, #tpu.memory_space<vmem>>, %arg15: memref<256x64xf32, #tpu.memory_space<vmem>>, %arg16: memref<16x16x288xbf16, #tpu.memory_space<vmem>>, %arg17: memref<16x16x608xbf16, #tpu.memory_space<vmem>>) attributes {dimension_semantics = [#tpu.dimension_semantics<parallel>], iteration_bounds = array<i64: 2>, scalar_prefetch = 0 : i64, scratch_operands = 2 : i64, tpu.core_type = #tpu.core_type<tc>, window_params = [{transform_indices = @transform_0, window_bounds = array<i64: 256, 32>}, {pipeline_mode = #tpu.pipeline_mode<synchronous>, transform_indices = @transform_1, window_bounds = array<i64: 1, 64>}, {pipeline_mode = #tpu.pipeline_mode<synchronous>, transform_indices = @transform_2, window_bounds = array<i64: 1, 32>}, {pipeline_mode = #tpu.pipeline_mode<synchronous>, transform_indices = @transform_3, window_bounds = array<i64: 1, 32>}, {pipeline_mode = #tpu.pipeline_mode<synchronous>, transform_indices = @transform_4, window_bounds = array<i64: 32, 32>}, {pipeline_mode = #tpu.pipeline_mode<synchronous>, transform_indices = @transform_5, window_bounds = array<i64: 32, 32>}, {pipeline_mode = #tpu.pipeline_mode<synchronous>, transform_indices = @transform_6, window_bounds = array<i64: 288, 64>}, {pipeline_mode = #tpu.pipeline_mode<synchronous>, transform_indices = @transform_7, window_bounds = array<i64: 1, 64>}, {pipeline_mode = #tpu.pipeline_mode<synchronous>, transform_indices = @transform_8, window_bounds = array<i64: 1, 64>}, {pipeline_mode = #tpu.pipeline_mode<synchronous>, transform_indices = @transform_9, window_bounds = array<i64: 1, 64>}, {pipeline_mode = #tpu.pipeline_mode<synchronous>, transform_indices = @transform_10, window_bounds = array<i64: 64, 32>}, {pipeline_mode = #tpu.pipeline_mode<synchronous>, transform_indices = @transform_11, window_bounds = array<i64: 32, 64>}, {pipeline_mode = #tpu.pipeline_mode<synchronous>, transform_indices = @transform_12, window_bounds = array<i64: 608, 64>}, {pipeline_mode = #tpu.pipeline_mode<synchronous>, transform_indices = @transform_13, window_bounds = array<i64: 1, 64>}, {transform_indices = @transform_14, window_bounds = array<i64: 256, 64>}]} {
    %c0 = arith.constant 0 : index
    %c0_0 = arith.constant 0 : index
    %0 = vector.load %arg1[%c0, %c0_0] : memref<256x32xf32, #tpu.memory_space<vmem>>, vector<256x32xf32>
    %c0_1 = arith.constant 0 : index
    %c0_2 = arith.constant 0 : index
    %1 = vector.load %arg5[%c0_1, %c0_2] : memref<32x32xf32, #tpu.memory_space<vmem>>, vector<32x32xf32>
    %c0_3 = arith.constant 0 : index
    %c0_4 = arith.constant 0 : index
    %2 = vector.load %arg6[%c0_3, %c0_4] : memref<32x32xf32, #tpu.memory_space<vmem>>, vector<32x32xf32>
    %c0_5 = arith.constant 0 : index
    %c0_6 = arith.constant 0 : index
    %3 = vector.load %arg3[%c0_5, %c0_6] : memref<1x32xf32, #tpu.memory_space<vmem>>, vector<1x32xf32>
    %c0_7 = arith.constant 0 : index
    %c0_8 = arith.constant 0 : index
    %4 = vector.load %arg4[%c0_7, %c0_8] : memref<1x32xf32, #tpu.memory_space<vmem>>, vector<1x32xf32>
    %cst = arith.constant dense<0.000000e+00> : vector<32xf32>
    %5 = vector.multi_reduction <add>, %0, %cst [0] : vector<256x32xf32> to vector<32xf32>
    %6 = vector.shape_cast %5 : vector<32xf32> to vector<1x32xf32>
    %cst_9 = arith.constant 2.560000e+02 : f32
    %7 = vector.broadcast %cst_9 : f32 to vector<1x32xf32>
    %8 = arith.divf %6, %7 : vector<1x32xf32>
    %cst_10 = arith.constant dense<0.000000e+00> : vector<1x32xf32>
    %9 = tpu.matmul %8, %1, %cst_10 {dimension_numbers = #tpu.dot_dimension_numbers<[1], [0], [0], [1], [0, 0, 1, 1], [], []>} : vector<1x32xf32>, vector<32x32xf32>, vector<1x32xf32> -> vector<1x32xf32>
    %cst_11 = arith.constant dense<0.000000e+00> : vector<1x32xf32>
    %10 = tpu.matmul %9, %2, %cst_11 {dimension_numbers = #tpu.dot_dimension_numbers<[1], [0], [0], [1], [0, 0, 1, 1], [], []>} : vector<1x32xf32>, vector<32x32xf32>, vector<1x32xf32> -> vector<1x32xf32>
    %11 = vector.broadcast %10 : vector<1x32xf32> to vector<256x32xf32>
    %12 = arith.subf %0, %11 : vector<256x32xf32>
    %13 = arith.mulf %12, %12 : vector<256x32xf32>
    %cst_12 = arith.constant dense<0.000000e+00> : vector<32xf32>
    %14 = vector.multi_reduction <add>, %13, %cst_12 [0] : vector<256x32xf32> to vector<32xf32>
    %15 = vector.shape_cast %14 : vector<32xf32> to vector<1x32xf32>
    %cst_13 = arith.constant 2.560000e+02 : f32
    %16 = vector.broadcast %cst_13 : f32 to vector<1x32xf32>
    %17 = arith.divf %15, %16 : vector<1x32xf32>
    %cst_14 = arith.constant dense<0.000000e+00> : vector<1x32xf32>
    %18 = tpu.matmul %17, %1, %cst_14 {dimension_numbers = #tpu.dot_dimension_numbers<[1], [0], [0], [1], [0, 0, 1, 1], [], []>} : vector<1x32xf32>, vector<32x32xf32>, vector<1x32xf32> -> vector<1x32xf32>
    %cst_15 = arith.constant dense<0.000000e+00> : vector<1x32xf32>
    %19 = tpu.matmul %18, %2, %cst_15 {dimension_numbers = #tpu.dot_dimension_numbers<[1], [0], [0], [1], [0, 0, 1, 1], [], []>} : vector<1x32xf32>, vector<32x32xf32>, vector<1x32xf32> -> vector<1x32xf32>
    %cst_16 = arith.constant 9.99999974E-6 : f32
    %20 = vector.broadcast %cst_16 : f32 to vector<1x32xf32>
    %21 = arith.addf %19, %20 : vector<1x32xf32>
    %22 = math.rsqrt %21 : vector<1x32xf32>
    %23 = arith.mulf %22, %3 : vector<1x32xf32>
    %24 = vector.broadcast %23 : vector<1x32xf32> to vector<256x32xf32>
    %25 = arith.mulf %12, %24 : vector<256x32xf32>
    %26 = vector.broadcast %4 : vector<1x32xf32> to vector<256x32xf32>
    %27 = arith.addf %25, %26 : vector<256x32xf32>
    %28 = vector.shape_cast %27 : vector<256x32xf32> to vector<16x16x32xf32>
    %cst_17 = arith.constant 0.000000e+00 : f32
    %29 = vector.broadcast %cst_17 : f32 to vector<1x16x32xf32>
    %30 = vector.extract_strided_slice %28 {offsets = [0, 0, 0], sizes = [15, 16, 32], strides = [1, 1, 1]} : vector<16x16x32xf32> to vector<15x16x32xf32>
    %31 = tpu.concatenate %29, %30 in 0 : vector<1x16x32xf32>, vector<15x16x32xf32> -> vector<16x16x32xf32>
    %cst_18 = arith.constant 0.000000e+00 : f32
    %32 = vector.broadcast %cst_18 : f32 to vector<16x1x32xf32>
    %33 = vector.extract_strided_slice %31 {offsets = [0, 0, 0], sizes = [16, 15, 32], strides = [1, 1, 1]} : vector<16x16x32xf32> to vector<16x15x32xf32>
    %34 = tpu.concatenate %32, %33 in 1 : vector<16x1x32xf32>, vector<16x15x32xf32> -> vector<16x16x32xf32>
    %35 = arith.truncf %34 : vector<16x16x32xf32> to vector<16x16x32xbf16>
    %c0_19 = arith.constant 0 : index
    %c0_20 = arith.constant 0 : index
    %c0_21 = arith.constant 0 : index
    %36 = vector.load %arg16[%c0_19, %c0_20, %c0_21] : memref<16x16x288xbf16, #tpu.memory_space<vmem>>, vector<16x16x32xbf16>
    tpu.vector_store %arg16[%c0_19, %c0_20, %c0_21], %35 {strides = array<i32>} : memref<16x16x288xbf16, #tpu.memory_space<vmem>>, vector<16x16x32xbf16>,
    %37 = arith.truncf %31 : vector<16x16x32xf32> to vector<16x16x32xbf16>
    %c0_22 = arith.constant 0 : index
    %c0_23 = arith.constant 0 : index
    %c32 = arith.constant 32 : index
    %38 = vector.load %arg16[%c0_22, %c0_23, %c32] : memref<16x16x288xbf16, #tpu.memory_space<vmem>>, vector<16x16x32xbf16>
    tpu.vector_store %arg16[%c0_22, %c0_23, %c32], %37 {strides = array<i32>} : memref<16x16x288xbf16, #tpu.memory_space<vmem>>, vector<16x16x32xbf16>,
    %cst_24 = arith.constant 0.000000e+00 : f32
    %39 = vector.broadcast %cst_24 : f32 to vector<16x1x32xf32>
    %40 = vector.extract_strided_slice %31 {offsets = [0, 1, 0], sizes = [16, 15, 32], strides = [1, 1, 1]} : vector<16x16x32xf32> to vector<16x15x32xf32>
    %41 = tpu.concatenate %40, %39 in 1 : vector<16x15x32xf32>, vector<16x1x32xf32> -> vector<16x16x32xf32>
    %42 = arith.truncf %41 : vector<16x16x32xf32> to vector<16x16x32xbf16>
    %c0_25 = arith.constant 0 : index
    %c0_26 = arith.constant 0 : index
    %c64 = arith.constant 64 : index
    %43 = vector.load %arg16[%c0_25, %c0_26, %c64] : memref<16x16x288xbf16, #tpu.memory_space<vmem>>, vector<16x16x32xbf16>
    tpu.vector_store %arg16[%c0_25, %c0_26, %c64], %42 {strides = array<i32>} : memref<16x16x288xbf16, #tpu.memory_space<vmem>>, vector<16x16x32xbf16>,
    %cst_27 = arith.constant 0.000000e+00 : f32
    %44 = vector.broadcast %cst_27 : f32 to vector<16x1x32xf32>
    %45 = vector.extract_strided_slice %28 {offsets = [0, 0, 0], sizes = [16, 15, 32], strides = [1, 1, 1]} : vector<16x16x32xf32> to vector<16x15x32xf32>
    %46 = tpu.concatenate %44, %45 in 1 : vector<16x1x32xf32>, vector<16x15x32xf32> -> vector<16x16x32xf32>
    %47 = arith.truncf %46 : vector<16x16x32xf32> to vector<16x16x32xbf16>
    %c0_28 = arith.constant 0 : index
    %c0_29 = arith.constant 0 : index
    %c96 = arith.constant 96 : index
    %48 = vector.load %arg16[%c0_28, %c0_29, %c96] : memref<16x16x288xbf16, #tpu.memory_space<vmem>>, vector<16x16x32xbf16>
    tpu.vector_store %arg16[%c0_28, %c0_29, %c96], %47 {strides = array<i32>} : memref<16x16x288xbf16, #tpu.memory_space<vmem>>, vector<16x16x32xbf16>,
    %49 = arith.truncf %28 : vector<16x16x32xf32> to vector<16x16x32xbf16>
    %c0_30 = arith.constant 0 : index
    %c0_31 = arith.constant 0 : index
    %c128 = arith.constant 128 : index
    %50 = vector.load %arg16[%c0_30, %c0_31, %c128] : memref<16x16x288xbf16, #tpu.memory_space<vmem>>, vector<16x16x32xbf16>
    tpu.vector_store %arg16[%c0_30, %c0_31, %c128], %49 {strides = array<i32>} : memref<16x16x288xbf16, #tpu.memory_space<vmem>>, vector<16x16x32xbf16>,
    %cst_32 = arith.constant 0.000000e+00 : f32
    %51 = vector.broadcast %cst_32 : f32 to vector<16x1x32xf32>
    %52 = vector.extract_strided_slice %28 {offsets = [0, 1, 0], sizes = [16, 15, 32], strides = [1, 1, 1]} : vector<16x16x32xf32> to vector<16x15x32xf32>
    %53 = tpu.concatenate %52, %51 in 1 : vector<16x15x32xf32>, vector<16x1x32xf32> -> vector<16x16x32xf32>
    %54 = arith.truncf %53 : vector<16x16x32xf32> to vector<16x16x32xbf16>
    %c0_33 = arith.constant 0 : index
    %c0_34 = arith.constant 0 : index
    %c160 = arith.constant 160 : index
    %55 = vector.load %arg16[%c0_33, %c0_34, %c160] : memref<16x16x288xbf16, #tpu.memory_space<vmem>>, vector<16x16x32xbf16>
    tpu.vector_store %arg16[%c0_33, %c0_34, %c160], %54 {strides = array<i32>} : memref<16x16x288xbf16, #tpu.memory_space<vmem>>, vector<16x16x32xbf16>,
    %cst_35 = arith.constant 0.000000e+00 : f32
    %56 = vector.broadcast %cst_35 : f32 to vector<1x16x32xf32>
    %57 = vector.extract_strided_slice %28 {offsets = [1, 0, 0], sizes = [15, 16, 32], strides = [1, 1, 1]} : vector<16x16x32xf32> to vector<15x16x32xf32>
    %58 = tpu.concatenate %57, %56 in 0 : vector<15x16x32xf32>, vector<1x16x32xf32> -> vector<16x16x32xf32>
    %cst_36 = arith.constant 0.000000e+00 : f32
    %59 = vector.broadcast %cst_36 : f32 to vector<16x1x32xf32>
    %60 = vector.extract_strided_slice %58 {offsets = [0, 0, 0], sizes = [16, 15, 32], strides = [1, 1, 1]} : vector<16x16x32xf32> to vector<16x15x32xf32>
    %61 = tpu.concatenate %59, %60 in 1 : vector<16x1x32xf32>, vector<16x15x32xf32> -> vector<16x16x32xf32>
    %62 = arith.truncf %61 : vector<16x16x32xf32> to vector<16x16x32xbf16>
    %c0_37 = arith.constant 0 : index
    %c0_38 = arith.constant 0 : index
    %c192 = arith.constant 192 : index
    %63 = vector.load %arg16[%c0_37, %c0_38, %c192] : memref<16x16x288xbf16, #tpu.memory_space<vmem>>, vector<16x16x32xbf16>
    tpu.vector_store %arg16[%c0_37, %c0_38, %c192], %62 {strides = array<i32>} : memref<16x16x288xbf16, #tpu.memory_space<vmem>>, vector<16x16x32xbf16>,
    %64 = arith.truncf %58 : vector<16x16x32xf32> to vector<16x16x32xbf16>
    %c0_39 = arith.constant 0 : index
    %c0_40 = arith.constant 0 : index
    %c224 = arith.constant 224 : index
    %65 = vector.load %arg16[%c0_39, %c0_40, %c224] : memref<16x16x288xbf16, #tpu.memory_space<vmem>>, vector<16x16x32xbf16>
    tpu.vector_store %arg16[%c0_39, %c0_40, %c224], %64 {strides = array<i32>} : memref<16x16x288xbf16, #tpu.memory_space<vmem>>, vector<16x16x32xbf16>,
    %cst_41 = arith.constant 0.000000e+00 : f32
    %66 = vector.broadcast %cst_41 : f32 to vector<16x1x32xf32>
    %67 = vector.extract_strided_slice %58 {offsets = [0, 1, 0], sizes = [16, 15, 32], strides = [1, 1, 1]} : vector<16x16x32xf32> to vector<16x15x32xf32>
    %68 = tpu.concatenate %67, %66 in 1 : vector<16x15x32xf32>, vector<16x1x32xf32> -> vector<16x16x32xf32>
    %69 = arith.truncf %68 : vector<16x16x32xf32> to vector<16x16x32xbf16>
    %c0_42 = arith.constant 0 : index
    %c0_43 = arith.constant 0 : index
    %c256 = arith.constant 256 : index
    %70 = vector.load %arg16[%c0_42, %c0_43, %c256] : memref<16x16x288xbf16, #tpu.memory_space<vmem>>, vector<16x16x32xbf16>
    tpu.vector_store %arg16[%c0_42, %c0_43, %c256], %69 {strides = array<i32>} : memref<16x16x288xbf16, #tpu.memory_space<vmem>>, vector<16x16x32xbf16>,
    %c0_44 = arith.constant 0 : index
    %c0_45 = arith.constant 0 : index
    %c0_46 = arith.constant 0 : index
    %71 = vector.load %arg16[%c0_44, %c0_45, %c0_46] : memref<16x16x288xbf16, #tpu.memory_space<vmem>>, vector<16x16x288xbf16>
    %72 = vector.shape_cast %71 : vector<16x16x288xbf16> to vector<256x288xbf16>
    %c0_47 = arith.constant 0 : index
    %c0_48 = arith.constant 0 : index
    %73 = vector.load %arg7[%c0_47, %c0_48] : memref<288x64xbf16, #tpu.memory_space<vmem>>, vector<288x64xbf16>
    %cst_49 = arith.constant dense<0.000000e+00> : vector<256x64xf32>
    %74 = tpu.matmul %72, %73, %cst_49 {dimension_numbers = #tpu.dot_dimension_numbers<[1], [0], [0], [1], [0, 0, 1, 1], [], []>} : vector<256x288xbf16>, vector<288x64xbf16>, vector<256x64xf32> -> vector<256x64xf32>
    %c0_50 = arith.constant 0 : index
    %c0_51 = arith.constant 0 : index
    %75 = vector.load %arg8[%c0_50, %c0_51] : memref<1x64xf32, #tpu.memory_space<vmem>>, vector<1x64xf32>
    %76 = vector.broadcast %75 : vector<1x64xf32> to vector<256x64xf32>
    %77 = arith.addf %74, %76 : vector<256x64xf32>
    %cst_52 = arith.constant 0.000000e+00 : f32
    %78 = vector.broadcast %cst_52 : f32 to vector<256x64xf32>
    %79 = arith.subf %78, %77 : vector<256x64xf32>
    %80 = math.exp %79 : vector<256x64xf32>
    %cst_53 = arith.constant 1.000000e+00 : f32
    %81 = vector.broadcast %cst_53 : f32 to vector<256x64xf32>
    %82 = arith.addf %81, %80 : vector<256x64xf32>
    %83 = tpu.reciprocal %82 {approx = true} : vector<256x64xf32> -> vector<256x64xf32>
    %84 = arith.mulf %77, %83 : vector<256x64xf32>
    %c0_54 = arith.constant 0 : index
    %c0_55 = arith.constant 0 : index
    %85 = vector.load %arg2[%c0_54, %c0_55] : memref<1x64xf32, #tpu.memory_space<vmem>>, vector<1x64xf32>
    %86 = vector.broadcast %85 : vector<1x64xf32> to vector<256x64xf32>
    %87 = arith.addf %84, %86 : vector<256x64xf32>
    %c0_56 = arith.constant 0 : index
    %c0_57 = arith.constant 0 : index
    %88 = vector.load %arg11[%c0_56, %c0_57] : memref<64x32xf32, #tpu.memory_space<vmem>>, vector<64x32xf32>
    %c0_58 = arith.constant 0 : index
    %c0_59 = arith.constant 0 : index
    %89 = vector.load %arg12[%c0_58, %c0_59] : memref<32x64xf32, #tpu.memory_space<vmem>>, vector<32x64xf32>
    %c0_60 = arith.constant 0 : index
    %c0_61 = arith.constant 0 : index
    %90 = vector.load %arg9[%c0_60, %c0_61] : memref<1x64xf32, #tpu.memory_space<vmem>>, vector<1x64xf32>
    %c0_62 = arith.constant 0 : index
    %c0_63 = arith.constant 0 : index
    %91 = vector.load %arg10[%c0_62, %c0_63] : memref<1x64xf32, #tpu.memory_space<vmem>>, vector<1x64xf32>
    %cst_64 = arith.constant dense<0.000000e+00> : vector<64xf32>
    %92 = vector.multi_reduction <add>, %87, %cst_64 [0] : vector<256x64xf32> to vector<64xf32>
    %93 = vector.shape_cast %92 : vector<64xf32> to vector<1x64xf32>
    %cst_65 = arith.constant 2.560000e+02 : f32
    %94 = vector.broadcast %cst_65 : f32 to vector<1x64xf32>
    %95 = arith.divf %93, %94 : vector<1x64xf32>
    %cst_66 = arith.constant dense<0.000000e+00> : vector<1x32xf32>
    %96 = tpu.matmul %95, %88, %cst_66 {dimension_numbers = #tpu.dot_dimension_numbers<[1], [0], [0], [1], [0, 0, 1, 1], [], []>} : vector<1x64xf32>, vector<64x32xf32>, vector<1x32xf32> -> vector<1x32xf32>
    %cst_67 = arith.constant dense<0.000000e+00> : vector<1x64xf32>
    %97 = tpu.matmul %96, %89, %cst_67 {dimension_numbers = #tpu.dot_dimension_numbers<[1], [0], [0], [1], [0, 0, 1, 1], [], []>} : vector<1x32xf32>, vector<32x64xf32>, vector<1x64xf32> -> vector<1x64xf32>
    %98 = vector.broadcast %97 : vector<1x64xf32> to vector<256x64xf32>
    %99 = arith.subf %87, %98 : vector<256x64xf32>
    %100 = arith.mulf %99, %99 : vector<256x64xf32>
    %cst_68 = arith.constant dense<0.000000e+00> : vector<64xf32>
    %101 = vector.multi_reduction <add>, %100, %cst_68 [0] : vector<256x64xf32> to vector<64xf32>
    %102 = vector.shape_cast %101 : vector<64xf32> to vector<1x64xf32>
    %cst_69 = arith.constant 2.560000e+02 : f32
    %103 = vector.broadcast %cst_69 : f32 to vector<1x64xf32>
    %104 = arith.divf %102, %103 : vector<1x64xf32>
    %cst_70 = arith.constant dense<0.000000e+00> : vector<1x32xf32>
    %105 = tpu.matmul %104, %88, %cst_70 {dimension_numbers = #tpu.dot_dimension_numbers<[1], [0], [0], [1], [0, 0, 1, 1], [], []>} : vector<1x64xf32>, vector<64x32xf32>, vector<1x32xf32> -> vector<1x32xf32>
    %cst_71 = arith.constant dense<0.000000e+00> : vector<1x64xf32>
    %106 = tpu.matmul %105, %89, %cst_71 {dimension_numbers = #tpu.dot_dimension_numbers<[1], [0], [0], [1], [0, 0, 1, 1], [], []>} : vector<1x32xf32>, vector<32x64xf32>, vector<1x64xf32> -> vector<1x64xf32>
    %cst_72 = arith.constant 9.99999974E-6 : f32
    %107 = vector.broadcast %cst_72 : f32 to vector<1x64xf32>
    %108 = arith.addf %106, %107 : vector<1x64xf32>
    %109 = math.rsqrt %108 : vector<1x64xf32>
    %110 = arith.mulf %109, %90 : vector<1x64xf32>
    %111 = vector.broadcast %110 : vector<1x64xf32> to vector<256x64xf32>
    %112 = arith.mulf %99, %111 : vector<256x64xf32>
    %113 = vector.broadcast %91 : vector<1x64xf32> to vector<256x64xf32>
    %114 = arith.addf %112, %113 : vector<256x64xf32>
    %115 = vector.shape_cast %114 : vector<256x64xf32> to vector<16x16x64xf32>
    %cst_73 = arith.constant 0.000000e+00 : f32
    %116 = vector.broadcast %cst_73 : f32 to vector<1x16x64xf32>
    %117 = vector.extract_strided_slice %115 {offsets = [0, 0, 0], sizes = [15, 16, 64], strides = [1, 1, 1]} : vector<16x16x64xf32> to vector<15x16x64xf32>
    %118 = tpu.concatenate %116, %117 in 0 : vector<1x16x64xf32>, vector<15x16x64xf32> -> vector<16x16x64xf32>
    %cst_74 = arith.constant 0.000000e+00 : f32
    %119 = vector.broadcast %cst_74 : f32 to vector<16x1x64xf32>
    %120 = vector.extract_strided_slice %118 {offsets = [0, 0, 0], sizes = [16, 15, 64], strides = [1, 1, 1]} : vector<16x16x64xf32> to vector<16x15x64xf32>
    %121 = tpu.concatenate %119, %120 in 1 : vector<16x1x64xf32>, vector<16x15x64xf32> -> vector<16x16x64xf32>
    %122 = arith.truncf %121 : vector<16x16x64xf32> to vector<16x16x64xbf16>
    %c0_75 = arith.constant 0 : index
    %c0_76 = arith.constant 0 : index
    %c0_77 = arith.constant 0 : index
    %123 = vector.load %arg17[%c0_75, %c0_76, %c0_77] : memref<16x16x608xbf16, #tpu.memory_space<vmem>>, vector<16x16x64xbf16>
    tpu.vector_store %arg17[%c0_75, %c0_76, %c0_77], %122 {strides = array<i32>} : memref<16x16x608xbf16, #tpu.memory_space<vmem>>, vector<16x16x64xbf16>,
    %124 = arith.truncf %118 : vector<16x16x64xf32> to vector<16x16x64xbf16>
    %c0_78 = arith.constant 0 : index
    %c0_79 = arith.constant 0 : index
    %c64_80 = arith.constant 64 : index
    %125 = vector.load %arg17[%c0_78, %c0_79, %c64_80] : memref<16x16x608xbf16, #tpu.memory_space<vmem>>, vector<16x16x64xbf16>
    tpu.vector_store %arg17[%c0_78, %c0_79, %c64_80], %124 {strides = array<i32>} : memref<16x16x608xbf16, #tpu.memory_space<vmem>>, vector<16x16x64xbf16>,
    %cst_81 = arith.constant 0.000000e+00 : f32
    %126 = vector.broadcast %cst_81 : f32 to vector<16x1x64xf32>
    %127 = vector.extract_strided_slice %118 {offsets = [0, 1, 0], sizes = [16, 15, 64], strides = [1, 1, 1]} : vector<16x16x64xf32> to vector<16x15x64xf32>
    %128 = tpu.concatenate %127, %126 in 1 : vector<16x15x64xf32>, vector<16x1x64xf32> -> vector<16x16x64xf32>
    %129 = arith.truncf %128 : vector<16x16x64xf32> to vector<16x16x64xbf16>
    %c0_82 = arith.constant 0 : index
    %c0_83 = arith.constant 0 : index
    %c128_84 = arith.constant 128 : index
    %130 = vector.load %arg17[%c0_82, %c0_83, %c128_84] : memref<16x16x608xbf16, #tpu.memory_space<vmem>>, vector<16x16x64xbf16>
    tpu.vector_store %arg17[%c0_82, %c0_83, %c128_84], %129 {strides = array<i32>} : memref<16x16x608xbf16, #tpu.memory_space<vmem>>, vector<16x16x64xbf16>,
    %cst_85 = arith.constant 0.000000e+00 : f32
    %131 = vector.broadcast %cst_85 : f32 to vector<16x1x64xf32>
    %132 = vector.extract_strided_slice %115 {offsets = [0, 0, 0], sizes = [16, 15, 64], strides = [1, 1, 1]} : vector<16x16x64xf32> to vector<16x15x64xf32>
    %133 = tpu.concatenate %131, %132 in 1 : vector<16x1x64xf32>, vector<16x15x64xf32> -> vector<16x16x64xf32>
    %134 = arith.truncf %133 : vector<16x16x64xf32> to vector<16x16x64xbf16>
    %c0_86 = arith.constant 0 : index
    %c0_87 = arith.constant 0 : index
    %c192_88 = arith.constant 192 : index
    %135 = vector.load %arg17[%c0_86, %c0_87, %c192_88] : memref<16x16x608xbf16, #tpu.memory_space<vmem>>, vector<16x16x64xbf16>
    tpu.vector_store %arg17[%c0_86, %c0_87, %c192_88], %134 {strides = array<i32>} : memref<16x16x608xbf16, #tpu.memory_space<vmem>>, vector<16x16x64xbf16>,
    %136 = arith.truncf %115 : vector<16x16x64xf32> to vector<16x16x64xbf16>
    %c0_89 = arith.constant 0 : index
    %c0_90 = arith.constant 0 : index
    %c256_91 = arith.constant 256 : index
    %137 = vector.load %arg17[%c0_89, %c0_90, %c256_91] : memref<16x16x608xbf16, #tpu.memory_space<vmem>>, vector<16x16x64xbf16>
    tpu.vector_store %arg17[%c0_89, %c0_90, %c256_91], %136 {strides = array<i32>} : memref<16x16x608xbf16, #tpu.memory_space<vmem>>, vector<16x16x64xbf16>,
    %cst_92 = arith.constant 0.000000e+00 : f32
    %138 = vector.broadcast %cst_92 : f32 to vector<16x1x64xf32>
    %139 = vector.extract_strided_slice %115 {offsets = [0, 1, 0], sizes = [16, 15, 64], strides = [1, 1, 1]} : vector<16x16x64xf32> to vector<16x15x64xf32>
    %140 = tpu.concatenate %139, %138 in 1 : vector<16x15x64xf32>, vector<16x1x64xf32> -> vector<16x16x64xf32>
    %141 = arith.truncf %140 : vector<16x16x64xf32> to vector<16x16x64xbf16>
    %c0_93 = arith.constant 0 : index
    %c0_94 = arith.constant 0 : index
    %c320 = arith.constant 320 : index
    %142 = vector.load %arg17[%c0_93, %c0_94, %c320] : memref<16x16x608xbf16, #tpu.memory_space<vmem>>, vector<16x16x64xbf16>
    tpu.vector_store %arg17[%c0_93, %c0_94, %c320], %141 {strides = array<i32>} : memref<16x16x608xbf16, #tpu.memory_space<vmem>>, vector<16x16x64xbf16>,
    %cst_95 = arith.constant 0.000000e+00 : f32
    %143 = vector.broadcast %cst_95 : f32 to vector<1x16x64xf32>
    %144 = vector.extract_strided_slice %115 {offsets = [1, 0, 0], sizes = [15, 16, 64], strides = [1, 1, 1]} : vector<16x16x64xf32> to vector<15x16x64xf32>
    %145 = tpu.concatenate %144, %143 in 0 : vector<15x16x64xf32>, vector<1x16x64xf32> -> vector<16x16x64xf32>
    %cst_96 = arith.constant 0.000000e+00 : f32
    %146 = vector.broadcast %cst_96 : f32 to vector<16x1x64xf32>
    %147 = vector.extract_strided_slice %145 {offsets = [0, 0, 0], sizes = [16, 15, 64], strides = [1, 1, 1]} : vector<16x16x64xf32> to vector<16x15x64xf32>
    %148 = tpu.concatenate %146, %147 in 1 : vector<16x1x64xf32>, vector<16x15x64xf32> -> vector<16x16x64xf32>
    %149 = arith.truncf %148 : vector<16x16x64xf32> to vector<16x16x64xbf16>
    %c0_97 = arith.constant 0 : index
    %c0_98 = arith.constant 0 : index
    %c384 = arith.constant 384 : index
    %150 = vector.load %arg17[%c0_97, %c0_98, %c384] : memref<16x16x608xbf16, #tpu.memory_space<vmem>>, vector<16x16x64xbf16>
    tpu.vector_store %arg17[%c0_97, %c0_98, %c384], %149 {strides = array<i32>} : memref<16x16x608xbf16, #tpu.memory_space<vmem>>, vector<16x16x64xbf16>,
    %151 = arith.truncf %145 : vector<16x16x64xf32> to vector<16x16x64xbf16>
    %c0_99 = arith.constant 0 : index
    %c0_100 = arith.constant 0 : index
    %c448 = arith.constant 448 : index
    %152 = vector.load %arg17[%c0_99, %c0_100, %c448] : memref<16x16x608xbf16, #tpu.memory_space<vmem>>, vector<16x16x64xbf16>
    tpu.vector_store %arg17[%c0_99, %c0_100, %c448], %151 {strides = array<i32>} : memref<16x16x608xbf16, #tpu.memory_space<vmem>>, vector<16x16x64xbf16>,
    %cst_101 = arith.constant 0.000000e+00 : f32
    %153 = vector.broadcast %cst_101 : f32 to vector<16x1x64xf32>
    %154 = vector.extract_strided_slice %145 {offsets = [0, 1, 0], sizes = [16, 15, 64], strides = [1, 1, 1]} : vector<16x16x64xf32> to vector<16x15x64xf32>
    %155 = tpu.concatenate %154, %153 in 1 : vector<16x15x64xf32>, vector<16x1x64xf32> -> vector<16x16x64xf32>
    %156 = arith.truncf %155 : vector<16x16x64xf32> to vector<16x16x64xbf16>
    %c0_102 = arith.constant 0 : index
    %c0_103 = arith.constant 0 : index
    %c512 = arith.constant 512 : index
    %157 = vector.load %arg17[%c0_102, %c0_103, %c512] : memref<16x16x608xbf16, #tpu.memory_space<vmem>>, vector<16x16x64xbf16>
    tpu.vector_store %arg17[%c0_102, %c0_103, %c512], %156 {strides = array<i32>} : memref<16x16x608xbf16, #tpu.memory_space<vmem>>, vector<16x16x64xbf16>,
    %158 = vector.shape_cast %0 : vector<256x32xf32> to vector<16x16x32xf32>
    %159 = arith.truncf %158 : vector<16x16x32xf32> to vector<16x16x32xbf16>
    %c0_104 = arith.constant 0 : index
    %c0_105 = arith.constant 0 : index
    %c576 = arith.constant 576 : index
    %160 = vector.load %arg17[%c0_104, %c0_105, %c576] : memref<16x16x608xbf16, #tpu.memory_space<vmem>>, vector<16x16x32xbf16>
    tpu.vector_store %arg17[%c0_104, %c0_105, %c576], %159 {strides = array<i32>} : memref<16x16x608xbf16, #tpu.memory_space<vmem>>, vector<16x16x32xbf16>,
    %c0_106 = arith.constant 0 : index
    %c0_107 = arith.constant 0 : index
    %c0_108 = arith.constant 0 : index
    %161 = vector.load %arg17[%c0_106, %c0_107, %c0_108] : memref<16x16x608xbf16, #tpu.memory_space<vmem>>, vector<16x16x608xbf16>
    %162 = vector.shape_cast %161 : vector<16x16x608xbf16> to vector<256x608xbf16>
    %c0_109 = arith.constant 0 : index
    %c0_110 = arith.constant 0 : index
    %163 = vector.load %arg13[%c0_109, %c0_110] : memref<608x64xbf16, #tpu.memory_space<vmem>>, vector<608x64xbf16>
    %cst_111 = arith.constant dense<0.000000e+00> : vector<256x64xf32>
    %164 = tpu.matmul %162, %163, %cst_111 {dimension_numbers = #tpu.dot_dimension_numbers<[1], [0], [0], [1], [0, 0, 1, 1], [], []>} : vector<256x608xbf16>, vector<608x64xbf16>, vector<256x64xf32> -> vector<256x64xf32>
    %c0_112 = arith.constant 0 : index
    %c0_113 = arith.constant 0 : index
    %165 = vector.load %arg14[%c0_112, %c0_113] : memref<1x64xf32, #tpu.memory_space<vmem>>, vector<1x64xf32>
    %166 = vector.broadcast %165 : vector<1x64xf32> to vector<256x64xf32>
    %167 = arith.addf %164, %166 : vector<256x64xf32>
    %c0_114 = arith.constant 0 : index
    %c0_115 = arith.constant 0 : index
    %168 = vector.load %arg15[%c0_114, %c0_115] : memref<256x64xf32, #tpu.memory_space<vmem>>, vector<256x64xf32>
    tpu.vector_store %arg15[%c0_114, %c0_115], %167 {strides = array<i32>} : memref<256x64xf32, #tpu.memory_space<vmem>>, vector<256x64xf32>,
    return
  }
  func.func @transform_0(%arg0: i32) -> (i32, i32) {
    %c0_i32 = arith.constant 0 : i32
    %c0_i32_0 = arith.constant 0 : i32
    return %arg0, %c0_i32 : i32, i32
  }
  func.func @transform_1(%arg0: i32) -> (i32, i32) {
    %c0_i32 = arith.constant 0 : i32
    %c0_i32_0 = arith.constant 0 : i32
    %c0_i32_1 = arith.constant 0 : i32
    return %c0_i32, %c0_i32_0 : i32, i32
  }
  func.func @transform_2(%arg0: i32) -> (i32, i32) {
    %c0_i32 = arith.constant 0 : i32
    %c0_i32_0 = arith.constant 0 : i32
    %c0_i32_1 = arith.constant 0 : i32
    return %c0_i32, %c0_i32_0 : i32, i32
  }
  func.func @transform_3(%arg0: i32) -> (i32, i32) {
    %c0_i32 = arith.constant 0 : i32
    %c0_i32_0 = arith.constant 0 : i32
    %c0_i32_1 = arith.constant 0 : i32
    return %c0_i32, %c0_i32_0 : i32, i32
  }
  func.func @transform_4(%arg0: i32) -> (i32, i32) {
    %c0_i32 = arith.constant 0 : i32
    %c0_i32_0 = arith.constant 0 : i32
    %c0_i32_1 = arith.constant 0 : i32
    return %c0_i32, %c0_i32_0 : i32, i32
  }
  func.func @transform_5(%arg0: i32) -> (i32, i32) {
    %c0_i32 = arith.constant 0 : i32
    %c0_i32_0 = arith.constant 0 : i32
    %c0_i32_1 = arith.constant 0 : i32
    return %c0_i32, %c0_i32_0 : i32, i32
  }
  func.func @transform_6(%arg0: i32) -> (i32, i32) {
    %c0_i32 = arith.constant 0 : i32
    %c0_i32_0 = arith.constant 0 : i32
    %c0_i32_1 = arith.constant 0 : i32
    return %c0_i32, %c0_i32_0 : i32, i32
  }
  func.func @transform_7(%arg0: i32) -> (i32, i32) {
    %c0_i32 = arith.constant 0 : i32
    %c0_i32_0 = arith.constant 0 : i32
    %c0_i32_1 = arith.constant 0 : i32
    return %c0_i32, %c0_i32_0 : i32, i32
  }
  func.func @transform_8(%arg0: i32) -> (i32, i32) {
    %c0_i32 = arith.constant 0 : i32
    %c0_i32_0 = arith.constant 0 : i32
    %c0_i32_1 = arith.constant 0 : i32
    return %c0_i32, %c0_i32_0 : i32, i32
  }
  func.func @transform_9(%arg0: i32) -> (i32, i32) {
    %c0_i32 = arith.constant 0 : i32
    %c0_i32_0 = arith.constant 0 : i32
    %c0_i32_1 = arith.constant 0 : i32
    return %c0_i32, %c0_i32_0 : i32, i32
  }
  func.func @transform_10(%arg0: i32) -> (i32, i32) {
    %c0_i32 = arith.constant 0 : i32
    %c0_i32_0 = arith.constant 0 : i32
    %c0_i32_1 = arith.constant 0 : i32
    return %c0_i32, %c0_i32_0 : i32, i32
  }
  func.func @transform_11(%arg0: i32) -> (i32, i32) {
    %c0_i32 = arith.constant 0 : i32
    %c0_i32_0 = arith.constant 0 : i32
    %c0_i32_1 = arith.constant 0 : i32
    return %c0_i32, %c0_i32_0 : i32, i32
  }
  func.func @transform_12(%arg0: i32) -> (i32, i32) {
    %c0_i32 = arith.constant 0 : i32
    %c0_i32_0 = arith.constant 0 : i32
    %c0_i32_1 = arith.constant 0 : i32
    return %c0_i32, %c0_i32_0 : i32, i32
  }
  func.func @transform_13(%arg0: i32) -> (i32, i32) {
    %c0_i32 = arith.constant 0 : i32
    %c0_i32_0 = arith.constant 0 : i32
    %c0_i32_1 = arith.constant 0 : i32
    return %c0_i32, %c0_i32_0 : i32, i32
  }
  func.func @transform_14(%arg0: i32) -> (i32, i32) {
    %c0_i32 = arith.constant 0 : i32
    %c0_i32_0 = arith.constant 0 : i32
    return %arg0, %c0_i32 : i32, i32
  }
}

</mosaic_0001>

<llo_original>
// kernel: tpu_custom_call.1
$region0: #{tpu_custom_call.1}
  #allocation0 [shape = 'u32[]', space=smem, size = 0x4, offset = 0x4, fixed_abs, tag = 'smem constant byte address 0x4 - core index']
  #allocation1 [shape = 'u32[144,128]{1,0:T(1,128)}', space=vmem, size = 0x12000, scoped, tag = 'internal scratch']
  #allocation2 [shape = 'bf16[16,16,288]{2,1,0:T(8,128)(2,1)}', space=vmem, size = 0x30000, scoped, tag = 'scratch operand']
  #allocation3 [shape = 'bf16[16,16,608]{2,1,0:T(8,128)(2,1)}', space=vmem, size = 0x50000, scoped, tag = 'scratch operand']
  %s0 = inlined_call_operand.vmem [shape: f32[512,32], index: 0, kind: input, shape index: {}]
  %s1 = inlined_call_operand.vmem [shape: f32[1,64], index: 1, kind: input, shape index: {}]
  %s2 = inlined_call_operand.vmem [shape: f32[1,32], index: 2, kind: input, shape index: {}]
  %s3 = inlined_call_operand.vmem [shape: f32[1,32], index: 3, kind: input, shape index: {}]
  %s4 = inlined_call_operand.vmem [shape: f32[32,32], index: 4, kind: input, shape index: {}]
  %s5 = inlined_call_operand.vmem [shape: f32[32,32], index: 5, kind: input, shape index: {}]
  %s6 = inlined_call_operand.vmem [shape: bf16[288,64], index: 6, kind: input, shape index: {}]
  %s7 = inlined_call_operand.vmem [shape: f32[1,64], index: 7, kind: input, shape index: {}]
  %s8 = inlined_call_operand.vmem [shape: f32[1,64], index: 8, kind: input, shape index: {}]
  %s9 = inlined_call_operand.vmem [shape: f32[1,64], index: 9, kind: input, shape index: {}]
  %s10 = inlined_call_operand.vmem [shape: f32[64,32], index: 10, kind: input, shape index: {}]
  %s11 = inlined_call_operand.vmem [shape: f32[32,64], index: 11, kind: input, shape index: {}]
  %s12 = inlined_call_operand.vmem [shape: bf16[608,64], index: 12, kind: input, shape index: {}]
  %s13 = inlined_call_operand.vmem [shape: f32[1,64], index: 13, kind: input, shape index: {}]
  %s14 = inlined_call_operand.vmem [shape: f32[512,64], index: 14, kind: output, shape index: {}]
  %s15 = sld [smem:[#allocation0]]
  $region89: #{tpu_custom_call.1} parent=0
    _
  %s17 = ssub.s32 1, %s15
  %s18 = scalar_select 0, %s17, %s15
  loop: start=0, step=1, limit=4
  $region2: #{tpu_custom_call.1} parent=0 // loop_pre_header
    _
  $region3: #{tpu_custom_call.1} parent=0 // loop_header
    %s20 = sphi 0, %s24
    %p21 = scmp.ge.s32.totalorder %s20, 4
    %s30 = sphi 0, %s32
    %s33 = sphi 0, %s30
    %s34 = sphi 0, %s33
    %s50 = sphi 0, %s34
    %s54 = sphi 0, %s54
    %s56 = sphi 0, %s54
    %s57 = sphi 0, %s56
    %s71 = sphi 0, %s57
    %s75 = sphi 0, %s75
    %s77 = sphi 0, %s75
    %s78 = sphi 0, %s77
    %s92 = sphi 0, %s78
    %s96 = sphi 0, %s96
    %s98 = sphi 0, %s96
    %s99 = sphi 0, %s98
    %s113 = sphi 0, %s99
    %s117 = sphi 0, %s117
    %s119 = sphi 0, %s117
    %s120 = sphi 0, %s119
    %s134 = sphi 0, %s120
    %s138 = sphi 0, %s138
    %s140 = sphi 0, %s138
    %s141 = sphi 0, %s140
    %s155 = sphi 0, %s141
    %s159 = sphi 0, %s159
    %s161 = sphi 0, %s159
    %s162 = sphi 0, %s161
    %s176 = sphi 0, %s162
    %s180 = sphi 0, %s180
    %s182 = sphi 0, %s180
    %s183 = sphi 0, %s182
    %s197 = sphi 0, %s183
    %s201 = sphi 0, %s201
    %s203 = sphi 0, %s201
    %s204 = sphi 0, %s203
    %s218 = sphi 0, %s204
    %s222 = sphi 0, %s222
    %s224 = sphi 0, %s222
    %s225 = sphi 0, %s224
    %s239 = sphi 0, %s225
    %s243 = sphi 0, %s243
    %s245 = sphi 0, %s243
    %s246 = sphi 0, %s245
    %s260 = sphi 0, %s246
    %s264 = sphi 0, %s264
    %s266 = sphi 0, %s264
    %s267 = sphi 0, %s266
    %s281 = sphi 0, %s267
    %s285 = sphi 0, %s285
    %s287 = sphi 0, %s285
    %s288 = sphi 0, %s287
    %s302 = sphi 0, %s288
    %s306 = sphi 0, %s306
    %s308 = sphi 0, %s306
    %s309 = sphi 0, %s308
    %s323 = sphi 0, %s309
    %s329 = sphi 0, %s331
    %s332 = sphi 0, %s329
    %s333 = sphi 0, %s332
    %s349 = sphi 0, %s333
  $region4: #{tpu_custom_call.1} parent=0 // loop_header_branch
    %23 = sbr.rel (%p21) target = $region8
  $region5: #{tpu_custom_call.1} parent=0 // loop_body
    %s25 = ssub.s32 %s20, 1
    %s26 = ssub.s32 %s20, 2
    %s27 = sadd.s32 %s20, 1
    %s28 = ssub.s32 %s20, %s27
    %p29 = scmp.eq.s32.totalorder %s28, 0
    %s31 = sadd.s32 %s30, 1
    %s32 = scalar_select %p29, %s30, %s31
    %p35 = pneg %p29
    %p36 = scmp.eq.s32.totalorder %s20, 1
    %p37 = por %p35, %p36
    %p38 = scmp.ne.s32.totalorder %s30, %s33
    %p39 = scmp.eq.s32.totalorder %s20, 0
    %p40 = por %p38, %p39
    %p41 = scmp.ne.s32.totalorder %s30, %s33
    %p42 = scmp.eq.s32.totalorder %s25, 1
    %p43 = por %p41, %p42
    %p44 = scmp.ne.s32.totalorder %s33, %s34
    %p45 = scmp.eq.s32.totalorder %s25, 0
    %p46 = por %p44, %p45
    %p47 = scmp.ne.s32.totalorder %s33, %s34
    %p48 = scmp.eq.s32.totalorder %s26, 1
    %p49 = por %p47, %p48
    %p51 = scmp.ne.s32.totalorder %s34, %s50
    %p52 = scmp.eq.s32.totalorder %s26, 0
    %p53 = por %p51, %p52
    %s55 = sadd.s32 %s54, 1
    %p58 = scmp.eq.s32.totalorder %s20, 1
    %p59 = scmp.ne.s32.totalorder %s54, %s56
    %p60 = scmp.eq.s32.totalorder %s20, 0
    %p61 = por %p59, %p60
    %p62 = scmp.ne.s32.totalorder %s54, %s56
    %p63 = scmp.eq.s32.totalorder %s25, 1
    %p64 = por %p62, %p63
    %p65 = scmp.ne.s32.totalorder %s56, %s57
    %p66 = scmp.eq.s32.totalorder %s25, 0
    %p67 = por %p65, %p66
    %p68 = scmp.ne.s32.totalorder %s56, %s57
    %p69 = scmp.eq.s32.totalorder %s26, 1
    %p70 = por %p68, %p69
    %p72 = scmp.ne.s32.totalorder %s57, %s71
    %p73 = scmp.eq.s32.totalorder %s26, 0
    %p74 = por %p72, %p73
    %s76 = sadd.s32 %s75, 1
    %p79 = scmp.eq.s32.totalorder %s20, 1
    %p80 = scmp.ne.s32.totalorder %s75, %s77
    %p81 = scmp.eq.s32.totalorder %s20, 0
    %p82 = por %p80, %p81
    %p83 = scmp.ne.s32.totalorder %s75, %s77
    %p84 = scmp.eq.s32.totalorder %s25, 1
    %p85 = por %p83, %p84
    %p86 = scmp.ne.s32.totalorder %s77, %s78
    %p87 = scmp.eq.s32.totalorder %s25, 0
    %p88 = por %p86, %p87
    %p89 = scmp.ne.s32.totalorder %s77, %s78
    %p90 = scmp.eq.s32.totalorder %s26, 1
    %p91 = por %p89, %p90
    %p93 = scmp.ne.s32.totalorder %s78, %s92
    %p94 = scmp.eq.s32.totalorder %s26, 0
    %p95 = por %p93, %p94
    %s97 = sadd.s32 %s96, 1
    %p100 = scmp.eq.s32.totalorder %s20, 1
    %p101 = scmp.ne.s32.totalorder %s96, %s98
    %p102 = scmp.eq.s32.totalorder %s20, 0
    %p103 = por %p101, %p102
    %p104 = scmp.ne.s32.totalorder %s96, %s98
    %p105 = scmp.eq.s32.totalorder %s25, 1
    %p106 = por %p104, %p105
    %p107 = scmp.ne.s32.totalorder %s98, %s99
    %p108 = scmp.eq.s32.totalorder %s25, 0
    %p109 = por %p107, %p108
    %p110 = scmp.ne.s32.totalorder %s98, %s99
    %p111 = scmp.eq.s32.totalorder %s26, 1
    %p112 = por %p110, %p111
    %p114 = scmp.ne.s32.totalorder %s99, %s113
    %p115 = scmp.eq.s32.totalorder %s26, 0
    %p116 = por %p114, %p115
    %s118 = sadd.s32 %s117, 1
    %p121 = scmp.eq.s32.totalorder %s20, 1
    %p122 = scmp.ne.s32.totalorder %s117, %s119
    %p123 = scmp.eq.s32.totalorder %s20, 0
    %p124 = por %p122, %p123
    %p125 = scmp.ne.s32.totalorder %s117, %s119
    %p126 = scmp.eq.s32.totalorder %s25, 1
    %p127 = por %p125, %p126
    %p128 = scmp.ne.s32.totalorder %s119, %s120
    %p129 = scmp.eq.s32.totalorder %s25, 0
    %p130 = por %p128, %p129
    %p131 = scmp.ne.s32.totalorder %s119, %s120
    %p132 = scmp.eq.s32.totalorder %s26, 1
    %p133 = por %p131, %p132
    %p135 = scmp.ne.s32.totalorder %s120, %s134
    %p136 = scmp.eq.s32.totalorder %s26, 0
    %p137 = por %p135, %p136
    %s139 = sadd.s32 %s138, 1
    %p142 = scmp.eq.s32.totalorder %s20, 1
    %p143 = scmp.ne.s32.totalorder %s138, %s140
    %p144 = scmp.eq.s32.totalorder %s20, 0
    %p145 = por %p143, %p144
    %p146 = scmp.ne.s32.totalorder %s138, %s140
    %p147 = scmp.eq.s32.totalorder %s25, 1
    %p148 = por %p146, %p147
    %p149 = scmp.ne.s32.totalorder %s140, %s141
    %p150 = scmp.eq.s32.totalorder %s25, 0
    %p151 = por %p149, %p150
    %p152 = scmp.ne.s32.totalorder %s140, %s141
    %p153 = scmp.eq.s32.totalorder %s26, 1
    %p154 = por %p152, %p153
    %p156 = scmp.ne.s32.totalorder %s141, %s155
    %p157 = scmp.eq.s32.totalorder %s26, 0
    %p158 = por %p156, %p157
    %s160 = sadd.s32 %s159, 1
    %p163 = scmp.eq.s32.totalorder %s20, 1
    %p164 = scmp.ne.s32.totalorder %s159, %s161
    %p165 = scmp.eq.s32.totalorder %s20, 0
    %p166 = por %p164, %p165
    %p167 = scmp.ne.s32.totalorder %s159, %s161
    %p168 = scmp.eq.s32.totalorder %s25, 1
    %p169 = por %p167, %p168
    %p170 = scmp.ne.s32.totalorder %s161, %s162
    %p171 = scmp.eq.s32.totalorder %s25, 0
    %p172 = por %p170, %p171
    %p173 = scmp.ne.s32.totalorder %s161, %s162
    %p174 = scmp.eq.s32.totalorder %s26, 1
    %p175 = por %p173, %p174
    %p177 = scmp.ne.s32.totalorder %s162, %s176
    %p178 = scmp.eq.s32.totalorder %s26, 0
    %p179 = por %p177, %p178
    %s181 = sadd.s32 %s180, 1
    %p184 = scmp.eq.s32.totalorder %s20, 1
    %p185 = scmp.ne.s32.totalorder %s180, %s182
    %p186 = scmp.eq.s32.totalorder %s20, 0
    %p187 = por %p185, %p186
    %p188 = scmp.ne.s32.totalorder %s180, %s182
    %p189 = scmp.eq.s32.totalorder %s25, 1
    %p190 = por %p188, %p189
    %p191 = scmp.ne.s32.totalorder %s182, %s183
    %p192 = scmp.eq.s32.totalorder %s25, 0
    %p193 = por %p191, %p192
    %p194 = scmp.ne.s32.totalorder %s182, %s183
    %p195 = scmp.eq.s32.totalorder %s26, 1
    %p196 = por %p194, %p195
    %p198 = scmp.ne.s32.totalorder %s183, %s197
    %p199 = scmp.eq.s32.totalorder %s26, 0
    %p200 = por %p198, %p199
    %s202 = sadd.s32 %s201, 1
    %p205 = scmp.eq.s32.totalorder %s20, 1
    %p206 = scmp.ne.s32.totalorder %s201, %s203
    %p207 = scmp.eq.s32.totalorder %s20, 0
    %p208 = por %p206, %p207
    %p209 = scmp.ne.s32.totalorder %s201, %s203
    %p210 = scmp.eq.s32.totalorder %s25, 1
    %p211 = por %p209, %p210
    %p212 = scmp.ne.s32.totalorder %s203, %s204
    %p213 = scmp.eq.s32.totalorder %s25, 0
    %p214 = por %p212, %p213
    %p215 = scmp.ne.s32.totalorder %s203, %s204
    %p216 = scmp.eq.s32.totalorder %s26, 1
    %p217 = por %p215, %p216
    %p219 = scmp.ne.s32.totalorder %s204, %s218
    %p220 = scmp.eq.s32.totalorder %s26, 0
    %p221 = por %p219, %p220
    %s223 = sadd.s32 %s222, 1
    %p226 = scmp.eq.s32.totalorder %s20, 1
    %p227 = scmp.ne.s32.totalorder %s222, %s224
    %p228 = scmp.eq.s32.totalorder %s20, 0
    %p229 = por %p227, %p228
    %p230 = scmp.ne.s32.totalorder %s222, %s224
    %p231 = scmp.eq.s32.totalorder %s25, 1
    %p232 = por %p230, %p231
    %p233 = scmp.ne.s32.totalorder %s224, %s225
    %p234 = scmp.eq.s32.totalorder %s25, 0
    %p235 = por %p233, %p234
    %p236 = scmp.ne.s32.totalorder %s224, %s225
    %p237 = scmp.eq.s32.totalorder %s26, 1
    %p238 = por %p236, %p237
    %p240 = scmp.ne.s32.totalorder %s225, %s239
    %p241 = scmp.eq.s32.totalorder %s26, 0
    %p242 = por %p240, %p241
    %s244 = sadd.s32 %s243, 1
    %p247 = scmp.eq.s32.totalorder %s20, 1
    %p248 = scmp.ne.s32.totalorder %s243, %s245
    %p249 = scmp.eq.s32.totalorder %s20, 0
    %p250 = por %p248, %p249
    %p251 = scmp.ne.s32.totalorder %s243, %s245
    %p252 = scmp.eq.s32.totalorder %s25, 1
    %p253 = por %p251, %p252
    %p254 = scmp.ne.s32.totalorder %s245, %s246
    %p255 = scmp.eq.s32.totalorder %s25, 0
    %p256 = por %p254, %p255
    %p257 = scmp.ne.s32.totalorder %s245, %s246
    %p258 = scmp.eq.s32.totalorder %s26, 1
    %p259 = por %p257, %p258
    %p261 = scmp.ne.s32.totalorder %s246, %s260
    %p262 = scmp.eq.s32.totalorder %s26, 0
    %p263 = por %p261, %p262
    %s265 = sadd.s32 %s264, 1
    %p268 = scmp.eq.s32.totalorder %s20, 1
    %p269 = scmp.ne.s32.totalorder %s264, %s266
    %p270 = scmp.eq.s32.totalorder %s20, 0
    %p271 = por %p269, %p270
    %p272 = scmp.ne.s32.totalorder %s264, %s266
    %p273 = scmp.eq.s32.totalorder %s25, 1
    %p274 = por %p272, %p273
    %p275 = scmp.ne.s32.totalorder %s266, %s267
    %p276 = scmp.eq.s32.totalorder %s25, 0
    %p277 = por %p275, %p276
    %p278 = scmp.ne.s32.totalorder %s266, %s267
    %p279 = scmp.eq.s32.totalorder %s26, 1
    %p280 = por %p278, %p279
    %p282 = scmp.ne.s32.totalorder %s267, %s281
    %p283 = scmp.eq.s32.totalorder %s26, 0
    %p284 = por %p282, %p283
    %s286 = sadd.s32 %s285, 1
    %p289 = scmp.eq.s32.totalorder %s20, 1
    %p290 = scmp.ne.s32.totalorder %s285, %s287
    %p291 = scmp.eq.s32.totalorder %s20, 0
    %p292 = por %p290, %p291
    %p293 = scmp.ne.s32.totalorder %s285, %s287
    %p294 = scmp.eq.s32.totalorder %s25, 1
    %p295 = por %p293, %p294
    %p296 = scmp.ne.s32.totalorder %s287, %s288
    %p297 = scmp.eq.s32.totalorder %s25, 0
    %p298 = por %p296, %p297
    %p299 = scmp.ne.s32.totalorder %s287, %s288
    %p300 = scmp.eq.s32.totalorder %s26, 1
    %p301 = por %p299, %p300
    %p303 = scmp.ne.s32.totalorder %s288, %s302
    %p304 = scmp.eq.s32.totalorder %s26, 0
    %p305 = por %p303, %p304
    %s307 = sadd.s32 %s306, 1
    %p310 = scmp.eq.s32.totalorder %s20, 1
    %p311 = scmp.ne.s32.totalorder %s306, %s308
    %p312 = scmp.eq.s32.totalorder %s20, 0
    %p313 = por %p311, %p312
    %p314 = scmp.ne.s32.totalorder %s306, %s308
    %p315 = scmp.eq.s32.totalorder %s25, 1
    %p316 = por %p314, %p315
    %p317 = scmp.ne.s32.totalorder %s308, %s309
    %p318 = scmp.eq.s32.totalorder %s25, 0
    %p319 = por %p317, %p318
    %p320 = scmp.ne.s32.totalorder %s308, %s309
    %p321 = scmp.eq.s32.totalorder %s26, 1
    %p322 = por %p320, %p321
    %p324 = scmp.ne.s32.totalorder %s309, %s323
    %p325 = scmp.eq.s32.totalorder %s26, 0
    %p326 = por %p324, %p325
    %s327 = ssub.s32 %s20, %s27
    %p328 = scmp.eq.s32.totalorder %s327, 0
    %s330 = sadd.s32 %s329, 1
    %s331 = scalar_select %p328, %s329, %s330
    %p334 = pneg %p328
    %p335 = scmp.eq.s32.totalorder %s20, 1
    %p336 = por %p334, %p335
    %p337 = scmp.ne.s32.totalorder %s329, %s332
    %p338 = scmp.eq.s32.totalorder %s20, 0
    %p339 = por %p337, %p338
    %p340 = scmp.ne.s32.totalorder %s329, %s332
    %p341 = scmp.eq.s32.totalorder %s25, 1
    %p342 = por %p340, %p341
    %p343 = scmp.ne.s32.totalorder %s332, %s333
    %p344 = scmp.eq.s32.totalorder %s25, 0
    %p345 = por %p343, %p344
    %p346 = scmp.ne.s32.totalorder %s332, %s333
    %p347 = scmp.eq.s32.totalorder %s26, 1
    %p348 = por %p346, %p347
    %p350 = scmp.ne.s32.totalorder %s333, %s349
    %p351 = scmp.eq.s32.totalorder %s26, 0
    %p352 = por %p350, %p351
    %p353 = scmp.le.s32.totalorder 1, %s20
    %p354 = scmp.lt.s32.totalorder %s20, 3
    %p355 = pnand %p353, %p354
    %p356 = pneg %p355
    // Predicated region
    $region9: #{tpu_custom_call.1} parent=5 // pred_check
      _
    $region10: #{tpu_custom_call.1} parent=5 // pred_check_branch
      %358 = sbr.rel (%p355) target = $region12
    $region11: #{tpu_custom_call.1} parent=5 // pred_region
      %s359 = ssub.s32 %s20, 1
      // Predicated region
      $region13: #{tpu_custom_call.1} parent=11 // pred_check
        %p360 = pneg %p67
      $region14: #{tpu_custom_call.1} parent=11 // pred_check_branch
        %362 = sbr.rel (%p360) target = $region16
      $region15: #{tpu_custom_call.1} parent=11 // pred_region
        _
      $region16: #{tpu_custom_call.1} parent=11 // pred_fallthru
        _
      // Predicated region
      $region17: #{tpu_custom_call.1} parent=11 // pred_check
        %p363 = pneg %p88
      $region18: #{tpu_custom_call.1} parent=11 // pred_check_branch
        %365 = sbr.rel (%p363) target = $region20
      $region19: #{tpu_custom_call.1} parent=11 // pred_region
        _
      $region20: #{tpu_custom_call.1} parent=11 // pred_fallthru
        _
      // Predicated region
      $region21: #{tpu_custom_call.1} parent=11 // pred_check
        %p366 = pneg %p109
      $region22: #{tpu_custom_call.1} parent=11 // pred_check_branch
        %368 = sbr.rel (%p366) target = $region24
      $region23: #{tpu_custom_call.1} parent=11 // pred_region
        _
      $region24: #{tpu_custom_call.1} parent=11 // pred_fallthru
        _
      // Predicated region
      $region25: #{tpu_custom_call.1} parent=11 // pred_check
        %p369 = pneg %p130
      $region26: #{tpu_custom_call.1} parent=11 // pred_check_branch
        %371 = sbr.rel (%p369) target = $region28
      $region27: #{tpu_custom_call.1} parent=11 // pred_region
        _
      $region28: #{tpu_custom_call.1} parent=11 // pred_fallthru
        _
      // Predicated region
      $region29: #{tpu_custom_call.1} parent=11 // pred_check
        %p372 = pneg %p151
      $region30: #{tpu_custom_call.1} parent=11 // pred_check_branch
        %374 = sbr.rel (%p372) target = $region32
      $region31: #{tpu_custom_call.1} parent=11 // pred_region
        _
      $region32: #{tpu_custom_call.1} parent=11 // pred_fallthru
        _
      // Predicated region
      $region33: #{tpu_custom_call.1} parent=11 // pred_check
        %p375 = pneg %p172
      $region34: #{tpu_custom_call.1} parent=11 // pred_check_branch
        %377 = sbr.rel (%p375) target = $region36
      $region35: #{tpu_custom_call.1} parent=11 // pred_region
        _
      $region36: #{tpu_custom_call.1} parent=11 // pred_fallthru
        _
      // Predicated region
      $region37: #{tpu_custom_call.1} parent=11 // pred_check
        %p378 = pneg %p193
      $region38: #{tpu_custom_call.1} parent=11 // pred_check_branch
        %380 = sbr.rel (%p378) target = $region40
      $region39: #{tpu_custom_call.1} parent=11 // pred_region
        _
      $region40: #{tpu_custom_call.1} parent=11 // pred_fallthru
        _
      // Predicated region
      $region41: #{tpu_custom_call.1} parent=11 // pred_check
        %p381 = pneg %p214
      $region42: #{tpu_custom_call.1} parent=11 // pred_check_branch
        %383 = sbr.rel (%p381) target = $region44
      $region43: #{tpu_custom_call.1} parent=11 // pred_region
        _
      $region44: #{tpu_custom_call.1} parent=11 // pred_fallthru
        _
      // Predicated region
      $region45: #{tpu_custom_call.1} parent=11 // pred_check
        %p384 = pneg %p235
      $region46: #{tpu_custom_call.1} parent=11 // pred_check_branch
        %386 = sbr.rel (%p384) target = $region48
      $region47: #{tpu_custom_call.1} parent=11 // pred_region
        _
      $region48: #{tpu_custom_call.1} parent=11 // pred_fallthru
        _
      // Predicated region
      $region49: #{tpu_custom_call.1} parent=11 // pred_check
        %p387 = pneg %p256
      $region50: #{tpu_custom_call.1} parent=11 // pred_check_branch
        %389 = sbr.rel (%p387) target = $region52
      $region51: #{tpu_custom_call.1} parent=11 // pred_region
        _
      $region52: #{tpu_custom_call.1} parent=11 // pred_fallthru
        _
      // Predicated region
      $region53: #{tpu_custom_call.1} parent=11 // pred_check
        %p390 = pneg %p277
      $region54: #{tpu_custom_call.1} parent=11 // pred_check_branch
        %392 = sbr.rel (%p390) target = $region56
      $region55: #{tpu_custom_call.1} parent=11 // pred_region
        _
      $region56: #{tpu_custom_call.1} parent=11 // pred_fallthru
        _
      // Predicated region
      $region57: #{tpu_custom_call.1} parent=11 // pred_check
        %p393 = pneg %p298
      $region58: #{tpu_custom_call.1} parent=11 // pred_check_branch
        %395 = sbr.rel (%p393) target = $region60
      $region59: #{tpu_custom_call.1} parent=11 // pred_region
        _
      $region60: #{tpu_custom_call.1} parent=11 // pred_fallthru
        _
      // Predicated region
      $region61: #{tpu_custom_call.1} parent=11 // pred_check
        %p396 = pneg %p319
      $region62: #{tpu_custom_call.1} parent=11 // pred_check_branch
        %398 = sbr.rel (%p396) target = $region64
      $region63: #{tpu_custom_call.1} parent=11 // pred_region
        _
      $region64: #{tpu_custom_call.1} parent=11 // pred_fallthru
        _
    $region12: #{tpu_custom_call.1} parent=5 // pred_fallthru
      _
    %p399 = scmp.lt.s32.totalorder %s20, 2
    // Predicated region
    $region65: #{tpu_custom_call.1} parent=5 // pred_check
      %p400 = pneg %p399
    $region66: #{tpu_custom_call.1} parent=5 // pred_check_branch
      %402 = sbr.rel (%p400) target = $region68
    $region67: #{tpu_custom_call.1} parent=5 // pred_region
      // Predicated region
      $region69: #{tpu_custom_call.1} parent=67 // pred_check
        %p403 = pneg %p40
      $region70: #{tpu_custom_call.1} parent=67 // pred_check_branch
        %405 = sbr.rel (%p403) target = $region72
      $region71: #{tpu_custom_call.1} parent=67 // pred_region
        %s406 = smul.u32 32, %s20
        %p407 = scmp.lt.s32.totalorder %s406, 63
        %s408 = scalar_select %p407, %s406, 63
        %s409 = smul.addr %s408, 8
        %s410 = scalar_lea.vmem %s0, %s409
        %s411 = smul.u32 32, %s20
      $region72: #{tpu_custom_call.1} parent=67 // pred_fallthru
        _
    $region68: #{tpu_custom_call.1} parent=5 // pred_fallthru
      _
    %p412 = scmp.le.s32.totalorder 1, %s20
    %p413 = scmp.lt.s32.totalorder %s20, 3
    %p414 = pnand %p412, %p413
    %p415 = pneg %p414
    // Predicated region
    $region73: #{tpu_custom_call.1} parent=5 // pred_check
      _
    $region74: #{tpu_custom_call.1} parent=5 // pred_check_branch
      %417 = sbr.rel (%p414) target = $region76
    $region75: #{tpu_custom_call.1} parent=5 // pred_region
      %s418 = ssub.s32 %s20, 1
      %s419 = smul.u32 32, %s25
      %p420 = scmp.lt.s32.totalorder %s419, 63
      %s421 = scalar_select %p420, %s419, 63
      %s422 = smul.addr %s421, 8
      %s423 = scalar_lea.vmem %s0, %s422
      %p424 = pneg %p46
      %p425 = pneg %p43
      %p426 = pneg %p67
      %p427 = pneg %p64
      %p428 = pneg %p88
      %p429 = pneg %p85
      %p430 = pneg %p109
      %p431 = pneg %p106
      %p432 = pneg %p130
      %p433 = pneg %p127
      %p434 = pneg %p151
      %p435 = pneg %p148
      %p436 = pneg %p172
      %p437 = pneg %p169
      %p438 = pneg %p193
      %p439 = pneg %p190
      %p440 = pneg %p214
      %p441 = pneg %p211
      %p442 = pneg %p235
      %p443 = pneg %p232
      %p444 = pneg %p256
      %p445 = pneg %p253
      %p446 = pneg %p277
      %p447 = pneg %p274
      %p448 = pneg %p298
      %p449 = pneg %p295
      %p450 = pneg %p319
      %p451 = pneg %p316
      %p452 = pneg %p345
      %p453 = pneg %p342
      %s454 = smul.u32 32, %s25
      %p455 = scmp.lt.s32.totalorder %s454, 63
      %s456 = scalar_select %p455, %s454, 63
      %s457 = smul.addr %s456, 8
      %s458 = scalar_lea.vmem %s14, %s457
      %s459 = smul.u32 32, %s25
      %p460 = scmp.lt.s32.totalorder %s459, 63
      %s461 = scalar_select %p460, %s459, 63
      %s462 = smul.addr %s461, 8
      %s463 = scalar_lea.vmem %s0, %s462
      %s464 = smul.u32 32, %s25
      %s465 = smul.u32 32, %s25
      %p466 = scmp.lt.s32.totalorder %s465, 63
      %s467 = scalar_select %p466, %s465, 63
      %s468 = smul.addr %s467, 8
      %s469 = scalar_lea.vmem %s14, %s468
      %s470 = smul.u32 32, %s25
      %v472 = vld [vmem:[%s463] sm:$0xff]
      %v473 = vld [vmem:[%s463 + $0x8] sm:$0xff]
      %v474 = vld [vmem:[%s463 + $0x10] sm:$0xff]
      %v475 = vld [vmem:[%s463 + $0x18] sm:$0xff]
      %v476 = vld [vmem:[%s463 + $0x20] sm:$0xff]
      %v477 = vld [vmem:[%s463 + $0x28] sm:$0xff]
      %v478 = vld [vmem:[%s463 + $0x30] sm:$0xff]
      %v479 = vld [vmem:[%s463 + $0x38] sm:$0xff]
      %v480 = vld [vmem:[%s463 + $0x40] sm:$0xff]
      %v481 = vld [vmem:[%s463 + $0x48] sm:$0xff]
      %v482 = vld [vmem:[%s463 + $0x50] sm:$0xff]
      %v483 = vld [vmem:[%s463 + $0x58] sm:$0xff]
      %v484 = vld [vmem:[%s463 + $0x60] sm:$0xff]
      %v485 = vld [vmem:[%s463 + $0x68] sm:$0xff]
      %v486 = vld [vmem:[%s463 + $0x70] sm:$0xff]
      %v487 = vld [vmem:[%s463 + $0x78] sm:$0xff]
      %v488 = vld [vmem:[%s463 + $0x80] sm:$0xff]
      %v489 = vld [vmem:[%s463 + $0x88] sm:$0xff]
      %v490 = vld [vmem:[%s463 + $0x90] sm:$0xff]
      %v491 = vld [vmem:[%s463 + $0x98] sm:$0xff]
      %v492 = vld [vmem:[%s463 + $0xa0] sm:$0xff]
      %v493 = vld [vmem:[%s463 + $0xa8] sm:$0xff]
      %v494 = vld [vmem:[%s463 + $0xb0] sm:$0xff]
      %v495 = vld [vmem:[%s463 + $0xb8] sm:$0xff]
      %v496 = vld [vmem:[%s463 + $0xc0] sm:$0xff]
      %v497 = vld [vmem:[%s463 + $0xc8] sm:$0xff]
      %v498 = vld [vmem:[%s463 + $0xd0] sm:$0xff]
      %v499 = vld [vmem:[%s463 + $0xd8] sm:$0xff]
      %v500 = vld [vmem:[%s463 + $0xe0] sm:$0xff]
      %v501 = vld [vmem:[%s463 + $0xe8] sm:$0xff]
      %v502 = vld [vmem:[%s463 + $0xf0] sm:$0xff]
      %v503 = vld [vmem:[%s463 + $0xf8] sm:$0xff]
      %v504 = vld [vmem:[%s4] sm:$0xff]
      %v505 = vld [vmem:[%s4 + $0x8] sm:$0xff]
      %v506 = vld [vmem:[%s4 + $0x10] sm:$0xff]
      %v507 = vld [vmem:[%s4 + $0x18] sm:$0xff]
      %v508 = vld [vmem:[%s5] sm:$0xff]
      %v509 = vld [vmem:[%s5 + $0x8] sm:$0xff]
      %v510 = vld [vmem:[%s5 + $0x10] sm:$0xff]
      %v511 = vld [vmem:[%s5 + $0x18] sm:$0xff]
      %v512 = vld [vmem:[%s2] sm:$0x1]
      %v513 = vld [vmem:[%s3] sm:$0x1]
      %vm514 = vcmask 261120
      %v515 = vsel %vm514, %v472, 0.0
      %v516 = vsel %vm514, %v473, 0.0
      %v517 = vadd.f32 %v515, %v516
      %v518 = vsel %vm514, %v474, 0.0
      %v519 = vadd.f32 %v517, %v518
      %v520 = vsel %vm514, %v475, 0.0
      %v521 = vadd.f32 %v519, %v520
      %v522 = vsel %vm514, %v476, 0.0
      %v523 = vadd.f32 %v521, %v522
      %v524 = vsel %vm514, %v477, 0.0
      %v525 = vadd.f32 %v523, %v524
      %v526 = vsel %vm514, %v478, 0.0
      %v527 = vadd.f32 %v525, %v526
      %v528 = vsel %vm514, %v479, 0.0
      %v529 = vadd.f32 %v527, %v528
      %v530 = vsel %vm514, %v480, 0.0
      %v531 = vadd.f32 %v529, %v530
      %v532 = vsel %vm514, %v481, 0.0
      %v533 = vadd.f32 %v531, %v532
      %v534 = vsel %vm514, %v482, 0.0
      %v535 = vadd.f32 %v533, %v534
      %v536 = vsel %vm514, %v483, 0.0
      %v537 = vadd.f32 %v535, %v536
      %v538 = vsel %vm514, %v484, 0.0
      %v539 = vadd.f32 %v537, %v538
      %v540 = vsel %vm514, %v485, 0.0
      %v541 = vadd.f32 %v539, %v540
      %v542 = vsel %vm514, %v486, 0.0
      %v543 = vadd.f32 %v541, %v542
      %v544 = vsel %vm514, %v487, 0.0
      %v545 = vadd.f32 %v543, %v544
      %v546 = vsel %vm514, %v488, 0.0
      %v547 = vadd.f32 %v545, %v546
      %v548 = vsel %vm514, %v489, 0.0
      %v549 = vadd.f32 %v547, %v548
      %v550 = vsel %vm514, %v490, 0.0
      %v551 = vadd.f32 %v549, %v550
      %v552 = vsel %vm514, %v491, 0.0
      %v553 = vadd.f32 %v551, %v552
      %v554 = vsel %vm514, %v492, 0.0
      %v555 = vadd.f32 %v553, %v554
      %v556 = vsel %vm514, %v493, 0.0
      %v557 = vadd.f32 %v555, %v556
      %v558 = vsel %vm514, %v494, 0.0
      %v559 = vadd.f32 %v557, %v558
      %v560 = vsel %vm514, %v495, 0.0
      %v561 = vadd.f32 %v559, %v560
      %v562 = vsel %vm514, %v496, 0.0
      %v563 = vadd.f32 %v561, %v562
      %v564 = vsel %vm514, %v497, 0.0
      %v565 = vadd.f32 %v563, %v564
      %v566 = vsel %vm514, %v498, 0.0
      %v567 = vadd.f32 %v565, %v566
      %v568 = vsel %vm514, %v499, 0.0
      %v569 = vadd.f32 %v567, %v568
      %v570 = vsel %vm514, %v500, 0.0
      %v571 = vadd.f32 %v569, %v570
      %v572 = vsel %vm514, %v501, 0.0
      %v573 = vadd.f32 %v571, %v572
      %v574 = vsel %vm514, %v502, 0.0
      %v575 = vadd.f32 %v573, %v574
      %v576 = vsel %vm514, %v503, 0.0
      %v577 = vadd.f32 %v575, %v576
      %v578 = vrot.slane %v577, 4
      %v579 = vadd.f32 %v577, %v578
      %v580 = vrot.slane %v579, 2
      %v581 = vadd.f32 %v579, %v580
      %v582 = vrot.slane %v581, 1
      %v583 = vadd.f32 %v581, %v582
      %v584 = vrcp.pop 256.0
      %v585 = vmul.f32 %v583, %v584
      %v587 = vsel %vm514, %v585, 0
      %589 = vmatprep.subr.mxu0 0.0
      %590 = vmatpush1.msra.mxu0 0.0
      %591 = vmatprep.subr.mxu0 0.0
      %592 = vmatpush1.msra.mxu0 0.0
      %593 = vmatprep.subr.mxu0 0.0
      %594 = vmatpush1.msra.mxu0 0.0
      %595 = vmatprep.subr.mxu0 0.0
      %596 = vmatpush1.msra.mxu0 0.0
      %597 = vmatprep.subr.mxu0 0.0
      %598 = vmatpush1.msra.mxu0 0.0
      %599 = vmatprep.subr.mxu0 0.0
      %600 = vmatpush1.msra.mxu0 0.0
      %601 = vmatprep.subr.mxu0 0.0
      %602 = vmatpush1.msra.mxu0 0.0
      %603 = vmatprep.subr.mxu0 0.0
      %604 = vmatpush1.msra.mxu0 0.0
      %605 = vmatprep.subr.mxu0 0.0
      %606 = vmatpush1.msra.mxu0 0.0
      %607 = vmatprep.subr.mxu0 0.0
      %608 = vmatpush1.msra.mxu0 0.0
      %609 = vmatprep.subr.mxu0 0.0
      %610 = vmatpush1.msra.mxu0 0.0
      %611 = vmatprep.subr.mxu0 0.0
      %612 = vmatpush1.msra.mxu0 0.0
      %613 = vmatprep.subr.mxu0 0.0
      %614 = vmatpush1.msra.mxu0 %v507
      %615 = vmatprep.subr.mxu0 0.0
      %616 = vmatpush1.msra.mxu0 %v506
      %617 = vmatprep.subr.mxu0 0.0
      %618 = vmatpush1.msra.mxu0 %v505
      %619 = vmatprep.subr.mxu0 0.0
      %620 = vmatpush1.msra.mxu0 %v504
      %621 = vmatprep.subr.mxu0 0.0
      %622 = vmatpush2.msra.mxu0 0.0
      %623 = vmatprep.subr.mxu0 0.0
      %624 = vmatpush2.msra.mxu0 0.0
      %625 = vmatprep.subr.mxu0 0.0
      %626 = vmatpush2.msra.mxu0 0.0
      %627 = vmatprep.subr.mxu0 0.0
      %628 = vmatpush2.msra.mxu0 0.0
      %629 = vmatprep.subr.mxu0 0.0
      %630 = vmatpush2.msra.mxu0 0.0
      %631 = vmatprep.subr.mxu0 0.0
      %632 = vmatpush2.msra.mxu0 0.0
      %633 = vmatprep.subr.mxu0 0.0
      %634 = vmatpush2.msra.mxu0 0.0
      %635 = vmatprep.subr.mxu0 0.0
      %636 = vmatpush2.msra.mxu0 0.0
      %637 = vmatprep.subr.mxu0 0.0
      %638 = vmatpush2.msra.mxu0 0.0
      %639 = vmatprep.subr.mxu0 0.0
      %640 = vmatpush2.msra.mxu0 0.0
      %641 = vmatprep.subr.mxu0 0.0
      %642 = vmatpush2.msra.mxu0 0.0
      %643 = vmatprep.subr.mxu0 0.0
      %644 = vmatpush2.msra.mxu0 0.0
      %645 = vmatprep.subr.mxu0 0.0
      %646 = vmatpush2.msra.mxu0 0.0
      %647 = vmatprep.subr.mxu0 0.0
      %648 = vmatpush2.msra.mxu0 0.0
      %649 = vmatprep.subr.mxu0 0.0
      %650 = vmatpush2.msra.mxu0 0.0
      %651 = vmatprep.subr.mxu0 0.0
      %652 = vmatpush2.msra.mxu0 0.0
      %653 = vmatprep.mubr.f32.mxu0 0.0
      %654 = vmatmul.mubr.f32.gmra.mxu0 %v587
      %v655 = vpop.f32.mrf.mxu0
      %v656 = vadd.f32 0.0, %v655
      %v657 = vpop.f32.mrf.mxu0
      %658 = vdwg.mxu0
      %v660 = vsel %vm514, %v656, 0
      %662 = vmatprep.subr.mxu0 0.0
      %663 = vmatpush1.msra.mxu0 0.0
      %664 = vmatprep.subr.mxu0 0.0
      %665 = vmatpush1.msra.mxu0 0.0
      %666 = vmatprep.subr.mxu0 0.0
      %667 = vmatpush1.msra.mxu0 0.0
      %668 = vmatprep.subr.mxu0 0.0
      %669 = vmatpush1.msra.mxu0 0.0
      %670 = vmatprep.subr.mxu0 0.0
      %671 = vmatpush1.msra.mxu0 0.0
      %672 = vmatprep.subr.mxu0 0.0
      %673 = vmatpush1.msra.mxu0 0.0
      %674 = vmatprep.subr.mxu0 0.0
      %675 = vmatpush1.msra.mxu0 0.0
      %676 = vmatprep.subr.mxu0 0.0
      %677 = vmatpush1.msra.mxu0 0.0
      %678 = vmatprep.subr.mxu0 0.0
      %679 = vmatpush1.msra.mxu0 0.0
      %680 = vmatprep.subr.mxu0 0.0
      %681 = vmatpush1.msra.mxu0 0.0
      %682 = vmatprep.subr.mxu0 0.0
      %683 = vmatpush1.msra.mxu0 0.0
      %684 = vmatprep.subr.mxu0 0.0
      %685 = vmatpush1.msra.mxu0 0.0
      %686 = vmatprep.subr.mxu0 0.0
      %687 = vmatpush1.msra.mxu0 %v511
      %688 = vmatprep.subr.mxu0 0.0
      %689 = vmatpush1.msra.mxu0 %v510
      %690 = vmatprep.subr.mxu0 0.0
      %691 = vmatpush1.msra.mxu0 %v509
      %692 = vmatprep.subr.mxu0 0.0
      %693 = vmatpush1.msra.mxu0 %v508
      %694 = vmatprep.subr.mxu0 0.0
      %695 = vmatpush2.msra.mxu0 0.0
      %696 = vmatprep.subr.mxu0 0.0
      %697 = vmatpush2.msra.mxu0 0.0
      %698 = vmatprep.subr.mxu0 0.0
      %699 = vmatpush2.msra.mxu0 0.0
      %700 = vmatprep.subr.mxu0 0.0
      %701 = vmatpush2.msra.mxu0 0.0
      %702 = vmatprep.subr.mxu0 0.0
      %703 = vmatpush2.msra.mxu0 0.0
      %704 = vmatprep.subr.mxu0 0.0
      %705 = vmatpush2.msra.mxu0 0.0
      %706 = vmatprep.subr.mxu0 0.0
      %707 = vmatpush2.msra.mxu0 0.0
      %708 = vmatprep.subr.mxu0 0.0
      %709 = vmatpush2.msra.mxu0 0.0
      %710 = vmatprep.subr.mxu0 0.0
      %711 = vmatpush2.msra.mxu0 0.0
      %712 = vmatprep.subr.mxu0 0.0
      %713 = vmatpush2.msra.mxu0 0.0
      %714 = vmatprep.subr.mxu0 0.0
      %715 = vmatpush2.msra.mxu0 0.0
      %716 = vmatprep.subr.mxu0 0.0
      %717 = vmatpush2.msra.mxu0 0.0
      %718 = vmatprep.subr.mxu0 0.0
      %719 = vmatpush2.msra.mxu0 0.0
      %720 = vmatprep.subr.mxu0 0.0
      %721 = vmatpush2.msra.mxu0 0.0
      %722 = vmatprep.subr.mxu0 0.0
      %723 = vmatpush2.msra.mxu0 0.0
      %724 = vmatprep.subr.mxu0 0.0
      %725 = vmatpush2.msra.mxu0 0.0
      %726 = vmatprep.mubr.f32.mxu0 0.0
      %727 = vmatmul.mubr.f32.gmra.mxu0 %v660
      %v728 = vpop.f32.mrf.mxu0
      %v729 = vadd.f32 0.0, %v728
      %v730 = vpop.f32.mrf.mxu0
      %731 = vdwg.mxu0
      %v732 = vlaneseq
      %v733 = vshrl.u32 %v732, 7
      %v734 = vsub.s32 0, %v733
      %v735 = vrot.slane %v729, %v734
      %v736 = vsub.f32 %v472, %v735
      %v737 = vsub.f32 %v473, %v735
      %v738 = vsub.f32 %v474, %v735
      %v739 = vsub.f32 %v475, %v735
      %v740 = vsub.f32 %v476, %v735
      %v741 = vsub.f32 %v477, %v735
      %v742 = vsub.f32 %v478, %v735
      %v743 = vsub.f32 %v479, %v735
      %v744 = vsub.f32 %v480, %v735
      %v745 = vsub.f32 %v481, %v735
      %v746 = vsub.f32 %v482, %v735
      %v747 = vsub.f32 %v483, %v735
      %v748 = vsub.f32 %v484, %v735
      %v749 = vsub.f32 %v485, %v735
      %v750 = vsub.f32 %v486, %v735
      %v751 = vsub.f32 %v487, %v735
      %v752 = vsub.f32 %v488, %v735
      %v753 = vsub.f32 %v489, %v735
      %v754 = vsub.f32 %v490, %v735
      %v755 = vsub.f32 %v491, %v735
      %v756 = vsub.f32 %v492, %v735
      %v757 = vsub.f32 %v493, %v735
      %v758 = vsub.f32 %v494, %v735
      %v759 = vsub.f32 %v495, %v735
      %v760 = vsub.f32 %v496, %v735
      %v761 = vsub.f32 %v497, %v735
      %v762 = vsub.f32 %v498, %v735
      %v763 = vsub.f32 %v499, %v735
      %v764 = vsub.f32 %v500, %v735
      %v765 = vsub.f32 %v501, %v735
      %v766 = vsub.f32 %v502, %v735
      %v767 = vsub.f32 %v503, %v735
      %v768 = vmul.f32 %v736, %v736
      %v769 = vmul.f32 %v737, %v737
      %v770 = vmul.f32 %v738, %v738
      %v771 = vmul.f32 %v739, %v739
      %v772 = vmul.f32 %v740, %v740
      %v773 = vmul.f32 %v741, %v741
      %v774 = vmul.f32 %v742, %v742
      %v775 = vmul.f32 %v743, %v743
      %v776 = vmul.f32 %v744, %v744
      %v777 = vmul.f32 %v745, %v745
      %v778 = vmul.f32 %v746, %v746
      %v779 = vmul.f32 %v747, %v747
      %v780 = vmul.f32 %v748, %v748
      %v781 = vmul.f32 %v749, %v749
      %v782 = vmul.f32 %v750, %v750
      %v783 = vmul.f32 %v751, %v751
      %v784 = vmul.f32 %v752, %v752
      %v785 = vmul.f32 %v753, %v753
      %v786 = vmul.f32 %v754, %v754
      %v787 = vmul.f32 %v755, %v755
      %v788 = vmul.f32 %v756, %v756
      %v789 = vmul.f32 %v757, %v757
      %v790 = vmul.f32 %v758, %v758
      %v791 = vmul.f32 %v759, %v759
      %v792 = vmul.f32 %v760, %v760
      %v793 = vmul.f32 %v761, %v761
      %v794 = vmul.f32 %v762, %v762
      %v795 = vmul.f32 %v763, %v763
      %v796 = vmul.f32 %v764, %v764
      %v797 = vmul.f32 %v765, %v765
      %v798 = vmul.f32 %v766, %v766
      %v799 = vmul.f32 %v767, %v767
      %v800 = vsel %vm514, %v768, 0.0
      %v801 = vsel %vm514, %v769, 0.0
      %v802 = vadd.f32 %v800, %v801
      %v803 = vsel %vm514, %v770, 0.0
      %v804 = vadd.f32 %v802, %v803
      %v805 = vsel %vm514, %v771, 0.0
      %v806 = vadd.f32 %v804, %v805
      %v807 = vsel %vm514, %v772, 0.0
      %v808 = vadd.f32 %v806, %v807
      %v809 = vsel %vm514, %v773, 0.0
      %v810 = vadd.f32 %v808, %v809
      %v811 = vsel %vm514, %v774, 0.0
      %v812 = vadd.f32 %v810, %v811
      %v813 = vsel %vm514, %v775, 0.0
      %v814 = vadd.f32 %v812, %v813
      %v815 = vsel %vm514, %v776, 0.0
      %v816 = vadd.f32 %v814, %v815
      %v817 = vsel %vm514, %v777, 0.0
      %v818 = vadd.f32 %v816, %v817
      %v819 = vsel %vm514, %v778, 0.0
      %v820 = vadd.f32 %v818, %v819
      %v821 = vsel %vm514, %v779, 0.0
      %v822 = vadd.f32 %v820, %v821
      %v823 = vsel %vm514, %v780, 0.0
      %v824 = vadd.f32 %v822, %v823
      %v825 = vsel %vm514, %v781, 0.0
      %v826 = vadd.f32 %v824, %v825
      %v827 = vsel %vm514, %v782, 0.0
      %v828 = vadd.f32 %v826, %v827
      %v829 = vsel %vm514, %v783, 0.0
      %v830 = vadd.f32 %v828, %v829
      %v831 = vsel %vm514, %v784, 0.0
      %v832 = vadd.f32 %v830, %v831
      %v833 = vsel %vm514, %v785, 0.0
      %v834 = vadd.f32 %v832, %v833
      %v835 = vsel %vm514, %v786, 0.0
      %v836 = vadd.f32 %v834, %v835
      %v837 = vsel %vm514, %v787, 0.0
      %v838 = vadd.f32 %v836, %v837
      %v839 = vsel %vm514, %v788, 0.0
      %v840 = vadd.f32 %v838, %v839
      %v841 = vsel %vm514, %v789, 0.0
      %v842 = vadd.f32 %v840, %v841
      %v843 = vsel %vm514, %v790, 0.0
      %v844 = vadd.f32 %v842, %v843
      %v845 = vsel %vm514, %v791, 0.0
      %v846 = vadd.f32 %v844, %v845
      %v847 = vsel %vm514, %v792, 0.0
      %v848 = vadd.f32 %v846, %v847
      %v849 = vsel %vm514, %v793, 0.0
      %v850 = vadd.f32 %v848, %v849
      %v851 = vsel %vm514, %v794, 0.0
      %v852 = vadd.f32 %v850, %v851
      %v853 = vsel %vm514, %v795, 0.0
      %v854 = vadd.f32 %v852, %v853
      %v855 = vsel %vm514, %v796, 0.0
      %v856 = vadd.f32 %v854, %v855
      %v857 = vsel %vm514, %v797, 0.0
      %v858 = vadd.f32 %v856, %v857
      %v859 = vsel %vm514, %v798, 0.0
      %v860 = vadd.f32 %v858, %v859
      %v861 = vsel %vm514, %v799, 0.0
      %v862 = vadd.f32 %v860, %v861
      %v863 = vrot.slane %v862, 4
      %v864 = vadd.f32 %v862, %v863
      %v865 = vrot.slane %v864, 2
      %v866 = vadd.f32 %v864, %v865
      %v867 = vrot.slane %v866, 1
      %v868 = vadd.f32 %v866, %v867
      %v869 = vmul.f32 %v868, %v584
      %v871 = vsel %vm514, %v869, 0
      %873 = vmatprep.subr.mxu0 0.0
      %874 = vmatpush1.msra.mxu0 0.0
      %875 = vmatprep.subr.mxu0 0.0
      %876 = vmatpush1.msra.mxu0 0.0
      %877 = vmatprep.subr.mxu0 0.0
      %878 = vmatpush1.msra.mxu0 0.0
      %879 = vmatprep.subr.mxu0 0.0
      %880 = vmatpush1.msra.mxu0 0.0
      %881 = vmatprep.subr.mxu0 0.0
      %882 = vmatpush1.msra.mxu0 0.0
      %883 = vmatprep.subr.mxu0 0.0
      %884 = vmatpush1.msra.mxu0 0.0
      %885 = vmatprep.subr.mxu0 0.0
      %886 = vmatpush1.msra.mxu0 0.0
      %887 = vmatprep.subr.mxu0 0.0
      %888 = vmatpush1.msra.mxu0 0.0
      %889 = vmatprep.subr.mxu0 0.0
      %890 = vmatpush1.msra.mxu0 0.0
      %891 = vmatprep.subr.mxu0 0.0
      %892 = vmatpush1.msra.mxu0 0.0
      %893 = vmatprep.subr.mxu0 0.0
      %894 = vmatpush1.msra.mxu0 0.0
      %895 = vmatprep.subr.mxu0 0.0
      %896 = vmatpush1.msra.mxu0 0.0
      %897 = vmatprep.subr.mxu0 0.0
      %898 = vmatpush1.msra.mxu0 %v507
      %899 = vmatprep.subr.mxu0 0.0
      %900 = vmatpush1.msra.mxu0 %v506
      %901 = vmatprep.subr.mxu0 0.0
      %902 = vmatpush1.msra.mxu0 %v505
      %903 = vmatprep.subr.mxu0 0.0
      %904 = vmatpush1.msra.mxu0 %v504
      %905 = vmatprep.subr.mxu0 0.0
      %906 = vmatpush2.msra.mxu0 0.0
      %907 = vmatprep.subr.mxu0 0.0
      %908 = vmatpush2.msra.mxu0 0.0
      %909 = vmatprep.subr.mxu0 0.0
      %910 = vmatpush2.msra.mxu0 0.0
      %911 = vmatprep.subr.mxu0 0.0
      %912 = vmatpush2.msra.mxu0 0.0
      %913 = vmatprep.subr.mxu0 0.0
      %914 = vmatpush2.msra.mxu0 0.0
      %915 = vmatprep.subr.mxu0 0.0
      %916 = vmatpush2.msra.mxu0 0.0
      %917 = vmatprep.subr.mxu0 0.0
      %918 = vmatpush2.msra.mxu0 0.0
      %919 = vmatprep.subr.mxu0 0.0
      %920 = vmatpush2.msra.mxu0 0.0
      %921 = vmatprep.subr.mxu0 0.0
      %922 = vmatpush2.msra.mxu0 0.0
      %923 = vmatprep.subr.mxu0 0.0
      %924 = vmatpush2.msra.mxu0 0.0
      %925 = vmatprep.subr.mxu0 0.0
      %926 = vmatpush2.msra.mxu0 0.0
      %927 = vmatprep.subr.mxu0 0.0
      %928 = vmatpush2.msra.mxu0 0.0
      %929 = vmatprep.subr.mxu0 0.0
      %930 = vmatpush2.msra.mxu0 0.0
      %931 = vmatprep.subr.mxu0 0.0
      %932 = vmatpush2.msra.mxu0 0.0
      %933 = vmatprep.subr.mxu0 0.0
      %934 = vmatpush2.msra.mxu0 0.0
      %935 = vmatprep.subr.mxu0 0.0
      %936 = vmatpush2.msra.mxu0 0.0
      %937 = vmatprep.mubr.f32.mxu0 0.0
      %938 = vmatmul.mubr.f32.gmra.mxu0 %v871
      %v939 = vpop.f32.mrf.mxu0
      %v940 = vadd.f32 0.0, %v939
      %v941 = vpop.f32.mrf.mxu0
      %942 = vdwg.mxu0
      %v944 = vsel %vm514, %v940, 0
      %946 = vmatprep.subr.mxu0 0.0
      %947 = vmatpush1.msra.mxu0 0.0
      %948 = vmatprep.subr.mxu0 0.0
      %949 = vmatpush1.msra.mxu0 0.0
      %950 = vmatprep.subr.mxu0 0.0
      %951 = vmatpush1.msra.mxu0 0.0
      %952 = vmatprep.subr.mxu0 0.0
      %953 = vmatpush1.msra.mxu0 0.0
      %954 = vmatprep.subr.mxu0 0.0
      %955 = vmatpush1.msra.mxu0 0.0
      %956 = vmatprep.subr.mxu0 0.0
      %957 = vmatpush1.msra.mxu0 0.0
      %958 = vmatprep.subr.mxu0 0.0
      %959 = vmatpush1.msra.mxu0 0.0
      %960 = vmatprep.subr.mxu0 0.0
      %961 = vmatpush1.msra.mxu0 0.0
      %962 = vmatprep.subr.mxu0 0.0
      %963 = vmatpush1.msra.mxu0 0.0
      %964 = vmatprep.subr.mxu0 0.0
      %965 = vmatpush1.msra.mxu0 0.0
      %966 = vmatprep.subr.mxu0 0.0
      %967 = vmatpush1.msra.mxu0 0.0
      %968 = vmatprep.subr.mxu0 0.0
      %969 = vmatpush1.msra.mxu0 0.0
      %970 = vmatprep.subr.mxu0 0.0
      %971 = vmatpush1.msra.mxu0 %v511
      %972 = vmatprep.subr.mxu0 0.0
      %973 = vmatpush1.msra.mxu0 %v510
      %974 = vmatprep.subr.mxu0 0.0
      %975 = vmatpush1.msra.mxu0 %v509
      %976 = vmatprep.subr.mxu0 0.0
      %977 = vmatpush1.msra.mxu0 %v508
      %978 = vmatprep.subr.mxu0 0.0
      %979 = vmatpush2.msra.mxu0 0.0
      %980 = vmatprep.subr.mxu0 0.0
      %981 = vmatpush2.msra.mxu0 0.0
      %982 = vmatprep.subr.mxu0 0.0
      %983 = vmatpush2.msra.mxu0 0.0
      %984 = vmatprep.subr.mxu0 0.0
      %985 = vmatpush2.msra.mxu0 0.0
      %986 = vmatprep.subr.mxu0 0.0
      %987 = vmatpush2.msra.mxu0 0.0
      %988 = vmatprep.subr.mxu0 0.0
      %989 = vmatpush2.msra.mxu0 0.0
      %990 = vmatprep.subr.mxu0 0.0
      %991 = vmatpush2.msra.mxu0 0.0
      %992 = vmatprep.subr.mxu0 0.0
      %993 = vmatpush2.msra.mxu0 0.0
      %994 = vmatprep.subr.mxu0 0.0
      %995 = vmatpush2.msra.mxu0 0.0
      %996 = vmatprep.subr.mxu0 0.0
      %997 = vmatpush2.msra.mxu0 0.0
      %998 = vmatprep.subr.mxu0 0.0
      %999 = vmatpush2.msra.mxu0 0.0
      %1000 = vmatprep.subr.mxu0 0.0
      %1001 = vmatpush2.msra.mxu0 0.0
      %1002 = vmatprep.subr.mxu0 0.0
      %1003 = vmatpush2.msra.mxu0 0.0
      %1004 = vmatprep.subr.mxu0 0.0
      %1005 = vmatpush2.msra.mxu0 0.0
      %1006 = vmatprep.subr.mxu0 0.0
      %1007 = vmatpush2.msra.mxu0 0.0
      %1008 = vmatprep.subr.mxu0 0.0
      %1009 = vmatpush2.msra.mxu0 0.0
      %1010 = vmatprep.mubr.f32.mxu0 0.0
      %1011 = vmatmul.mubr.f32.gmra.mxu0 %v944
      %v1012 = vpop.f32.mrf.mxu0
      %v1013 = vadd.f32 1e-05, %v1012
      %v1014 = vpop.f32.mrf.mxu0
      %1015 = vdwg.mxu0
      %v1016 = vrsqrt.pop %v1013
      %v1017 = vmul.f32 %v1016, %v512
      %v1018 = vlaneseq
      %v1019 = vshrl.u32 %v1018, 7
      %v1020 = vsub.s32 0, %v1019
      %v1021 = vrot.slane %v1017, %v1020
      %v1022 = vmul.f32 %v736, %v1021
      %v1023 = vmul.f32 %v737, %v1021
      %v1024 = vmul.f32 %v738, %v1021
      %v1025 = vmul.f32 %v739, %v1021
      %v1026 = vmul.f32 %v740, %v1021
      %v1027 = vmul.f32 %v741, %v1021
      %v1028 = vmul.f32 %v742, %v1021
      %v1029 = vmul.f32 %v743, %v1021
      %v1030 = vmul.f32 %v744, %v1021
      %v1031 = vmul.f32 %v745, %v1021
      %v1032 = vmul.f32 %v746, %v1021
      %v1033 = vmul.f32 %v747, %v1021
      %v1034 = vmul.f32 %v748, %v1021
      %v1035 = vmul.f32 %v749, %v1021
      %v1036 = vmul.f32 %v750, %v1021
      %v1037 = vmul.f32 %v751, %v1021
      %v1038 = vmul.f32 %v752, %v1021
      %v1039 = vmul.f32 %v753, %v1021
      %v1040 = vmul.f32 %v754, %v1021
      %v1041 = vmul.f32 %v755, %v1021
      %v1042 = vmul.f32 %v756, %v1021
      %v1043 = vmul.f32 %v757, %v1021
      %v1044 = vmul.f32 %v758, %v1021
      %v1045 = vmul.f32 %v759, %v1021
      %v1046 = vmul.f32 %v760, %v1021
      %v1047 = vmul.f32 %v761, %v1021
      %v1048 = vmul.f32 %v762, %v1021
      %v1049 = vmul.f32 %v763, %v1021
      %v1050 = vmul.f32 %v764, %v1021
      %v1051 = vmul.f32 %v765, %v1021
      %v1052 = vmul.f32 %v766, %v1021
      %v1053 = vmul.f32 %v767, %v1021
      %v1055 = vlaneseq
      %v1056 = vshrl.u32 %v1055, 7
      %v1057 = vsub.s32 0, %v1056
      %v1058 = vrot.slane %v513, %v1057
      %v1060 = vadd.f32 %v1022, %v1058
      %v1061 = vadd.f32 %v1023, %v1058
      %v1062 = vadd.f32 %v1024, %v1058
      %v1063 = vadd.f32 %v1025, %v1058
      %v1064 = vadd.f32 %v1026, %v1058
      %v1065 = vadd.f32 %v1027, %v1058
      %v1066 = vadd.f32 %v1028, %v1058
      %v1067 = vadd.f32 %v1029, %v1058
      %v1068 = vadd.f32 %v1030, %v1058
      %v1069 = vadd.f32 %v1031, %v1058
      %v1070 = vadd.f32 %v1032, %v1058
      %v1071 = vadd.f32 %v1033, %v1058
      %v1072 = vadd.f32 %v1034, %v1058
      %v1073 = vadd.f32 %v1035, %v1058
      %v1074 = vadd.f32 %v1036, %v1058
      %v1075 = vadd.f32 %v1037, %v1058
      %v1076 = vadd.f32 %v1038, %v1058
      %v1077 = vadd.f32 %v1039, %v1058
      %v1078 = vadd.f32 %v1040, %v1058
      %v1079 = vadd.f32 %v1041, %v1058
      %v1080 = vadd.f32 %v1042, %v1058
      %v1081 = vadd.f32 %v1043, %v1058
      %v1082 = vadd.f32 %v1044, %v1058
      %v1083 = vadd.f32 %v1045, %v1058
      %v1084 = vadd.f32 %v1046, %v1058
      %v1085 = vadd.f32 %v1047, %v1058
      %v1086 = vadd.f32 %v1048, %v1058
      %v1087 = vadd.f32 %v1049, %v1058
      %v1088 = vadd.f32 %v1050, %v1058
      %v1089 = vadd.f32 %v1051, %v1058
      %v1090 = vadd.f32 %v1052, %v1058
      %v1091 = vadd.f32 %v1053, %v1058
      %vm1123 = vcmask 1040384
      %v1124 = vrot.slane 0.0, 7
      %v1125 = vsel %vm1123, %v1124, %v1124
      %v1126 = vrot.slane %v1060, 7
      %v1127 = vrot.slane %v1061, 7
      %v1128 = vsel %vm1123, %v1126, %v1127
      %v1129 = vrot.slane %v1062, 7
      %v1130 = vrot.slane %v1063, 7
      %v1131 = vsel %vm1123, %v1129, %v1130
      %v1132 = vrot.slane %v1064, 7
      %v1133 = vrot.slane %v1065, 7
      %v1134 = vsel %vm1123, %v1132, %v1133
      %v1135 = vrot.slane %v1066, 7
      %v1136 = vrot.slane %v1067, 7
      %v1137 = vsel %vm1123, %v1135, %v1136
      %v1138 = vrot.slane %v1068, 7
      %v1139 = vrot.slane %v1069, 7
      %v1140 = vsel %vm1123, %v1138, %v1139
      %v1141 = vrot.slane %v1070, 7
      %v1142 = vrot.slane %v1071, 7
      %v1143 = vsel %vm1123, %v1141, %v1142
      %v1144 = vrot.slane %v1072, 7
      %v1145 = vrot.slane %v1073, 7
      %v1146 = vsel %vm1123, %v1144, %v1145
      %v1147 = vrot.slane %v1074, 7
      %v1148 = vrot.slane %v1075, 7
      %v1149 = vsel %vm1123, %v1147, %v1148
      %v1150 = vrot.slane %v1076, 7
      %v1151 = vrot.slane %v1077, 7
      %v1152 = vsel %vm1123, %v1150, %v1151
      %v1153 = vrot.slane %v1078, 7
      %v1154 = vrot.slane %v1079, 7
      %v1155 = vsel %vm1123, %v1153, %v1154
      %v1156 = vrot.slane %v1080, 7
      %v1157 = vrot.slane %v1081, 7
      %v1158 = vsel %vm1123, %v1156, %v1157
      %v1159 = vrot.slane %v1082, 7
      %v1160 = vrot.slane %v1083, 7
      %v1161 = vsel %vm1123, %v1159, %v1160
      %v1162 = vrot.slane %v1084, 7
      %v1163 = vrot.slane %v1085, 7
      %v1164 = vsel %vm1123, %v1162, %v1163
      %v1165 = vrot.slane %v1086, 7
      %v1166 = vrot.slane %v1087, 7
      %v1167 = vsel %vm1123, %v1165, %v1166
      %v1168 = vrot.slane %v1088, 7
      %v1169 = vrot.slane %v1089, 7
      %v1170 = vsel %vm1123, %v1168, %v1169
      %v1203 = vsel %vm1123, 0.0, %v1124
      %v1204 = vsel %vm1123, 0.0, %v1126
      %v1205 = vsel %vm1123, 0.0, %v1129
      %v1206 = vsel %vm1123, 0.0, %v1132
      %v1207 = vsel %vm1123, 0.0, %v1135
      %v1208 = vsel %vm1123, 0.0, %v1138
      %v1209 = vsel %vm1123, 0.0, %v1141
      %v1210 = vsel %vm1123, 0.0, %v1144
      %v1211 = vsel %vm1123, 0.0, %v1147
      %v1212 = vsel %vm1123, 0.0, %v1150
      %v1213 = vsel %vm1123, 0.0, %v1153
      %v1214 = vsel %vm1123, 0.0, %v1156
      %v1215 = vsel %vm1123, 0.0, %v1159
      %v1216 = vsel %vm1123, 0.0, %v1162
      %v1217 = vsel %vm1123, 0.0, %v1165
      %v1218 = vsel %vm1123, 0.0, %v1168
      %v1219 = vpack.c.bf16 %v1125, %v1203
      %v1220 = vpack.c.bf16 %v1128, %v1204
      %v1221 = vpack.c.bf16 %v1131, %v1205
      %v1222 = vpack.c.bf16 %v1134, %v1206
      %v1223 = vpack.c.bf16 %v1137, %v1207
      %v1224 = vpack.c.bf16 %v1140, %v1208
      %v1225 = vpack.c.bf16 %v1143, %v1209
      %v1226 = vpack.c.bf16 %v1146, %v1210
      %v1227 = vpack.c.bf16 %v1149, %v1211
      %v1228 = vpack.c.bf16 %v1152, %v1212
      %v1229 = vpack.c.bf16 %v1155, %v1213
      %v1230 = vpack.c.bf16 %v1158, %v1214
      %v1231 = vpack.c.bf16 %v1161, %v1215
      %v1232 = vpack.c.bf16 %v1164, %v1216
      %v1233 = vpack.c.bf16 %v1167, %v1217
      %v1234 = vpack.c.bf16 %v1170, %v1218
      %v1251 = vunpack.c.l.b16 %v1219
      %v1252 = vunpack.c.h.b16 %v1219
      %v1253 = vunpack.c.l.b16 %v1220
      %v1254 = vunpack.c.h.b16 %v1220
      %v1255 = vunpack.c.l.b16 %v1221
      %v1256 = vunpack.c.h.b16 %v1221
      %v1257 = vunpack.c.l.b16 %v1222
      %v1258 = vunpack.c.h.b16 %v1222
      %v1259 = vunpack.c.l.b16 %v1223
      %v1260 = vunpack.c.h.b16 %v1223
      %v1261 = vunpack.c.l.b16 %v1224
      %v1262 = vunpack.c.h.b16 %v1224
      %v1263 = vunpack.c.l.b16 %v1225
      %v1264 = vunpack.c.h.b16 %v1225
      %v1265 = vunpack.c.l.b16 %v1226
      %v1266 = vunpack.c.h.b16 %v1226
      %v1267 = vunpack.c.l.b16 %v1227
      %v1268 = vunpack.c.h.b16 %v1227
      %v1269 = vunpack.c.l.b16 %v1228
      %v1270 = vunpack.c.h.b16 %v1228
      %v1271 = vunpack.c.l.b16 %v1229
      %v1272 = vunpack.c.h.b16 %v1229
      %v1273 = vunpack.c.l.b16 %v1230
      %v1274 = vunpack.c.h.b16 %v1230
      %v1275 = vunpack.c.l.b16 %v1231
      %v1276 = vunpack.c.h.b16 %v1231
      %v1277 = vunpack.c.l.b16 %v1232
      %v1278 = vunpack.c.h.b16 %v1232
      %v1279 = vunpack.c.l.b16 %v1233
      %v1280 = vunpack.c.h.b16 %v1233
      %v1281 = vunpack.c.l.b16 %v1234
      %v1282 = vunpack.c.h.b16 %v1234
      %v1283 = vpack.c.b16 %v1251, %v1251
      %v1284 = vpack.c.b16 %v1252, %v1252
      %v1285 = vpack.c.b16 %v1253, %v1253
      %v1286 = vpack.c.b16 %v1254, %v1254
      %v1287 = vpack.c.b16 %v1255, %v1255
      %v1288 = vpack.c.b16 %v1256, %v1256
      %v1289 = vpack.c.b16 %v1257, %v1257
      %v1290 = vpack.c.b16 %v1258, %v1258
      %v1291 = vpack.c.b16 %v1259, %v1259
      %v1292 = vpack.c.b16 %v1260, %v1260
      %v1293 = vpack.c.b16 %v1261, %v1261
      %v1294 = vpack.c.b16 %v1262, %v1262
      %v1295 = vpack.c.b16 %v1263, %v1263
      %v1296 = vpack.c.b16 %v1264, %v1264
      %v1297 = vpack.c.b16 %v1265, %v1265
      %v1298 = vpack.c.b16 %v1266, %v1266
      %v1299 = vpack.c.b16 %v1267, %v1267
      %v1300 = vpack.c.b16 %v1268, %v1268
      %v1301 = vpack.c.b16 %v1269, %v1269
      %v1302 = vpack.c.b16 %v1270, %v1270
      %v1303 = vpack.c.b16 %v1271, %v1271
      %v1304 = vpack.c.b16 %v1272, %v1272
      %v1305 = vpack.c.b16 %v1273, %v1273
      %v1306 = vpack.c.b16 %v1274, %v1274
      %v1307 = vpack.c.b16 %v1275, %v1275
      %v1308 = vpack.c.b16 %v1276, %v1276
      %v1309 = vpack.c.b16 %v1277, %v1277
      %v1310 = vpack.c.b16 %v1278, %v1278
      %v1311 = vpack.c.b16 %v1279, %v1279
      %v1312 = vpack.c.b16 %v1280, %v1280
      %v1313 = vpack.c.b16 %v1281, %v1281
      %v1314 = vpack.c.b16 %v1282, %v1282
      %vm1347 = vcmask 257024
      %1348 = vst.msk [vmem:[#allocation2] sm:$0xf] %vm1347, %v1283
      %1349 = vst.msk [vmem:[#allocation2 + $0xc] sm:$0xf] %vm1347, %v1284
      %1350 = vst.msk [vmem:[#allocation2 + $0x18] sm:$0xf] %vm1347, %v1285
      %1351 = vst.msk [vmem:[#allocation2 + $0x24] sm:$0xf] %vm1347, %v1286
      %1352 = vst.msk [vmem:[#allocation2 + $0x30] sm:$0xf] %vm1347, %v1287
      %1353 = vst.msk [vmem:[#allocation2 + $0x3c] sm:$0xf] %vm1347, %v1288
      %1354 = vst.msk [vmem:[#allocation2 + $0x48] sm:$0xf] %vm1347, %v1289
      %1355 = vst.msk [vmem:[#allocation2 + $0x54] sm:$0xf] %vm1347, %v1290
      %1356 = vst.msk [vmem:[#allocation2 + $0x60] sm:$0xf] %vm1347, %v1291
      %1357 = vst.msk [vmem:[#allocation2 + $0x6c] sm:$0xf] %vm1347, %v1292
      %1358 = vst.msk [vmem:[#allocation2 + $0x78] sm:$0xf] %vm1347, %v1293
      %1359 = vst.msk [vmem:[#allocation2 + $0x84] sm:$0xf] %vm1347, %v1294
      %1360 = vst.msk [vmem:[#allocation2 + $0x90] sm:$0xf] %vm1347, %v1295
      %1361 = vst.msk [vmem:[#allocation2 + $0x9c] sm:$0xf] %vm1347, %v1296
      %1362 = vst.msk [vmem:[#allocation2 + $0xa8] sm:$0xf] %vm1347, %v1297
      %1363 = vst.msk [vmem:[#allocation2 + $0xb4] sm:$0xf] %vm1347, %v1298
      %1364 = vst.msk [vmem:[#allocation2 + $0xc0] sm:$0xf] %vm1347, %v1299
      %1365 = vst.msk [vmem:[#allocation2 + $0xcc] sm:$0xf] %vm1347, %v1300
      %1366 = vst.msk [vmem:[#allocation2 + $0xd8] sm:$0xf] %vm1347, %v1301
      %1367 = vst.msk [vmem:[#allocation2 + $0xe4] sm:$0xf] %vm1347, %v1302
      %1368 = vst.msk [vmem:[#allocation2 + $0xf0] sm:$0xf] %vm1347, %v1303
      %1369 = vst.msk [vmem:[#allocation2 + $0xfc] sm:$0xf] %vm1347, %v1304
      %1370 = vst.msk [vmem:[#allocation2 + $0x108] sm:$0xf] %vm1347, %v1305
      %1371 = vst.msk [vmem:[#allocation2 + $0x114] sm:$0xf] %vm1347, %v1306
      %1372 = vst.msk [vmem:[#allocation2 + $0x120] sm:$0xf] %vm1347, %v1307
      %1373 = vst.msk [vmem:[#allocation2 + $0x12c] sm:$0xf] %vm1347, %v1308
      %1374 = vst.msk [vmem:[#allocation2 + $0x138] sm:$0xf] %vm1347, %v1309
      %1375 = vst.msk [vmem:[#allocation2 + $0x144] sm:$0xf] %vm1347, %v1310
      %1376 = vst.msk [vmem:[#allocation2 + $0x150] sm:$0xf] %vm1347, %v1311
      %1377 = vst.msk [vmem:[#allocation2 + $0x15c] sm:$0xf] %vm1347, %v1312
      %1378 = vst.msk [vmem:[#allocation2 + $0x168] sm:$0xf] %vm1347, %v1313
      %1379 = vst.msk [vmem:[#allocation2 + $0x174] sm:$0xf] %vm1347, %v1314
      %v1380 = vpack.c.bf16 0.0, 0.0
      %v1381 = vpack.c.bf16 %v1061, %v1060
      %v1382 = vpack.c.bf16 %v1063, %v1062
      %v1383 = vpack.c.bf16 %v1065, %v1064
      %v1384 = vpack.c.bf16 %v1067, %v1066
      %v1385 = vpack.c.bf16 %v1069, %v1068
      %v1386 = vpack.c.bf16 %v1071, %v1070
      %v1387 = vpack.c.bf16 %v1073, %v1072
      %v1388 = vpack.c.bf16 %v1075, %v1074
      %v1389 = vpack.c.bf16 %v1077, %v1076
      %v1390 = vpack.c.bf16 %v1079, %v1078
      %v1391 = vpack.c.bf16 %v1081, %v1080
      %v1392 = vpack.c.bf16 %v1083, %v1082
      %v1393 = vpack.c.bf16 %v1085, %v1084
      %v1394 = vpack.c.bf16 %v1087, %v1086
      %v1395 = vpack.c.bf16 %v1089, %v1088
      %v1412 = vunpack.c.l.b16 %v1380
      %v1413 = vunpack.c.h.b16 %v1380
      %v1414 = vunpack.c.l.b16 %v1381
      %v1415 = vunpack.c.h.b16 %v1381
      %v1416 = vunpack.c.l.b16 %v1382
      %v1417 = vunpack.c.h.b16 %v1382
      %v1418 = vunpack.c.l.b16 %v1383
      %v1419 = vunpack.c.h.b16 %v1383
      %v1420 = vunpack.c.l.b16 %v1384
      %v1421 = vunpack.c.h.b16 %v1384
      %v1422 = vunpack.c.l.b16 %v1385
      %v1423 = vunpack.c.h.b16 %v1385
      %v1424 = vunpack.c.l.b16 %v1386
      %v1425 = vunpack.c.h.b16 %v1386
      %v1426 = vunpack.c.l.b16 %v1387
      %v1427 = vunpack.c.h.b16 %v1387
      %v1428 = vunpack.c.l.b16 %v1388
      %v1429 = vunpack.c.h.b16 %v1388
      %v1430 = vunpack.c.l.b16 %v1389
      %v1431 = vunpack.c.h.b16 %v1389
      %v1432 = vunpack.c.l.b16 %v1390
      %v1433 = vunpack.c.h.b16 %v1390
      %v1434 = vunpack.c.l.b16 %v1391
      %v1435 = vunpack.c.h.b16 %v1391
      %v1436 = vunpack.c.l.b16 %v1392
      %v1437 = vunpack.c.h.b16 %v1392
      %v1438 = vunpack.c.l.b16 %v1393
      %v1439 = vunpack.c.h.b16 %v1393
      %v1440 = vunpack.c.l.b16 %v1394
      %v1441 = vunpack.c.h.b16 %v1394
      %v1442 = vunpack.c.l.b16 %v1395
      %v1443 = vunpack.c.h.b16 %v1395
      %v1444 = vpack.c.b16 %v1412, %v1412
      %v1445 = vpack.c.b16 %v1413, %v1413
      %v1446 = vpack.c.b16 %v1414, %v1414
      %v1447 = vpack.c.b16 %v1415, %v1415
      %v1448 = vpack.c.b16 %v1416, %v1416
      %v1449 = vpack.c.b16 %v1417, %v1417
      %v1450 = vpack.c.b16 %v1418, %v1418
      %v1451 = vpack.c.b16 %v1419, %v1419
      %v1452 = vpack.c.b16 %v1420, %v1420
      %v1453 = vpack.c.b16 %v1421, %v1421
      %v1454 = vpack.c.b16 %v1422, %v1422
      %v1455 = vpack.c.b16 %v1423, %v1423
      %v1456 = vpack.c.b16 %v1424, %v1424
      %v1457 = vpack.c.b16 %v1425, %v1425
      %v1458 = vpack.c.b16 %v1426, %v1426
      %v1459 = vpack.c.b16 %v1427, %v1427
      %v1460 = vpack.c.b16 %v1428, %v1428
      %v1461 = vpack.c.b16 %v1429, %v1429
      %v1462 = vpack.c.b16 %v1430, %v1430
      %v1463 = vpack.c.b16 %v1431, %v1431
      %v1464 = vpack.c.b16 %v1432, %v1432
      %v1465 = vpack.c.b16 %v1433, %v1433
      %v1466 = vpack.c.b16 %v1434, %v1434
      %v1467 = vpack.c.b16 %v1435, %v1435
      %v1468 = vpack.c.b16 %v1436, %v1436
      %v1469 = vpack.c.b16 %v1437, %v1437
      %v1470 = vpack.c.b16 %v1438, %v1438
      %v1471 = vpack.c.b16 %v1439, %v1439
      %v1472 = vpack.c.b16 %v1440, %v1440
      %v1473 = vpack.c.b16 %v1441, %v1441
      %v1474 = vpack.c.b16 %v1442, %v1442
      %v1475 = vpack.c.b16 %v1443, %v1443
      %1476 = vrot.lane.b32.xlu0 %v1444, 32
      %v1477 = vpop.permute.xlu0 %1476
      %1478 = vrot.lane.b32.xlu0 %v1445, 32
      %v1479 = vpop.permute.xlu0 %1478
      %1480 = vrot.lane.b32.xlu0 %v1446, 32
      %v1481 = vpop.permute.xlu0 %1480
      %1482 = vrot.lane.b32.xlu0 %v1447, 32
      %v1483 = vpop.permute.xlu0 %1482
      %1484 = vrot.lane.b32.xlu0 %v1448, 32
      %v1485 = vpop.permute.xlu0 %1484
      %1486 = vrot.lane.b32.xlu0 %v1449, 32
      %v1487 = vpop.permute.xlu0 %1486
      %1488 = vrot.lane.b32.xlu0 %v1450, 32
      %v1489 = vpop.permute.xlu0 %1488
      %1490 = vrot.lane.b32.xlu0 %v1451, 32
      %v1491 = vpop.permute.xlu0 %1490
      %1492 = vrot.lane.b32.xlu0 %v1452, 32
      %v1493 = vpop.permute.xlu0 %1492
      %1494 = vrot.lane.b32.xlu0 %v1453, 32
      %v1495 = vpop.permute.xlu0 %1494
      %1496 = vrot.lane.b32.xlu0 %v1454, 32
      %v1497 = vpop.permute.xlu0 %1496
      %1498 = vrot.lane.b32.xlu0 %v1455, 32
      %v1499 = vpop.permute.xlu0 %1498
      %1500 = vrot.lane.b32.xlu0 %v1456, 32
      %v1501 = vpop.permute.xlu0 %1500
      %1502 = vrot.lane.b32.xlu0 %v1457, 32
      %v1503 = vpop.permute.xlu0 %1502
      %1504 = vrot.lane.b32.xlu0 %v1458, 32
      %v1505 = vpop.permute.xlu0 %1504
      %1506 = vrot.lane.b32.xlu0 %v1459, 32
      %v1507 = vpop.permute.xlu0 %1506
      %1508 = vrot.lane.b32.xlu0 %v1460, 32
      %v1509 = vpop.permute.xlu0 %1508
      %1510 = vrot.lane.b32.xlu0 %v1461, 32
      %v1511 = vpop.permute.xlu0 %1510
      %1512 = vrot.lane.b32.xlu0 %v1462, 32
      %v1513 = vpop.permute.xlu0 %1512
      %1514 = vrot.lane.b32.xlu0 %v1463, 32
      %v1515 = vpop.permute.xlu0 %1514
      %1516 = vrot.lane.b32.xlu0 %v1464, 32
      %v1517 = vpop.permute.xlu0 %1516
      %1518 = vrot.lane.b32.xlu0 %v1465, 32
      %v1519 = vpop.permute.xlu0 %1518
      %1520 = vrot.lane.b32.xlu0 %v1466, 32
      %v1521 = vpop.permute.xlu0 %1520
      %1522 = vrot.lane.b32.xlu0 %v1467, 32
      %v1523 = vpop.permute.xlu0 %1522
      %1524 = vrot.lane.b32.xlu0 %v1468, 32
      %v1525 = vpop.permute.xlu0 %1524
      %1526 = vrot.lane.b32.xlu0 %v1469, 32
      %v1527 = vpop.permute.xlu0 %1526
      %1528 = vrot.lane.b32.xlu0 %v1470, 32
      %v1529 = vpop.permute.xlu0 %1528
      %1530 = vrot.lane.b32.xlu0 %v1471, 32
      %v1531 = vpop.permute.xlu0 %1530
      %1532 = vrot.lane.b32.xlu0 %v1472, 32
      %v1533 = vpop.permute.xlu0 %1532
      %1534 = vrot.lane.b32.xlu0 %v1473, 32
      %v1535 = vpop.permute.xlu0 %1534
      %1536 = vrot.lane.b32.xlu0 %v1474, 32
      %v1537 = vpop.permute.xlu0 %1536
      %1538 = vrot.lane.b32.xlu0 %v1475, 32
      %v1539 = vpop.permute.xlu0 %1538
      %vm1572 = vcmask 519424
      %1573 = vst.msk [vmem:[#allocation2] sm:$0xf] %vm1572, %v1477
      %1574 = vst.msk [vmem:[#allocation2 + $0xc] sm:$0xf] %vm1572, %v1479
      %1575 = vst.msk [vmem:[#allocation2 + $0x18] sm:$0xf] %vm1572, %v1481
      %1576 = vst.msk [vmem:[#allocation2 + $0x24] sm:$0xf] %vm1572, %v1483
      %1577 = vst.msk [vmem:[#allocation2 + $0x30] sm:$0xf] %vm1572, %v1485
      %1578 = vst.msk [vmem:[#allocation2 + $0x3c] sm:$0xf] %vm1572, %v1487
      %1579 = vst.msk [vmem:[#allocation2 + $0x48] sm:$0xf] %vm1572, %v1489
      %1580 = vst.msk [vmem:[#allocation2 + $0x54] sm:$0xf] %vm1572, %v1491
      %1581 = vst.msk [vmem:[#allocation2 + $0x60] sm:$0xf] %vm1572, %v1493
      %1582 = vst.msk [vmem:[#allocation2 + $0x6c] sm:$0xf] %vm1572, %v1495
      %1583 = vst.msk [vmem:[#allocation2 + $0x78] sm:$0xf] %vm1572, %v1497
      %1584 = vst.msk [vmem:[#allocation2 + $0x84] sm:$0xf] %vm1572, %v1499
      %1585 = vst.msk [vmem:[#allocation2 + $0x90] sm:$0xf] %vm1572, %v1501
      %1586 = vst.msk [vmem:[#allocation2 + $0x9c] sm:$0xf] %vm1572, %v1503
      %1587 = vst.msk [vmem:[#allocation2 + $0xa8] sm:$0xf] %vm1572, %v1505
      %1588 = vst.msk [vmem:[#allocation2 + $0xb4] sm:$0xf] %vm1572, %v1507
      %1589 = vst.msk [vmem:[#allocation2 + $0xc0] sm:$0xf] %vm1572, %v1509
      %1590 = vst.msk [vmem:[#allocation2 + $0xcc] sm:$0xf] %vm1572, %v1511
      %1591 = vst.msk [vmem:[#allocation2 + $0xd8] sm:$0xf] %vm1572, %v1513
      %1592 = vst.msk [vmem:[#allocation2 + $0xe4] sm:$0xf] %vm1572, %v1515
      %1593 = vst.msk [vmem:[#allocation2 + $0xf0] sm:$0xf] %vm1572, %v1517
      %1594 = vst.msk [vmem:[#allocation2 + $0xfc] sm:$0xf] %vm1572, %v1519
      %1595 = vst.msk [vmem:[#allocation2 + $0x108] sm:$0xf] %vm1572, %v1521
      %1596 = vst.msk [vmem:[#allocation2 + $0x114] sm:$0xf] %vm1572, %v1523
      %1597 = vst.msk [vmem:[#allocation2 + $0x120] sm:$0xf] %vm1572, %v1525
      %1598 = vst.msk [vmem:[#allocation2 + $0x12c] sm:$0xf] %vm1572, %v1527
      %1599 = vst.msk [vmem:[#allocation2 + $0x138] sm:$0xf] %vm1572, %v1529
      %1600 = vst.msk [vmem:[#allocation2 + $0x144] sm:$0xf] %vm1572, %v1531
      %1601 = vst.msk [vmem:[#allocation2 + $0x150] sm:$0xf] %vm1572, %v1533
      %1602 = vst.msk [vmem:[#allocation2 + $0x15c] sm:$0xf] %vm1572, %v1535
      %1603 = vst.msk [vmem:[#allocation2 + $0x168] sm:$0xf] %vm1572, %v1537
      %1604 = vst.msk [vmem:[#allocation2 + $0x174] sm:$0xf] %vm1572, %v1539
      %vm1605 = vcmask 1046528
      %v1606 = vrot.slane 0.0, 1
      %v1607 = vsel %vm1605, %v1606, %v1606
      %v1608 = vrot.slane %v1060, 1
      %v1609 = vrot.slane %v1061, 1
      %v1610 = vsel %vm1605, %v1608, %v1609
      %v1611 = vrot.slane %v1062, 1
      %v1612 = vrot.slane %v1063, 1
      %v1613 = vsel %vm1605, %v1611, %v1612
      %v1614 = vrot.slane %v1064, 1
      %v1615 = vrot.slane %v1065, 1
      %v1616 = vsel %vm1605, %v1614, %v1615
      %v1617 = vrot.slane %v1066, 1
      %v1618 = vrot.slane %v1067, 1
      %v1619 = vsel %vm1605, %v1617, %v1618
      %v1620 = vrot.slane %v1068, 1
      %v1621 = vrot.slane %v1069, 1
      %v1622 = vsel %vm1605, %v1620, %v1621
      %v1623 = vrot.slane %v1070, 1
      %v1624 = vrot.slane %v1071, 1
      %v1625 = vsel %vm1605, %v1623, %v1624
      %v1626 = vrot.slane %v1072, 1
      %v1627 = vrot.slane %v1073, 1
      %v1628 = vsel %vm1605, %v1626, %v1627
      %v1629 = vrot.slane %v1074, 1
      %v1630 = vrot.slane %v1075, 1
      %v1631 = vsel %vm1605, %v1629, %v1630
      %v1632 = vrot.slane %v1076, 1
      %v1633 = vrot.slane %v1077, 1
      %v1634 = vsel %vm1605, %v1632, %v1633
      %v1635 = vrot.slane %v1078, 1
      %v1636 = vrot.slane %v1079, 1
      %v1637 = vsel %vm1605, %v1635, %v1636
      %v1638 = vrot.slane %v1080, 1
      %v1639 = vrot.slane %v1081, 1
      %v1640 = vsel %vm1605, %v1638, %v1639
      %v1641 = vrot.slane %v1082, 1
      %v1642 = vrot.slane %v1083, 1
      %v1643 = vsel %vm1605, %v1641, %v1642
      %v1644 = vrot.slane %v1084, 1
      %v1645 = vrot.slane %v1085, 1
      %v1646 = vsel %vm1605, %v1644, %v1645
      %v1647 = vrot.slane %v1086, 1
      %v1648 = vrot.slane %v1087, 1
      %v1649 = vsel %vm1605, %v1647, %v1648
      %v1650 = vrot.slane %v1088, 1
      %v1651 = vrot.slane %v1089, 1
      %v1652 = vsel %vm1605, %v1650, %v1651
      %v1685 = vsel %vm1605, %v1606, 0.0
      %v1686 = vsel %vm1605, %v1609, 0.0
      %v1687 = vsel %vm1605, %v1612, 0.0
      %v1688 = vsel %vm1605, %v1615, 0.0
      %v1689 = vsel %vm1605, %v1618, 0.0
      %v1690 = vsel %vm1605, %v1621, 0.0
      %v1691 = vsel %vm1605, %v1624, 0.0
      %v1692 = vsel %vm1605, %v1627, 0.0
      %v1693 = vsel %vm1605, %v1630, 0.0
      %v1694 = vsel %vm1605, %v1633, 0.0
      %v1695 = vsel %vm1605, %v1636, 0.0
      %v1696 = vsel %vm1605, %v1639, 0.0
      %v1697 = vsel %vm1605, %v1642, 0.0
      %v1698 = vsel %vm1605, %v1645, 0.0
      %v1699 = vsel %vm1605, %v1648, 0.0
      %v1700 = vsel %vm1605, %v1651, 0.0
      %v1701 = vpack.c.bf16 %v1685, %v1607
      %v1702 = vpack.c.bf16 %v1686, %v1610
      %v1703 = vpack.c.bf16 %v1687, %v1613
      %v1704 = vpack.c.bf16 %v1688, %v1616
      %v1705 = vpack.c.bf16 %v1689, %v1619
      %v1706 = vpack.c.bf16 %v1690, %v1622
      %v1707 = vpack.c.bf16 %v1691, %v1625
      %v1708 = vpack.c.bf16 %v1692, %v1628
      %v1709 = vpack.c.bf16 %v1693, %v1631
      %v1710 = vpack.c.bf16 %v1694, %v1634
      %v1711 = vpack.c.bf16 %v1695, %v1637
      %v1712 = vpack.c.bf16 %v1696, %v1640
      %v1713 = vpack.c.bf16 %v1697, %v1643
      %v1714 = vpack.c.bf16 %v1698, %v1646
      %v1715 = vpack.c.bf16 %v1699, %v1649
      %v1716 = vpack.c.bf16 %v1700, %v1652
      %v1733 = vunpack.c.l.b16 %v1701
      %v1734 = vunpack.c.h.b16 %v1701
      %v1735 = vunpack.c.l.b16 %v1702
      %v1736 = vunpack.c.h.b16 %v1702
      %v1737 = vunpack.c.l.b16 %v1703
      %v1738 = vunpack.c.h.b16 %v1703
      %v1739 = vunpack.c.l.b16 %v1704
      %v1740 = vunpack.c.h.b16 %v1704
      %v1741 = vunpack.c.l.b16 %v1705
      %v1742 = vunpack.c.h.b16 %v1705
      %v1743 = vunpack.c.l.b16 %v1706
      %v1744 = vunpack.c.h.b16 %v1706
      %v1745 = vunpack.c.l.b16 %v1707
      %v1746 = vunpack.c.h.b16 %v1707
      %v1747 = vunpack.c.l.b16 %v1708
      %v1748 = vunpack.c.h.b16 %v1708
      %v1749 = vunpack.c.l.b16 %v1709
      %v1750 = vunpack.c.h.b16 %v1709
      %v1751 = vunpack.c.l.b16 %v1710
      %v1752 = vunpack.c.h.b16 %v1710
      %v1753 = vunpack.c.l.b16 %v1711
      %v1754 = vunpack.c.h.b16 %v1711
      %v1755 = vunpack.c.l.b16 %v1712
      %v1756 = vunpack.c.h.b16 %v1712
      %v1757 = vunpack.c.l.b16 %v1713
      %v1758 = vunpack.c.h.b16 %v1713
      %v1759 = vunpack.c.l.b16 %v1714
      %v1760 = vunpack.c.h.b16 %v1714
      %v1761 = vunpack.c.l.b16 %v1715
      %v1762 = vunpack.c.h.b16 %v1715
      %v1763 = vunpack.c.l.b16 %v1716
      %v1764 = vunpack.c.h.b16 %v1716
      %v1765 = vpack.c.b16 %v1733, %v1733
      %v1766 = vpack.c.b16 %v1734, %v1734
      %v1767 = vpack.c.b16 %v1735, %v1735
      %v1768 = vpack.c.b16 %v1736, %v1736
      %v1769 = vpack.c.b16 %v1737, %v1737
      %v1770 = vpack.c.b16 %v1738, %v1738
      %v1771 = vpack.c.b16 %v1739, %v1739
      %v1772 = vpack.c.b16 %v1740, %v1740
      %v1773 = vpack.c.b16 %v1741, %v1741
      %v1774 = vpack.c.b16 %v1742, %v1742
      %v1775 = vpack.c.b16 %v1743, %v1743
      %v1776 = vpack.c.b16 %v1744, %v1744
      %v1777 = vpack.c.b16 %v1745, %v1745
      %v1778 = vpack.c.b16 %v1746, %v1746
      %v1779 = vpack.c.b16 %v1747, %v1747
      %v1780 = vpack.c.b16 %v1748, %v1748
      %v1781 = vpack.c.b16 %v1749, %v1749
      %v1782 = vpack.c.b16 %v1750, %v1750
      %v1783 = vpack.c.b16 %v1751, %v1751
      %v1784 = vpack.c.b16 %v1752, %v1752
      %v1785 = vpack.c.b16 %v1753, %v1753
      %v1786 = vpack.c.b16 %v1754, %v1754
      %v1787 = vpack.c.b16 %v1755, %v1755
      %v1788 = vpack.c.b16 %v1756, %v1756
      %v1789 = vpack.c.b16 %v1757, %v1757
      %v1790 = vpack.c.b16 %v1758, %v1758
      %v1791 = vpack.c.b16 %v1759, %v1759
      %v1792 = vpack.c.b16 %v1760, %v1760
      %v1793 = vpack.c.b16 %v1761, %v1761
      %v1794 = vpack.c.b16 %v1762, %v1762
      %v1795 = vpack.c.b16 %v1763, %v1763
      %v1796 = vpack.c.b16 %v1764, %v1764
      %1797 = vrot.lane.b32.xlu0 %v1765, 64
      %v1798 = vpop.permute.xlu0 %1797
      %1799 = vrot.lane.b32.xlu0 %v1766, 64
      %v1800 = vpop.permute.xlu0 %1799
      %1801 = vrot.lane.b32.xlu0 %v1767, 64
      %v1802 = vpop.permute.xlu0 %1801
      %1803 = vrot.lane.b32.xlu0 %v1768, 64
      %v1804 = vpop.permute.xlu0 %1803
      %1805 = vrot.lane.b32.xlu0 %v1769, 64
      %v1806 = vpop.permute.xlu0 %1805
      %1807 = vrot.lane.b32.xlu0 %v1770, 64
      %v1808 = vpop.permute.xlu0 %1807
      %1809 = vrot.lane.b32.xlu0 %v1771, 64
      %v1810 = vpop.permute.xlu0 %1809
      %1811 = vrot.lane.b32.xlu0 %v1772, 64
      %v1812 = vpop.permute.xlu0 %1811
      %1813 = vrot.lane.b32.xlu0 %v1773, 64
      %v1814 = vpop.permute.xlu0 %1813
      %1815 = vrot.lane.b32.xlu0 %v1774, 64
      %v1816 = vpop.permute.xlu0 %1815
      %1817 = vrot.lane.b32.xlu0 %v1775, 64
      %v1818 = vpop.permute.xlu0 %1817
      %1819 = vrot.lane.b32.xlu0 %v1776, 64
      %v1820 = vpop.permute.xlu0 %1819
      %1821 = vrot.lane.b32.xlu0 %v1777, 64
      %v1822 = vpop.permute.xlu0 %1821
      %1823 = vrot.lane.b32.xlu0 %v1778, 64
      %v1824 = vpop.permute.xlu0 %1823
      %1825 = vrot.lane.b32.xlu0 %v1779, 64
      %v1826 = vpop.permute.xlu0 %1825
      %1827 = vrot.lane.b32.xlu0 %v1780, 64
      %v1828 = vpop.permute.xlu0 %1827
      %1829 = vrot.lane.b32.xlu0 %v1781, 64
      %v1830 = vpop.permute.xlu0 %1829
      %1831 = vrot.lane.b32.xlu0 %v1782, 64
      %v1832 = vpop.permute.xlu0 %1831
      %1833 = vrot.lane.b32.xlu0 %v1783, 64
      %v1834 = vpop.permute.xlu0 %1833
      %1835 = vrot.lane.b32.xlu0 %v1784, 64
      %v1836 = vpop.permute.xlu0 %1835
      %1837 = vrot.lane.b32.xlu0 %v1785, 64
      %v1838 = vpop.permute.xlu0 %1837
      %1839 = vrot.lane.b32.xlu0 %v1786, 64
      %v1840 = vpop.permute.xlu0 %1839
      %1841 = vrot.lane.b32.xlu0 %v1787, 64
      %v1842 = vpop.permute.xlu0 %1841
      %1843 = vrot.lane.b32.xlu0 %v1788, 64
      %v1844 = vpop.permute.xlu0 %1843
      %1845 = vrot.lane.b32.xlu0 %v1789, 64
      %v1846 = vpop.permute.xlu0 %1845
      %1847 = vrot.lane.b32.xlu0 %v1790, 64
      %v1848 = vpop.permute.xlu0 %1847
      %1849 = vrot.lane.b32.xlu0 %v1791, 64
      %v1850 = vpop.permute.xlu0 %1849
      %1851 = vrot.lane.b32.xlu0 %v1792, 64
      %v1852 = vpop.permute.xlu0 %1851
      %1853 = vrot.lane.b32.xlu0 %v1793, 64
      %v1854 = vpop.permute.xlu0 %1853
      %1855 = vrot.lane.b32.xlu0 %v1794, 64
      %v1856 = vpop.permute.xlu0 %1855
      %1857 = vrot.lane.b32.xlu0 %v1795, 64
      %v1858 = vpop.permute.xlu0 %1857
      %1859 = vrot.lane.b32.xlu0 %v1796, 64
      %v1860 = vpop.permute.xlu0 %1859
      %vm1893 = vcmask 781824
      %1894 = vst.msk [vmem:[#allocation2] sm:$0xf] %vm1893, %v1798
      %1895 = vst.msk [vmem:[#allocation2 + $0xc] sm:$0xf] %vm1893, %v1800
      %1896 = vst.msk [vmem:[#allocation2 + $0x18] sm:$0xf] %vm1893, %v1802
      %1897 = vst.msk [vmem:[#allocation2 + $0x24] sm:$0xf] %vm1893, %v1804
      %1898 = vst.msk [vmem:[#allocation2 + $0x30] sm:$0xf] %vm1893, %v1806
      %1899 = vst.msk [vmem:[#allocation2 + $0x3c] sm:$0xf] %vm1893, %v1808
      %1900 = vst.msk [vmem:[#allocation2 + $0x48] sm:$0xf] %vm1893, %v1810
      %1901 = vst.msk [vmem:[#allocation2 + $0x54] sm:$0xf] %vm1893, %v1812
      %1902 = vst.msk [vmem:[#allocation2 + $0x60] sm:$0xf] %vm1893, %v1814
      %1903 = vst.msk [vmem:[#allocation2 + $0x6c] sm:$0xf] %vm1893, %v1816
      %1904 = vst.msk [vmem:[#allocation2 + $0x78] sm:$0xf] %vm1893, %v1818
      %1905 = vst.msk [vmem:[#allocation2 + $0x84] sm:$0xf] %vm1893, %v1820
      %1906 = vst.msk [vmem:[#allocation2 + $0x90] sm:$0xf] %vm1893, %v1822
      %1907 = vst.msk [vmem:[#allocation2 + $0x9c] sm:$0xf] %vm1893, %v1824
      %1908 = vst.msk [vmem:[#allocation2 + $0xa8] sm:$0xf] %vm1893, %v1826
      %1909 = vst.msk [vmem:[#allocation2 + $0xb4] sm:$0xf] %vm1893, %v1828
      %1910 = vst.msk [vmem:[#allocation2 + $0xc0] sm:$0xf] %vm1893, %v1830
      %1911 = vst.msk [vmem:[#allocation2 + $0xcc] sm:$0xf] %vm1893, %v1832
      %1912 = vst.msk [vmem:[#allocation2 + $0xd8] sm:$0xf] %vm1893, %v1834
      %1913 = vst.msk [vmem:[#allocation2 + $0xe4] sm:$0xf] %vm1893, %v1836
      %1914 = vst.msk [vmem:[#allocation2 + $0xf0] sm:$0xf] %vm1893, %v1838
      %1915 = vst.msk [vmem:[#allocation2 + $0xfc] sm:$0xf] %vm1893, %v1840
      %1916 = vst.msk [vmem:[#allocation2 + $0x108] sm:$0xf] %vm1893, %v1842
      %1917 = vst.msk [vmem:[#allocation2 + $0x114] sm:$0xf] %vm1893, %v1844
      %1918 = vst.msk [vmem:[#allocation2 + $0x120] sm:$0xf] %vm1893, %v1846
      %1919 = vst.msk [vmem:[#allocation2 + $0x12c] sm:$0xf] %vm1893, %v1848
      %1920 = vst.msk [vmem:[#allocation2 + $0x138] sm:$0xf] %vm1893, %v1850
      %1921 = vst.msk [vmem:[#allocation2 + $0x144] sm:$0xf] %vm1893, %v1852
      %1922 = vst.msk [vmem:[#allocation2 + $0x150] sm:$0xf] %vm1893, %v1854
      %1923 = vst.msk [vmem:[#allocation2 + $0x15c] sm:$0xf] %vm1893, %v1856
      %1924 = vst.msk [vmem:[#allocation2 + $0x168] sm:$0xf] %vm1893, %v1858
      %1925 = vst.msk [vmem:[#allocation2 + $0x174] sm:$0xf] %vm1893, %v1860
      %v1928 = vrot.slane %v1090, 7
      %v1929 = vrot.slane %v1091, 7
      %v1930 = vsel %vm1123, %v1928, %v1929
      %v1933 = vsel %vm1123, 0.0, %v1928
      %v1934 = vpack.c.bf16 %v1930, %v1933
      %v1936 = vunpack.c.l.b16 %v1934
      %v1937 = vunpack.c.h.b16 %v1934
      %v1938 = vpack.c.b16 %v1936, %v1936
      %v1939 = vpack.c.b16 %v1937, %v1937
      %1940 = vrot.lane.b32.xlu0 %v1285, 96
      %v1941 = vpop.permute.xlu0 %1940
      %1942 = vrot.lane.b32.xlu0 %v1286, 96
      %v1943 = vpop.permute.xlu0 %1942
      %1944 = vrot.lane.b32.xlu0 %v1287, 96
      %v1945 = vpop.permute.xlu0 %1944
      %1946 = vrot.lane.b32.xlu0 %v1288, 96
      %v1947 = vpop.permute.xlu0 %1946
      %1948 = vrot.lane.b32.xlu0 %v1289, 96
      %v1949 = vpop.permute.xlu0 %1948
      %1950 = vrot.lane.b32.xlu0 %v1290, 96
      %v1951 = vpop.permute.xlu0 %1950
      %1952 = vrot.lane.b32.xlu0 %v1291, 96
      %v1953 = vpop.permute.xlu0 %1952
      %1954 = vrot.lane.b32.xlu0 %v1292, 96
      %v1955 = vpop.permute.xlu0 %1954
      %1956 = vrot.lane.b32.xlu0 %v1293, 96
      %v1957 = vpop.permute.xlu0 %1956
      %1958 = vrot.lane.b32.xlu0 %v1294, 96
      %v1959 = vpop.permute.xlu0 %1958
      %1960 = vrot.lane.b32.xlu0 %v1295, 96
      %v1961 = vpop.permute.xlu0 %1960
      %1962 = vrot.lane.b32.xlu0 %v1296, 96
      %v1963 = vpop.permute.xlu0 %1962
      %1964 = vrot.lane.b32.xlu0 %v1297, 96
      %v1965 = vpop.permute.xlu0 %1964
      %1966 = vrot.lane.b32.xlu0 %v1298, 96
      %v1967 = vpop.permute.xlu0 %1966
      %1968 = vrot.lane.b32.xlu0 %v1299, 96
      %v1969 = vpop.permute.xlu0 %1968
      %1970 = vrot.lane.b32.xlu0 %v1300, 96
      %v1971 = vpop.permute.xlu0 %1970
      %1972 = vrot.lane.b32.xlu0 %v1301, 96
      %v1973 = vpop.permute.xlu0 %1972
      %1974 = vrot.lane.b32.xlu0 %v1302, 96
      %v1975 = vpop.permute.xlu0 %1974
      %1976 = vrot.lane.b32.xlu0 %v1303, 96
      %v1977 = vpop.permute.xlu0 %1976
      %1978 = vrot.lane.b32.xlu0 %v1304, 96
      %v1979 = vpop.permute.xlu0 %1978
      %1980 = vrot.lane.b32.xlu0 %v1305, 96
      %v1981 = vpop.permute.xlu0 %1980
      %1982 = vrot.lane.b32.xlu0 %v1306, 96
      %v1983 = vpop.permute.xlu0 %1982
      %1984 = vrot.lane.b32.xlu0 %v1307, 96
      %v1985 = vpop.permute.xlu0 %1984
      %1986 = vrot.lane.b32.xlu0 %v1308, 96
      %v1987 = vpop.permute.xlu0 %1986
      %1988 = vrot.lane.b32.xlu0 %v1309, 96
      %v1989 = vpop.permute.xlu0 %1988
      %1990 = vrot.lane.b32.xlu0 %v1310, 96
      %v1991 = vpop.permute.xlu0 %1990
      %1992 = vrot.lane.b32.xlu0 %v1311, 96
      %v1993 = vpop.permute.xlu0 %1992
      %1994 = vrot.lane.b32.xlu0 %v1312, 96
      %v1995 = vpop.permute.xlu0 %1994
      %1996 = vrot.lane.b32.xlu0 %v1313, 96
      %v1997 = vpop.permute.xlu0 %1996
      %1998 = vrot.lane.b32.xlu0 %v1314, 96
      %v1999 = vpop.permute.xlu0 %1998
      %2000 = vrot.lane.b32.xlu0 %v1938, 96
      %v2001 = vpop.permute.xlu0 %2000
      %2002 = vrot.lane.b32.xlu0 %v1939, 96
      %v2003 = vpop.permute.xlu0 %2002
      %vm2036 = vcmask 1044224
      %2037 = vst.msk [vmem:[#allocation2] sm:$0xf] %vm2036, %v1941
      %2038 = vst.msk [vmem:[#allocation2 + $0xc] sm:$0xf] %vm2036, %v1943
      %2039 = vst.msk [vmem:[#allocation2 + $0x18] sm:$0xf] %vm2036, %v1945
      %2040 = vst.msk [vmem:[#allocation2 + $0x24] sm:$0xf] %vm2036, %v1947
      %2041 = vst.msk [vmem:[#allocation2 + $0x30] sm:$0xf] %vm2036, %v1949
      %2042 = vst.msk [vmem:[#allocation2 + $0x3c] sm:$0xf] %vm2036, %v1951
      %2043 = vst.msk [vmem:[#allocation2 + $0x48] sm:$0xf] %vm2036, %v1953
      %2044 = vst.msk [vmem:[#allocation2 + $0x54] sm:$0xf] %vm2036, %v1955
      %2045 = vst.msk [vmem:[#allocation2 + $0x60] sm:$0xf] %vm2036, %v1957
      %2046 = vst.msk [vmem:[#allocation2 + $0x6c] sm:$0xf] %vm2036, %v1959
      %2047 = vst.msk [vmem:[#allocation2 + $0x78] sm:$0xf] %vm2036, %v1961
      %2048 = vst.msk [vmem:[#allocation2 + $0x84] sm:$0xf] %vm2036, %v1963
      %2049 = vst.msk [vmem:[#allocation2 + $0x90] sm:$0xf] %vm2036, %v1965
      %2050 = vst.msk [vmem:[#allocation2 + $0x9c] sm:$0xf] %vm2036, %v1967
      %2051 = vst.msk [vmem:[#allocation2 + $0xa8] sm:$0xf] %vm2036, %v1969
      %2052 = vst.msk [vmem:[#allocation2 + $0xb4] sm:$0xf] %vm2036, %v1971
      %2053 = vst.msk [vmem:[#allocation2 + $0xc0] sm:$0xf] %vm2036, %v1973
      %2054 = vst.msk [vmem:[#allocation2 + $0xcc] sm:$0xf] %vm2036, %v1975
      %2055 = vst.msk [vmem:[#allocation2 + $0xd8] sm:$0xf] %vm2036, %v1977
      %2056 = vst.msk [vmem:[#allocation2 + $0xe4] sm:$0xf] %vm2036, %v1979
      %2057 = vst.msk [vmem:[#allocation2 + $0xf0] sm:$0xf] %vm2036, %v1981
      %2058 = vst.msk [vmem:[#allocation2 + $0xfc] sm:$0xf] %vm2036, %v1983
      %2059 = vst.msk [vmem:[#allocation2 + $0x108] sm:$0xf] %vm2036, %v1985
      %2060 = vst.msk [vmem:[#allocation2 + $0x114] sm:$0xf] %vm2036, %v1987
      %2061 = vst.msk [vmem:[#allocation2 + $0x120] sm:$0xf] %vm2036, %v1989
      %2062 = vst.msk [vmem:[#allocation2 + $0x12c] sm:$0xf] %vm2036, %v1991
      %2063 = vst.msk [vmem:[#allocation2 + $0x138] sm:$0xf] %vm2036, %v1993
      %2064 = vst.msk [vmem:[#allocation2 + $0x144] sm:$0xf] %vm2036, %v1995
      %2065 = vst.msk [vmem:[#allocation2 + $0x150] sm:$0xf] %vm2036, %v1997
      %2066 = vst.msk [vmem:[#allocation2 + $0x15c] sm:$0xf] %vm2036, %v1999
      %2067 = vst.msk [vmem:[#allocation2 + $0x168] sm:$0xf] %vm2036, %v2001
      %2068 = vst.msk [vmem:[#allocation2 + $0x174] sm:$0xf] %vm2036, %v2003
      %v2069 = vpack.c.bf16 %v1091, %v1090
      %v2071 = vunpack.c.l.b16 %v2069
      %v2072 = vunpack.c.h.b16 %v2069
      %v2073 = vpack.c.b16 %v2071, %v2071
      %v2074 = vpack.c.b16 %v2072, %v2072
      %2107 = vst.msk [vmem:[#allocation2 + $0x4] sm:$0xf] %vm1347, %v1446
      %2108 = vst.msk [vmem:[#allocation2 + $0x10] sm:$0xf] %vm1347, %v1447
      %2109 = vst.msk [vmem:[#allocation2 + $0x1c] sm:$0xf] %vm1347, %v1448
      %2110 = vst.msk [vmem:[#allocation2 + $0x28] sm:$0xf] %vm1347, %v1449
      %2111 = vst.msk [vmem:[#allocation2 + $0x34] sm:$0xf] %vm1347, %v1450
      %2112 = vst.msk [vmem:[#allocation2 + $0x40] sm:$0xf] %vm1347, %v1451
      %2113 = vst.msk [vmem:[#allocation2 + $0x4c] sm:$0xf] %vm1347, %v1452
      %2114 = vst.msk [vmem:[#allocation2 + $0x58] sm:$0xf] %vm1347, %v1453
      %2115 = vst.msk [vmem:[#allocation2 + $0x64] sm:$0xf] %vm1347, %v1454
      %2116 = vst.msk [vmem:[#allocation2 + $0x70] sm:$0xf] %vm1347, %v1455
      %2117 = vst.msk [vmem:[#allocation2 + $0x7c] sm:$0xf] %vm1347, %v1456
      %2118 = vst.msk [vmem:[#allocation2 + $0x88] sm:$0xf] %vm1347, %v1457
      %2119 = vst.msk [vmem:[#allocation2 + $0x94] sm:$0xf] %vm1347, %v1458
      %2120 = vst.msk [vmem:[#allocation2 + $0xa0] sm:$0xf] %vm1347, %v1459
      %2121 = vst.msk [vmem:[#allocation2 + $0xac] sm:$0xf] %vm1347, %v1460
      %2122 = vst.msk [vmem:[#allocation2 + $0xb8] sm:$0xf] %vm1347, %v1461
      %2123 = vst.msk [vmem:[#allocation2 + $0xc4] sm:$0xf] %vm1347, %v1462
      %2124 = vst.msk [vmem:[#allocation2 + $0xd0] sm:$0xf] %vm1347, %v1463
      %2125 = vst.msk [vmem:[#allocation2 + $0xdc] sm:$0xf] %vm1347, %v1464
      %2126 = vst.msk [vmem:[#allocation2 + $0xe8] sm:$0xf] %vm1347, %v1465
      %2127 = vst.msk [vmem:[#allocation2 + $0xf4] sm:$0xf] %vm1347, %v1466
      %2128 = vst.msk [vmem:[#allocation2 + $0x100] sm:$0xf] %vm1347, %v1467
      %2129 = vst.msk [vmem:[#allocation2 + $0x10c] sm:$0xf] %vm1347, %v1468
      %2130 = vst.msk [vmem:[#allocation2 + $0x118] sm:$0xf] %vm1347, %v1469
      %2131 = vst.msk [vmem:[#allocation2 + $0x124] sm:$0xf] %vm1347, %v1470
      %2132 = vst.msk [vmem:[#allocation2 + $0x130] sm:$0xf] %vm1347, %v1471
      %2133 = vst.msk [vmem:[#allocation2 + $0x13c] sm:$0xf] %vm1347, %v1472
      %2134 = vst.msk [vmem:[#allocation2 + $0x148] sm:$0xf] %vm1347, %v1473
      %2135 = vst.msk [vmem:[#allocation2 + $0x154] sm:$0xf] %vm1347, %v1474
      %2136 = vst.msk [vmem:[#allocation2 + $0x160] sm:$0xf] %vm1347, %v1475
      %2137 = vst.msk [vmem:[#allocation2 + $0x16c] sm:$0xf] %vm1347, %v2073
      %2138 = vst.msk [vmem:[#allocation2 + $0x178] sm:$0xf] %vm1347, %v2074
      %v2139 = vrot.slane %v1090, 1
      %v2140 = vrot.slane %v1091, 1
      %v2141 = vsel %vm1605, %v2139, %v2140
      %v2144 = vsel %vm1605, %v2140, 0.0
      %v2145 = vpack.c.bf16 %v2144, %v2141
      %v2147 = vunpack.c.l.b16 %v2145
      %v2148 = vunpack.c.h.b16 %v2145
      %v2149 = vpack.c.b16 %v2147, %v2147
      %v2150 = vpack.c.b16 %v2148, %v2148
      %2151 = vrot.lane.b32.xlu0 %v1767, 32
      %v2152 = vpop.permute.xlu0 %2151
      %2153 = vrot.lane.b32.xlu0 %v1768, 32
      %v2154 = vpop.permute.xlu0 %2153
      %2155 = vrot.lane.b32.xlu0 %v1769, 32
      %v2156 = vpop.permute.xlu0 %2155
      %2157 = vrot.lane.b32.xlu0 %v1770, 32
      %v2158 = vpop.permute.xlu0 %2157
      %2159 = vrot.lane.b32.xlu0 %v1771, 32
      %v2160 = vpop.permute.xlu0 %2159
      %2161 = vrot.lane.b32.xlu0 %v1772, 32
      %v2162 = vpop.permute.xlu0 %2161
      %2163 = vrot.lane.b32.xlu0 %v1773, 32
      %v2164 = vpop.permute.xlu0 %2163
      %2165 = vrot.lane.b32.xlu0 %v1774, 32
      %v2166 = vpop.permute.xlu0 %2165
      %2167 = vrot.lane.b32.xlu0 %v1775, 32
      %v2168 = vpop.permute.xlu0 %2167
      %2169 = vrot.lane.b32.xlu0 %v1776, 32
      %v2170 = vpop.permute.xlu0 %2169
      %2171 = vrot.lane.b32.xlu0 %v1777, 32
      %v2172 = vpop.permute.xlu0 %2171
      %2173 = vrot.lane.b32.xlu0 %v1778, 32
      %v2174 = vpop.permute.xlu0 %2173
      %2175 = vrot.lane.b32.xlu0 %v1779, 32
      %v2176 = vpop.permute.xlu0 %2175
      %2177 = vrot.lane.b32.xlu0 %v1780, 32
      %v2178 = vpop.permute.xlu0 %2177
      %2179 = vrot.lane.b32.xlu0 %v1781, 32
      %v2180 = vpop.permute.xlu0 %2179
      %2181 = vrot.lane.b32.xlu0 %v1782, 32
      %v2182 = vpop.permute.xlu0 %2181
      %2183 = vrot.lane.b32.xlu0 %v1783, 32
      %v2184 = vpop.permute.xlu0 %2183
      %2185 = vrot.lane.b32.xlu0 %v1784, 32
      %v2186 = vpop.permute.xlu0 %2185
      %2187 = vrot.lane.b32.xlu0 %v1785, 32
      %v2188 = vpop.permute.xlu0 %2187
      %2189 = vrot.lane.b32.xlu0 %v1786, 32
      %v2190 = vpop.permute.xlu0 %2189
      %2191 = vrot.lane.b32.xlu0 %v1787, 32
      %v2192 = vpop.permute.xlu0 %2191
      %2193 = vrot.lane.b32.xlu0 %v1788, 32
      %v2194 = vpop.permute.xlu0 %2193
      %2195 = vrot.lane.b32.xlu0 %v1789, 32
      %v2196 = vpop.permute.xlu0 %2195
      %2197 = vrot.lane.b32.xlu0 %v1790, 32
      %v2198 = vpop.permute.xlu0 %2197
      %2199 = vrot.lane.b32.xlu0 %v1791, 32
      %v2200 = vpop.permute.xlu0 %2199
      %2201 = vrot.lane.b32.xlu0 %v1792, 32
      %v2202 = vpop.permute.xlu0 %2201
      %2203 = vrot.lane.b32.xlu0 %v1793, 32
      %v2204 = vpop.permute.xlu0 %2203
      %2205 = vrot.lane.b32.xlu0 %v1794, 32
      %v2206 = vpop.permute.xlu0 %2205
      %2207 = vrot.lane.b32.xlu0 %v1795, 32
      %v2208 = vpop.permute.xlu0 %2207
      %2209 = vrot.lane.b32.xlu0 %v1796, 32
      %v2210 = vpop.permute.xlu0 %2209
      %2211 = vrot.lane.b32.xlu0 %v2149, 32
      %v2212 = vpop.permute.xlu0 %2211
      %2213 = vrot.lane.b32.xlu0 %v2150, 32
      %v2214 = vpop.permute.xlu0 %2213
      %2247 = vst.msk [vmem:[#allocation2 + $0x4] sm:$0xf] %vm1572, %v2152
      %2248 = vst.msk [vmem:[#allocation2 + $0x10] sm:$0xf] %vm1572, %v2154
      %2249 = vst.msk [vmem:[#allocation2 + $0x1c] sm:$0xf] %vm1572, %v2156
      %2250 = vst.msk [vmem:[#allocation2 + $0x28] sm:$0xf] %vm1572, %v2158
      %2251 = vst.msk [vmem:[#allocation2 + $0x34] sm:$0xf] %vm1572, %v2160
      %2252 = vst.msk [vmem:[#allocation2 + $0x40] sm:$0xf] %vm1572, %v2162
      %2253 = vst.msk [vmem:[#allocation2 + $0x4c] sm:$0xf] %vm1572, %v2164
      %2254 = vst.msk [vmem:[#allocation2 + $0x58] sm:$0xf] %vm1572, %v2166
      %2255 = vst.msk [vmem:[#allocation2 + $0x64] sm:$0xf] %vm1572, %v2168
      %2256 = vst.msk [vmem:[#allocation2 + $0x70] sm:$0xf] %vm1572, %v2170
      %2257 = vst.msk [vmem:[#allocation2 + $0x7c] sm:$0xf] %vm1572, %v2172
      %2258 = vst.msk [vmem:[#allocation2 + $0x88] sm:$0xf] %vm1572, %v2174
      %2259 = vst.msk [vmem:[#allocation2 + $0x94] sm:$0xf] %vm1572, %v2176
      %2260 = vst.msk [vmem:[#allocation2 + $0xa0] sm:$0xf] %vm1572, %v2178
      %2261 = vst.msk [vmem:[#allocation2 + $0xac] sm:$0xf] %vm1572, %v2180
      %2262 = vst.msk [vmem:[#allocation2 + $0xb8] sm:$0xf] %vm1572, %v2182
      %2263 = vst.msk [vmem:[#allocation2 + $0xc4] sm:$0xf] %vm1572, %v2184
      %2264 = vst.msk [vmem:[#allocation2 + $0xd0] sm:$0xf] %vm1572, %v2186
      %2265 = vst.msk [vmem:[#allocation2 + $0xdc] sm:$0xf] %vm1572, %v2188
      %2266 = vst.msk [vmem:[#allocation2 + $0xe8] sm:$0xf] %vm1572, %v2190
      %2267 = vst.msk [vmem:[#allocation2 + $0xf4] sm:$0xf] %vm1572, %v2192
      %2268 = vst.msk [vmem:[#allocation2 + $0x100] sm:$0xf] %vm1572, %v2194
      %2269 = vst.msk [vmem:[#allocation2 + $0x10c] sm:$0xf] %vm1572, %v2196
      %2270 = vst.msk [vmem:[#allocation2 + $0x118] sm:$0xf] %vm1572, %v2198
      %2271 = vst.msk [vmem:[#allocation2 + $0x124] sm:$0xf] %vm1572, %v2200
      %2272 = vst.msk [vmem:[#allocation2 + $0x130] sm:$0xf] %vm1572, %v2202
      %2273 = vst.msk [vmem:[#allocation2 + $0x13c] sm:$0xf] %vm1572, %v2204
      %2274 = vst.msk [vmem:[#allocation2 + $0x148] sm:$0xf] %vm1572, %v2206
      %2275 = vst.msk [vmem:[#allocation2 + $0x154] sm:$0xf] %vm1572, %v2208
      %2276 = vst.msk [vmem:[#allocation2 + $0x160] sm:$0xf] %vm1572, %v2210
      %2277 = vst.msk [vmem:[#allocation2 + $0x16c] sm:$0xf] %vm1572, %v2212
      %2278 = vst.msk [vmem:[#allocation2 + $0x178] sm:$0xf] %vm1572, %v2214
      %2279 = vrot.lane.b32.xlu0 %v1287, 64
      %v2280 = vpop.permute.xlu0 %2279
      %2281 = vrot.lane.b32.xlu0 %v1288, 64
      %v2282 = vpop.permute.xlu0 %2281
      %2283 = vrot.lane.b32.xlu0 %v1289, 64
      %v2284 = vpop.permute.xlu0 %2283
      %2285 = vrot.lane.b32.xlu0 %v1290, 64
      %v2286 = vpop.permute.xlu0 %2285
      %2287 = vrot.lane.b32.xlu0 %v1291, 64
      %v2288 = vpop.permute.xlu0 %2287
      %2289 = vrot.lane.b32.xlu0 %v1292, 64
      %v2290 = vpop.permute.xlu0 %2289
      %2291 = vrot.lane.b32.xlu0 %v1293, 64
      %v2292 = vpop.permute.xlu0 %2291
      %2293 = vrot.lane.b32.xlu0 %v1294, 64
      %v2294 = vpop.permute.xlu0 %2293
      %2295 = vrot.lane.b32.xlu0 %v1295, 64
      %v2296 = vpop.permute.xlu0 %2295
      %2297 = vrot.lane.b32.xlu0 %v1296, 64
      %v2298 = vpop.permute.xlu0 %2297
      %2299 = vrot.lane.b32.xlu0 %v1297, 64
      %v2300 = vpop.permute.xlu0 %2299
      %2301 = vrot.lane.b32.xlu0 %v1298, 64
      %v2302 = vpop.permute.xlu0 %2301
      %2303 = vrot.lane.b32.xlu0 %v1299, 64
      %v2304 = vpop.permute.xlu0 %2303
      %2305 = vrot.lane.b32.xlu0 %v1300, 64
      %v2306 = vpop.permute.xlu0 %2305
      %2307 = vrot.lane.b32.xlu0 %v1301, 64
      %v2308 = vpop.permute.xlu0 %2307
      %2309 = vrot.lane.b32.xlu0 %v1302, 64
      %v2310 = vpop.permute.xlu0 %2309
      %2311 = vrot.lane.b32.xlu0 %v1303, 64
      %v2312 = vpop.permute.xlu0 %2311
      %2313 = vrot.lane.b32.xlu0 %v1304, 64
      %v2314 = vpop.permute.xlu0 %2313
      %2315 = vrot.lane.b32.xlu0 %v1305, 64
      %v2316 = vpop.permute.xlu0 %2315
      %2317 = vrot.lane.b32.xlu0 %v1306, 64
      %v2318 = vpop.permute.xlu0 %2317
      %2319 = vrot.lane.b32.xlu0 %v1307, 64
      %v2320 = vpop.permute.xlu0 %2319
      %2321 = vrot.lane.b32.xlu0 %v1308, 64
      %v2322 = vpop.permute.xlu0 %2321
      %2323 = vrot.lane.b32.xlu0 %v1309, 64
      %v2324 = vpop.permute.xlu0 %2323
      %2325 = vrot.lane.b32.xlu0 %v1310, 64
      %v2326 = vpop.permute.xlu0 %2325
      %2327 = vrot.lane.b32.xlu0 %v1311, 64
      %v2328 = vpop.permute.xlu0 %2327
      %2329 = vrot.lane.b32.xlu0 %v1312, 64
      %v2330 = vpop.permute.xlu0 %2329
      %2331 = vrot.lane.b32.xlu0 %v1313, 64
      %v2332 = vpop.permute.xlu0 %2331
      %2333 = vrot.lane.b32.xlu0 %v1314, 64
      %v2334 = vpop.permute.xlu0 %2333
      %2335 = vrot.lane.b32.xlu0 %v1938, 64
      %v2336 = vpop.permute.xlu0 %2335
      %2337 = vrot.lane.b32.xlu0 %v1939, 64
      %v2338 = vpop.permute.xlu0 %2337
      %2339 = vrot.lane.b32.xlu0 %v1283, 64
      %v2340 = vpop.permute.xlu0 %2339
      %2341 = vrot.lane.b32.xlu0 %v1284, 64
      %v2342 = vpop.permute.xlu0 %2341
      %2375 = vst.msk [vmem:[#allocation2 + $0x4] sm:$0xf] %vm1893, %v2280
      %2376 = vst.msk [vmem:[#allocation2 + $0x10] sm:$0xf] %vm1893, %v2282
      %2377 = vst.msk [vmem:[#allocation2 + $0x1c] sm:$0xf] %vm1893, %v2284
      %2378 = vst.msk [vmem:[#allocation2 + $0x28] sm:$0xf] %vm1893, %v2286
      %2379 = vst.msk [vmem:[#allocation2 + $0x34] sm:$0xf] %vm1893, %v2288
      %2380 = vst.msk [vmem:[#allocation2 + $0x40] sm:$0xf] %vm1893, %v2290
      %2381 = vst.msk [vmem:[#allocation2 + $0x4c] sm:$0xf] %vm1893, %v2292
      %2382 = vst.msk [vmem:[#allocation2 + $0x58] sm:$0xf] %vm1893, %v2294
      %2383 = vst.msk [vmem:[#allocation2 + $0x64] sm:$0xf] %vm1893, %v2296
      %2384 = vst.msk [vmem:[#allocation2 + $0x70] sm:$0xf] %vm1893, %v2298
      %2385 = vst.msk [vmem:[#allocation2 + $0x7c] sm:$0xf] %vm1893, %v2300
      %2386 = vst.msk [vmem:[#allocation2 + $0x88] sm:$0xf] %vm1893, %v2302
      %2387 = vst.msk [vmem:[#allocation2 + $0x94] sm:$0xf] %vm1893, %v2304
      %2388 = vst.msk [vmem:[#allocation2 + $0xa0] sm:$0xf] %vm1893, %v2306
      %2389 = vst.msk [vmem:[#allocation2 + $0xac] sm:$0xf] %vm1893, %v2308
      %2390 = vst.msk [vmem:[#allocation2 + $0xb8] sm:$0xf] %vm1893, %v2310
      %2391 = vst.msk [vmem:[#allocation2 + $0xc4] sm:$0xf] %vm1893, %v2312
      %2392 = vst.msk [vmem:[#allocation2 + $0xd0] sm:$0xf] %vm1893, %v2314
      %2393 = vst.msk [vmem:[#allocation2 + $0xdc] sm:$0xf] %vm1893, %v2316
      %2394 = vst.msk [vmem:[#allocation2 + $0xe8] sm:$0xf] %vm1893, %v2318
      %2395 = vst.msk [vmem:[#allocation2 + $0xf4] sm:$0xf] %vm1893, %v2320
      %2396 = vst.msk [vmem:[#allocation2 + $0x100] sm:$0xf] %vm1893, %v2322
      %2397 = vst.msk [vmem:[#allocation2 + $0x10c] sm:$0xf] %vm1893, %v2324
      %2398 = vst.msk [vmem:[#allocation2 + $0x118] sm:$0xf] %vm1893, %v2326
      %2399 = vst.msk [vmem:[#allocation2 + $0x124] sm:$0xf] %vm1893, %v2328
      %2400 = vst.msk [vmem:[#allocation2 + $0x130] sm:$0xf] %vm1893, %v2330
      %2401 = vst.msk [vmem:[#allocation2 + $0x13c] sm:$0xf] %vm1893, %v2332
      %2402 = vst.msk [vmem:[#allocation2 + $0x148] sm:$0xf] %vm1893, %v2334
      %2403 = vst.msk [vmem:[#allocation2 + $0x154] sm:$0xf] %vm1893, %v2336
      %2404 = vst.msk [vmem:[#allocation2 + $0x160] sm:$0xf] %vm1893, %v2338
      %2405 = vst.msk [vmem:[#allocation2 + $0x16c] sm:$0xf] %vm1893, %v2340
      %2406 = vst.msk [vmem:[#allocation2 + $0x178] sm:$0xf] %vm1893, %v2342
      %2407 = vrot.lane.b32.xlu0 %v1448, 96
      %v2408 = vpop.permute.xlu0 %2407
      %2409 = vrot.lane.b32.xlu0 %v1449, 96
      %v2410 = vpop.permute.xlu0 %2409
      %2411 = vrot.lane.b32.xlu0 %v1450, 96
      %v2412 = vpop.permute.xlu0 %2411
      %2413 = vrot.lane.b32.xlu0 %v1451, 96
      %v2414 = vpop.permute.xlu0 %2413
      %2415 = vrot.lane.b32.xlu0 %v1452, 96
      %v2416 = vpop.permute.xlu0 %2415
      %2417 = vrot.lane.b32.xlu0 %v1453, 96
      %v2418 = vpop.permute.xlu0 %2417
      %2419 = vrot.lane.b32.xlu0 %v1454, 96
      %v2420 = vpop.permute.xlu0 %2419
      %2421 = vrot.lane.b32.xlu0 %v1455, 96
      %v2422 = vpop.permute.xlu0 %2421
      %2423 = vrot.lane.b32.xlu0 %v1456, 96
      %v2424 = vpop.permute.xlu0 %2423
      %2425 = vrot.lane.b32.xlu0 %v1457, 96
      %v2426 = vpop.permute.xlu0 %2425
      %2427 = vrot.lane.b32.xlu0 %v1458, 96
      %v2428 = vpop.permute.xlu0 %2427
      %2429 = vrot.lane.b32.xlu0 %v1459, 96
      %v2430 = vpop.permute.xlu0 %2429
      %2431 = vrot.lane.b32.xlu0 %v1460, 96
      %v2432 = vpop.permute.xlu0 %2431
      %2433 = vrot.lane.b32.xlu0 %v1461, 96
      %v2434 = vpop.permute.xlu0 %2433
      %2435 = vrot.lane.b32.xlu0 %v1462, 96
      %v2436 = vpop.permute.xlu0 %2435
      %2437 = vrot.lane.b32.xlu0 %v1463, 96
      %v2438 = vpop.permute.xlu0 %2437
      %2439 = vrot.lane.b32.xlu0 %v1464, 96
      %v2440 = vpop.permute.xlu0 %2439
      %2441 = vrot.lane.b32.xlu0 %v1465, 96
      %v2442 = vpop.permute.xlu0 %2441
      %2443 = vrot.lane.b32.xlu0 %v1466, 96
      %v2444 = vpop.permute.xlu0 %2443
      %2445 = vrot.lane.b32.xlu0 %v1467, 96
      %v2446 = vpop.permute.xlu0 %2445
      %2447 = vrot.lane.b32.xlu0 %v1468, 96
      %v2448 = vpop.permute.xlu0 %2447
      %2449 = vrot.lane.b32.xlu0 %v1469, 96
      %v2450 = vpop.permute.xlu0 %2449
      %2451 = vrot.lane.b32.xlu0 %v1470, 96
      %v2452 = vpop.permute.xlu0 %2451
      %2453 = vrot.lane.b32.xlu0 %v1471, 96
      %v2454 = vpop.permute.xlu0 %2453
      %2455 = vrot.lane.b32.xlu0 %v1472, 96
      %v2456 = vpop.permute.xlu0 %2455
      %2457 = vrot.lane.b32.xlu0 %v1473, 96
      %v2458 = vpop.permute.xlu0 %2457
      %2459 = vrot.lane.b32.xlu0 %v1474, 96
      %v2460 = vpop.permute.xlu0 %2459
      %2461 = vrot.lane.b32.xlu0 %v1475, 96
      %v2462 = vpop.permute.xlu0 %2461
      %2463 = vrot.lane.b32.xlu0 %v2073, 96
      %v2464 = vpop.permute.xlu0 %2463
      %2465 = vrot.lane.b32.xlu0 %v2074, 96
      %v2466 = vpop.permute.xlu0 %2465
      %2467 = vrot.lane.b32.xlu0 %v1444, 96
      %v2468 = vpop.permute.xlu0 %2467
      %2469 = vrot.lane.b32.xlu0 %v1445, 96
      %v2470 = vpop.permute.xlu0 %2469
      %2503 = vst.msk [vmem:[#allocation2 + $0x4] sm:$0xf] %vm2036, %v2408
      %2504 = vst.msk [vmem:[#allocation2 + $0x10] sm:$0xf] %vm2036, %v2410
      %2505 = vst.msk [vmem:[#allocation2 + $0x1c] sm:$0xf] %vm2036, %v2412
      %2506 = vst.msk [vmem:[#allocation2 + $0x28] sm:$0xf] %vm2036, %v2414
      %2507 = vst.msk [vmem:[#allocation2 + $0x34] sm:$0xf] %vm2036, %v2416
      %2508 = vst.msk [vmem:[#allocation2 + $0x40] sm:$0xf] %vm2036, %v2418
      %2509 = vst.msk [vmem:[#allocation2 + $0x4c] sm:$0xf] %vm2036, %v2420
      %2510 = vst.msk [vmem:[#allocation2 + $0x58] sm:$0xf] %vm2036, %v2422
      %2511 = vst.msk [vmem:[#allocation2 + $0x64] sm:$0xf] %vm2036, %v2424
      %2512 = vst.msk [vmem:[#allocation2 + $0x70] sm:$0xf] %vm2036, %v2426
      %2513 = vst.msk [vmem:[#allocation2 + $0x7c] sm:$0xf] %vm2036, %v2428
      %2514 = vst.msk [vmem:[#allocation2 + $0x88] sm:$0xf] %vm2036, %v2430
      %2515 = vst.msk [vmem:[#allocation2 + $0x94] sm:$0xf] %vm2036, %v2432
      %2516 = vst.msk [vmem:[#allocation2 + $0xa0] sm:$0xf] %vm2036, %v2434
      %2517 = vst.msk [vmem:[#allocation2 + $0xac] sm:$0xf] %vm2036, %v2436
      %2518 = vst.msk [vmem:[#allocation2 + $0xb8] sm:$0xf] %vm2036, %v2438
      %2519 = vst.msk [vmem:[#allocation2 + $0xc4] sm:$0xf] %vm2036, %v2440
      %2520 = vst.msk [vmem:[#allocation2 + $0xd0] sm:$0xf] %vm2036, %v2442
      %2521 = vst.msk [vmem:[#allocation2 + $0xdc] sm:$0xf] %vm2036, %v2444
      %2522 = vst.msk [vmem:[#allocation2 + $0xe8] sm:$0xf] %vm2036, %v2446
      %2523 = vst.msk [vmem:[#allocation2 + $0xf4] sm:$0xf] %vm2036, %v2448
      %2524 = vst.msk [vmem:[#allocation2 + $0x100] sm:$0xf] %vm2036, %v2450
      %2525 = vst.msk [vmem:[#allocation2 + $0x10c] sm:$0xf] %vm2036, %v2452
      %2526 = vst.msk [vmem:[#allocation2 + $0x118] sm:$0xf] %vm2036, %v2454
      %2527 = vst.msk [vmem:[#allocation2 + $0x124] sm:$0xf] %vm2036, %v2456
      %2528 = vst.msk [vmem:[#allocation2 + $0x130] sm:$0xf] %vm2036, %v2458
      %2529 = vst.msk [vmem:[#allocation2 + $0x13c] sm:$0xf] %vm2036, %v2460
      %2530 = vst.msk [vmem:[#allocation2 + $0x148] sm:$0xf] %vm2036, %v2462
      %2531 = vst.msk [vmem:[#allocation2 + $0x154] sm:$0xf] %vm2036, %v2464
      %2532 = vst.msk [vmem:[#allocation2 + $0x160] sm:$0xf] %vm2036, %v2466
      %2533 = vst.msk [vmem:[#allocation2 + $0x16c] sm:$0xf] %vm2036, %v2468
      %2534 = vst.msk [vmem:[#allocation2 + $0x178] sm:$0xf] %vm2036, %v2470
      %2567 = vst.msk [vmem:[#allocation2 + $0x8] sm:$0xf] %vm1347, %v1769
      %2568 = vst.msk [vmem:[#allocation2 + $0x14] sm:$0xf] %vm1347, %v1770
      %2569 = vst.msk [vmem:[#allocation2 + $0x20] sm:$0xf] %vm1347, %v1771
      %2570 = vst.msk [vmem:[#allocation2 + $0x2c] sm:$0xf] %vm1347, %v1772
      %2571 = vst.msk [vmem:[#allocation2 + $0x38] sm:$0xf] %vm1347, %v1773
      %2572 = vst.msk [vmem:[#allocation2 + $0x44] sm:$0xf] %vm1347, %v1774
      %2573 = vst.msk [vmem:[#allocation2 + $0x50] sm:$0xf] %vm1347, %v1775
      %2574 = vst.msk [vmem:[#allocation2 + $0x5c] sm:$0xf] %vm1347, %v1776
      %2575 = vst.msk [vmem:[#allocation2 + $0x68] sm:$0xf] %vm1347, %v1777
      %2576 = vst.msk [vmem:[#allocation2 + $0x74] sm:$0xf] %vm1347, %v1778
      %2577 = vst.msk [vmem:[#allocation2 + $0x80] sm:$0xf] %vm1347, %v1779
      %2578 = vst.msk [vmem:[#allocation2 + $0x8c] sm:$0xf] %vm1347, %v1780
      %2579 = vst.msk [vmem:[#allocation2 + $0x98] sm:$0xf] %vm1347, %v1781
      %2580 = vst.msk [vmem:[#allocation2 + $0xa4] sm:$0xf] %vm1347, %v1782
      %2581 = vst.msk [vmem:[#allocation2 + $0xb0] sm:$0xf] %vm1347, %v1783
      %2582 = vst.msk [vmem:[#allocation2 + $0xbc] sm:$0xf] %vm1347, %v1784
      %2583 = vst.msk [vmem:[#allocation2 + $0xc8] sm:$0xf] %vm1347, %v1785
      %2584 = vst.msk [vmem:[#allocation2 + $0xd4] sm:$0xf] %vm1347, %v1786
      %2585 = vst.msk [vmem:[#allocation2 + $0xe0] sm:$0xf] %vm1347, %v1787
      %2586 = vst.msk [vmem:[#allocation2 + $0xec] sm:$0xf] %vm1347, %v1788
      %2587 = vst.msk [vmem:[#allocation2 + $0xf8] sm:$0xf] %vm1347, %v1789
      %2588 = vst.msk [vmem:[#allocation2 + $0x104] sm:$0xf] %vm1347, %v1790
      %2589 = vst.msk [vmem:[#allocation2 + $0x110] sm:$0xf] %vm1347, %v1791
      %2590 = vst.msk [vmem:[#allocation2 + $0x11c] sm:$0xf] %vm1347, %v1792
      %2591 = vst.msk [vmem:[#allocation2 + $0x128] sm:$0xf] %vm1347, %v1793
      %2592 = vst.msk [vmem:[#allocation2 + $0x134] sm:$0xf] %vm1347, %v1794
      %2593 = vst.msk [vmem:[#allocation2 + $0x140] sm:$0xf] %vm1347, %v1795
      %2594 = vst.msk [vmem:[#allocation2 + $0x14c] sm:$0xf] %vm1347, %v1796
      %2595 = vst.msk [vmem:[#allocation2 + $0x158] sm:$0xf] %vm1347, %v2149
      %2596 = vst.msk [vmem:[#allocation2 + $0x164] sm:$0xf] %vm1347, %v2150
      %2597 = vst.msk [vmem:[#allocation2 + $0x170] sm:$0xf] %vm1347, %v1765
      %2598 = vst.msk [vmem:[#allocation2 + $0x17c] sm:$0xf] %vm1347, %v1766
      %v2599 = vld [vmem:[#allocation2] sm:$0xff]
      %v2600 = vld [vmem:[#allocation2 + $0x8] sm:$0xf]
      %v2601 = vld [vmem:[#allocation2 + $0xc] sm:$0xff]
      %v2602 = vld [vmem:[#allocation2 + $0x14] sm:$0xf]
      %v2603 = vld [vmem:[#allocation2 + $0x18] sm:$0xff]
      %v2604 = vld [vmem:[#allocation2 + $0x20] sm:$0xf]
      %v2605 = vld [vmem:[#allocation2 + $0x24] sm:$0xff]
      %v2606 = vld [vmem:[#allocation2 + $0x2c] sm:$0xf]
      %v2607 = vld [vmem:[#allocation2 + $0x30] sm:$0xff]
      %v2608 = vld [vmem:[#allocation2 + $0x38] sm:$0xf]
      %v2609 = vld [vmem:[#allocation2 + $0x3c] sm:$0xff]
      %v2610 = vld [vmem:[#allocation2 + $0x44] sm:$0xf]
      %v2611 = vld [vmem:[#allocation2 + $0x48] sm:$0xff]
      %v2612 = vld [vmem:[#allocation2 + $0x50] sm:$0xf]
      %v2613 = vld [vmem:[#allocation2 + $0x54] sm:$0xff]
      %v2614 = vld [vmem:[#allocation2 + $0x5c] sm:$0xf]
      %v2615 = vld [vmem:[#allocation2 + $0x60] sm:$0xff]
      %v2616 = vld [vmem:[#allocation2 + $0x68] sm:$0xf]
      %v2617 = vld [vmem:[#allocation2 + $0x6c] sm:$0xff]
      %v2618 = vld [vmem:[#allocation2 + $0x74] sm:$0xf]
      %v2619 = vld [vmem:[#allocation2 + $0x78] sm:$0xff]
      %v2620 = vld [vmem:[#allocation2 + $0x80] sm:$0xf]
      %v2621 = vld [vmem:[#allocation2 + $0x84] sm:$0xff]
      %v2622 = vld [vmem:[#allocation2 + $0x8c] sm:$0xf]
      %v2623 = vld [vmem:[#allocation2 + $0x90] sm:$0xff]
      %v2624 = vld [vmem:[#allocation2 + $0x98] sm:$0xf]
      %v2625 = vld [vmem:[#allocation2 + $0x9c] sm:$0xff]
      %v2626 = vld [vmem:[#allocation2 + $0xa4] sm:$0xf]
      %v2627 = vld [vmem:[#allocation2 + $0xa8] sm:$0xff]
      %v2628 = vld [vmem:[#allocation2 + $0xb0] sm:$0xf]
      %v2629 = vld [vmem:[#allocation2 + $0xb4] sm:$0xff]
      %v2630 = vld [vmem:[#allocation2 + $0xbc] sm:$0xf]
      %v2631 = vld [vmem:[#allocation2 + $0xc0] sm:$0xff]
      %v2632 = vld [vmem:[#allocation2 + $0xc8] sm:$0xf]
      %v2633 = vld [vmem:[#allocation2 + $0xcc] sm:$0xff]
      %v2634 = vld [vmem:[#allocation2 + $0xd4] sm:$0xf]
      %v2635 = vld [vmem:[#allocation2 + $0xd8] sm:$0xff]
      %v2636 = vld [vmem:[#allocation2 + $0xe0] sm:$0xf]
      %v2637 = vld [vmem:[#allocation2 + $0xe4] sm:$0xff]
      %v2638 = vld [vmem:[#allocation2 + $0xec] sm:$0xf]
      %v2639 = vld [vmem:[#allocation2 + $0xf0] sm:$0xff]
      %v2640 = vld [vmem:[#allocation2 + $0xf8] sm:$0xf]
      %v2641 = vld [vmem:[#allocation2 + $0xfc] sm:$0xff]
      %v2642 = vld [vmem:[#allocation2 + $0x104] sm:$0xf]
      %v2643 = vld [vmem:[#allocation2 + $0x108] sm:$0xff]
      %v2644 = vld [vmem:[#allocation2 + $0x110] sm:$0xf]
      %v2645 = vld [vmem:[#allocation2 + $0x114] sm:$0xff]
      %v2646 = vld [vmem:[#allocation2 + $0x11c] sm:$0xf]
      %v2647 = vld [vmem:[#allocation2 + $0x120] sm:$0xff]
      %v2648 = vld [vmem:[#allocation2 + $0x128] sm:$0xf]
      %v2649 = vld [vmem:[#allocation2 + $0x12c] sm:$0xff]
      %v2650 = vld [vmem:[#allocation2 + $0x134] sm:$0xf]
      %v2651 = vld [vmem:[#allocation2 + $0x138] sm:$0xff]
      %v2652 = vld [vmem:[#allocation2 + $0x140] sm:$0xf]
      %v2653 = vld [vmem:[#allocation2 + $0x144] sm:$0xff]
      %v2654 = vld [vmem:[#allocation2 + $0x14c] sm:$0xf]
      %v2655 = vld [vmem:[#allocation2 + $0x150] sm:$0xff]
      %v2656 = vld [vmem:[#allocation2 + $0x158] sm:$0xf]
      %v2657 = vld [vmem:[#allocation2 + $0x15c] sm:$0xff]
      %v2658 = vld [vmem:[#allocation2 + $0x164] sm:$0xf]
      %v2659 = vld [vmem:[#allocation2 + $0x168] sm:$0xff]
      %v2660 = vld [vmem:[#allocation2 + $0x170] sm:$0xf]
      %v2661 = vld [vmem:[#allocation2 + $0x174] sm:$0xff]
      %v2662 = vld [vmem:[#allocation2 + $0x17c] sm:$0xf]
      %v2663 = vld [vmem:[%s6] sm:$0xf]
      %v2664 = vld [vmem:[%s6 + $0x4] sm:$0xf]
      %v2665 = vld [vmem:[%s6 + $0x8] sm:$0xf]
      %v2666 = vld [vmem:[%s6 + $0xc] sm:$0xf]
      %v2667 = vld [vmem:[%s6 + $0x10] sm:$0xf]
      %v2668 = vld [vmem:[%s6 + $0x14] sm:$0xf]
      %v2669 = vld [vmem:[%s6 + $0x18] sm:$0xf]
      %v2670 = vld [vmem:[%s6 + $0x1c] sm:$0xf]
      %v2671 = vld [vmem:[%s6 + $0x20] sm:$0xf]
      %v2672 = vld [vmem:[%s6 + $0x24] sm:$0xf]
      %v2673 = vld [vmem:[%s6 + $0x28] sm:$0xf]
      %v2674 = vld [vmem:[%s6 + $0x2c] sm:$0xf]
      %v2675 = vld [vmem:[%s6 + $0x30] sm:$0xf]
      %v2676 = vld [vmem:[%s6 + $0x34] sm:$0xf]
      %v2677 = vld [vmem:[%s6 + $0x38] sm:$0xf]
      %v2678 = vld [vmem:[%s6 + $0x3c] sm:$0xf]
      %v2679 = vld [vmem:[%s6 + $0x40] sm:$0xf]
      %v2680 = vld [vmem:[%s6 + $0x44] sm:$0xf]
      %v2681 = vld [vmem:[%s6 + $0x48] sm:$0xf]
      %v2682 = vld [vmem:[%s6 + $0x4c] sm:$0xf]
      %v2683 = vld [vmem:[%s6 + $0x50] sm:$0xf]
      %v2684 = vld [vmem:[%s6 + $0x54] sm:$0xf]
      %v2685 = vld [vmem:[%s6 + $0x58] sm:$0xf]
      %v2686 = vld [vmem:[%s6 + $0x5c] sm:$0xf]
      %v2687 = vld [vmem:[%s6 + $0x60] sm:$0xf]
      %v2688 = vld [vmem:[%s6 + $0x64] sm:$0xf]
      %v2689 = vld [vmem:[%s6 + $0x68] sm:$0xf]
      %v2690 = vld [vmem:[%s6 + $0x6c] sm:$0xf]
      %v2691 = vld [vmem:[%s6 + $0x70] sm:$0xf]
      %v2692 = vld [vmem:[%s6 + $0x74] sm:$0xf]
      %v2693 = vld [vmem:[%s6 + $0x78] sm:$0xf]
      %v2694 = vld [vmem:[%s6 + $0x7c] sm:$0xf]
      %v2695 = vld [vmem:[%s6 + $0x80] sm:$0xf]
      %v2696 = vld [vmem:[%s6 + $0x84] sm:$0xf]
      %v2697 = vld [vmem:[%s6 + $0x88] sm:$0xf]
      %v2698 = vld [vmem:[%s6 + $0x8c] sm:$0xf]
      %v2699 = vld [vmem:[%s7] sm:$0x1]
      %v2701 = vlaneseq
      %v2702 = vshrl.u32 %v2701, 7
      %v2703 = vsub.s32 0, %v2702
      %v2704 = vrot.slane %v2699, %v2703
      %v2770 = vunpack.c.l.b16 %v2599
      %v2771 = vunpack.c.h.b16 %v2599
      %v2772 = vunpack.c.l.b16 %v2600
      %v2773 = vunpack.c.l.b16 %v2601
      %v2774 = vunpack.c.h.b16 %v2601
      %v2775 = vunpack.c.l.b16 %v2602
      %v2776 = vunpack.c.l.b16 %v2603
      %v2777 = vunpack.c.h.b16 %v2603
      %v2778 = vunpack.c.l.b16 %v2604
      %v2779 = vunpack.c.l.b16 %v2605
      %v2780 = vunpack.c.h.b16 %v2605
      %v2781 = vunpack.c.l.b16 %v2606
      %v2782 = vunpack.c.l.b16 %v2607
      %v2783 = vunpack.c.h.b16 %v2607
      %v2784 = vunpack.c.l.b16 %v2608
      %v2785 = vunpack.c.l.b16 %v2609
      %v2786 = vunpack.c.h.b16 %v2609
      %v2787 = vunpack.c.l.b16 %v2610
      %v2788 = vunpack.c.l.b16 %v2611
      %v2789 = vunpack.c.h.b16 %v2611
      %v2790 = vunpack.c.l.b16 %v2612
      %v2791 = vunpack.c.l.b16 %v2613
      %v2792 = vunpack.c.h.b16 %v2613
      %v2793 = vunpack.c.l.b16 %v2614
      %v2794 = vunpack.c.l.b16 %v2615
      %v2795 = vunpack.c.h.b16 %v2615
      %v2796 = vunpack.c.l.b16 %v2616
      %v2797 = vunpack.c.l.b16 %v2617
      %v2798 = vunpack.c.h.b16 %v2617
      %v2799 = vunpack.c.l.b16 %v2618
      %v2800 = vunpack.c.l.b16 %v2619
      %v2801 = vunpack.c.h.b16 %v2619
      %v2802 = vunpack.c.l.b16 %v2620
      %v2803 = vunpack.c.l.b16 %v2621
      %v2804 = vunpack.c.h.b16 %v2621
      %v2805 = vunpack.c.l.b16 %v2622
      %v2806 = vunpack.c.l.b16 %v2623
      %v2807 = vunpack.c.h.b16 %v2623
      %v2808 = vunpack.c.l.b16 %v2624
      %v2809 = vunpack.c.l.b16 %v2625
      %v2810 = vunpack.c.h.b16 %v2625
      %v2811 = vunpack.c.l.b16 %v2626
      %v2812 = vunpack.c.l.b16 %v2627
      %v2813 = vunpack.c.h.b16 %v2627
      %v2814 = vunpack.c.l.b16 %v2628
      %v2815 = vunpack.c.l.b16 %v2629
      %v2816 = vunpack.c.h.b16 %v2629
      %v2817 = vunpack.c.l.b16 %v2630
      %v2818 = vunpack.c.l.b16 %v2631
      %v2819 = vunpack.c.h.b16 %v2631
      %v2820 = vunpack.c.l.b16 %v2632
      %v2821 = vunpack.c.l.b16 %v2633
      %v2822 = vunpack.c.h.b16 %v2633
      %v2823 = vunpack.c.l.b16 %v2634
      %v2824 = vunpack.c.l.b16 %v2635
      %v2825 = vunpack.c.h.b16 %v2635
      %v2826 = vunpack.c.l.b16 %v2636
      %v2827 = vunpack.c.l.b16 %v2637
      %v2828 = vunpack.c.h.b16 %v2637
      %v2829 = vunpack.c.l.b16 %v2638
      %v2830 = vunpack.c.l.b16 %v2639
      %v2831 = vunpack.c.h.b16 %v2639
      %v2832 = vunpack.c.l.b16 %v2640
      %v2833 = vunpack.c.l.b16 %v2641
      %v2834 = vunpack.c.h.b16 %v2641
      %v2835 = vunpack.c.l.b16 %v2642
      %v2836 = vunpack.c.l.b16 %v2643
      %v2837 = vunpack.c.h.b16 %v2643
      %v2838 = vunpack.c.l.b16 %v2644
      %v2839 = vunpack.c.l.b16 %v2645
      %v2840 = vunpack.c.h.b16 %v2645
      %v2841 = vunpack.c.l.b16 %v2646
      %v2842 = vunpack.c.l.b16 %v2647
      %v2843 = vunpack.c.h.b16 %v2647
      %v2844 = vunpack.c.l.b16 %v2648
      %v2845 = vunpack.c.l.b16 %v2649
      %v2846 = vunpack.c.h.b16 %v2649
      %v2847 = vunpack.c.l.b16 %v2650
      %v2848 = vunpack.c.l.b16 %v2651
      %v2849 = vunpack.c.h.b16 %v2651
      %v2850 = vunpack.c.l.b16 %v2652
      %v2851 = vunpack.c.l.b16 %v2653
      %v2852 = vunpack.c.h.b16 %v2653
      %v2853 = vunpack.c.l.b16 %v2654
      %v2854 = vunpack.c.l.b16 %v2655
      %v2855 = vunpack.c.h.b16 %v2655
      %v2856 = vunpack.c.l.b16 %v2656
      %v2857 = vunpack.c.l.b16 %v2657
      %v2858 = vunpack.c.h.b16 %v2657
      %v2859 = vunpack.c.l.b16 %v2658
      %v2860 = vunpack.c.l.b16 %v2659
      %v2861 = vunpack.c.h.b16 %v2659
      %v2862 = vunpack.c.l.b16 %v2660
      %v2863 = vunpack.c.l.b16 %v2661
      %v2864 = vunpack.c.h.b16 %v2661
      %v2865 = vunpack.c.l.b16 %v2662
      %v2866 = vpack.c.b16 %v2773, %v2770
      %v2867 = vpack.c.b16 %v2774, %v2771
      %v2868 = vpack.c.b16 %v2775, %v2772
      %v2869 = vpack.c.b16 %v2779, %v2776
      %v2870 = vpack.c.b16 %v2780, %v2777
      %v2871 = vpack.c.b16 %v2781, %v2778
      %v2872 = vpack.c.b16 %v2785, %v2782
      %v2873 = vpack.c.b16 %v2786, %v2783
      %v2874 = vpack.c.b16 %v2787, %v2784
      %v2875 = vpack.c.b16 %v2791, %v2788
      %v2876 = vpack.c.b16 %v2792, %v2789
      %v2877 = vpack.c.b16 %v2793, %v2790
      %v2878 = vpack.c.b16 %v2797, %v2794
      %v2879 = vpack.c.b16 %v2798, %v2795
      %v2880 = vpack.c.b16 %v2799, %v2796
      %v2881 = vpack.c.b16 %v2803, %v2800
      %v2882 = vpack.c.b16 %v2804, %v2801
      %v2883 = vpack.c.b16 %v2805, %v2802
      %v2884 = vpack.c.b16 %v2809, %v2806
      %v2885 = vpack.c.b16 %v2810, %v2807
      %v2886 = vpack.c.b16 %v2811, %v2808
      %v2887 = vpack.c.b16 %v2815, %v2812
      %v2888 = vpack.c.b16 %v2816, %v2813
      %v2889 = vpack.c.b16 %v2817, %v2814
      %v2890 = vpack.c.b16 %v2821, %v2818
      %v2891 = vpack.c.b16 %v2822, %v2819
      %v2892 = vpack.c.b16 %v2823, %v2820
      %v2893 = vpack.c.b16 %v2827, %v2824
      %v2894 = vpack.c.b16 %v2828, %v2825
      %v2895 = vpack.c.b16 %v2829, %v2826
      %v2896 = vpack.c.b16 %v2833, %v2830
      %v2897 = vpack.c.b16 %v2834, %v2831
      %v2898 = vpack.c.b16 %v2835, %v2832
      %v2899 = vpack.c.b16 %v2839, %v2836
      %v2900 = vpack.c.b16 %v2840, %v2837
      %v2901 = vpack.c.b16 %v2841, %v2838
      %v2902 = vpack.c.b16 %v2845, %v2842
      %v2903 = vpack.c.b16 %v2846, %v2843
      %v2904 = vpack.c.b16 %v2847, %v2844
      %v2905 = vpack.c.b16 %v2851, %v2848
      %v2906 = vpack.c.b16 %v2852, %v2849
      %v2907 = vpack.c.b16 %v2853, %v2850
      %v2908 = vpack.c.b16 %v2857, %v2854
      %v2909 = vpack.c.b16 %v2858, %v2855
      %v2910 = vpack.c.b16 %v2859, %v2856
      %v2911 = vpack.c.b16 %v2863, %v2860
      %v2912 = vpack.c.b16 %v2864, %v2861
      %v2913 = vpack.c.b16 %v2865, %v2862
      %v2982 = vunpack.c.l.b16 %v2663
      %v2983 = vunpack.c.l.b16 %v2664
      %v2984 = vunpack.c.l.b16 %v2665
      %v2985 = vunpack.c.l.b16 %v2666
      %v2986 = vunpack.c.l.b16 %v2667
      %v2987 = vunpack.c.l.b16 %v2668
      %v2988 = vunpack.c.l.b16 %v2669
      %v2989 = vunpack.c.l.b16 %v2670
      %v2990 = vunpack.c.l.b16 %v2671
      %v2991 = vunpack.c.l.b16 %v2672
      %v2992 = vunpack.c.l.b16 %v2673
      %v2993 = vunpack.c.l.b16 %v2674
      %v2994 = vunpack.c.l.b16 %v2675
      %v2995 = vunpack.c.l.b16 %v2676
      %v2996 = vunpack.c.l.b16 %v2677
      %v2997 = vunpack.c.l.b16 %v2678
      %v2998 = vunpack.c.l.b16 %v2679
      %v2999 = vunpack.c.l.b16 %v2680
      %v3000 = vunpack.c.l.b16 %v2681
      %v3001 = vunpack.c.l.b16 %v2682
      %v3002 = vunpack.c.l.b16 %v2683
      %v3003 = vunpack.c.l.b16 %v2684
      %v3004 = vunpack.c.l.b16 %v2685
      %v3005 = vunpack.c.l.b16 %v2686
      %v3006 = vunpack.c.l.b16 %v2687
      %v3007 = vunpack.c.l.b16 %v2688
      %v3008 = vunpack.c.l.b16 %v2689
      %v3009 = vunpack.c.l.b16 %v2690
      %v3010 = vunpack.c.l.b16 %v2691
      %v3011 = vunpack.c.l.b16 %v2692
      %v3012 = vunpack.c.l.b16 %v2693
      %v3013 = vunpack.c.l.b16 %v2694
      %v3014 = vunpack.c.l.b16 %v2695
      %v3015 = vunpack.c.l.b16 %v2696
      %v3016 = vunpack.c.l.b16 %v2697
      %v3017 = vunpack.c.l.b16 %v2698
      %v3018 = vpack.c.b16 %v2983, %v2982
      %v3019 = vpack.c.b16 %v2985, %v2984
      %v3020 = vpack.c.b16 %v2987, %v2986
      %v3021 = vpack.c.b16 %v2989, %v2988
      %v3022 = vpack.c.b16 %v2991, %v2990
      %v3023 = vpack.c.b16 %v2993, %v2992
      %v3024 = vpack.c.b16 %v2995, %v2994
      %v3025 = vpack.c.b16 %v2997, %v2996
      %v3026 = vpack.c.b16 %v2999, %v2998
      %v3027 = vpack.c.b16 %v3001, %v3000
      %v3028 = vpack.c.b16 %v3003, %v3002
      %v3029 = vpack.c.b16 %v3005, %v3004
      %v3030 = vpack.c.b16 %v3007, %v3006
      %v3031 = vpack.c.b16 %v3009, %v3008
      %v3032 = vpack.c.b16 %v3011, %v3010
      %v3033 = vpack.c.b16 %v3013, %v3012
      %v3034 = vpack.c.b16 %v3015, %v3014
      %v3035 = vpack.c.b16 %v3017, %v3016
      %v3055 = vsel %vm514, %v2868, 0
      %v3058 = vsel %vm514, %v2871, 0
      %v3061 = vsel %vm514, %v2874, 0
      %v3064 = vsel %vm514, %v2877, 0
      %v3067 = vsel %vm514, %v2880, 0
      %v3070 = vsel %vm514, %v2883, 0
      %v3073 = vsel %vm514, %v2886, 0
      %v3076 = vsel %vm514, %v2889, 0
      %v3079 = vsel %vm514, %v2892, 0
      %v3082 = vsel %vm514, %v2895, 0
      %v3085 = vsel %vm514, %v2898, 0
      %v3088 = vsel %vm514, %v2901, 0
      %v3091 = vsel %vm514, %v2904, 0
      %v3094 = vsel %vm514, %v2907, 0
      %v3097 = vsel %vm514, %v2910, 0
      %v3100 = vsel %vm514, %v2913, 0
      %3102 = vmatprep.subr.bf16.mxu0 0
      %3103 = vmatpush1.bf16.msra.mxu0 %v3025
      %3104 = vmatprep.subr.bf16.mxu0 0
      %3105 = vmatpush1.bf16.msra.mxu0 %v3024
      %3106 = vmatprep.subr.bf16.mxu0 0
      %3107 = vmatpush1.bf16.msra.mxu0 %v3023
      %3108 = vmatprep.subr.bf16.mxu0 0
      %3109 = vmatpush1.bf16.msra.mxu0 %v3022
      %3110 = vmatprep.subr.bf16.mxu0 0
      %3111 = vmatpush1.bf16.msra.mxu0 %v3021
      %3112 = vmatprep.subr.bf16.mxu0 0
      %3113 = vmatpush1.bf16.msra.mxu0 %v3020
      %3114 = vmatprep.subr.bf16.mxu0 0
      %3115 = vmatpush1.bf16.msra.mxu0 %v3019
      %3116 = vmatprep.subr.bf16.mxu0 0
      %3117 = vmatpush1.bf16.msra.mxu0 %v3018
      %3118 = vmatprep.subr.bf16.mxu0 0
      %3119 = vmatpush2.bf16.msra.mxu0 %v3033
      %3120 = vmatprep.subr.bf16.mxu0 0
      %3121 = vmatpush2.bf16.msra.mxu0 %v3032
      %3122 = vmatprep.subr.bf16.mxu0 0
      %3123 = vmatpush2.bf16.msra.mxu0 %v3031
      %3124 = vmatprep.subr.bf16.mxu0 0
      %3125 = vmatpush2.bf16.msra.mxu0 %v3030
      %3126 = vmatprep.subr.bf16.mxu0 0
      %3127 = vmatpush2.bf16.msra.mxu0 %v3029
      %3128 = vmatprep.subr.bf16.mxu0 0
      %3129 = vmatpush2.bf16.msra.mxu0 %v3028
      %3130 = vmatprep.subr.bf16.mxu0 0
      %3131 = vmatpush2.bf16.msra.mxu0 %v3027
      %3132 = vmatprep.subr.bf16.mxu0 0
      %3133 = vmatpush2.bf16.msra.mxu0 %v3026
      %3134 = vmatprep.mubr.bf16.mxu0 %v2867
      %3135 = vmatmul.mubr.bf16.gmra.mxu0 %v2866
      %v3136 = vpop.f32.mrf.mxu0
      %v3137 = vadd.f32 %v2704, %v3136
      %v3138 = vpop.f32.mrf.mxu0
      %v3139 = vpop.f32.mrf.mxu0
      %v3140 = vadd.f32 %v2704, %v3139
      %v3141 = vpop.f32.mrf.mxu0
      %3142 = vmatprep.mubr.bf16.mxu0 %v2870
      %3143 = vmatmul.mubr.bf16.gmra.mxu0 %v2869
      %v3144 = vpop.f32.mrf.mxu0
      %v3145 = vadd.f32 %v2704, %v3144
      %v3146 = vpop.f32.mrf.mxu0
      %v3147 = vpop.f32.mrf.mxu0
      %v3148 = vadd.f32 %v2704, %v3147
      %v3149 = vpop.f32.mrf.mxu0
      %3150 = vmatprep.mubr.bf16.mxu0 %v2873
      %3151 = vmatmul.mubr.bf16.gmra.mxu0 %v2872
      %v3152 = vpop.f32.mrf.mxu0
      %v3153 = vadd.f32 %v2704, %v3152
      %v3154 = vpop.f32.mrf.mxu0
      %v3155 = vpop.f32.mrf.mxu0
      %v3156 = vadd.f32 %v2704, %v3155
      %v3157 = vpop.f32.mrf.mxu0
      %3158 = vmatprep.mubr.bf16.mxu0 %v2876
      %3159 = vmatmul.mubr.bf16.gmra.mxu0 %v2875
      %v3160 = vpop.f32.mrf.mxu0
      %v3161 = vadd.f32 %v2704, %v3160
      %v3162 = vpop.f32.mrf.mxu0
      %v3163 = vpop.f32.mrf.mxu0
      %v3164 = vadd.f32 %v2704, %v3163
      %v3165 = vpop.f32.mrf.mxu0
      %3166 = vmatprep.mubr.bf16.mxu0 %v2879
      %3167 = vmatmul.mubr.bf16.gmra.mxu0 %v2878
      %v3168 = vpop.f32.mrf.mxu0
      %v3169 = vadd.f32 %v2704, %v3168
      %v3170 = vpop.f32.mrf.mxu0
      %v3171 = vpop.f32.mrf.mxu0
      %v3172 = vadd.f32 %v2704, %v3171
      %v3173 = vpop.f32.mrf.mxu0
      %3174 = vmatprep.mubr.bf16.mxu0 %v2882
      %3175 = vmatmul.mubr.bf16.gmra.mxu0 %v2881
      %v3176 = vpop.f32.mrf.mxu0
      %v3177 = vadd.f32 %v2704, %v3176
      %v3178 = vpop.f32.mrf.mxu0
      %v3179 = vpop.f32.mrf.mxu0
      %v3180 = vadd.f32 %v2704, %v3179
      %v3181 = vpop.f32.mrf.mxu0
      %3182 = vmatprep.mubr.bf16.mxu0 %v2885
      %3183 = vmatmul.mubr.bf16.gmra.mxu0 %v2884
      %v3184 = vpop.f32.mrf.mxu0
      %v3185 = vadd.f32 %v2704, %v3184
      %v3186 = vpop.f32.mrf.mxu0
      %v3187 = vpop.f32.mrf.mxu0
      %v3188 = vadd.f32 %v2704, %v3187
      %v3189 = vpop.f32.mrf.mxu0
      %3190 = vmatprep.mubr.bf16.mxu0 %v2888
      %3191 = vmatmul.mubr.bf16.gmra.mxu0 %v2887
      %v3192 = vpop.f32.mrf.mxu0
      %v3193 = vadd.f32 %v2704, %v3192
      %v3194 = vpop.f32.mrf.mxu0
      %v3195 = vpop.f32.mrf.mxu0
      %v3196 = vadd.f32 %v2704, %v3195
      %v3197 = vpop.f32.mrf.mxu0
      %3198 = vmatprep.mubr.bf16.mxu0 %v2891
      %3199 = vmatmul.mubr.bf16.gmra.mxu0 %v2890
      %v3200 = vpop.f32.mrf.mxu0
      %v3201 = vadd.f32 %v2704, %v3200
      %v3202 = vpop.f32.mrf.mxu0
      %v3203 = vpop.f32.mrf.mxu0
      %v3204 = vadd.f32 %v2704, %v3203
      %v3205 = vpop.f32.mrf.mxu0
      %3206 = vmatprep.mubr.bf16.mxu0 %v2894
      %3207 = vmatmul.mubr.bf16.gmra.mxu0 %v2893
      %v3208 = vpop.f32.mrf.mxu0
      %v3209 = vadd.f32 %v2704, %v3208
      %v3210 = vpop.f32.mrf.mxu0
      %v3211 = vpop.f32.mrf.mxu0
      %v3212 = vadd.f32 %v2704, %v3211
      %v3213 = vpop.f32.mrf.mxu0
      %3214 = vmatprep.mubr.bf16.mxu0 %v2897
      %3215 = vmatmul.mubr.bf16.gmra.mxu0 %v2896
      %v3216 = vpop.f32.mrf.mxu0
      %v3217 = vadd.f32 %v2704, %v3216
      %v3218 = vpop.f32.mrf.mxu0
      %v3219 = vpop.f32.mrf.mxu0
      %v3220 = vadd.f32 %v2704, %v3219
      %v3221 = vpop.f32.mrf.mxu0
      %3222 = vmatprep.mubr.bf16.mxu0 %v2900
      %3223 = vmatmul.mubr.bf16.gmra.mxu0 %v2899
      %v3224 = vpop.f32.mrf.mxu0
      %v3225 = vadd.f32 %v2704, %v3224
      %v3226 = vpop.f32.mrf.mxu0
      %v3227 = vpop.f32.mrf.mxu0
      %v3228 = vadd.f32 %v2704, %v3227
      %v3229 = vpop.f32.mrf.mxu0
      %3230 = vmatprep.mubr.bf16.mxu0 %v2903
      %3231 = vmatmul.mubr.bf16.gmra.mxu0 %v2902
      %v3232 = vpop.f32.mrf.mxu0
      %v3233 = vadd.f32 %v2704, %v3232
      %v3234 = vpop.f32.mrf.mxu0
      %v3235 = vpop.f32.mrf.mxu0
      %v3236 = vadd.f32 %v2704, %v3235
      %v3237 = vpop.f32.mrf.mxu0
      %3238 = vmatprep.mubr.bf16.mxu0 %v2906
      %3239 = vmatmul.mubr.bf16.gmra.mxu0 %v2905
      %v3240 = vpop.f32.mrf.mxu0
      %v3241 = vadd.f32 %v2704, %v3240
      %v3242 = vpop.f32.mrf.mxu0
      %v3243 = vpop.f32.mrf.mxu0
      %v3244 = vadd.f32 %v2704, %v3243
      %v3245 = vpop.f32.mrf.mxu0
      %3246 = vmatprep.mubr.bf16.mxu0 %v2909
      %3247 = vmatmul.mubr.bf16.gmra.mxu0 %v2908
      %v3248 = vpop.f32.mrf.mxu0
      %v3249 = vadd.f32 %v2704, %v3248
      %v3250 = vpop.f32.mrf.mxu0
      %v3251 = vpop.f32.mrf.mxu0
      %v3252 = vadd.f32 %v2704, %v3251
      %v3253 = vpop.f32.mrf.mxu0
      %3254 = vmatprep.mubr.bf16.mxu0 %v2912
      %3255 = vmatmul.mubr.bf16.gmra.mxu0 %v2911
      %v3256 = vpop.f32.mrf.mxu0
      %v3257 = vadd.f32 %v2704, %v3256
      %v3258 = vpop.f32.mrf.mxu0
      %v3259 = vpop.f32.mrf.mxu0
      %v3260 = vadd.f32 %v2704, %v3259
      %v3261 = vpop.f32.mrf.mxu0
      %3262 = vdwg.mxu0
      %3263 = vmatprep.subr.bf16.mxu0 0
      %3264 = vmatpush1.bf16.msra.mxu0 0
      %3265 = vmatprep.subr.bf16.mxu0 0
      %3266 = vmatpush1.bf16.msra.mxu0 0
      %3267 = vmatprep.subr.bf16.mxu0 0
      %3268 = vmatpush1.bf16.msra.mxu0 0
      %3269 = vmatprep.subr.bf16.mxu0 0
      %3270 = vmatpush1.bf16.msra.mxu0 0
      %3271 = vmatprep.subr.bf16.mxu0 0
      %3272 = vmatpush1.bf16.msra.mxu0 0
      %3273 = vmatprep.subr.bf16.mxu0 0
      %3274 = vmatpush1.bf16.msra.mxu0 0
      %3275 = vmatprep.subr.bf16.mxu0 0
      %3276 = vmatpush1.bf16.msra.mxu0 %v3035
      %3277 = vmatprep.subr.bf16.mxu0 0
      %3278 = vmatpush1.bf16.msra.mxu0 %v3034
      %3279 = vmatprep.subr.bf16.mxu0 0
      %3280 = vmatpush2.bf16.msra.mxu0 0
      %3281 = vmatprep.subr.bf16.mxu0 0
      %3282 = vmatpush2.bf16.msra.mxu0 0
      %3283 = vmatprep.subr.bf16.mxu0 0
      %3284 = vmatpush2.bf16.msra.mxu0 0
      %3285 = vmatprep.subr.bf16.mxu0 0
      %3286 = vmatpush2.bf16.msra.mxu0 0
      %3287 = vmatprep.subr.bf16.mxu0 0
      %3288 = vmatpush2.bf16.msra.mxu0 0
      %3289 = vmatprep.subr.bf16.mxu0 0
      %3290 = vmatpush2.bf16.msra.mxu0 0
      %3291 = vmatprep.subr.bf16.mxu0 0
      %3292 = vmatpush2.bf16.msra.mxu0 0
      %3293 = vmatprep.subr.bf16.mxu0 0
      %3294 = vmatpush2.bf16.msra.mxu0 0
      %3295 = vmatprep.mubr.bf16.mxu0 0
      %3296 = vmatmul.mubr.bf16.gmra.mxu0 %v3055
      %v3297 = vpop.f32.mrf.mxu0
      %v3298 = vadd.f32 %v3137, %v3297
      %v3299 = vpop.f32.mrf.mxu0
      %v3300 = vpop.f32.mrf.mxu0
      %v3301 = vadd.f32 %v3140, %v3300
      %v3302 = vpop.f32.mrf.mxu0
      %3303 = vmatprep.mubr.bf16.mxu0 0
      %3304 = vmatmul.mubr.bf16.gmra.mxu0 %v3058
      %v3305 = vpop.f32.mrf.mxu0
      %v3306 = vadd.f32 %v3145, %v3305
      %v3307 = vpop.f32.mrf.mxu0
      %v3308 = vpop.f32.mrf.mxu0
      %v3309 = vadd.f32 %v3148, %v3308
      %v3310 = vpop.f32.mrf.mxu0
      %3311 = vmatprep.mubr.bf16.mxu0 0
      %3312 = vmatmul.mubr.bf16.gmra.mxu0 %v3061
      %v3313 = vpop.f32.mrf.mxu0
      %v3314 = vadd.f32 %v3153, %v3313
      %v3315 = vpop.f32.mrf.mxu0
      %v3316 = vpop.f32.mrf.mxu0
      %v3317 = vadd.f32 %v3156, %v3316
      %v3318 = vpop.f32.mrf.mxu0
      %3319 = vmatprep.mubr.bf16.mxu0 0
      %3320 = vmatmul.mubr.bf16.gmra.mxu0 %v3064
      %v3321 = vpop.f32.mrf.mxu0
      %v3322 = vadd.f32 %v3161, %v3321
      %v3323 = vpop.f32.mrf.mxu0
      %v3324 = vpop.f32.mrf.mxu0
      %v3325 = vadd.f32 %v3164, %v3324
      %v3326 = vpop.f32.mrf.mxu0
      %3327 = vmatprep.mubr.bf16.mxu0 0
      %3328 = vmatmul.mubr.bf16.gmra.mxu0 %v3067
      %v3329 = vpop.f32.mrf.mxu0
      %v3330 = vadd.f32 %v3169, %v3329
      %v3331 = vpop.f32.mrf.mxu0
      %v3332 = vpop.f32.mrf.mxu0
      %v3333 = vadd.f32 %v3172, %v3332
      %v3334 = vpop.f32.mrf.mxu0
      %3335 = vmatprep.mubr.bf16.mxu0 0
      %3336 = vmatmul.mubr.bf16.gmra.mxu0 %v3070
      %v3337 = vpop.f32.mrf.mxu0
      %v3338 = vadd.f32 %v3177, %v3337
      %v3339 = vpop.f32.mrf.mxu0
      %v3340 = vpop.f32.mrf.mxu0
      %v3341 = vadd.f32 %v3180, %v3340
      %v3342 = vpop.f32.mrf.mxu0
      %3343 = vmatprep.mubr.bf16.mxu0 0
      %3344 = vmatmul.mubr.bf16.gmra.mxu0 %v3073
      %v3345 = vpop.f32.mrf.mxu0
      %v3346 = vadd.f32 %v3185, %v3345
      %v3347 = vpop.f32.mrf.mxu0
      %v3348 = vpop.f32.mrf.mxu0
      %v3349 = vadd.f32 %v3188, %v3348
      %v3350 = vpop.f32.mrf.mxu0
      %3351 = vmatprep.mubr.bf16.mxu0 0
      %3352 = vmatmul.mubr.bf16.gmra.mxu0 %v3076
      %v3353 = vpop.f32.mrf.mxu0
      %v3354 = vadd.f32 %v3193, %v3353
      %v3355 = vpop.f32.mrf.mxu0
      %v3356 = vpop.f32.mrf.mxu0
      %v3357 = vadd.f32 %v3196, %v3356
      %v3358 = vpop.f32.mrf.mxu0
      %3359 = vmatprep.mubr.bf16.mxu0 0
      %3360 = vmatmul.mubr.bf16.gmra.mxu0 %v3079
      %v3361 = vpop.f32.mrf.mxu0
      %v3362 = vadd.f32 %v3201, %v3361
      %v3363 = vpop.f32.mrf.mxu0
      %v3364 = vpop.f32.mrf.mxu0
      %v3365 = vadd.f32 %v3204, %v3364
      %v3366 = vpop.f32.mrf.mxu0
      %3367 = vmatprep.mubr.bf16.mxu0 0
      %3368 = vmatmul.mubr.bf16.gmra.mxu0 %v3082
      %v3369 = vpop.f32.mrf.mxu0
      %v3370 = vadd.f32 %v3209, %v3369
      %v3371 = vpop.f32.mrf.mxu0
      %v3372 = vpop.f32.mrf.mxu0
      %v3373 = vadd.f32 %v3212, %v3372
      %v3374 = vpop.f32.mrf.mxu0
      %3375 = vmatprep.mubr.bf16.mxu0 0
      %3376 = vmatmul.mubr.bf16.gmra.mxu0 %v3085
      %v3377 = vpop.f32.mrf.mxu0
      %v3378 = vadd.f32 %v3217, %v3377
      %v3379 = vpop.f32.mrf.mxu0
      %v3380 = vpop.f32.mrf.mxu0
      %v3381 = vadd.f32 %v3220, %v3380
      %v3382 = vpop.f32.mrf.mxu0
      %3383 = vmatprep.mubr.bf16.mxu0 0
      %3384 = vmatmul.mubr.bf16.gmra.mxu0 %v3088
      %v3385 = vpop.f32.mrf.mxu0
      %v3386 = vadd.f32 %v3225, %v3385
      %v3387 = vpop.f32.mrf.mxu0
      %v3388 = vpop.f32.mrf.mxu0
      %v3389 = vadd.f32 %v3228, %v3388
      %v3390 = vpop.f32.mrf.mxu0
      %3391 = vmatprep.mubr.bf16.mxu0 0
      %3392 = vmatmul.mubr.bf16.gmra.mxu0 %v3091
      %v3393 = vpop.f32.mrf.mxu0
      %v3394 = vadd.f32 %v3233, %v3393
      %v3395 = vpop.f32.mrf.mxu0
      %v3396 = vpop.f32.mrf.mxu0
      %v3397 = vadd.f32 %v3236, %v3396
      %v3398 = vpop.f32.mrf.mxu0
      %3399 = vmatprep.mubr.bf16.mxu0 0
      %3400 = vmatmul.mubr.bf16.gmra.mxu0 %v3094
      %v3401 = vpop.f32.mrf.mxu0
      %v3402 = vadd.f32 %v3241, %v3401
      %v3403 = vpop.f32.mrf.mxu0
      %v3404 = vpop.f32.mrf.mxu0
      %v3405 = vadd.f32 %v3244, %v3404
      %v3406 = vpop.f32.mrf.mxu0
      %3407 = vmatprep.mubr.bf16.mxu0 0
      %3408 = vmatmul.mubr.bf16.gmra.mxu0 %v3097
      %v3409 = vpop.f32.mrf.mxu0
      %v3410 = vadd.f32 %v3249, %v3409
      %v3411 = vpop.f32.mrf.mxu0
      %v3412 = vpop.f32.mrf.mxu0
      %v3413 = vadd.f32 %v3252, %v3412
      %v3414 = vpop.f32.mrf.mxu0
      %3415 = vmatprep.mubr.bf16.mxu0 0
      %3416 = vmatmul.mubr.bf16.gmra.mxu0 %v3100
      %v3417 = vpop.f32.mrf.mxu0
      %v3418 = vadd.f32 %v3257, %v3417
      %v3419 = vpop.f32.mrf.mxu0
      %v3420 = vpop.f32.mrf.mxu0
      %v3421 = vadd.f32 %v3260, %v3420
      %v3422 = vpop.f32.mrf.mxu0
      %3423 = vdwg.mxu0
      %v3424 = vsub.f32 0.0, %v3298
      %v3425 = vsub.f32 0.0, %v3301
      %v3426 = vsub.f32 0.0, %v3306
      %v3427 = vsub.f32 0.0, %v3309
      %v3428 = vsub.f32 0.0, %v3314
      %v3429 = vsub.f32 0.0, %v3317
      %v3430 = vsub.f32 0.0, %v3322
      %v3431 = vsub.f32 0.0, %v3325
      %v3432 = vsub.f32 0.0, %v3330
      %v3433 = vsub.f32 0.0, %v3333
      %v3434 = vsub.f32 0.0, %v3338
      %v3435 = vsub.f32 0.0, %v3341
      %v3436 = vsub.f32 0.0, %v3346
      %v3437 = vsub.f32 0.0, %v3349
      %v3438 = vsub.f32 0.0, %v3354
      %v3439 = vsub.f32 0.0, %v3357
      %v3440 = vsub.f32 0.0, %v3362
      %v3441 = vsub.f32 0.0, %v3365
      %v3442 = vsub.f32 0.0, %v3370
      %v3443 = vsub.f32 0.0, %v3373
      %v3444 = vsub.f32 0.0, %v3378
      %v3445 = vsub.f32 0.0, %v3381
      %v3446 = vsub.f32 0.0, %v3386
      %v3447 = vsub.f32 0.0, %v3389
      %v3448 = vsub.f32 0.0, %v3394
      %v3449 = vsub.f32 0.0, %v3397
      %v3450 = vsub.f32 0.0, %v3402
      %v3451 = vsub.f32 0.0, %v3405
      %v3452 = vsub.f32 0.0, %v3410
      %v3453 = vsub.f32 0.0, %v3413
      %v3454 = vsub.f32 0.0, %v3418
      %v3455 = vsub.f32 0.0, %v3421
      %v3456 = vmul.f32 %v3424, 1.442695
      %v3457 = vpow.pop %v3456
      %v3458 = vmul.f32 %v3425, 1.442695
      %v3459 = vpow.pop %v3458
      %v3460 = vmul.f32 %v3426, 1.442695
      %v3461 = vpow.pop %v3460
      %v3462 = vmul.f32 %v3427, 1.442695
      %v3463 = vpow.pop %v3462
      %v3464 = vmul.f32 %v3428, 1.442695
      %v3465 = vpow.pop %v3464
      %v3466 = vmul.f32 %v3429, 1.442695
      %v3467 = vpow.pop %v3466
      %v3468 = vmul.f32 %v3430, 1.442695
      %v3469 = vpow.pop %v3468
      %v3470 = vmul.f32 %v3431, 1.442695
      %v3471 = vpow.pop %v3470
      %v3472 = vmul.f32 %v3432, 1.442695
      %v3473 = vpow.pop %v3472
      %v3474 = vmul.f32 %v3433, 1.442695
      %v3475 = vpow.pop %v3474
      %v3476 = vmul.f32 %v3434, 1.442695
      %v3477 = vpow.pop %v3476
      %v3478 = vmul.f32 %v3435, 1.442695
      %v3479 = vpow.pop %v3478
      %v3480 = vmul.f32 %v3436, 1.442695
      %v3481 = vpow.pop %v3480
      %v3482 = vmul.f32 %v3437, 1.442695
      %v3483 = vpow.pop %v3482
      %v3484 = vmul.f32 %v3438, 1.442695
      %v3485 = vpow.pop %v3484
      %v3486 = vmul.f32 %v3439, 1.442695
      %v3487 = vpow.pop %v3486
      %v3488 = vmul.f32 %v3440, 1.442695
      %v3489 = vpow.pop %v3488
      %v3490 = vmul.f32 %v3441, 1.442695
      %v3491 = vpow.pop %v3490
      %v3492 = vmul.f32 %v3442, 1.442695
      %v3493 = vpow.pop %v3492
      %v3494 = vmul.f32 %v3443, 1.442695
      %v3495 = vpow.pop %v3494
      %v3496 = vmul.f32 %v3444, 1.442695
      %v3497 = vpow.pop %v3496
      %v3498 = vmul.f32 %v3445, 1.442695
      %v3499 = vpow.pop %v3498
      %v3500 = vmul.f32 %v3446, 1.442695
      %v3501 = vpow.pop %v3500
      %v3502 = vmul.f32 %v3447, 1.442695
      %v3503 = vpow.pop %v3502
      %v3504 = vmul.f32 %v3448, 1.442695
      %v3505 = vpow.pop %v3504
      %v3506 = vmul.f32 %v3449, 1.442695
      %v3507 = vpow.pop %v3506
      %v3508 = vmul.f32 %v3450, 1.442695
      %v3509 = vpow.pop %v3508
      %v3510 = vmul.f32 %v3451, 1.442695
      %v3511 = vpow.pop %v3510
      %v3512 = vmul.f32 %v3452, 1.442695
      %v3513 = vpow.pop %v3512
      %v3514 = vmul.f32 %v3453, 1.442695
      %v3515 = vpow.pop %v3514
      %v3516 = vmul.f32 %v3454, 1.442695
      %v3517 = vpow.pop %v3516
      %v3518 = vmul.f32 %v3455, 1.442695
      %v3519 = vpow.pop %v3518
      %v3520 = vadd.f32 %v3457, 1.0
      %v3521 = vadd.f32 %v3459, 1.0
      %v3522 = vadd.f32 %v3461, 1.0
      %v3523 = vadd.f32 %v3463, 1.0
      %v3524 = vadd.f32 %v3465, 1.0
      %v3525 = vadd.f32 %v3467, 1.0
      %v3526 = vadd.f32 %v3469, 1.0
      %v3527 = vadd.f32 %v3471, 1.0
      %v3528 = vadd.f32 %v3473, 1.0
      %v3529 = vadd.f32 %v3475, 1.0
      %v3530 = vadd.f32 %v3477, 1.0
      %v3531 = vadd.f32 %v3479, 1.0
      %v3532 = vadd.f32 %v3481, 1.0
      %v3533 = vadd.f32 %v3483, 1.0
      %v3534 = vadd.f32 %v3485, 1.0
      %v3535 = vadd.f32 %v3487, 1.0
      %v3536 = vadd.f32 %v3489, 1.0
      %v3537 = vadd.f32 %v3491, 1.0
      %v3538 = vadd.f32 %v3493, 1.0
      %v3539 = vadd.f32 %v3495, 1.0
      %v3540 = vadd.f32 %v3497, 1.0
      %v3541 = vadd.f32 %v3499, 1.0
      %v3542 = vadd.f32 %v3501, 1.0
      %v3543 = vadd.f32 %v3503, 1.0
      %v3544 = vadd.f32 %v3505, 1.0
      %v3545 = vadd.f32 %v3507, 1.0
      %v3546 = vadd.f32 %v3509, 1.0
      %v3547 = vadd.f32 %v3511, 1.0
      %v3548 = vadd.f32 %v3513, 1.0
      %v3549 = vadd.f32 %v3515, 1.0
      %v3550 = vadd.f32 %v3517, 1.0
      %v3551 = vadd.f32 %v3519, 1.0
      %v3552 = vrcp.pop %v3520
      %v3553 = vrcp.pop %v3521
      %v3554 = vrcp.pop %v3522
      %v3555 = vrcp.pop %v3523
      %v3556 = vrcp.pop %v3524
      %v3557 = vrcp.pop %v3525
      %v3558 = vrcp.pop %v3526
      %v3559 = vrcp.pop %v3527
      %v3560 = vrcp.pop %v3528
      %v3561 = vrcp.pop %v3529
      %v3562 = vrcp.pop %v3530
      %v3563 = vrcp.pop %v3531
      %v3564 = vrcp.pop %v3532
      %v3565 = vrcp.pop %v3533
      %v3566 = vrcp.pop %v3534
      %v3567 = vrcp.pop %v3535
      %v3568 = vrcp.pop %v3536
      %v3569 = vrcp.pop %v3537
      %v3570 = vrcp.pop %v3538
      %v3571 = vrcp.pop %v3539
      %v3572 = vrcp.pop %v3540
      %v3573 = vrcp.pop %v3541
      %v3574 = vrcp.pop %v3542
      %v3575 = vrcp.pop %v3543
      %v3576 = vrcp.pop %v3544
      %v3577 = vrcp.pop %v3545
      %v3578 = vrcp.pop %v3546
      %v3579 = vrcp.pop %v3547
      %v3580 = vrcp.pop %v3548
      %v3581 = vrcp.pop %v3549
      %v3582 = vrcp.pop %v3550
      %v3583 = vrcp.pop %v3551
      %v3584 = vmul.f32 %v3298, %v3552
      %v3585 = vmul.f32 %v3301, %v3553
      %v3586 = vmul.f32 %v3306, %v3554
      %v3587 = vmul.f32 %v3309, %v3555
      %v3588 = vmul.f32 %v3314, %v3556
      %v3589 = vmul.f32 %v3317, %v3557
      %v3590 = vmul.f32 %v3322, %v3558
      %v3591 = vmul.f32 %v3325, %v3559
      %v3592 = vmul.f32 %v3330, %v3560
      %v3593 = vmul.f32 %v3333, %v3561
      %v3594 = vmul.f32 %v3338, %v3562
      %v3595 = vmul.f32 %v3341, %v3563
      %v3596 = vmul.f32 %v3346, %v3564
      %v3597 = vmul.f32 %v3349, %v3565
      %v3598 = vmul.f32 %v3354, %v3566
      %v3599 = vmul.f32 %v3357, %v3567
      %v3600 = vmul.f32 %v3362, %v3568
      %v3601 = vmul.f32 %v3365, %v3569
      %v3602 = vmul.f32 %v3370, %v3570
      %v3603 = vmul.f32 %v3373, %v3571
      %v3604 = vmul.f32 %v3378, %v3572
      %v3605 = vmul.f32 %v3381, %v3573
      %v3606 = vmul.f32 %v3386, %v3574
      %v3607 = vmul.f32 %v3389, %v3575
      %v3608 = vmul.f32 %v3394, %v3576
      %v3609 = vmul.f32 %v3397, %v3577
      %v3610 = vmul.f32 %v3402, %v3578
      %v3611 = vmul.f32 %v3405, %v3579
      %v3612 = vmul.f32 %v3410, %v3580
      %v3613 = vmul.f32 %v3413, %v3581
      %v3614 = vmul.f32 %v3418, %v3582
      %v3615 = vmul.f32 %v3421, %v3583
      %v3616 = vld [vmem:[%s1] sm:$0x1]
      %v3618 = vlaneseq
      %v3619 = vshrl.u32 %v3618, 7
      %v3620 = vsub.s32 0, %v3619
      %v3621 = vrot.slane %v3616, %v3620
      %v3623 = vadd.f32 %v3584, %v3621
      %v3624 = vadd.f32 %v3585, %v3621
      %v3625 = vadd.f32 %v3586, %v3621
      %v3626 = vadd.f32 %v3587, %v3621
      %v3627 = vadd.f32 %v3588, %v3621
      %v3628 = vadd.f32 %v3589, %v3621
      %v3629 = vadd.f32 %v3590, %v3621
      %v3630 = vadd.f32 %v3591, %v3621
      %v3631 = vadd.f32 %v3592, %v3621
      %v3632 = vadd.f32 %v3593, %v3621
      %v3633 = vadd.f32 %v3594, %v3621
      %v3634 = vadd.f32 %v3595, %v3621
      %v3635 = vadd.f32 %v3596, %v3621
      %v3636 = vadd.f32 %v3597, %v3621
      %v3637 = vadd.f32 %v3598, %v3621
      %v3638 = vadd.f32 %v3599, %v3621
      %v3639 = vadd.f32 %v3600, %v3621
      %v3640 = vadd.f32 %v3601, %v3621
      %v3641 = vadd.f32 %v3602, %v3621
      %v3642 = vadd.f32 %v3603, %v3621
      %v3643 = vadd.f32 %v3604, %v3621
      %v3644 = vadd.f32 %v3605, %v3621
      %v3645 = vadd.f32 %v3606, %v3621
      %v3646 = vadd.f32 %v3607, %v3621
      %v3647 = vadd.f32 %v3608, %v3621
      %v3648 = vadd.f32 %v3609, %v3621
      %v3649 = vadd.f32 %v3610, %v3621
      %v3650 = vadd.f32 %v3611, %v3621
      %v3651 = vadd.f32 %v3612, %v3621
      %v3652 = vadd.f32 %v3613, %v3621
      %v3653 = vadd.f32 %v3614, %v3621
      %v3654 = vadd.f32 %v3615, %v3621
      %v3655 = vld [vmem:[%s10] sm:$0xff]
      %v3656 = vld [vmem:[%s10 + $0x8] sm:$0xff]
      %v3657 = vld [vmem:[%s10 + $0x10] sm:$0xff]
      %v3658 = vld [vmem:[%s10 + $0x18] sm:$0xff]
      %v3659 = vld [vmem:[%s10 + $0x20] sm:$0xff]
      %v3660 = vld [vmem:[%s10 + $0x28] sm:$0xff]
      %v3661 = vld [vmem:[%s10 + $0x30] sm:$0xff]
      %v3662 = vld [vmem:[%s10 + $0x38] sm:$0xff]
      %v3663 = vld [vmem:[%s11] sm:$0xff]
      %v3664 = vld [vmem:[%s11 + $0x8] sm:$0xff]
      %v3665 = vld [vmem:[%s11 + $0x10] sm:$0xff]
      %v3666 = vld [vmem:[%s11 + $0x18] sm:$0xff]
      %v3667 = vld [vmem:[%s8] sm:$0x1]
      %v3668 = vld [vmem:[%s9] sm:$0x1]
      %vm3669 = vcmask 523264
      %v3670 = vsel %vm3669, %v3623, 0.0
      %v3671 = vsel %vm3669, %v3624, 0.0
      %v3672 = vadd.f32 %v3670, %v3671
      %v3673 = vsel %vm3669, %v3625, 0.0
      %v3674 = vadd.f32 %v3672, %v3673
      %v3675 = vsel %vm3669, %v3626, 0.0
      %v3676 = vadd.f32 %v3674, %v3675
      %v3677 = vsel %vm3669, %v3627, 0.0
      %v3678 = vadd.f32 %v3676, %v3677
      %v3679 = vsel %vm3669, %v3628, 0.0
      %v3680 = vadd.f32 %v3678, %v3679
      %v3681 = vsel %vm3669, %v3629, 0.0
      %v3682 = vadd.f32 %v3680, %v3681
      %v3683 = vsel %vm3669, %v3630, 0.0
      %v3684 = vadd.f32 %v3682, %v3683
      %v3685 = vsel %vm3669, %v3631, 0.0
      %v3686 = vadd.f32 %v3684, %v3685
      %v3687 = vsel %vm3669, %v3632, 0.0
      %v3688 = vadd.f32 %v3686, %v3687
      %v3689 = vsel %vm3669, %v3633, 0.0
      %v3690 = vadd.f32 %v3688, %v3689
      %v3691 = vsel %vm3669, %v3634, 0.0
      %v3692 = vadd.f32 %v3690, %v3691
      %v3693 = vsel %vm3669, %v3635, 0.0
      %v3694 = vadd.f32 %v3692, %v3693
      %v3695 = vsel %vm3669, %v3636, 0.0
      %v3696 = vadd.f32 %v3694, %v3695
      %v3697 = vsel %vm3669, %v3637, 0.0
      %v3698 = vadd.f32 %v3696, %v3697
      %v3699 = vsel %vm3669, %v3638, 0.0
      %v3700 = vadd.f32 %v3698, %v3699
      %v3701 = vsel %vm3669, %v3639, 0.0
      %v3702 = vadd.f32 %v3700, %v3701
      %v3703 = vsel %vm3669, %v3640, 0.0
      %v3704 = vadd.f32 %v3702, %v3703
      %v3705 = vsel %vm3669, %v3641, 0.0
      %v3706 = vadd.f32 %v3704, %v3705
      %v3707 = vsel %vm3669, %v3642, 0.0
      %v3708 = vadd.f32 %v3706, %v3707
      %v3709 = vsel %vm3669, %v3643, 0.0
      %v3710 = vadd.f32 %v3708, %v3709
      %v3711 = vsel %vm3669, %v3644, 0.0
      %v3712 = vadd.f32 %v3710, %v3711
      %v3713 = vsel %vm3669, %v3645, 0.0
      %v3714 = vadd.f32 %v3712, %v3713
      %v3715 = vsel %vm3669, %v3646, 0.0
      %v3716 = vadd.f32 %v3714, %v3715
      %v3717 = vsel %vm3669, %v3647, 0.0
      %v3718 = vadd.f32 %v3716, %v3717
      %v3719 = vsel %vm3669, %v3648, 0.0
      %v3720 = vadd.f32 %v3718, %v3719
      %v3721 = vsel %vm3669, %v3649, 0.0
      %v3722 = vadd.f32 %v3720, %v3721
      %v3723 = vsel %vm3669, %v3650, 0.0
      %v3724 = vadd.f32 %v3722, %v3723
      %v3725 = vsel %vm3669, %v3651, 0.0
      %v3726 = vadd.f32 %v3724, %v3725
      %v3727 = vsel %vm3669, %v3652, 0.0
      %v3728 = vadd.f32 %v3726, %v3727
      %v3729 = vsel %vm3669, %v3653, 0.0
      %v3730 = vadd.f32 %v3728, %v3729
      %v3731 = vsel %vm3669, %v3654, 0.0
      %v3732 = vadd.f32 %v3730, %v3731
      %v3733 = vrot.slane %v3732, 4
      %v3734 = vadd.f32 %v3732, %v3733
      %v3735 = vrot.slane %v3734, 2
      %v3736 = vadd.f32 %v3734, %v3735
      %v3737 = vrot.slane %v3736, 1
      %v3738 = vadd.f32 %v3736, %v3737
      %v3739 = vmul.f32 %v3738, %v584
      %v3741 = vsel %vm3669, %v3739, 0
      %3743 = vmatprep.subr.mxu0 0.0
      %3744 = vmatpush1.msra.mxu0 0.0
      %3745 = vmatprep.subr.mxu0 0.0
      %3746 = vmatpush1.msra.mxu0 0.0
      %3747 = vmatprep.subr.mxu0 0.0
      %3748 = vmatpush1.msra.mxu0 0.0
      %3749 = vmatprep.subr.mxu0 0.0
      %3750 = vmatpush1.msra.mxu0 0.0
      %3751 = vmatprep.subr.mxu0 0.0
      %3752 = vmatpush1.msra.mxu0 0.0
      %3753 = vmatprep.subr.mxu0 0.0
      %3754 = vmatpush1.msra.mxu0 0.0
      %3755 = vmatprep.subr.mxu0 0.0
      %3756 = vmatpush1.msra.mxu0 0.0
      %3757 = vmatprep.subr.mxu0 0.0
      %3758 = vmatpush1.msra.mxu0 0.0
      %3759 = vmatprep.subr.mxu0 0.0
      %3760 = vmatpush1.msra.mxu0 %v3662
      %3761 = vmatprep.subr.mxu0 0.0
      %3762 = vmatpush1.msra.mxu0 %v3661
      %3763 = vmatprep.subr.mxu0 0.0
      %3764 = vmatpush1.msra.mxu0 %v3660
      %3765 = vmatprep.subr.mxu0 0.0
      %3766 = vmatpush1.msra.mxu0 %v3659
      %3767 = vmatprep.subr.mxu0 0.0
      %3768 = vmatpush1.msra.mxu0 %v3658
      %3769 = vmatprep.subr.mxu0 0.0
      %3770 = vmatpush1.msra.mxu0 %v3657
      %3771 = vmatprep.subr.mxu0 0.0
      %3772 = vmatpush1.msra.mxu0 %v3656
      %3773 = vmatprep.subr.mxu0 0.0
      %3774 = vmatpush1.msra.mxu0 %v3655
      %3775 = vmatprep.subr.mxu0 0.0
      %3776 = vmatpush2.msra.mxu0 0.0
      %3777 = vmatprep.subr.mxu0 0.0
      %3778 = vmatpush2.msra.mxu0 0.0
      %3779 = vmatprep.subr.mxu0 0.0
      %3780 = vmatpush2.msra.mxu0 0.0
      %3781 = vmatprep.subr.mxu0 0.0
      %3782 = vmatpush2.msra.mxu0 0.0
      %3783 = vmatprep.subr.mxu0 0.0
      %3784 = vmatpush2.msra.mxu0 0.0
      %3785 = vmatprep.subr.mxu0 0.0
      %3786 = vmatpush2.msra.mxu0 0.0
      %3787 = vmatprep.subr.mxu0 0.0
      %3788 = vmatpush2.msra.mxu0 0.0
      %3789 = vmatprep.subr.mxu0 0.0
      %3790 = vmatpush2.msra.mxu0 0.0
      %3791 = vmatprep.subr.mxu0 0.0
      %3792 = vmatpush2.msra.mxu0 0.0
      %3793 = vmatprep.subr.mxu0 0.0
      %3794 = vmatpush2.msra.mxu0 0.0
      %3795 = vmatprep.subr.mxu0 0.0
      %3796 = vmatpush2.msra.mxu0 0.0
      %3797 = vmatprep.subr.mxu0 0.0
      %3798 = vmatpush2.msra.mxu0 0.0
      %3799 = vmatprep.subr.mxu0 0.0
      %3800 = vmatpush2.msra.mxu0 0.0
      %3801 = vmatprep.subr.mxu0 0.0
      %3802 = vmatpush2.msra.mxu0 0.0
      %3803 = vmatprep.subr.mxu0 0.0
      %3804 = vmatpush2.msra.mxu0 0.0
      %3805 = vmatprep.subr.mxu0 0.0
      %3806 = vmatpush2.msra.mxu0 0.0
      %3807 = vmatprep.mubr.f32.mxu0 0.0
      %3808 = vmatmul.mubr.f32.gmra.mxu0 %v3741
      %v3809 = vpop.f32.mrf.mxu0
      %v3810 = vadd.f32 0.0, %v3809
      %v3811 = vpop.f32.mrf.mxu0
      %3812 = vdwg.mxu0
      %v3814 = vsel %vm514, %v3810, 0
      %3816 = vmatprep.subr.mxu0 0.0
      %3817 = vmatpush1.msra.mxu0 0.0
      %3818 = vmatprep.subr.mxu0 0.0
      %3819 = vmatpush1.msra.mxu0 0.0
      %3820 = vmatprep.subr.mxu0 0.0
      %3821 = vmatpush1.msra.mxu0 0.0
      %3822 = vmatprep.subr.mxu0 0.0
      %3823 = vmatpush1.msra.mxu0 0.0
      %3824 = vmatprep.subr.mxu0 0.0
      %3825 = vmatpush1.msra.mxu0 0.0
      %3826 = vmatprep.subr.mxu0 0.0
      %3827 = vmatpush1.msra.mxu0 0.0
      %3828 = vmatprep.subr.mxu0 0.0
      %3829 = vmatpush1.msra.mxu0 0.0
      %3830 = vmatprep.subr.mxu0 0.0
      %3831 = vmatpush1.msra.mxu0 0.0
      %3832 = vmatprep.subr.mxu0 0.0
      %3833 = vmatpush1.msra.mxu0 0.0
      %3834 = vmatprep.subr.mxu0 0.0
      %3835 = vmatpush1.msra.mxu0 0.0
      %3836 = vmatprep.subr.mxu0 0.0
      %3837 = vmatpush1.msra.mxu0 0.0
      %3838 = vmatprep.subr.mxu0 0.0
      %3839 = vmatpush1.msra.mxu0 0.0
      %3840 = vmatprep.subr.mxu0 0.0
      %3841 = vmatpush1.msra.mxu0 %v3666
      %3842 = vmatprep.subr.mxu0 0.0
      %3843 = vmatpush1.msra.mxu0 %v3665
      %3844 = vmatprep.subr.mxu0 0.0
      %3845 = vmatpush1.msra.mxu0 %v3664
      %3846 = vmatprep.subr.mxu0 0.0
      %3847 = vmatpush1.msra.mxu0 %v3663
      %3848 = vmatprep.subr.mxu0 0.0
      %3849 = vmatpush2.msra.mxu0 0.0
      %3850 = vmatprep.subr.mxu0 0.0
      %3851 = vmatpush2.msra.mxu0 0.0
      %3852 = vmatprep.subr.mxu0 0.0
      %3853 = vmatpush2.msra.mxu0 0.0
      %3854 = vmatprep.subr.mxu0 0.0
      %3855 = vmatpush2.msra.mxu0 0.0
      %3856 = vmatprep.subr.mxu0 0.0
      %3857 = vmatpush2.msra.mxu0 0.0
      %3858 = vmatprep.subr.mxu0 0.0
      %3859 = vmatpush2.msra.mxu0 0.0
      %3860 = vmatprep.subr.mxu0 0.0
      %3861 = vmatpush2.msra.mxu0 0.0
      %3862 = vmatprep.subr.mxu0 0.0
      %3863 = vmatpush2.msra.mxu0 0.0
      %3864 = vmatprep.subr.mxu0 0.0
      %3865 = vmatpush2.msra.mxu0 0.0
      %3866 = vmatprep.subr.mxu0 0.0
      %3867 = vmatpush2.msra.mxu0 0.0
      %3868 = vmatprep.subr.mxu0 0.0
      %3869 = vmatpush2.msra.mxu0 0.0
      %3870 = vmatprep.subr.mxu0 0.0
      %3871 = vmatpush2.msra.mxu0 0.0
      %3872 = vmatprep.subr.mxu0 0.0
      %3873 = vmatpush2.msra.mxu0 0.0
      %3874 = vmatprep.subr.mxu0 0.0
      %3875 = vmatpush2.msra.mxu0 0.0
      %3876 = vmatprep.subr.mxu0 0.0
      %3877 = vmatpush2.msra.mxu0 0.0
      %3878 = vmatprep.subr.mxu0 0.0
      %3879 = vmatpush2.msra.mxu0 0.0
      %3880 = vmatprep.mubr.f32.mxu0 0.0
      %3881 = vmatmul.mubr.f32.gmra.mxu0 %v3814
      %v3882 = vpop.f32.mrf.mxu0
      %v3883 = vadd.f32 0.0, %v3882
      %v3884 = vpop.f32.mrf.mxu0
      %3885 = vdwg.mxu0
      %v3886 = vlaneseq
      %v3887 = vshrl.u32 %v3886, 7
      %v3888 = vsub.s32 0, %v3887
      %v3889 = vrot.slane %v3883, %v3888
      %v3890 = vsub.f32 %v3623, %v3889
      %v3891 = vsub.f32 %v3624, %v3889
      %v3892 = vsub.f32 %v3625, %v3889
      %v3893 = vsub.f32 %v3626, %v3889
      %v3894 = vsub.f32 %v3627, %v3889
      %v3895 = vsub.f32 %v3628, %v3889
      %v3896 = vsub.f32 %v3629, %v3889
      %v3897 = vsub.f32 %v3630, %v3889
      %v3898 = vsub.f32 %v3631, %v3889
      %v3899 = vsub.f32 %v3632, %v3889
      %v3900 = vsub.f32 %v3633, %v3889
      %v3901 = vsub.f32 %v3634, %v3889
      %v3902 = vsub.f32 %v3635, %v3889
      %v3903 = vsub.f32 %v3636, %v3889
      %v3904 = vsub.f32 %v3637, %v3889
      %v3905 = vsub.f32 %v3638, %v3889
      %v3906 = vsub.f32 %v3639, %v3889
      %v3907 = vsub.f32 %v3640, %v3889
      %v3908 = vsub.f32 %v3641, %v3889
      %v3909 = vsub.f32 %v3642, %v3889
      %v3910 = vsub.f32 %v3643, %v3889
      %v3911 = vsub.f32 %v3644, %v3889
      %v3912 = vsub.f32 %v3645, %v3889
      %v3913 = vsub.f32 %v3646, %v3889
      %v3914 = vsub.f32 %v3647, %v3889
      %v3915 = vsub.f32 %v3648, %v3889
      %v3916 = vsub.f32 %v3649, %v3889
      %v3917 = vsub.f32 %v3650, %v3889
      %v3918 = vsub.f32 %v3651, %v3889
      %v3919 = vsub.f32 %v3652, %v3889
      %v3920 = vsub.f32 %v3653, %v3889
      %v3921 = vsub.f32 %v3654, %v3889
      %v3922 = vmul.f32 %v3890, %v3890
      %v3923 = vmul.f32 %v3891, %v3891
      %v3924 = vmul.f32 %v3892, %v3892
      %v3925 = vmul.f32 %v3893, %v3893
      %v3926 = vmul.f32 %v3894, %v3894
      %v3927 = vmul.f32 %v3895, %v3895
      %v3928 = vmul.f32 %v3896, %v3896
      %v3929 = vmul.f32 %v3897, %v3897
      %v3930 = vmul.f32 %v3898, %v3898
      %v3931 = vmul.f32 %v3899, %v3899
      %v3932 = vmul.f32 %v3900, %v3900
      %v3933 = vmul.f32 %v3901, %v3901
      %v3934 = vmul.f32 %v3902, %v3902
      %v3935 = vmul.f32 %v3903, %v3903
      %v3936 = vmul.f32 %v3904, %v3904
      %v3937 = vmul.f32 %v3905, %v3905
      %v3938 = vmul.f32 %v3906, %v3906
      %v3939 = vmul.f32 %v3907, %v3907
      %v3940 = vmul.f32 %v3908, %v3908
      %v3941 = vmul.f32 %v3909, %v3909
      %v3942 = vmul.f32 %v3910, %v3910
      %v3943 = vmul.f32 %v3911, %v3911
      %v3944 = vmul.f32 %v3912, %v3912
      %v3945 = vmul.f32 %v3913, %v3913
      %v3946 = vmul.f32 %v3914, %v3914
      %v3947 = vmul.f32 %v3915, %v3915
      %v3948 = vmul.f32 %v3916, %v3916
      %v3949 = vmul.f32 %v3917, %v3917
      %v3950 = vmul.f32 %v3918, %v3918
      %v3951 = vmul.f32 %v3919, %v3919
      %v3952 = vmul.f32 %v3920, %v3920
      %v3953 = vmul.f32 %v3921, %v3921
      %v3954 = vsel %vm3669, %v3922, 0.0
      %v3955 = vsel %vm3669, %v3923, 0.0
      %v3956 = vadd.f32 %v3954, %v3955
      %v3957 = vsel %vm3669, %v3924, 0.0
      %v3958 = vadd.f32 %v3956, %v3957
      %v3959 = vsel %vm3669, %v3925, 0.0
      %v3960 = vadd.f32 %v3958, %v3959
      %v3961 = vsel %vm3669, %v3926, 0.0
      %v3962 = vadd.f32 %v3960, %v3961
      %v3963 = vsel %vm3669, %v3927, 0.0
      %v3964 = vadd.f32 %v3962, %v3963
      %v3965 = vsel %vm3669, %v3928, 0.0
      %v3966 = vadd.f32 %v3964, %v3965
      %v3967 = vsel %vm3669, %v3929, 0.0
      %v3968 = vadd.f32 %v3966, %v3967
      %v3969 = vsel %vm3669, %v3930, 0.0
      %v3970 = vadd.f32 %v3968, %v3969
      %v3971 = vsel %vm3669, %v3931, 0.0
      %v3972 = vadd.f32 %v3970, %v3971
      %v3973 = vsel %vm3669, %v3932, 0.0
      %v3974 = vadd.f32 %v3972, %v3973
      %v3975 = vsel %vm3669, %v3933, 0.0
      %v3976 = vadd.f32 %v3974, %v3975
      %v3977 = vsel %vm3669, %v3934, 0.0
      %v3978 = vadd.f32 %v3976, %v3977
      %v3979 = vsel %vm3669, %v3935, 0.0
      %v3980 = vadd.f32 %v3978, %v3979
      %v3981 = vsel %vm3669, %v3936, 0.0
      %v3982 = vadd.f32 %v3980, %v3981
      %v3983 = vsel %vm3669, %v3937, 0.0
      %v3984 = vadd.f32 %v3982, %v3983
      %v3985 = vsel %vm3669, %v3938, 0.0
      %v3986 = vadd.f32 %v3984, %v3985
      %v3987 = vsel %vm3669, %v3939, 0.0
      %v3988 = vadd.f32 %v3986, %v3987
      %v3989 = vsel %vm3669, %v3940, 0.0
      %v3990 = vadd.f32 %v3988, %v3989
      %v3991 = vsel %vm3669, %v3941, 0.0
      %v3992 = vadd.f32 %v3990, %v3991
      %v3993 = vsel %vm3669, %v3942, 0.0
      %v3994 = vadd.f32 %v3992, %v3993
      %v3995 = vsel %vm3669, %v3943, 0.0
      %v3996 = vadd.f32 %v3994, %v3995
      %v3997 = vsel %vm3669, %v3944, 0.0
      %v3998 = vadd.f32 %v3996, %v3997
      %v3999 = vsel %vm3669, %v3945, 0.0
      %v4000 = vadd.f32 %v3998, %v3999
      %v4001 = vsel %vm3669, %v3946, 0.0
      %v4002 = vadd.f32 %v4000, %v4001
      %v4003 = vsel %vm3669, %v3947, 0.0
      %v4004 = vadd.f32 %v4002, %v4003
      %v4005 = vsel %vm3669, %v3948, 0.0
      %v4006 = vadd.f32 %v4004, %v4005
      %v4007 = vsel %vm3669, %v3949, 0.0
      %v4008 = vadd.f32 %v4006, %v4007
      %v4009 = vsel %vm3669, %v3950, 0.0
      %v4010 = vadd.f32 %v4008, %v4009
      %v4011 = vsel %vm3669, %v3951, 0.0
      %v4012 = vadd.f32 %v4010, %v4011
      %v4013 = vsel %vm3669, %v3952, 0.0
      %v4014 = vadd.f32 %v4012, %v4013
      %v4015 = vsel %vm3669, %v3953, 0.0
      %v4016 = vadd.f32 %v4014, %v4015
      %v4017 = vrot.slane %v4016, 4
      %v4018 = vadd.f32 %v4016, %v4017
      %v4019 = vrot.slane %v4018, 2
      %v4020 = vadd.f32 %v4018, %v4019
      %v4021 = vrot.slane %v4020, 1
      %v4022 = vadd.f32 %v4020, %v4021
      %v4023 = vmul.f32 %v4022, %v584
      %v4025 = vsel %vm3669, %v4023, 0
      %4027 = vmatprep.subr.mxu0 0.0
      %4028 = vmatpush1.msra.mxu0 0.0
      %4029 = vmatprep.subr.mxu0 0.0
      %4030 = vmatpush1.msra.mxu0 0.0
      %4031 = vmatprep.subr.mxu0 0.0
      %4032 = vmatpush1.msra.mxu0 0.0
      %4033 = vmatprep.subr.mxu0 0.0
      %4034 = vmatpush1.msra.mxu0 0.0
      %4035 = vmatprep.subr.mxu0 0.0
      %4036 = vmatpush1.msra.mxu0 0.0
      %4037 = vmatprep.subr.mxu0 0.0
      %4038 = vmatpush1.msra.mxu0 0.0
      %4039 = vmatprep.subr.mxu0 0.0
      %4040 = vmatpush1.msra.mxu0 0.0
      %4041 = vmatprep.subr.mxu0 0.0
      %4042 = vmatpush1.msra.mxu0 0.0
      %4043 = vmatprep.subr.mxu0 0.0
      %4044 = vmatpush1.msra.mxu0 %v3662
      %4045 = vmatprep.subr.mxu0 0.0
      %4046 = vmatpush1.msra.mxu0 %v3661
      %4047 = vmatprep.subr.mxu0 0.0
      %4048 = vmatpush1.msra.mxu0 %v3660
      %4049 = vmatprep.subr.mxu0 0.0
      %4050 = vmatpush1.msra.mxu0 %v3659
      %4051 = vmatprep.subr.mxu0 0.0
      %4052 = vmatpush1.msra.mxu0 %v3658
      %4053 = vmatprep.subr.mxu0 0.0
      %4054 = vmatpush1.msra.mxu0 %v3657
      %4055 = vmatprep.subr.mxu0 0.0
      %4056 = vmatpush1.msra.mxu0 %v3656
      %4057 = vmatprep.subr.mxu0 0.0
      %4058 = vmatpush1.msra.mxu0 %v3655
      %4059 = vmatprep.subr.mxu0 0.0
      %4060 = vmatpush2.msra.mxu0 0.0
      %4061 = vmatprep.subr.mxu0 0.0
      %4062 = vmatpush2.msra.mxu0 0.0
      %4063 = vmatprep.subr.mxu0 0.0
      %4064 = vmatpush2.msra.mxu0 0.0
      %4065 = vmatprep.subr.mxu0 0.0
      %4066 = vmatpush2.msra.mxu0 0.0
      %4067 = vmatprep.subr.mxu0 0.0
      %4068 = vmatpush2.msra.mxu0 0.0
      %4069 = vmatprep.subr.mxu0 0.0
      %4070 = vmatpush2.msra.mxu0 0.0
      %4071 = vmatprep.subr.mxu0 0.0
      %4072 = vmatpush2.msra.mxu0 0.0
      %4073 = vmatprep.subr.mxu0 0.0
      %4074 = vmatpush2.msra.mxu0 0.0
      %4075 = vmatprep.subr.mxu0 0.0
      %4076 = vmatpush2.msra.mxu0 0.0
      %4077 = vmatprep.subr.mxu0 0.0
      %4078 = vmatpush2.msra.mxu0 0.0
      %4079 = vmatprep.subr.mxu0 0.0
      %4080 = vmatpush2.msra.mxu0 0.0
      %4081 = vmatprep.subr.mxu0 0.0
      %4082 = vmatpush2.msra.mxu0 0.0
      %4083 = vmatprep.subr.mxu0 0.0
      %4084 = vmatpush2.msra.mxu0 0.0
      %4085 = vmatprep.subr.mxu0 0.0
      %4086 = vmatpush2.msra.mxu0 0.0
      %4087 = vmatprep.subr.mxu0 0.0
      %4088 = vmatpush2.msra.mxu0 0.0
      %4089 = vmatprep.subr.mxu0 0.0
      %4090 = vmatpush2.msra.mxu0 0.0
      %4091 = vmatprep.mubr.f32.mxu0 0.0
      %4092 = vmatmul.mubr.f32.gmra.mxu0 %v4025
      %v4093 = vpop.f32.mrf.mxu0
      %v4094 = vadd.f32 0.0, %v4093
      %v4095 = vpop.f32.mrf.mxu0
      %4096 = vdwg.mxu0
      %v4098 = vsel %vm514, %v4094, 0
      %4100 = vmatprep.subr.mxu0 0.0
      %4101 = vmatpush1.msra.mxu0 0.0
      %4102 = vmatprep.subr.mxu0 0.0
      %4103 = vmatpush1.msra.mxu0 0.0
      %4104 = vmatprep.subr.mxu0 0.0
      %4105 = vmatpush1.msra.mxu0 0.0
      %4106 = vmatprep.subr.mxu0 0.0
      %4107 = vmatpush1.msra.mxu0 0.0
      %4108 = vmatprep.subr.mxu0 0.0
      %4109 = vmatpush1.msra.mxu0 0.0
      %4110 = vmatprep.subr.mxu0 0.0
      %4111 = vmatpush1.msra.mxu0 0.0
      %4112 = vmatprep.subr.mxu0 0.0
      %4113 = vmatpush1.msra.mxu0 0.0
      %4114 = vmatprep.subr.mxu0 0.0
      %4115 = vmatpush1.msra.mxu0 0.0
      %4116 = vmatprep.subr.mxu0 0.0
      %4117 = vmatpush1.msra.mxu0 0.0
      %4118 = vmatprep.subr.mxu0 0.0
      %4119 = vmatpush1.msra.mxu0 0.0
      %4120 = vmatprep.subr.mxu0 0.0
      %4121 = vmatpush1.msra.mxu0 0.0
      %4122 = vmatprep.subr.mxu0 0.0
      %4123 = vmatpush1.msra.mxu0 0.0
      %4124 = vmatprep.subr.mxu0 0.0
      %4125 = vmatpush1.msra.mxu0 %v3666
      %4126 = vmatprep.subr.mxu0 0.0
      %4127 = vmatpush1.msra.mxu0 %v3665
      %4128 = vmatprep.subr.mxu0 0.0
      %4129 = vmatpush1.msra.mxu0 %v3664
      %4130 = vmatprep.subr.mxu0 0.0
      %4131 = vmatpush1.msra.mxu0 %v3663
      %4132 = vmatprep.subr.mxu0 0.0
      %4133 = vmatpush2.msra.mxu0 0.0
      %4134 = vmatprep.subr.mxu0 0.0
      %4135 = vmatpush2.msra.mxu0 0.0
      %4136 = vmatprep.subr.mxu0 0.0
      %4137 = vmatpush2.msra.mxu0 0.0
      %4138 = vmatprep.subr.mxu0 0.0
      %4139 = vmatpush2.msra.mxu0 0.0
      %4140 = vmatprep.subr.mxu0 0.0
      %4141 = vmatpush2.msra.mxu0 0.0
      %4142 = vmatprep.subr.mxu0 0.0
      %4143 = vmatpush2.msra.mxu0 0.0
      %4144 = vmatprep.subr.mxu0 0.0
      %4145 = vmatpush2.msra.mxu0 0.0
      %4146 = vmatprep.subr.mxu0 0.0
      %4147 = vmatpush2.msra.mxu0 0.0
      %4148 = vmatprep.subr.mxu0 0.0
      %4149 = vmatpush2.msra.mxu0 0.0
      %4150 = vmatprep.subr.mxu0 0.0
      %4151 = vmatpush2.msra.mxu0 0.0
      %4152 = vmatprep.subr.mxu0 0.0
      %4153 = vmatpush2.msra.mxu0 0.0
      %4154 = vmatprep.subr.mxu0 0.0
      %4155 = vmatpush2.msra.mxu0 0.0
      %4156 = vmatprep.subr.mxu0 0.0
      %4157 = vmatpush2.msra.mxu0 0.0
      %4158 = vmatprep.subr.mxu0 0.0
      %4159 = vmatpush2.msra.mxu0 0.0
      %4160 = vmatprep.subr.mxu0 0.0
      %4161 = vmatpush2.msra.mxu0 0.0
      %4162 = vmatprep.subr.mxu0 0.0
      %4163 = vmatpush2.msra.mxu0 0.0
      %4164 = vmatprep.mubr.f32.mxu0 0.0
      %4165 = vmatmul.mubr.f32.gmra.mxu0 %v4098
      %v4166 = vpop.f32.mrf.mxu0
      %v4167 = vadd.f32 1e-05, %v4166
      %v4168 = vpop.f32.mrf.mxu0
      %4169 = vdwg.mxu0
      %v4170 = vrsqrt.pop %v4167
      %v4171 = vmul.f32 %v4170, %v3667
      %v4172 = vlaneseq
      %v4173 = vshrl.u32 %v4172, 7
      %v4174 = vsub.s32 0, %v4173
      %v4175 = vrot.slane %v4171, %v4174
      %v4176 = vmul.f32 %v3890, %v4175
      %v4177 = vmul.f32 %v3891, %v4175
      %v4178 = vmul.f32 %v3892, %v4175
      %v4179 = vmul.f32 %v3893, %v4175
      %v4180 = vmul.f32 %v3894, %v4175
      %v4181 = vmul.f32 %v3895, %v4175
      %v4182 = vmul.f32 %v3896, %v4175
      %v4183 = vmul.f32 %v3897, %v4175
      %v4184 = vmul.f32 %v3898, %v4175
      %v4185 = vmul.f32 %v3899, %v4175
      %v4186 = vmul.f32 %v3900, %v4175
      %v4187 = vmul.f32 %v3901, %v4175
      %v4188 = vmul.f32 %v3902, %v4175
      %v4189 = vmul.f32 %v3903, %v4175
      %v4190 = vmul.f32 %v3904, %v4175
      %v4191 = vmul.f32 %v3905, %v4175
      %v4192 = vmul.f32 %v3906, %v4175
      %v4193 = vmul.f32 %v3907, %v4175
      %v4194 = vmul.f32 %v3908, %v4175
      %v4195 = vmul.f32 %v3909, %v4175
      %v4196 = vmul.f32 %v3910, %v4175
      %v4197 = vmul.f32 %v3911, %v4175
      %v4198 = vmul.f32 %v3912, %v4175
      %v4199 = vmul.f32 %v3913, %v4175
      %v4200 = vmul.f32 %v3914, %v4175
      %v4201 = vmul.f32 %v3915, %v4175
      %v4202 = vmul.f32 %v3916, %v4175
      %v4203 = vmul.f32 %v3917, %v4175
      %v4204 = vmul.f32 %v3918, %v4175
      %v4205 = vmul.f32 %v3919, %v4175
      %v4206 = vmul.f32 %v3920, %v4175
      %v4207 = vmul.f32 %v3921, %v4175
      %v4209 = vlaneseq
      %v4210 = vshrl.u32 %v4209, 7
      %v4211 = vsub.s32 0, %v4210
      %v4212 = vrot.slane %v3668, %v4211
      %v4214 = vadd.f32 %v4176, %v4212
      %v4215 = vadd.f32 %v4177, %v4212
      %v4216 = vadd.f32 %v4178, %v4212
      %v4217 = vadd.f32 %v4179, %v4212
      %v4218 = vadd.f32 %v4180, %v4212
      %v4219 = vadd.f32 %v4181, %v4212
      %v4220 = vadd.f32 %v4182, %v4212
      %v4221 = vadd.f32 %v4183, %v4212
      %v4222 = vadd.f32 %v4184, %v4212
      %v4223 = vadd.f32 %v4185, %v4212
      %v4224 = vadd.f32 %v4186, %v4212
      %v4225 = vadd.f32 %v4187, %v4212
      %v4226 = vadd.f32 %v4188, %v4212
      %v4227 = vadd.f32 %v4189, %v4212
      %v4228 = vadd.f32 %v4190, %v4212
      %v4229 = vadd.f32 %v4191, %v4212
      %v4230 = vadd.f32 %v4192, %v4212
      %v4231 = vadd.f32 %v4193, %v4212
      %v4232 = vadd.f32 %v4194, %v4212
      %v4233 = vadd.f32 %v4195, %v4212
      %v4234 = vadd.f32 %v4196, %v4212
      %v4235 = vadd.f32 %v4197, %v4212
      %v4236 = vadd.f32 %v4198, %v4212
      %v4237 = vadd.f32 %v4199, %v4212
      %v4238 = vadd.f32 %v4200, %v4212
      %v4239 = vadd.f32 %v4201, %v4212
      %v4240 = vadd.f32 %v4202, %v4212
      %v4241 = vadd.f32 %v4203, %v4212
      %v4242 = vadd.f32 %v4204, %v4212
      %v4243 = vadd.f32 %v4205, %v4212
      %v4244 = vadd.f32 %v4206, %v4212
      %v4245 = vadd.f32 %v4207, %v4212
      %v4276 = vrot.slane %v4214, 7
      %v4277 = vrot.slane %v4215, 7
      %v4278 = vsel %vm1123, %v4276, %v4277
      %v4279 = vrot.slane %v4216, 7
      %v4280 = vrot.slane %v4217, 7
      %v4281 = vsel %vm1123, %v4279, %v4280
      %v4282 = vrot.slane %v4218, 7
      %v4283 = vrot.slane %v4219, 7
      %v4284 = vsel %vm1123, %v4282, %v4283
      %v4285 = vrot.slane %v4220, 7
      %v4286 = vrot.slane %v4221, 7
      %v4287 = vsel %vm1123, %v4285, %v4286
      %v4288 = vrot.slane %v4222, 7
      %v4289 = vrot.slane %v4223, 7
      %v4290 = vsel %vm1123, %v4288, %v4289
      %v4291 = vrot.slane %v4224, 7
      %v4292 = vrot.slane %v4225, 7
      %v4293 = vsel %vm1123, %v4291, %v4292
      %v4294 = vrot.slane %v4226, 7
      %v4295 = vrot.slane %v4227, 7
      %v4296 = vsel %vm1123, %v4294, %v4295
      %v4297 = vrot.slane %v4228, 7
      %v4298 = vrot.slane %v4229, 7
      %v4299 = vsel %vm1123, %v4297, %v4298
      %v4300 = vrot.slane %v4230, 7
      %v4301 = vrot.slane %v4231, 7
      %v4302 = vsel %vm1123, %v4300, %v4301
      %v4303 = vrot.slane %v4232, 7
      %v4304 = vrot.slane %v4233, 7
      %v4305 = vsel %vm1123, %v4303, %v4304
      %v4306 = vrot.slane %v4234, 7
      %v4307 = vrot.slane %v4235, 7
      %v4308 = vsel %vm1123, %v4306, %v4307
      %v4309 = vrot.slane %v4236, 7
      %v4310 = vrot.slane %v4237, 7
      %v4311 = vsel %vm1123, %v4309, %v4310
      %v4312 = vrot.slane %v4238, 7
      %v4313 = vrot.slane %v4239, 7
      %v4314 = vsel %vm1123, %v4312, %v4313
      %v4315 = vrot.slane %v4240, 7
      %v4316 = vrot.slane %v4241, 7
      %v4317 = vsel %vm1123, %v4315, %v4316
      %v4318 = vrot.slane %v4242, 7
      %v4319 = vrot.slane %v4243, 7
      %v4320 = vsel %vm1123, %v4318, %v4319
      %v4351 = vsel %vm1123, 0.0, %v4276
      %v4352 = vsel %vm1123, 0.0, %v4279
      %v4353 = vsel %vm1123, 0.0, %v4282
      %v4354 = vsel %vm1123, 0.0, %v4285
      %v4355 = vsel %vm1123, 0.0, %v4288
      %v4356 = vsel %vm1123, 0.0, %v4291
      %v4357 = vsel %vm1123, 0.0, %v4294
      %v4358 = vsel %vm1123, 0.0, %v4297
      %v4359 = vsel %vm1123, 0.0, %v4300
      %v4360 = vsel %vm1123, 0.0, %v4303
      %v4361 = vsel %vm1123, 0.0, %v4306
      %v4362 = vsel %vm1123, 0.0, %v4309
      %v4363 = vsel %vm1123, 0.0, %v4312
      %v4364 = vsel %vm1123, 0.0, %v4315
      %v4365 = vsel %vm1123, 0.0, %v4318
      %v4366 = vpack.c.bf16 %v4278, %v4351
      %v4367 = vpack.c.bf16 %v4281, %v4352
      %v4368 = vpack.c.bf16 %v4284, %v4353
      %v4369 = vpack.c.bf16 %v4287, %v4354
      %v4370 = vpack.c.bf16 %v4290, %v4355
      %v4371 = vpack.c.bf16 %v4293, %v4356
      %v4372 = vpack.c.bf16 %v4296, %v4357
      %v4373 = vpack.c.bf16 %v4299, %v4358
      %v4374 = vpack.c.bf16 %v4302, %v4359
      %v4375 = vpack.c.bf16 %v4305, %v4360
      %v4376 = vpack.c.bf16 %v4308, %v4361
      %v4377 = vpack.c.bf16 %v4311, %v4362
      %v4378 = vpack.c.bf16 %v4314, %v4363
      %v4379 = vpack.c.bf16 %v4317, %v4364
      %v4380 = vpack.c.bf16 %v4320, %v4365
      %v4396 = vunpack.c.l.b16 %v4366
      %v4397 = vunpack.c.h.b16 %v4366
      %v4398 = vunpack.c.l.b16 %v4367
      %v4399 = vunpack.c.h.b16 %v4367
      %v4400 = vunpack.c.l.b16 %v4368
      %v4401 = vunpack.c.h.b16 %v4368
      %v4402 = vunpack.c.l.b16 %v4369
      %v4403 = vunpack.c.h.b16 %v4369
      %v4404 = vunpack.c.l.b16 %v4370
      %v4405 = vunpack.c.h.b16 %v4370
      %v4406 = vunpack.c.l.b16 %v4371
      %v4407 = vunpack.c.h.b16 %v4371
      %v4408 = vunpack.c.l.b16 %v4372
      %v4409 = vunpack.c.h.b16 %v4372
      %v4410 = vunpack.c.l.b16 %v4373
      %v4411 = vunpack.c.h.b16 %v4373
      %v4412 = vunpack.c.l.b16 %v4374
      %v4413 = vunpack.c.h.b16 %v4374
      %v4414 = vunpack.c.l.b16 %v4375
      %v4415 = vunpack.c.h.b16 %v4375
      %v4416 = vunpack.c.l.b16 %v4376
      %v4417 = vunpack.c.h.b16 %v4376
      %v4418 = vunpack.c.l.b16 %v4377
      %v4419 = vunpack.c.h.b16 %v4377
      %v4420 = vunpack.c.l.b16 %v4378
      %v4421 = vunpack.c.h.b16 %v4378
      %v4422 = vunpack.c.l.b16 %v4379
      %v4423 = vunpack.c.h.b16 %v4379
      %v4424 = vunpack.c.l.b16 %v4380
      %v4425 = vunpack.c.h.b16 %v4380
      %v4426 = vpack.c.b16 %v4396, %v4396
      %v4427 = vpack.c.b16 %v4397, %v4397
      %v4428 = vpack.c.b16 %v4398, %v4398
      %v4429 = vpack.c.b16 %v4399, %v4399
      %v4430 = vpack.c.b16 %v4400, %v4400
      %v4431 = vpack.c.b16 %v4401, %v4401
      %v4432 = vpack.c.b16 %v4402, %v4402
      %v4433 = vpack.c.b16 %v4403, %v4403
      %v4434 = vpack.c.b16 %v4404, %v4404
      %v4435 = vpack.c.b16 %v4405, %v4405
      %v4436 = vpack.c.b16 %v4406, %v4406
      %v4437 = vpack.c.b16 %v4407, %v4407
      %v4438 = vpack.c.b16 %v4408, %v4408
      %v4439 = vpack.c.b16 %v4409, %v4409
      %v4440 = vpack.c.b16 %v4410, %v4410
      %v4441 = vpack.c.b16 %v4411, %v4411
      %v4442 = vpack.c.b16 %v4412, %v4412
      %v4443 = vpack.c.b16 %v4413, %v4413
      %v4444 = vpack.c.b16 %v4414, %v4414
      %v4445 = vpack.c.b16 %v4415, %v4415
      %v4446 = vpack.c.b16 %v4416, %v4416
      %v4447 = vpack.c.b16 %v4417, %v4417
      %v4448 = vpack.c.b16 %v4418, %v4418
      %v4449 = vpack.c.b16 %v4419, %v4419
      %v4450 = vpack.c.b16 %v4420, %v4420
      %v4451 = vpack.c.b16 %v4421, %v4421
      %v4452 = vpack.c.b16 %v4422, %v4422
      %v4453 = vpack.c.b16 %v4423, %v4423
      %v4454 = vpack.c.b16 %v4424, %v4424
      %v4455 = vpack.c.b16 %v4425, %v4425
      %vm4486 = vcmask 519168
      %4487 = vst.msk [vmem:[#allocation3] sm:$0xf] %vm4486, %v1283
      %4488 = vst.msk [vmem:[#allocation3 + $0x14] sm:$0xf] %vm4486, %v1284
      %4489 = vst.msk [vmem:[#allocation3 + $0x28] sm:$0xf] %vm4486, %v4426
      %4490 = vst.msk [vmem:[#allocation3 + $0x3c] sm:$0xf] %vm4486, %v4427
      %4491 = vst.msk [vmem:[#allocation3 + $0x50] sm:$0xf] %vm4486, %v4428
      %4492 = vst.msk [vmem:[#allocation3 + $0x64] sm:$0xf] %vm4486, %v4429
      %4493 = vst.msk [vmem:[#allocation3 + $0x78] sm:$0xf] %vm4486, %v4430
      %4494 = vst.msk [vmem:[#allocation3 + $0x8c] sm:$0xf] %vm4486, %v4431
      %4495 = vst.msk [vmem:[#allocation3 + $0xa0] sm:$0xf] %vm4486, %v4432
      %4496 = vst.msk [vmem:[#allocation3 + $0xb4] sm:$0xf] %vm4486, %v4433
      %4497 = vst.msk [vmem:[#allocation3 + $0xc8] sm:$0xf] %vm4486, %v4434
      %4498 = vst.msk [vmem:[#allocation3 + $0xdc] sm:$0xf] %vm4486, %v4435
      %4499 = vst.msk [vmem:[#allocation3 + $0xf0] sm:$0xf] %vm4486, %v4436
      %4500 = vst.msk [vmem:[#allocation3 + $0x104] sm:$0xf] %vm4486, %v4437
      %4501 = vst.msk [vmem:[#allocation3 + $0x118] sm:$0xf] %vm4486, %v4438
      %4502 = vst.msk [vmem:[#allocation3 + $0x12c] sm:$0xf] %vm4486, %v4439
      %4503 = vst.msk [vmem:[#allocation3 + $0x140] sm:$0xf] %vm4486, %v4440
      %4504 = vst.msk [vmem:[#allocation3 + $0x154] sm:$0xf] %vm4486, %v4441
      %4505 = vst.msk [vmem:[#allocation3 + $0x168] sm:$0xf] %vm4486, %v4442
      %4506 = vst.msk [vmem:[#allocation3 + $0x17c] sm:$0xf] %vm4486, %v4443
      %4507 = vst.msk [vmem:[#allocation3 + $0x190] sm:$0xf] %vm4486, %v4444
      %4508 = vst.msk [vmem:[#allocation3 + $0x1a4] sm:$0xf] %vm4486, %v4445
      %4509 = vst.msk [vmem:[#allocation3 + $0x1b8] sm:$0xf] %vm4486, %v4446
      %4510 = vst.msk [vmem:[#allocation3 + $0x1cc] sm:$0xf] %vm4486, %v4447
      %4511 = vst.msk [vmem:[#allocation3 + $0x1e0] sm:$0xf] %vm4486, %v4448
      %4512 = vst.msk [vmem:[#allocation3 + $0x1f4] sm:$0xf] %vm4486, %v4449
      %4513 = vst.msk [vmem:[#allocation3 + $0x208] sm:$0xf] %vm4486, %v4450
      %4514 = vst.msk [vmem:[#allocation3 + $0x21c] sm:$0xf] %vm4486, %v4451
      %4515 = vst.msk [vmem:[#allocation3 + $0x230] sm:$0xf] %vm4486, %v4452
      %4516 = vst.msk [vmem:[#allocation3 + $0x244] sm:$0xf] %vm4486, %v4453
      %4517 = vst.msk [vmem:[#allocation3 + $0x258] sm:$0xf] %vm4486, %v4454
      %4518 = vst.msk [vmem:[#allocation3 + $0x26c] sm:$0xf] %vm4486, %v4455
      %v4519 = vpack.c.bf16 %v4215, %v4214
      %v4520 = vpack.c.bf16 %v4217, %v4216
      %v4521 = vpack.c.bf16 %v4219, %v4218
      %v4522 = vpack.c.bf16 %v4221, %v4220
      %v4523 = vpack.c.bf16 %v4223, %v4222
      %v4524 = vpack.c.bf16 %v4225, %v4224
      %v4525 = vpack.c.bf16 %v4227, %v4226
      %v4526 = vpack.c.bf16 %v4229, %v4228
      %v4527 = vpack.c.bf16 %v4231, %v4230
      %v4528 = vpack.c.bf16 %v4233, %v4232
      %v4529 = vpack.c.bf16 %v4235, %v4234
      %v4530 = vpack.c.bf16 %v4237, %v4236
      %v4531 = vpack.c.bf16 %v4239, %v4238
      %v4532 = vpack.c.bf16 %v4241, %v4240
      %v4533 = vpack.c.bf16 %v4243, %v4242
      %v4549 = vunpack.c.l.b16 %v4519
      %v4550 = vunpack.c.h.b16 %v4519
      %v4551 = vunpack.c.l.b16 %v4520
      %v4552 = vunpack.c.h.b16 %v4520
      %v4553 = vunpack.c.l.b16 %v4521
      %v4554 = vunpack.c.h.b16 %v4521
      %v4555 = vunpack.c.l.b16 %v4522
      %v4556 = vunpack.c.h.b16 %v4522
      %v4557 = vunpack.c.l.b16 %v4523
      %v4558 = vunpack.c.h.b16 %v4523
      %v4559 = vunpack.c.l.b16 %v4524
      %v4560 = vunpack.c.h.b16 %v4524
      %v4561 = vunpack.c.l.b16 %v4525
      %v4562 = vunpack.c.h.b16 %v4525
      %v4563 = vunpack.c.l.b16 %v4526
      %v4564 = vunpack.c.h.b16 %v4526
      %v4565 = vunpack.c.l.b16 %v4527
      %v4566 = vunpack.c.h.b16 %v4527
      %v4567 = vunpack.c.l.b16 %v4528
      %v4568 = vunpack.c.h.b16 %v4528
      %v4569 = vunpack.c.l.b16 %v4529
      %v4570 = vunpack.c.h.b16 %v4529
      %v4571 = vunpack.c.l.b16 %v4530
      %v4572 = vunpack.c.h.b16 %v4530
      %v4573 = vunpack.c.l.b16 %v4531
      %v4574 = vunpack.c.h.b16 %v4531
      %v4575 = vunpack.c.l.b16 %v4532
      %v4576 = vunpack.c.h.b16 %v4532
      %v4577 = vunpack.c.l.b16 %v4533
      %v4578 = vunpack.c.h.b16 %v4533
      %v4579 = vpack.c.b16 %v4549, %v4549
      %v4580 = vpack.c.b16 %v4550, %v4550
      %v4581 = vpack.c.b16 %v4551, %v4551
      %v4582 = vpack.c.b16 %v4552, %v4552
      %v4583 = vpack.c.b16 %v4553, %v4553
      %v4584 = vpack.c.b16 %v4554, %v4554
      %v4585 = vpack.c.b16 %v4555, %v4555
      %v4586 = vpack.c.b16 %v4556, %v4556
      %v4587 = vpack.c.b16 %v4557, %v4557
      %v4588 = vpack.c.b16 %v4558, %v4558
      %v4589 = vpack.c.b16 %v4559, %v4559
      %v4590 = vpack.c.b16 %v4560, %v4560
      %v4591 = vpack.c.b16 %v4561, %v4561
      %v4592 = vpack.c.b16 %v4562, %v4562
      %v4593 = vpack.c.b16 %v4563, %v4563
      %v4594 = vpack.c.b16 %v4564, %v4564
      %v4595 = vpack.c.b16 %v4565, %v4565
      %v4596 = vpack.c.b16 %v4566, %v4566
      %v4597 = vpack.c.b16 %v4567, %v4567
      %v4598 = vpack.c.b16 %v4568, %v4568
      %v4599 = vpack.c.b16 %v4569, %v4569
      %v4600 = vpack.c.b16 %v4570, %v4570
      %v4601 = vpack.c.b16 %v4571, %v4571
      %v4602 = vpack.c.b16 %v4572, %v4572
      %v4603 = vpack.c.b16 %v4573, %v4573
      %v4604 = vpack.c.b16 %v4574, %v4574
      %v4605 = vpack.c.b16 %v4575, %v4575
      %v4606 = vpack.c.b16 %v4576, %v4576
      %v4607 = vpack.c.b16 %v4577, %v4577
      %v4608 = vpack.c.b16 %v4578, %v4578
      %4609 = vrot.lane.b32.xlu0 %v1444, 64
      %v4610 = vpop.permute.xlu0 %4609
      %4611 = vrot.lane.b32.xlu0 %v1445, 64
      %v4612 = vpop.permute.xlu0 %4611
      %4613 = vrot.lane.b32.xlu0 %v4579, 64
      %v4614 = vpop.permute.xlu0 %4613
      %4615 = vrot.lane.b32.xlu0 %v4580, 64
      %v4616 = vpop.permute.xlu0 %4615
      %4617 = vrot.lane.b32.xlu0 %v4581, 64
      %v4618 = vpop.permute.xlu0 %4617
      %4619 = vrot.lane.b32.xlu0 %v4582, 64
      %v4620 = vpop.permute.xlu0 %4619
      %4621 = vrot.lane.b32.xlu0 %v4583, 64
      %v4622 = vpop.permute.xlu0 %4621
      %4623 = vrot.lane.b32.xlu0 %v4584, 64
      %v4624 = vpop.permute.xlu0 %4623
      %4625 = vrot.lane.b32.xlu0 %v4585, 64
      %v4626 = vpop.permute.xlu0 %4625
      %4627 = vrot.lane.b32.xlu0 %v4586, 64
      %v4628 = vpop.permute.xlu0 %4627
      %4629 = vrot.lane.b32.xlu0 %v4587, 64
      %v4630 = vpop.permute.xlu0 %4629
      %4631 = vrot.lane.b32.xlu0 %v4588, 64
      %v4632 = vpop.permute.xlu0 %4631
      %4633 = vrot.lane.b32.xlu0 %v4589, 64
      %v4634 = vpop.permute.xlu0 %4633
      %4635 = vrot.lane.b32.xlu0 %v4590, 64
      %v4636 = vpop.permute.xlu0 %4635
      %4637 = vrot.lane.b32.xlu0 %v4591, 64
      %v4638 = vpop.permute.xlu0 %4637
      %4639 = vrot.lane.b32.xlu0 %v4592, 64
      %v4640 = vpop.permute.xlu0 %4639
      %4641 = vrot.lane.b32.xlu0 %v4593, 64
      %v4642 = vpop.permute.xlu0 %4641
      %4643 = vrot.lane.b32.xlu0 %v4594, 64
      %v4644 = vpop.permute.xlu0 %4643
      %4645 = vrot.lane.b32.xlu0 %v4595, 64
      %v4646 = vpop.permute.xlu0 %4645
      %4647 = vrot.lane.b32.xlu0 %v4596, 64
      %v4648 = vpop.permute.xlu0 %4647
      %4649 = vrot.lane.b32.xlu0 %v4597, 64
      %v4650 = vpop.permute.xlu0 %4649
      %4651 = vrot.lane.b32.xlu0 %v4598, 64
      %v4652 = vpop.permute.xlu0 %4651
      %4653 = vrot.lane.b32.xlu0 %v4599, 64
      %v4654 = vpop.permute.xlu0 %4653
      %4655 = vrot.lane.b32.xlu0 %v4600, 64
      %v4656 = vpop.permute.xlu0 %4655
      %4657 = vrot.lane.b32.xlu0 %v4601, 64
      %v4658 = vpop.permute.xlu0 %4657
      %4659 = vrot.lane.b32.xlu0 %v4602, 64
      %v4660 = vpop.permute.xlu0 %4659
      %4661 = vrot.lane.b32.xlu0 %v4603, 64
      %v4662 = vpop.permute.xlu0 %4661
      %4663 = vrot.lane.b32.xlu0 %v4604, 64
      %v4664 = vpop.permute.xlu0 %4663
      %4665 = vrot.lane.b32.xlu0 %v4605, 64
      %v4666 = vpop.permute.xlu0 %4665
      %4667 = vrot.lane.b32.xlu0 %v4606, 64
      %v4668 = vpop.permute.xlu0 %4667
      %4669 = vrot.lane.b32.xlu0 %v4607, 64
      %v4670 = vpop.permute.xlu0 %4669
      %4671 = vrot.lane.b32.xlu0 %v4608, 64
      %v4672 = vpop.permute.xlu0 %4671
      %vm4705 = vcmask 1043968
      %4706 = vst.msk [vmem:[#allocation3] sm:$0xf] %vm4705, %v4610
      %4707 = vst.msk [vmem:[#allocation3 + $0x14] sm:$0xf] %vm4705, %v4612
      %4708 = vst.msk [vmem:[#allocation3 + $0x28] sm:$0xf] %vm4705, %v4614
      %4709 = vst.msk [vmem:[#allocation3 + $0x3c] sm:$0xf] %vm4705, %v4616
      %4710 = vst.msk [vmem:[#allocation3 + $0x50] sm:$0xf] %vm4705, %v4618
      %4711 = vst.msk [vmem:[#allocation3 + $0x64] sm:$0xf] %vm4705, %v4620
      %4712 = vst.msk [vmem:[#allocation3 + $0x78] sm:$0xf] %vm4705, %v4622
      %4713 = vst.msk [vmem:[#allocation3 + $0x8c] sm:$0xf] %vm4705, %v4624
      %4714 = vst.msk [vmem:[#allocation3 + $0xa0] sm:$0xf] %vm4705, %v4626
      %4715 = vst.msk [vmem:[#allocation3 + $0xb4] sm:$0xf] %vm4705, %v4628
      %4716 = vst.msk [vmem:[#allocation3 + $0xc8] sm:$0xf] %vm4705, %v4630
      %4717 = vst.msk [vmem:[#allocation3 + $0xdc] sm:$0xf] %vm4705, %v4632
      %4718 = vst.msk [vmem:[#allocation3 + $0xf0] sm:$0xf] %vm4705, %v4634
      %4719 = vst.msk [vmem:[#allocation3 + $0x104] sm:$0xf] %vm4705, %v4636
      %4720 = vst.msk [vmem:[#allocation3 + $0x118] sm:$0xf] %vm4705, %v4638
      %4721 = vst.msk [vmem:[#allocation3 + $0x12c] sm:$0xf] %vm4705, %v4640
      %4722 = vst.msk [vmem:[#allocation3 + $0x140] sm:$0xf] %vm4705, %v4642
      %4723 = vst.msk [vmem:[#allocation3 + $0x154] sm:$0xf] %vm4705, %v4644
      %4724 = vst.msk [vmem:[#allocation3 + $0x168] sm:$0xf] %vm4705, %v4646
      %4725 = vst.msk [vmem:[#allocation3 + $0x17c] sm:$0xf] %vm4705, %v4648
      %4726 = vst.msk [vmem:[#allocation3 + $0x190] sm:$0xf] %vm4705, %v4650
      %4727 = vst.msk [vmem:[#allocation3 + $0x1a4] sm:$0xf] %vm4705, %v4652
      %4728 = vst.msk [vmem:[#allocation3 + $0x1b8] sm:$0xf] %vm4705, %v4654
      %4729 = vst.msk [vmem:[#allocation3 + $0x1cc] sm:$0xf] %vm4705, %v4656
      %4730 = vst.msk [vmem:[#allocation3 + $0x1e0] sm:$0xf] %vm4705, %v4658
      %4731 = vst.msk [vmem:[#allocation3 + $0x1f4] sm:$0xf] %vm4705, %v4660
      %4732 = vst.msk [vmem:[#allocation3 + $0x208] sm:$0xf] %vm4705, %v4662
      %4733 = vst.msk [vmem:[#allocation3 + $0x21c] sm:$0xf] %vm4705, %v4664
      %4734 = vst.msk [vmem:[#allocation3 + $0x230] sm:$0xf] %vm4705, %v4666
      %4735 = vst.msk [vmem:[#allocation3 + $0x244] sm:$0xf] %vm4705, %v4668
      %4736 = vst.msk [vmem:[#allocation3 + $0x258] sm:$0xf] %vm4705, %v4670
      %4737 = vst.msk [vmem:[#allocation3 + $0x26c] sm:$0xf] %vm4705, %v4672
      %v4738 = vrot.slane %v4214, 1
      %v4739 = vrot.slane %v4215, 1
      %v4740 = vsel %vm1605, %v4738, %v4739
      %v4741 = vrot.slane %v4216, 1
      %v4742 = vrot.slane %v4217, 1
      %v4743 = vsel %vm1605, %v4741, %v4742
      %v4744 = vrot.slane %v4218, 1
      %v4745 = vrot.slane %v4219, 1
      %v4746 = vsel %vm1605, %v4744, %v4745
      %v4747 = vrot.slane %v4220, 1
      %v4748 = vrot.slane %v4221, 1
      %v4749 = vsel %vm1605, %v4747, %v4748
      %v4750 = vrot.slane %v4222, 1
      %v4751 = vrot.slane %v4223, 1
      %v4752 = vsel %vm1605, %v4750, %v4751
      %v4753 = vrot.slane %v4224, 1
      %v4754 = vrot.slane %v4225, 1
      %v4755 = vsel %vm1605, %v4753, %v4754
      %v4756 = vrot.slane %v4226, 1
      %v4757 = vrot.slane %v4227, 1
      %v4758 = vsel %vm1605, %v4756, %v4757
      %v4759 = vrot.slane %v4228, 1
      %v4760 = vrot.slane %v4229, 1
      %v4761 = vsel %vm1605, %v4759, %v4760
      %v4762 = vrot.slane %v4230, 1
      %v4763 = vrot.slane %v4231, 1
      %v4764 = vsel %vm1605, %v4762, %v4763
      %v4765 = vrot.slane %v4232, 1
      %v4766 = vrot.slane %v4233, 1
      %v4767 = vsel %vm1605, %v4765, %v4766
      %v4768 = vrot.slane %v4234, 1
      %v4769 = vrot.slane %v4235, 1
      %v4770 = vsel %vm1605, %v4768, %v4769
      %v4771 = vrot.slane %v4236, 1
      %v4772 = vrot.slane %v4237, 1
      %v4773 = vsel %vm1605, %v4771, %v4772
      %v4774 = vrot.slane %v4238, 1
      %v4775 = vrot.slane %v4239, 1
      %v4776 = vsel %vm1605, %v4774, %v4775
      %v4777 = vrot.slane %v4240, 1
      %v4778 = vrot.slane %v4241, 1
      %v4779 = vsel %vm1605, %v4777, %v4778
      %v4780 = vrot.slane %v4242, 1
      %v4781 = vrot.slane %v4243, 1
      %v4782 = vsel %vm1605, %v4780, %v4781
      %v4813 = vsel %vm1605, %v4739, 0.0
      %v4814 = vsel %vm1605, %v4742, 0.0
      %v4815 = vsel %vm1605, %v4745, 0.0
      %v4816 = vsel %vm1605, %v4748, 0.0
      %v4817 = vsel %vm1605, %v4751, 0.0
      %v4818 = vsel %vm1605, %v4754, 0.0
      %v4819 = vsel %vm1605, %v4757, 0.0
      %v4820 = vsel %vm1605, %v4760, 0.0
      %v4821 = vsel %vm1605, %v4763, 0.0
      %v4822 = vsel %vm1605, %v4766, 0.0
      %v4823 = vsel %vm1605, %v4769, 0.0
      %v4824 = vsel %vm1605, %v4772, 0.0
      %v4825 = vsel %vm1605, %v4775, 0.0
      %v4826 = vsel %vm1605, %v4778, 0.0
      %v4827 = vsel %vm1605, %v4781, 0.0
      %v4828 = vpack.c.bf16 %v4813, %v4740
      %v4829 = vpack.c.bf16 %v4814, %v4743
      %v4830 = vpack.c.bf16 %v4815, %v4746
      %v4831 = vpack.c.bf16 %v4816, %v4749
      %v4832 = vpack.c.bf16 %v4817, %v4752
      %v4833 = vpack.c.bf16 %v4818, %v4755
      %v4834 = vpack.c.bf16 %v4819, %v4758
      %v4835 = vpack.c.bf16 %v4820, %v4761
      %v4836 = vpack.c.bf16 %v4821, %v4764
      %v4837 = vpack.c.bf16 %v4822, %v4767
      %v4838 = vpack.c.bf16 %v4823, %v4770
      %v4839 = vpack.c.bf16 %v4824, %v4773
      %v4840 = vpack.c.bf16 %v4825, %v4776
      %v4841 = vpack.c.bf16 %v4826, %v4779
      %v4842 = vpack.c.bf16 %v4827, %v4782
      %v4858 = vunpack.c.l.b16 %v4828
      %v4859 = vunpack.c.h.b16 %v4828
      %v4860 = vunpack.c.l.b16 %v4829
      %v4861 = vunpack.c.h.b16 %v4829
      %v4862 = vunpack.c.l.b16 %v4830
      %v4863 = vunpack.c.h.b16 %v4830
      %v4864 = vunpack.c.l.b16 %v4831
      %v4865 = vunpack.c.h.b16 %v4831
      %v4866 = vunpack.c.l.b16 %v4832
      %v4867 = vunpack.c.h.b16 %v4832
      %v4868 = vunpack.c.l.b16 %v4833
      %v4869 = vunpack.c.h.b16 %v4833
      %v4870 = vunpack.c.l.b16 %v4834
      %v4871 = vunpack.c.h.b16 %v4834
      %v4872 = vunpack.c.l.b16 %v4835
      %v4873 = vunpack.c.h.b16 %v4835
      %v4874 = vunpack.c.l.b16 %v4836
      %v4875 = vunpack.c.h.b16 %v4836
      %v4876 = vunpack.c.l.b16 %v4837
      %v4877 = vunpack.c.h.b16 %v4837
      %v4878 = vunpack.c.l.b16 %v4838
      %v4879 = vunpack.c.h.b16 %v4838
      %v4880 = vunpack.c.l.b16 %v4839
      %v4881 = vunpack.c.h.b16 %v4839
      %v4882 = vunpack.c.l.b16 %v4840
      %v4883 = vunpack.c.h.b16 %v4840
      %v4884 = vunpack.c.l.b16 %v4841
      %v4885 = vunpack.c.h.b16 %v4841
      %v4886 = vunpack.c.l.b16 %v4842
      %v4887 = vunpack.c.h.b16 %v4842
      %v4888 = vpack.c.b16 %v4858, %v4858
      %v4889 = vpack.c.b16 %v4859, %v4859
      %v4890 = vpack.c.b16 %v4860, %v4860
      %v4891 = vpack.c.b16 %v4861, %v4861
      %v4892 = vpack.c.b16 %v4862, %v4862
      %v4893 = vpack.c.b16 %v4863, %v4863
      %v4894 = vpack.c.b16 %v4864, %v4864
      %v4895 = vpack.c.b16 %v4865, %v4865
      %v4896 = vpack.c.b16 %v4866, %v4866
      %v4897 = vpack.c.b16 %v4867, %v4867
      %v4898 = vpack.c.b16 %v4868, %v4868
      %v4899 = vpack.c.b16 %v4869, %v4869
      %v4900 = vpack.c.b16 %v4870, %v4870
      %v4901 = vpack.c.b16 %v4871, %v4871
      %v4902 = vpack.c.b16 %v4872, %v4872
      %v4903 = vpack.c.b16 %v4873, %v4873
      %v4904 = vpack.c.b16 %v4874, %v4874
      %v4905 = vpack.c.b16 %v4875, %v4875
      %v4906 = vpack.c.b16 %v4876, %v4876
      %v4907 = vpack.c.b16 %v4877, %v4877
      %v4908 = vpack.c.b16 %v4878, %v4878
      %v4909 = vpack.c.b16 %v4879, %v4879
      %v4910 = vpack.c.b16 %v4880, %v4880
      %v4911 = vpack.c.b16 %v4881, %v4881
      %v4912 = vpack.c.b16 %v4882, %v4882
      %v4913 = vpack.c.b16 %v4883, %v4883
      %v4914 = vpack.c.b16 %v4884, %v4884
      %v4915 = vpack.c.b16 %v4885, %v4885
      %v4916 = vpack.c.b16 %v4886, %v4886
      %v4917 = vpack.c.b16 %v4887, %v4887
      %4948 = vst.msk [vmem:[#allocation3 + $0x4] sm:$0xf] %vm4486, %v1765
      %4949 = vst.msk [vmem:[#allocation3 + $0x18] sm:$0xf] %vm4486, %v1766
      %4950 = vst.msk [vmem:[#allocation3 + $0x2c] sm:$0xf] %vm4486, %v4888
      %4951 = vst.msk [vmem:[#allocation3 + $0x40] sm:$0xf] %vm4486, %v4889
      %4952 = vst.msk [vmem:[#allocation3 + $0x54] sm:$0xf] %vm4486, %v4890
      %4953 = vst.msk [vmem:[#allocation3 + $0x68] sm:$0xf] %vm4486, %v4891
      %4954 = vst.msk [vmem:[#allocation3 + $0x7c] sm:$0xf] %vm4486, %v4892
      %4955 = vst.msk [vmem:[#allocation3 + $0x90] sm:$0xf] %vm4486, %v4893
      %4956 = vst.msk [vmem:[#allocation3 + $0xa4] sm:$0xf] %vm4486, %v4894
      %4957 = vst.msk [vmem:[#allocation3 + $0xb8] sm:$0xf] %vm4486, %v4895
      %4958 = vst.msk [vmem:[#allocation3 + $0xcc] sm:$0xf] %vm4486, %v4896
      %4959 = vst.msk [vmem:[#allocation3 + $0xe0] sm:$0xf] %vm4486, %v4897
      %4960 = vst.msk [vmem:[#allocation3 + $0xf4] sm:$0xf] %vm4486, %v4898
      %4961 = vst.msk [vmem:[#allocation3 + $0x108] sm:$0xf] %vm4486, %v4899
      %4962 = vst.msk [vmem:[#allocation3 + $0x11c] sm:$0xf] %vm4486, %v4900
      %4963 = vst.msk [vmem:[#allocation3 + $0x130] sm:$0xf] %vm4486, %v4901
      %4964 = vst.msk [vmem:[#allocation3 + $0x144] sm:$0xf] %vm4486, %v4902
      %4965 = vst.msk [vmem:[#allocation3 + $0x158] sm:$0xf] %vm4486, %v4903
      %4966 = vst.msk [vmem:[#allocation3 + $0x16c] sm:$0xf] %vm4486, %v4904
      %4967 = vst.msk [vmem:[#allocation3 + $0x180] sm:$0xf] %vm4486, %v4905
      %4968 = vst.msk [vmem:[#allocation3 + $0x194] sm:$0xf] %vm4486, %v4906
      %4969 = vst.msk [vmem:[#allocation3 + $0x1a8] sm:$0xf] %vm4486, %v4907
      %4970 = vst.msk [vmem:[#allocation3 + $0x1bc] sm:$0xf] %vm4486, %v4908
      %4971 = vst.msk [vmem:[#allocation3 + $0x1d0] sm:$0xf] %vm4486, %v4909
      %4972 = vst.msk [vmem:[#allocation3 + $0x1e4] sm:$0xf] %vm4486, %v4910
      %4973 = vst.msk [vmem:[#allocation3 + $0x1f8] sm:$0xf] %vm4486, %v4911
      %4974 = vst.msk [vmem:[#allocation3 + $0x20c] sm:$0xf] %vm4486, %v4912
      %4975 = vst.msk [vmem:[#allocation3 + $0x220] sm:$0xf] %vm4486, %v4913
      %4976 = vst.msk [vmem:[#allocation3 + $0x234] sm:$0xf] %vm4486, %v4914
      %4977 = vst.msk [vmem:[#allocation3 + $0x248] sm:$0xf] %vm4486, %v4915
      %4978 = vst.msk [vmem:[#allocation3 + $0x25c] sm:$0xf] %vm4486, %v4916
      %4979 = vst.msk [vmem:[#allocation3 + $0x270] sm:$0xf] %vm4486, %v4917
      %v4982 = vrot.slane %v4244, 7
      %v4983 = vrot.slane %v4245, 7
      %v4984 = vsel %vm1123, %v4982, %v4983
      %v4987 = vsel %vm1123, 0.0, %v4982
      %v4988 = vpack.c.bf16 %v4984, %v4987
      %v4990 = vunpack.c.l.b16 %v4988
      %v4991 = vunpack.c.h.b16 %v4988
      %v4992 = vpack.c.b16 %v4990, %v4990
      %v4993 = vpack.c.b16 %v4991, %v4991
      %4994 = vrot.lane.b32.xlu0 %v4426, 64
      %v4995 = vpop.permute.xlu0 %4994
      %4996 = vrot.lane.b32.xlu0 %v4427, 64
      %v4997 = vpop.permute.xlu0 %4996
      %4998 = vrot.lane.b32.xlu0 %v4428, 64
      %v4999 = vpop.permute.xlu0 %4998
      %5000 = vrot.lane.b32.xlu0 %v4429, 64
      %v5001 = vpop.permute.xlu0 %5000
      %5002 = vrot.lane.b32.xlu0 %v4430, 64
      %v5003 = vpop.permute.xlu0 %5002
      %5004 = vrot.lane.b32.xlu0 %v4431, 64
      %v5005 = vpop.permute.xlu0 %5004
      %5006 = vrot.lane.b32.xlu0 %v4432, 64
      %v5007 = vpop.permute.xlu0 %5006
      %5008 = vrot.lane.b32.xlu0 %v4433, 64
      %v5009 = vpop.permute.xlu0 %5008
      %5010 = vrot.lane.b32.xlu0 %v4434, 64
      %v5011 = vpop.permute.xlu0 %5010
      %5012 = vrot.lane.b32.xlu0 %v4435, 64
      %v5013 = vpop.permute.xlu0 %5012
      %5014 = vrot.lane.b32.xlu0 %v4436, 64
      %v5015 = vpop.permute.xlu0 %5014
      %5016 = vrot.lane.b32.xlu0 %v4437, 64
      %v5017 = vpop.permute.xlu0 %5016
      %5018 = vrot.lane.b32.xlu0 %v4438, 64
      %v5019 = vpop.permute.xlu0 %5018
      %5020 = vrot.lane.b32.xlu0 %v4439, 64
      %v5021 = vpop.permute.xlu0 %5020
      %5022 = vrot.lane.b32.xlu0 %v4440, 64
      %v5023 = vpop.permute.xlu0 %5022
      %5024 = vrot.lane.b32.xlu0 %v4441, 64
      %v5025 = vpop.permute.xlu0 %5024
      %5026 = vrot.lane.b32.xlu0 %v4442, 64
      %v5027 = vpop.permute.xlu0 %5026
      %5028 = vrot.lane.b32.xlu0 %v4443, 64
      %v5029 = vpop.permute.xlu0 %5028
      %5030 = vrot.lane.b32.xlu0 %v4444, 64
      %v5031 = vpop.permute.xlu0 %5030
      %5032 = vrot.lane.b32.xlu0 %v4445, 64
      %v5033 = vpop.permute.xlu0 %5032
      %5034 = vrot.lane.b32.xlu0 %v4446, 64
      %v5035 = vpop.permute.xlu0 %5034
      %5036 = vrot.lane.b32.xlu0 %v4447, 64
      %v5037 = vpop.permute.xlu0 %5036
      %5038 = vrot.lane.b32.xlu0 %v4448, 64
      %v5039 = vpop.permute.xlu0 %5038
      %5040 = vrot.lane.b32.xlu0 %v4449, 64
      %v5041 = vpop.permute.xlu0 %5040
      %5042 = vrot.lane.b32.xlu0 %v4450, 64
      %v5043 = vpop.permute.xlu0 %5042
      %5044 = vrot.lane.b32.xlu0 %v4451, 64
      %v5045 = vpop.permute.xlu0 %5044
      %5046 = vrot.lane.b32.xlu0 %v4452, 64
      %v5047 = vpop.permute.xlu0 %5046
      %5048 = vrot.lane.b32.xlu0 %v4453, 64
      %v5049 = vpop.permute.xlu0 %5048
      %5050 = vrot.lane.b32.xlu0 %v4454, 64
      %v5051 = vpop.permute.xlu0 %5050
      %5052 = vrot.lane.b32.xlu0 %v4455, 64
      %v5053 = vpop.permute.xlu0 %5052
      %5054 = vrot.lane.b32.xlu0 %v4992, 64
      %v5055 = vpop.permute.xlu0 %5054
      %5056 = vrot.lane.b32.xlu0 %v4993, 64
      %v5057 = vpop.permute.xlu0 %5056
      %5090 = vst.msk [vmem:[#allocation3 + $0x4] sm:$0xf] %vm4705, %v4995
      %5091 = vst.msk [vmem:[#allocation3 + $0x18] sm:$0xf] %vm4705, %v4997
      %5092 = vst.msk [vmem:[#allocation3 + $0x2c] sm:$0xf] %vm4705, %v4999
      %5093 = vst.msk [vmem:[#allocation3 + $0x40] sm:$0xf] %vm4705, %v5001
      %5094 = vst.msk [vmem:[#allocation3 + $0x54] sm:$0xf] %vm4705, %v5003
      %5095 = vst.msk [vmem:[#allocation3 + $0x68] sm:$0xf] %vm4705, %v5005
      %5096 = vst.msk [vmem:[#allocation3 + $0x7c] sm:$0xf] %vm4705, %v5007
      %5097 = vst.msk [vmem:[#allocation3 + $0x90] sm:$0xf] %vm4705, %v5009
      %5098 = vst.msk [vmem:[#allocation3 + $0xa4] sm:$0xf] %vm4705, %v5011
      %5099 = vst.msk [vmem:[#allocation3 + $0xb8] sm:$0xf] %vm4705, %v5013
      %5100 = vst.msk [vmem:[#allocation3 + $0xcc] sm:$0xf] %vm4705, %v5015
      %5101 = vst.msk [vmem:[#allocation3 + $0xe0] sm:$0xf] %vm4705, %v5017
      %5102 = vst.msk [vmem:[#allocation3 + $0xf4] sm:$0xf] %vm4705, %v5019
      %5103 = vst.msk [vmem:[#allocation3 + $0x108] sm:$0xf] %vm4705, %v5021
      %5104 = vst.msk [vmem:[#allocation3 + $0x11c] sm:$0xf] %vm4705, %v5023
      %5105 = vst.msk [vmem:[#allocation3 + $0x130] sm:$0xf] %vm4705, %v5025
      %5106 = vst.msk [vmem:[#allocation3 + $0x144] sm:$0xf] %vm4705, %v5027
      %5107 = vst.msk [vmem:[#allocation3 + $0x158] sm:$0xf] %vm4705, %v5029
      %5108 = vst.msk [vmem:[#allocation3 + $0x16c] sm:$0xf] %vm4705, %v5031
      %5109 = vst.msk [vmem:[#allocation3 + $0x180] sm:$0xf] %vm4705, %v5033
      %5110 = vst.msk [vmem:[#allocation3 + $0x194] sm:$0xf] %vm4705, %v5035
      %5111 = vst.msk [vmem:[#allocation3 + $0x1a8] sm:$0xf] %vm4705, %v5037
      %5112 = vst.msk [vmem:[#allocation3 + $0x1bc] sm:$0xf] %vm4705, %v5039
      %5113 = vst.msk [vmem:[#allocation3 + $0x1d0] sm:$0xf] %vm4705, %v5041
      %5114 = vst.msk [vmem:[#allocation3 + $0x1e4] sm:$0xf] %vm4705, %v5043
      %5115 = vst.msk [vmem:[#allocation3 + $0x1f8] sm:$0xf] %vm4705, %v5045
      %5116 = vst.msk [vmem:[#allocation3 + $0x20c] sm:$0xf] %vm4705, %v5047
      %5117 = vst.msk [vmem:[#allocation3 + $0x220] sm:$0xf] %vm4705, %v5049
      %5118 = vst.msk [vmem:[#allocation3 + $0x234] sm:$0xf] %vm4705, %v5051
      %5119 = vst.msk [vmem:[#allocation3 + $0x248] sm:$0xf] %vm4705, %v5053
      %5120 = vst.msk [vmem:[#allocation3 + $0x25c] sm:$0xf] %vm4705, %v5055
      %5121 = vst.msk [vmem:[#allocation3 + $0x270] sm:$0xf] %vm4705, %v5057
      %v5122 = vpack.c.bf16 %v4245, %v4244
      %v5124 = vunpack.c.l.b16 %v5122
      %v5125 = vunpack.c.h.b16 %v5122
      %v5126 = vpack.c.b16 %v5124, %v5124
      %v5127 = vpack.c.b16 %v5125, %v5125
      %5160 = vst.msk [vmem:[#allocation3 + $0x8] sm:$0xf] %vm4486, %v4579
      %5161 = vst.msk [vmem:[#allocation3 + $0x1c] sm:$0xf] %vm4486, %v4580
      %5162 = vst.msk [vmem:[#allocation3 + $0x30] sm:$0xf] %vm4486, %v4581
      %5163 = vst.msk [vmem:[#allocation3 + $0x44] sm:$0xf] %vm4486, %v4582
      %5164 = vst.msk [vmem:[#allocation3 + $0x58] sm:$0xf] %vm4486, %v4583
      %5165 = vst.msk [vmem:[#allocation3 + $0x6c] sm:$0xf] %vm4486, %v4584
      %5166 = vst.msk [vmem:[#allocation3 + $0x80] sm:$0xf] %vm4486, %v4585
      %5167 = vst.msk [vmem:[#allocation3 + $0x94] sm:$0xf] %vm4486, %v4586
      %5168 = vst.msk [vmem:[#allocation3 + $0xa8] sm:$0xf] %vm4486, %v4587
      %5169 = vst.msk [vmem:[#allocation3 + $0xbc] sm:$0xf] %vm4486, %v4588
      %5170 = vst.msk [vmem:[#allocation3 + $0xd0] sm:$0xf] %vm4486, %v4589
      %5171 = vst.msk [vmem:[#allocation3 + $0xe4] sm:$0xf] %vm4486, %v4590
      %5172 = vst.msk [vmem:[#allocation3 + $0xf8] sm:$0xf] %vm4486, %v4591
      %5173 = vst.msk [vmem:[#allocation3 + $0x10c] sm:$0xf] %vm4486, %v4592
      %5174 = vst.msk [vmem:[#allocation3 + $0x120] sm:$0xf] %vm4486, %v4593
      %5175 = vst.msk [vmem:[#allocation3 + $0x134] sm:$0xf] %vm4486, %v4594
      %5176 = vst.msk [vmem:[#allocation3 + $0x148] sm:$0xf] %vm4486, %v4595
      %5177 = vst.msk [vmem:[#allocation3 + $0x15c] sm:$0xf] %vm4486, %v4596
      %5178 = vst.msk [vmem:[#allocation3 + $0x170] sm:$0xf] %vm4486, %v4597
      %5179 = vst.msk [vmem:[#allocation3 + $0x184] sm:$0xf] %vm4486, %v4598
      %5180 = vst.msk [vmem:[#allocation3 + $0x198] sm:$0xf] %vm4486, %v4599
      %5181 = vst.msk [vmem:[#allocation3 + $0x1ac] sm:$0xf] %vm4486, %v4600
      %5182 = vst.msk [vmem:[#allocation3 + $0x1c0] sm:$0xf] %vm4486, %v4601
      %5183 = vst.msk [vmem:[#allocation3 + $0x1d4] sm:$0xf] %vm4486, %v4602
      %5184 = vst.msk [vmem:[#allocation3 + $0x1e8] sm:$0xf] %vm4486, %v4603
      %5185 = vst.msk [vmem:[#allocation3 + $0x1fc] sm:$0xf] %vm4486, %v4604
      %5186 = vst.msk [vmem:[#allocation3 + $0x210] sm:$0xf] %vm4486, %v4605
      %5187 = vst.msk [vmem:[#allocation3 + $0x224] sm:$0xf] %vm4486, %v4606
      %5188 = vst.msk [vmem:[#allocation3 + $0x238] sm:$0xf] %vm4486, %v4607
      %5189 = vst.msk [vmem:[#allocation3 + $0x24c] sm:$0xf] %vm4486, %v4608
      %5190 = vst.msk [vmem:[#allocation3 + $0x260] sm:$0xf] %vm4486, %v5126
      %5191 = vst.msk [vmem:[#allocation3 + $0x274] sm:$0xf] %vm4486, %v5127
      %v5192 = vrot.slane %v4244, 1
      %v5193 = vrot.slane %v4245, 1
      %v5194 = vsel %vm1605, %v5192, %v5193
      %v5197 = vsel %vm1605, %v5193, 0.0
      %v5198 = vpack.c.bf16 %v5197, %v5194
      %v5200 = vunpack.c.l.b16 %v5198
      %v5201 = vunpack.c.h.b16 %v5198
      %v5202 = vpack.c.b16 %v5200, %v5200
      %v5203 = vpack.c.b16 %v5201, %v5201
      %5204 = vrot.lane.b32.xlu0 %v4888, 64
      %v5205 = vpop.permute.xlu0 %5204
      %5206 = vrot.lane.b32.xlu0 %v4889, 64
      %v5207 = vpop.permute.xlu0 %5206
      %5208 = vrot.lane.b32.xlu0 %v4890, 64
      %v5209 = vpop.permute.xlu0 %5208
      %5210 = vrot.lane.b32.xlu0 %v4891, 64
      %v5211 = vpop.permute.xlu0 %5210
      %5212 = vrot.lane.b32.xlu0 %v4892, 64
      %v5213 = vpop.permute.xlu0 %5212
      %5214 = vrot.lane.b32.xlu0 %v4893, 64
      %v5215 = vpop.permute.xlu0 %5214
      %5216 = vrot.lane.b32.xlu0 %v4894, 64
      %v5217 = vpop.permute.xlu0 %5216
      %5218 = vrot.lane.b32.xlu0 %v4895, 64
      %v5219 = vpop.permute.xlu0 %5218
      %5220 = vrot.lane.b32.xlu0 %v4896, 64
      %v5221 = vpop.permute.xlu0 %5220
      %5222 = vrot.lane.b32.xlu0 %v4897, 64
      %v5223 = vpop.permute.xlu0 %5222
      %5224 = vrot.lane.b32.xlu0 %v4898, 64
      %v5225 = vpop.permute.xlu0 %5224
      %5226 = vrot.lane.b32.xlu0 %v4899, 64
      %v5227 = vpop.permute.xlu0 %5226
      %5228 = vrot.lane.b32.xlu0 %v4900, 64
      %v5229 = vpop.permute.xlu0 %5228
      %5230 = vrot.lane.b32.xlu0 %v4901, 64
      %v5231 = vpop.permute.xlu0 %5230
      %5232 = vrot.lane.b32.xlu0 %v4902, 64
      %v5233 = vpop.permute.xlu0 %5232
      %5234 = vrot.lane.b32.xlu0 %v4903, 64
      %v5235 = vpop.permute.xlu0 %5234
      %5236 = vrot.lane.b32.xlu0 %v4904, 64
      %v5237 = vpop.permute.xlu0 %5236
      %5238 = vrot.lane.b32.xlu0 %v4905, 64
      %v5239 = vpop.permute.xlu0 %5238
      %5240 = vrot.lane.b32.xlu0 %v4906, 64
      %v5241 = vpop.permute.xlu0 %5240
      %5242 = vrot.lane.b32.xlu0 %v4907, 64
      %v5243 = vpop.permute.xlu0 %5242
      %5244 = vrot.lane.b32.xlu0 %v4908, 64
      %v5245 = vpop.permute.xlu0 %5244
      %5246 = vrot.lane.b32.xlu0 %v4909, 64
      %v5247 = vpop.permute.xlu0 %5246
      %5248 = vrot.lane.b32.xlu0 %v4910, 64
      %v5249 = vpop.permute.xlu0 %5248
      %5250 = vrot.lane.b32.xlu0 %v4911, 64
      %v5251 = vpop.permute.xlu0 %5250
      %5252 = vrot.lane.b32.xlu0 %v4912, 64
      %v5253 = vpop.permute.xlu0 %5252
      %5254 = vrot.lane.b32.xlu0 %v4913, 64
      %v5255 = vpop.permute.xlu0 %5254
      %5256 = vrot.lane.b32.xlu0 %v4914, 64
      %v5257 = vpop.permute.xlu0 %5256
      %5258 = vrot.lane.b32.xlu0 %v4915, 64
      %v5259 = vpop.permute.xlu0 %5258
      %5260 = vrot.lane.b32.xlu0 %v4916, 64
      %v5261 = vpop.permute.xlu0 %5260
      %5262 = vrot.lane.b32.xlu0 %v4917, 64
      %v5263 = vpop.permute.xlu0 %5262
      %5264 = vrot.lane.b32.xlu0 %v5202, 64
      %v5265 = vpop.permute.xlu0 %5264
      %5266 = vrot.lane.b32.xlu0 %v5203, 64
      %v5267 = vpop.permute.xlu0 %5266
      %5300 = vst.msk [vmem:[#allocation3 + $0x8] sm:$0xf] %vm4705, %v5205
      %5301 = vst.msk [vmem:[#allocation3 + $0x1c] sm:$0xf] %vm4705, %v5207
      %5302 = vst.msk [vmem:[#allocation3 + $0x30] sm:$0xf] %vm4705, %v5209
      %5303 = vst.msk [vmem:[#allocation3 + $0x44] sm:$0xf] %vm4705, %v5211
      %5304 = vst.msk [vmem:[#allocation3 + $0x58] sm:$0xf] %vm4705, %v5213
      %5305 = vst.msk [vmem:[#allocation3 + $0x6c] sm:$0xf] %vm4705, %v5215
      %5306 = vst.msk [vmem:[#allocation3 + $0x80] sm:$0xf] %vm4705, %v5217
      %5307 = vst.msk [vmem:[#allocation3 + $0x94] sm:$0xf] %vm4705, %v5219
      %5308 = vst.msk [vmem:[#allocation3 + $0xa8] sm:$0xf] %vm4705, %v5221
      %5309 = vst.msk [vmem:[#allocation3 + $0xbc] sm:$0xf] %vm4705, %v5223
      %5310 = vst.msk [vmem:[#allocation3 + $0xd0] sm:$0xf] %vm4705, %v5225
      %5311 = vst.msk [vmem:[#allocation3 + $0xe4] sm:$0xf] %vm4705, %v5227
      %5312 = vst.msk [vmem:[#allocation3 + $0xf8] sm:$0xf] %vm4705, %v5229
      %5313 = vst.msk [vmem:[#allocation3 + $0x10c] sm:$0xf] %vm4705, %v5231
      %5314 = vst.msk [vmem:[#allocation3 + $0x120] sm:$0xf] %vm4705, %v5233
      %5315 = vst.msk [vmem:[#allocation3 + $0x134] sm:$0xf] %vm4705, %v5235
      %5316 = vst.msk [vmem:[#allocation3 + $0x148] sm:$0xf] %vm4705, %v5237
      %5317 = vst.msk [vmem:[#allocation3 + $0x15c] sm:$0xf] %vm4705, %v5239
      %5318 = vst.msk [vmem:[#allocation3 + $0x170] sm:$0xf] %vm4705, %v5241
      %5319 = vst.msk [vmem:[#allocation3 + $0x184] sm:$0xf] %vm4705, %v5243
      %5320 = vst.msk [vmem:[#allocation3 + $0x198] sm:$0xf] %vm4705, %v5245
      %5321 = vst.msk [vmem:[#allocation3 + $0x1ac] sm:$0xf] %vm4705, %v5247
      %5322 = vst.msk [vmem:[#allocation3 + $0x1c0] sm:$0xf] %vm4705, %v5249
      %5323 = vst.msk [vmem:[#allocation3 + $0x1d4] sm:$0xf] %vm4705, %v5251
      %5324 = vst.msk [vmem:[#allocation3 + $0x1e8] sm:$0xf] %vm4705, %v5253
      %5325 = vst.msk [vmem:[#allocation3 + $0x1fc] sm:$0xf] %vm4705, %v5255
      %5326 = vst.msk [vmem:[#allocation3 + $0x210] sm:$0xf] %vm4705, %v5257
      %5327 = vst.msk [vmem:[#allocation3 + $0x224] sm:$0xf] %vm4705, %v5259
      %5328 = vst.msk [vmem:[#allocation3 + $0x238] sm:$0xf] %vm4705, %v5261
      %5329 = vst.msk [vmem:[#allocation3 + $0x24c] sm:$0xf] %vm4705, %v5263
      %5330 = vst.msk [vmem:[#allocation3 + $0x260] sm:$0xf] %vm4705, %v5265
      %5331 = vst.msk [vmem:[#allocation3 + $0x274] sm:$0xf] %vm4705, %v5267
      %5334 = vst.msk [vmem:[#allocation3 + $0xc] sm:$0xf] %vm4486, %v4428
      %5335 = vst.msk [vmem:[#allocation3 + $0x20] sm:$0xf] %vm4486, %v4429
      %5336 = vst.msk [vmem:[#allocation3 + $0x34] sm:$0xf] %vm4486, %v4430
      %5337 = vst.msk [vmem:[#allocation3 + $0x48] sm:$0xf] %vm4486, %v4431
      %5338 = vst.msk [vmem:[#allocation3 + $0x5c] sm:$0xf] %vm4486, %v4432
      %5339 = vst.msk [vmem:[#allocation3 + $0x70] sm:$0xf] %vm4486, %v4433
      %5340 = vst.msk [vmem:[#allocation3 + $0x84] sm:$0xf] %vm4486, %v4434
      %5341 = vst.msk [vmem:[#allocation3 + $0x98] sm:$0xf] %vm4486, %v4435
      %5342 = vst.msk [vmem:[#allocation3 + $0xac] sm:$0xf] %vm4486, %v4436
      %5343 = vst.msk [vmem:[#allocation3 + $0xc0] sm:$0xf] %vm4486, %v4437
      %5344 = vst.msk [vmem:[#allocation3 + $0xd4] sm:$0xf] %vm4486, %v4438
      %5345 = vst.msk [vmem:[#allocation3 + $0xe8] sm:$0xf] %vm4486, %v4439
      %5346 = vst.msk [vmem:[#allocation3 + $0xfc] sm:$0xf] %vm4486, %v4440
      %5347 = vst.msk [vmem:[#allocation3 + $0x110] sm:$0xf] %vm4486, %v4441
      %5348 = vst.msk [vmem:[#allocation3 + $0x124] sm:$0xf] %vm4486, %v4442
      %5349 = vst.msk [vmem:[#allocation3 + $0x138] sm:$0xf] %vm4486, %v4443
      %5350 = vst.msk [vmem:[#allocation3 + $0x14c] sm:$0xf] %vm4486, %v4444
      %5351 = vst.msk [vmem:[#allocation3 + $0x160] sm:$0xf] %vm4486, %v4445
      %5352 = vst.msk [vmem:[#allocation3 + $0x174] sm:$0xf] %vm4486, %v4446
      %5353 = vst.msk [vmem:[#allocation3 + $0x188] sm:$0xf] %vm4486, %v4447
      %5354 = vst.msk [vmem:[#allocation3 + $0x19c] sm:$0xf] %vm4486, %v4448
      %5355 = vst.msk [vmem:[#allocation3 + $0x1b0] sm:$0xf] %vm4486, %v4449
      %5356 = vst.msk [vmem:[#allocation3 + $0x1c4] sm:$0xf] %vm4486, %v4450
      %5357 = vst.msk [vmem:[#allocation3 + $0x1d8] sm:$0xf] %vm4486, %v4451
      %5358 = vst.msk [vmem:[#allocation3 + $0x1ec] sm:$0xf] %vm4486, %v4452
      %5359 = vst.msk [vmem:[#allocation3 + $0x200] sm:$0xf] %vm4486, %v4453
      %5360 = vst.msk [vmem:[#allocation3 + $0x214] sm:$0xf] %vm4486, %v4454
      %5361 = vst.msk [vmem:[#allocation3 + $0x228] sm:$0xf] %vm4486, %v4455
      %5362 = vst.msk [vmem:[#allocation3 + $0x23c] sm:$0xf] %vm4486, %v4992
      %5363 = vst.msk [vmem:[#allocation3 + $0x250] sm:$0xf] %vm4486, %v4993
      %5364 = vst.msk [vmem:[#allocation3 + $0x264] sm:$0xf] %vm4486, %v1283
      %5365 = vst.msk [vmem:[#allocation3 + $0x278] sm:$0xf] %vm4486, %v1284
      %5366 = vrot.lane.b32.xlu0 %v5126, 64
      %v5367 = vpop.permute.xlu0 %5366
      %5368 = vrot.lane.b32.xlu0 %v5127, 64
      %v5369 = vpop.permute.xlu0 %5368
      %5372 = vst.msk [vmem:[#allocation3 + $0xc] sm:$0xf] %vm4705, %v4618
      %5373 = vst.msk [vmem:[#allocation3 + $0x20] sm:$0xf] %vm4705, %v4620
      %5374 = vst.msk [vmem:[#allocation3 + $0x34] sm:$0xf] %vm4705, %v4622
      %5375 = vst.msk [vmem:[#allocation3 + $0x48] sm:$0xf] %vm4705, %v4624
      %5376 = vst.msk [vmem:[#allocation3 + $0x5c] sm:$0xf] %vm4705, %v4626
      %5377 = vst.msk [vmem:[#allocation3 + $0x70] sm:$0xf] %vm4705, %v4628
      %5378 = vst.msk [vmem:[#allocation3 + $0x84] sm:$0xf] %vm4705, %v4630
      %5379 = vst.msk [vmem:[#allocation3 + $0x98] sm:$0xf] %vm4705, %v4632
      %5380 = vst.msk [vmem:[#allocation3 + $0xac] sm:$0xf] %vm4705, %v4634
      %5381 = vst.msk [vmem:[#allocation3 + $0xc0] sm:$0xf] %vm4705, %v4636
      %5382 = vst.msk [vmem:[#allocation3 + $0xd4] sm:$0xf] %vm4705, %v4638
      %5383 = vst.msk [vmem:[#allocation3 + $0xe8] sm:$0xf] %vm4705, %v4640
      %5384 = vst.msk [vmem:[#allocation3 + $0xfc] sm:$0xf] %vm4705, %v4642
      %5385 = vst.msk [vmem:[#allocation3 + $0x110] sm:$0xf] %vm4705, %v4644
      %5386 = vst.msk [vmem:[#allocation3 + $0x124] sm:$0xf] %vm4705, %v4646
      %5387 = vst.msk [vmem:[#allocation3 + $0x138] sm:$0xf] %vm4705, %v4648
      %5388 = vst.msk [vmem:[#allocation3 + $0x14c] sm:$0xf] %vm4705, %v4650
      %5389 = vst.msk [vmem:[#allocation3 + $0x160] sm:$0xf] %vm4705, %v4652
      %5390 = vst.msk [vmem:[#allocation3 + $0x174] sm:$0xf] %vm4705, %v4654
      %5391 = vst.msk [vmem:[#allocation3 + $0x188] sm:$0xf] %vm4705, %v4656
      %5392 = vst.msk [vmem:[#allocation3 + $0x19c] sm:$0xf] %vm4705, %v4658
      %5393 = vst.msk [vmem:[#allocation3 + $0x1b0] sm:$0xf] %vm4705, %v4660
      %5394 = vst.msk [vmem:[#allocation3 + $0x1c4] sm:$0xf] %vm4705, %v4662
      %5395 = vst.msk [vmem:[#allocation3 + $0x1d8] sm:$0xf] %vm4705, %v4664
      %5396 = vst.msk [vmem:[#allocation3 + $0x1ec] sm:$0xf] %vm4705, %v4666
      %5397 = vst.msk [vmem:[#allocation3 + $0x200] sm:$0xf] %vm4705, %v4668
      %5398 = vst.msk [vmem:[#allocation3 + $0x214] sm:$0xf] %vm4705, %v4670
      %5399 = vst.msk [vmem:[#allocation3 + $0x228] sm:$0xf] %vm4705, %v4672
      %5400 = vst.msk [vmem:[#allocation3 + $0x23c] sm:$0xf] %vm4705, %v5367
      %5401 = vst.msk [vmem:[#allocation3 + $0x250] sm:$0xf] %vm4705, %v5369
      %5402 = vst.msk [vmem:[#allocation3 + $0x264] sm:$0xf] %vm4705, %v4610
      %5403 = vst.msk [vmem:[#allocation3 + $0x278] sm:$0xf] %vm4705, %v4612
      %5406 = vst.msk [vmem:[#allocation3 + $0x10] sm:$0xf] %vm4486, %v4890
      %5407 = vst.msk [vmem:[#allocation3 + $0x24] sm:$0xf] %vm4486, %v4891
      %5408 = vst.msk [vmem:[#allocation3 + $0x38] sm:$0xf] %vm4486, %v4892
      %5409 = vst.msk [vmem:[#allocation3 + $0x4c] sm:$0xf] %vm4486, %v4893
      %5410 = vst.msk [vmem:[#allocation3 + $0x60] sm:$0xf] %vm4486, %v4894
      %5411 = vst.msk [vmem:[#allocation3 + $0x74] sm:$0xf] %vm4486, %v4895
      %5412 = vst.msk [vmem:[#allocation3 + $0x88] sm:$0xf] %vm4486, %v4896
      %5413 = vst.msk [vmem:[#allocation3 + $0x9c] sm:$0xf] %vm4486, %v4897
      %5414 = vst.msk [vmem:[#allocation3 + $0xb0] sm:$0xf] %vm4486, %v4898
      %5415 = vst.msk [vmem:[#allocation3 + $0xc4] sm:$0xf] %vm4486, %v4899
      %5416 = vst.msk [vmem:[#allocation3 + $0xd8] sm:$0xf] %vm4486, %v4900
      %5417 = vst.msk [vmem:[#allocation3 + $0xec] sm:$0xf] %vm4486, %v4901
      %5418 = vst.msk [vmem:[#allocation3 + $0x100] sm:$0xf] %vm4486, %v4902
      %5419 = vst.msk [vmem:[#allocation3 + $0x114] sm:$0xf] %vm4486, %v4903
      %5420 = vst.msk [vmem:[#allocation3 + $0x128] sm:$0xf] %vm4486, %v4904
      %5421 = vst.msk [vmem:[#allocation3 + $0x13c] sm:$0xf] %vm4486, %v4905
      %5422 = vst.msk [vmem:[#allocation3 + $0x150] sm:$0xf] %vm4486, %v4906
      %5423 = vst.msk [vmem:[#allocation3 + $0x164] sm:$0xf] %vm4486, %v4907
      %5424 = vst.msk [vmem:[#allocation3 + $0x178] sm:$0xf] %vm4486, %v4908
      %5425 = vst.msk [vmem:[#allocation3 + $0x18c] sm:$0xf] %vm4486, %v4909
      %5426 = vst.msk [vmem:[#allocation3 + $0x1a0] sm:$0xf] %vm4486, %v4910
      %5427 = vst.msk [vmem:[#allocation3 + $0x1b4] sm:$0xf] %vm4486, %v4911
      %5428 = vst.msk [vmem:[#allocation3 + $0x1c8] sm:$0xf] %vm4486, %v4912
      %5429 = vst.msk [vmem:[#allocation3 + $0x1dc] sm:$0xf] %vm4486, %v4913
      %5430 = vst.msk [vmem:[#allocation3 + $0x1f0] sm:$0xf] %vm4486, %v4914
      %5431 = vst.msk [vmem:[#allocation3 + $0x204] sm:$0xf] %vm4486, %v4915
      %5432 = vst.msk [vmem:[#allocation3 + $0x218] sm:$0xf] %vm4486, %v4916
      %5433 = vst.msk [vmem:[#allocation3 + $0x22c] sm:$0xf] %vm4486, %v4917
      %5434 = vst.msk [vmem:[#allocation3 + $0x240] sm:$0xf] %vm4486, %v5202
      %5435 = vst.msk [vmem:[#allocation3 + $0x254] sm:$0xf] %vm4486, %v5203
      %5436 = vst.msk [vmem:[#allocation3 + $0x268] sm:$0xf] %vm4486, %v1765
      %5437 = vst.msk [vmem:[#allocation3 + $0x27c] sm:$0xf] %vm4486, %v1766
      %v5438 = vpack.c.bf16 %v473, %v472
      %v5439 = vpack.c.bf16 %v475, %v474
      %v5440 = vpack.c.bf16 %v477, %v476
      %v5441 = vpack.c.bf16 %v479, %v478
      %v5442 = vpack.c.bf16 %v481, %v480
      %v5443 = vpack.c.bf16 %v483, %v482
      %v5444 = vpack.c.bf16 %v485, %v484
      %v5445 = vpack.c.bf16 %v487, %v486
      %v5446 = vpack.c.bf16 %v489, %v488
      %v5447 = vpack.c.bf16 %v491, %v490
      %v5448 = vpack.c.bf16 %v493, %v492
      %v5449 = vpack.c.bf16 %v495, %v494
      %v5450 = vpack.c.bf16 %v497, %v496
      %v5451 = vpack.c.bf16 %v499, %v498
      %v5452 = vpack.c.bf16 %v501, %v500
      %v5453 = vpack.c.bf16 %v503, %v502
      %v5470 = vunpack.c.l.b16 %v5438
      %v5471 = vunpack.c.h.b16 %v5438
      %v5472 = vunpack.c.l.b16 %v5439
      %v5473 = vunpack.c.h.b16 %v5439
      %v5474 = vunpack.c.l.b16 %v5440
      %v5475 = vunpack.c.h.b16 %v5440
      %v5476 = vunpack.c.l.b16 %v5441
      %v5477 = vunpack.c.h.b16 %v5441
      %v5478 = vunpack.c.l.b16 %v5442
      %v5479 = vunpack.c.h.b16 %v5442
      %v5480 = vunpack.c.l.b16 %v5443
      %v5481 = vunpack.c.h.b16 %v5443
      %v5482 = vunpack.c.l.b16 %v5444
      %v5483 = vunpack.c.h.b16 %v5444
      %v5484 = vunpack.c.l.b16 %v5445
      %v5485 = vunpack.c.h.b16 %v5445
      %v5486 = vunpack.c.l.b16 %v5446
      %v5487 = vunpack.c.h.b16 %v5446
      %v5488 = vunpack.c.l.b16 %v5447
      %v5489 = vunpack.c.h.b16 %v5447
      %v5490 = vunpack.c.l.b16 %v5448
      %v5491 = vunpack.c.h.b16 %v5448
      %v5492 = vunpack.c.l.b16 %v5449
      %v5493 = vunpack.c.h.b16 %v5449
      %v5494 = vunpack.c.l.b16 %v5450
      %v5495 = vunpack.c.h.b16 %v5450
      %v5496 = vunpack.c.l.b16 %v5451
      %v5497 = vunpack.c.h.b16 %v5451
      %v5498 = vunpack.c.l.b16 %v5452
      %v5499 = vunpack.c.h.b16 %v5452
      %v5500 = vunpack.c.l.b16 %v5453
      %v5501 = vunpack.c.h.b16 %v5453
      %v5502 = vpack.c.b16 %v5470, %v5470
      %v5503 = vpack.c.b16 %v5471, %v5471
      %v5504 = vpack.c.b16 %v5472, %v5472
      %v5505 = vpack.c.b16 %v5473, %v5473
      %v5506 = vpack.c.b16 %v5474, %v5474
      %v5507 = vpack.c.b16 %v5475, %v5475
      %v5508 = vpack.c.b16 %v5476, %v5476
      %v5509 = vpack.c.b16 %v5477, %v5477
      %v5510 = vpack.c.b16 %v5478, %v5478
      %v5511 = vpack.c.b16 %v5479, %v5479
      %v5512 = vpack.c.b16 %v5480, %v5480
      %v5513 = vpack.c.b16 %v5481, %v5481
      %v5514 = vpack.c.b16 %v5482, %v5482
      %v5515 = vpack.c.b16 %v5483, %v5483
      %v5516 = vpack.c.b16 %v5484, %v5484
      %v5517 = vpack.c.b16 %v5485, %v5485
      %v5518 = vpack.c.b16 %v5486, %v5486
      %v5519 = vpack.c.b16 %v5487, %v5487
      %v5520 = vpack.c.b16 %v5488, %v5488
      %v5521 = vpack.c.b16 %v5489, %v5489
      %v5522 = vpack.c.b16 %v5490, %v5490
      %v5523 = vpack.c.b16 %v5491, %v5491
      %v5524 = vpack.c.b16 %v5492, %v5492
      %v5525 = vpack.c.b16 %v5493, %v5493
      %v5526 = vpack.c.b16 %v5494, %v5494
      %v5527 = vpack.c.b16 %v5495, %v5495
      %v5528 = vpack.c.b16 %v5496, %v5496
      %v5529 = vpack.c.b16 %v5497, %v5497
      %v5530 = vpack.c.b16 %v5498, %v5498
      %v5531 = vpack.c.b16 %v5499, %v5499
      %v5532 = vpack.c.b16 %v5500, %v5500
      %v5533 = vpack.c.b16 %v5501, %v5501
      %5534 = vrot.lane.b32.xlu0 %v5502, 64
      %v5535 = vpop.permute.xlu0 %5534
      %5536 = vrot.lane.b32.xlu0 %v5503, 64
      %v5537 = vpop.permute.xlu0 %5536
      %5538 = vrot.lane.b32.xlu0 %v5504, 64
      %v5539 = vpop.permute.xlu0 %5538
      %5540 = vrot.lane.b32.xlu0 %v5505, 64
      %v5541 = vpop.permute.xlu0 %5540
      %5542 = vrot.lane.b32.xlu0 %v5506, 64
      %v5543 = vpop.permute.xlu0 %5542
      %5544 = vrot.lane.b32.xlu0 %v5507, 64
      %v5545 = vpop.permute.xlu0 %5544
      %5546 = vrot.lane.b32.xlu0 %v5508, 64
      %v5547 = vpop.permute.xlu0 %5546
      %5548 = vrot.lane.b32.xlu0 %v5509, 64
      %v5549 = vpop.permute.xlu0 %5548
      %5550 = vrot.lane.b32.xlu0 %v5510, 64
      %v5551 = vpop.permute.xlu0 %5550
      %5552 = vrot.lane.b32.xlu0 %v5511, 64
      %v5553 = vpop.permute.xlu0 %5552
      %5554 = vrot.lane.b32.xlu0 %v5512, 64
      %v5555 = vpop.permute.xlu0 %5554
      %5556 = vrot.lane.b32.xlu0 %v5513, 64
      %v5557 = vpop.permute.xlu0 %5556
      %5558 = vrot.lane.b32.xlu0 %v5514, 64
      %v5559 = vpop.permute.xlu0 %5558
      %5560 = vrot.lane.b32.xlu0 %v5515, 64
      %v5561 = vpop.permute.xlu0 %5560
      %5562 = vrot.lane.b32.xlu0 %v5516, 64
      %v5563 = vpop.permute.xlu0 %5562
      %5564 = vrot.lane.b32.xlu0 %v5517, 64
      %v5565 = vpop.permute.xlu0 %5564
      %5566 = vrot.lane.b32.xlu0 %v5518, 64
      %v5567 = vpop.permute.xlu0 %5566
      %5568 = vrot.lane.b32.xlu0 %v5519, 64
      %v5569 = vpop.permute.xlu0 %5568
      %5570 = vrot.lane.b32.xlu0 %v5520, 64
      %v5571 = vpop.permute.xlu0 %5570
      %5572 = vrot.lane.b32.xlu0 %v5521, 64
      %v5573 = vpop.permute.xlu0 %5572
      %5574 = vrot.lane.b32.xlu0 %v5522, 64
      %v5575 = vpop.permute.xlu0 %5574
      %5576 = vrot.lane.b32.xlu0 %v5523, 64
      %v5577 = vpop.permute.xlu0 %5576
      %5578 = vrot.lane.b32.xlu0 %v5524, 64
      %v5579 = vpop.permute.xlu0 %5578
      %5580 = vrot.lane.b32.xlu0 %v5525, 64
      %v5581 = vpop.permute.xlu0 %5580
      %5582 = vrot.lane.b32.xlu0 %v5526, 64
      %v5583 = vpop.permute.xlu0 %5582
      %5584 = vrot.lane.b32.xlu0 %v5527, 64
      %v5585 = vpop.permute.xlu0 %5584
      %5586 = vrot.lane.b32.xlu0 %v5528, 64
      %v5587 = vpop.permute.xlu0 %5586
      %5588 = vrot.lane.b32.xlu0 %v5529, 64
      %v5589 = vpop.permute.xlu0 %5588
      %5590 = vrot.lane.b32.xlu0 %v5530, 64
      %v5591 = vpop.permute.xlu0 %5590
      %5592 = vrot.lane.b32.xlu0 %v5531, 64
      %v5593 = vpop.permute.xlu0 %5592
      %5594 = vrot.lane.b32.xlu0 %v5532, 64
      %v5595 = vpop.permute.xlu0 %5594
      %5596 = vrot.lane.b32.xlu0 %v5533, 64
      %v5597 = vpop.permute.xlu0 %5596
      %5630 = vst.msk [vmem:[#allocation3 + $0x10] sm:$0xf] %vm1893, %v5535
      %5631 = vst.msk [vmem:[#allocation3 + $0x24] sm:$0xf] %vm1893, %v5537
      %5632 = vst.msk [vmem:[#allocation3 + $0x38] sm:$0xf] %vm1893, %v5539
      %5633 = vst.msk [vmem:[#allocation3 + $0x4c] sm:$0xf] %vm1893, %v5541
      %5634 = vst.msk [vmem:[#allocation3 + $0x60] sm:$0xf] %vm1893, %v5543
      %5635 = vst.msk [vmem:[#allocation3 + $0x74] sm:$0xf] %vm1893, %v5545
      %5636 = vst.msk [vmem:[#allocation3 + $0x88] sm:$0xf] %vm1893, %v5547
      %5637 = vst.msk [vmem:[#allocation3 + $0x9c] sm:$0xf] %vm1893, %v5549
      %5638 = vst.msk [vmem:[#allocation3 + $0xb0] sm:$0xf] %vm1893, %v5551
      %5639 = vst.msk [vmem:[#allocation3 + $0xc4] sm:$0xf] %vm1893, %v5553
      %5640 = vst.msk [vmem:[#allocation3 + $0xd8] sm:$0xf] %vm1893, %v5555
      %5641 = vst.msk [vmem:[#allocation3 + $0xec] sm:$0xf] %vm1893, %v5557
      %5642 = vst.msk [vmem:[#allocation3 + $0x100] sm:$0xf] %vm1893, %v5559
      %5643 = vst.msk [vmem:[#allocation3 + $0x114] sm:$0xf] %vm1893, %v5561
      %5644 = vst.msk [vmem:[#allocation3 + $0x128] sm:$0xf] %vm1893, %v5563
      %5645 = vst.msk [vmem:[#allocation3 + $0x13c] sm:$0xf] %vm1893, %v5565
      %5646 = vst.msk [vmem:[#allocation3 + $0x150] sm:$0xf] %vm1893, %v5567
      %5647 = vst.msk [vmem:[#allocation3 + $0x164] sm:$0xf] %vm1893, %v5569
      %5648 = vst.msk [vmem:[#allocation3 + $0x178] sm:$0xf] %vm1893, %v5571
      %5649 = vst.msk [vmem:[#allocation3 + $0x18c] sm:$0xf] %vm1893, %v5573
      %5650 = vst.msk [vmem:[#allocation3 + $0x1a0] sm:$0xf] %vm1893, %v5575
      %5651 = vst.msk [vmem:[#allocation3 + $0x1b4] sm:$0xf] %vm1893, %v5577
      %5652 = vst.msk [vmem:[#allocation3 + $0x1c8] sm:$0xf] %vm1893, %v5579
      %5653 = vst.msk [vmem:[#allocation3 + $0x1dc] sm:$0xf] %vm1893, %v5581
      %5654 = vst.msk [vmem:[#allocation3 + $0x1f0] sm:$0xf] %vm1893, %v5583
      %5655 = vst.msk [vmem:[#allocation3 + $0x204] sm:$0xf] %vm1893, %v5585
      %5656 = vst.msk [vmem:[#allocation3 + $0x218] sm:$0xf] %vm1893, %v5587
      %5657 = vst.msk [vmem:[#allocation3 + $0x22c] sm:$0xf] %vm1893, %v5589
      %5658 = vst.msk [vmem:[#allocation3 + $0x240] sm:$0xf] %vm1893, %v5591
      %5659 = vst.msk [vmem:[#allocation3 + $0x254] sm:$0xf] %vm1893, %v5593
      %5660 = vst.msk [vmem:[#allocation3 + $0x268] sm:$0xf] %vm1893, %v5595
      %5661 = vst.msk [vmem:[#allocation3 + $0x27c] sm:$0xf] %vm1893, %v5597
      %v5662 = vld [vmem:[#allocation3] sm:$0xff]
      %v5663 = vld [vmem:[#allocation3 + $0x8] sm:$0xff]
      %v5664 = vld [vmem:[#allocation3 + $0x10] sm:$0xf]
      %v5665 = vld [vmem:[#allocation3 + $0x14] sm:$0xff]
      %v5666 = vld [vmem:[#allocation3 + $0x1c] sm:$0xff]
      %v5667 = vld [vmem:[#allocation3 + $0x24] sm:$0xf]
      %v5668 = vld [vmem:[#allocation3 + $0x28] sm:$0xff]
      %v5669 = vld [vmem:[#allocation3 + $0x30] sm:$0xff]
      %v5670 = vld [vmem:[#allocation3 + $0x38] sm:$0xf]
      %v5671 = vld [vmem:[#allocation3 + $0x3c] sm:$0xff]
      %v5672 = vld [vmem:[#allocation3 + $0x44] sm:$0xff]
      %v5673 = vld [vmem:[#allocation3 + $0x4c] sm:$0xf]
      %v5674 = vld [vmem:[#allocation3 + $0x50] sm:$0xff]
      %v5675 = vld [vmem:[#allocation3 + $0x58] sm:$0xff]
      %v5676 = vld [vmem:[#allocation3 + $0x60] sm:$0xf]
      %v5677 = vld [vmem:[#allocation3 + $0x64] sm:$0xff]
      %v5678 = vld [vmem:[#allocation3 + $0x6c] sm:$0xff]
      %v5679 = vld [vmem:[#allocation3 + $0x74] sm:$0xf]
      %v5680 = vld [vmem:[#allocation3 + $0x78] sm:$0xff]
      %v5681 = vld [vmem:[#allocation3 + $0x80] sm:$0xff]
      %v5682 = vld [vmem:[#allocation3 + $0x88] sm:$0xf]
      %v5683 = vld [vmem:[#allocation3 + $0x8c] sm:$0xff]
      %v5684 = vld [vmem:[#allocation3 + $0x94] sm:$0xff]
      %v5685 = vld [vmem:[#allocation3 + $0x9c] sm:$0xf]
      %v5686 = vld [vmem:[#allocation3 + $0xa0] sm:$0xff]
      %v5687 = vld [vmem:[#allocation3 + $0xa8] sm:$0xff]
      %v5688 = vld [vmem:[#allocation3 + $0xb0] sm:$0xf]
      %v5689 = vld [vmem:[#allocation3 + $0xb4] sm:$0xff]
      %v5690 = vld [vmem:[#allocation3 + $0xbc] sm:$0xff]
      %v5691 = vld [vmem:[#allocation3 + $0xc4] sm:$0xf]
      %v5692 = vld [vmem:[#allocation3 + $0xc8] sm:$0xff]
      %v5693 = vld [vmem:[#allocation3 + $0xd0] sm:$0xff]
      %v5694 = vld [vmem:[#allocation3 + $0xd8] sm:$0xf]
      %v5695 = vld [vmem:[#allocation3 + $0xdc] sm:$0xff]
      %v5696 = vld [vmem:[#allocation3 + $0xe4] sm:$0xff]
      %v5697 = vld [vmem:[#allocation3 + $0xec] sm:$0xf]
      %v5698 = vld [vmem:[#allocation3 + $0xf0] sm:$0xff]
      %v5699 = vld [vmem:[#allocation3 + $0xf8] sm:$0xff]
      %v5700 = vld [vmem:[#allocation3 + $0x100] sm:$0xf]
      %v5701 = vld [vmem:[#allocation3 + $0x104] sm:$0xff]
      %v5702 = vld [vmem:[#allocation3 + $0x10c] sm:$0xff]
      %v5703 = vld [vmem:[#allocation3 + $0x114] sm:$0xf]
      %v5704 = vld [vmem:[#allocation3 + $0x118] sm:$0xff]
      %v5705 = vld [vmem:[#allocation3 + $0x120] sm:$0xff]
      %v5706 = vld [vmem:[#allocation3 + $0x128] sm:$0xf]
      %v5707 = vld [vmem:[#allocation3 + $0x12c] sm:$0xff]
      %v5708 = vld [vmem:[#allocation3 + $0x134] sm:$0xff]
      %v5709 = vld [vmem:[#allocation3 + $0x13c] sm:$0xf]
      %v5710 = vld [vmem:[#allocation3 + $0x140] sm:$0xff]
      %v5711 = vld [vmem:[#allocation3 + $0x148] sm:$0xff]
      %v5712 = vld [vmem:[#allocation3 + $0x150] sm:$0xf]
      %v5713 = vld [vmem:[#allocation3 + $0x154] sm:$0xff]
      %v5714 = vld [vmem:[#allocation3 + $0x15c] sm:$0xff]
      %v5715 = vld [vmem:[#allocation3 + $0x164] sm:$0xf]
      %v5716 = vld [vmem:[#allocation3 + $0x168] sm:$0xff]
      %v5717 = vld [vmem:[#allocation3 + $0x170] sm:$0xff]
      %v5718 = vld [vmem:[#allocation3 + $0x178] sm:$0xf]
      %v5719 = vld [vmem:[#allocation3 + $0x17c] sm:$0xff]
      %v5720 = vld [vmem:[#allocation3 + $0x184] sm:$0xff]
      %v5721 = vld [vmem:[#allocation3 + $0x18c] sm:$0xf]
      %v5722 = vld [vmem:[#allocation3 + $0x190] sm:$0xff]
      %v5723 = vld [vmem:[#allocation3 + $0x198] sm:$0xff]
      %v5724 = vld [vmem:[#allocation3 + $0x1a0] sm:$0xf]
      %v5725 = vld [vmem:[#allocation3 + $0x1a4] sm:$0xff]
      %v5726 = vld [vmem:[#allocation3 + $0x1ac] sm:$0xff]
      %v5727 = vld [vmem:[#allocation3 + $0x1b4] sm:$0xf]
      %v5728 = vld [vmem:[#allocation3 + $0x1b8] sm:$0xff]
      %v5729 = vld [vmem:[#allocation3 + $0x1c0] sm:$0xff]
      %v5730 = vld [vmem:[#allocation3 + $0x1c8] sm:$0xf]
      %v5731 = vld [vmem:[#allocation3 + $0x1cc] sm:$0xff]
      %v5732 = vld [vmem:[#allocation3 + $0x1d4] sm:$0xff]
      %v5733 = vld [vmem:[#allocation3 + $0x1dc] sm:$0xf]
      %v5734 = vld [vmem:[#allocation3 + $0x1e0] sm:$0xff]
      %v5735 = vld [vmem:[#allocation3 + $0x1e8] sm:$0xff]
      %v5736 = vld [vmem:[#allocation3 + $0x1f0] sm:$0xf]
      %v5737 = vld [vmem:[#allocation3 + $0x1f4] sm:$0xff]
      %v5738 = vld [vmem:[#allocation3 + $0x1fc] sm:$0xff]
      %v5739 = vld [vmem:[#allocation3 + $0x204] sm:$0xf]
      %v5740 = vld [vmem:[#allocation3 + $0x208] sm:$0xff]
      %v5741 = vld [vmem:[#allocation3 + $0x210] sm:$0xff]
      %v5742 = vld [vmem:[#allocation3 + $0x218] sm:$0xf]
      %v5743 = vld [vmem:[#allocation3 + $0x21c] sm:$0xff]
      %v5744 = vld [vmem:[#allocation3 + $0x224] sm:$0xff]
      %v5745 = vld [vmem:[#allocation3 + $0x22c] sm:$0xf]
      %v5746 = vld [vmem:[#allocation3 + $0x230] sm:$0xff]
      %v5747 = vld [vmem:[#allocation3 + $0x238] sm:$0xff]
      %v5748 = vld [vmem:[#allocation3 + $0x240] sm:$0xf]
      %v5749 = vld [vmem:[#allocation3 + $0x244] sm:$0xff]
      %v5750 = vld [vmem:[#allocation3 + $0x24c] sm:$0xff]
      %v5751 = vld [vmem:[#allocation3 + $0x254] sm:$0xf]
      %v5752 = vld [vmem:[#allocation3 + $0x258] sm:$0xff]
      %v5753 = vld [vmem:[#allocation3 + $0x260] sm:$0xff]
      %v5754 = vld [vmem:[#allocation3 + $0x268] sm:$0xf]
      %v5755 = vld [vmem:[#allocation3 + $0x26c] sm:$0xff]
      %v5756 = vld [vmem:[#allocation3 + $0x274] sm:$0xff]
      %v5757 = vld [vmem:[#allocation3 + $0x27c] sm:$0xf]
      %v5758 = vld [vmem:[%s12] sm:$0xf]
      %v5759 = vld [vmem:[%s12 + $0x4] sm:$0xf]
      %v5760 = vld [vmem:[%s12 + $0x8] sm:$0xf]
      %v5761 = vld [vmem:[%s12 + $0xc] sm:$0xf]
      %v5762 = vld [vmem:[%s12 + $0x10] sm:$0xf]
      %v5763 = vld [vmem:[%s12 + $0x14] sm:$0xf]
      %v5764 = vld [vmem:[%s12 + $0x18] sm:$0xf]
      %v5765 = vld [vmem:[%s12 + $0x1c] sm:$0xf]
      %v5766 = vld [vmem:[%s12 + $0x20] sm:$0xf]
      %v5767 = vld [vmem:[%s12 + $0x24] sm:$0xf]
      %v5768 = vld [vmem:[%s12 + $0x28] sm:$0xf]
      %v5769 = vld [vmem:[%s12 + $0x2c] sm:$0xf]
      %v5770 = vld [vmem:[%s12 + $0x30] sm:$0xf]
      %v5771 = vld [vmem:[%s12 + $0x34] sm:$0xf]
      %v5772 = vld [vmem:[%s12 + $0x38] sm:$0xf]
      %v5773 = vld [vmem:[%s12 + $0x3c] sm:$0xf]
      %v5774 = vld [vmem:[%s12 + $0x40] sm:$0xf]
      %v5775 = vld [vmem:[%s12 + $0x44] sm:$0xf]
      %v5776 = vld [vmem:[%s12 + $0x48] sm:$0xf]
      %v5777 = vld [vmem:[%s12 + $0x4c] sm:$0xf]
      %v5778 = vld [vmem:[%s12 + $0x50] sm:$0xf]
      %v5779 = vld [vmem:[%s12 + $0x54] sm:$0xf]
      %v5780 = vld [vmem:[%s12 + $0x58] sm:$0xf]
      %v5781 = vld [vmem:[%s12 + $0x5c] sm:$0xf]
      %v5782 = vld [vmem:[%s12 + $0x60] sm:$0xf]
      %v5783 = vld [vmem:[%s12 + $0x64] sm:$0xf]
      %v5784 = vld [vmem:[%s12 + $0x68] sm:$0xf]
      %v5785 = vld [vmem:[%s12 + $0x6c] sm:$0xf]
      %v5786 = vld [vmem:[%s12 + $0x70] sm:$0xf]
      %v5787 = vld [vmem:[%s12 + $0x74] sm:$0xf]
      %v5788 = vld [vmem:[%s12 + $0x78] sm:$0xf]
      %v5789 = vld [vmem:[%s12 + $0x7c] sm:$0xf]
      %v5790 = vld [vmem:[%s12 + $0x80] sm:$0xf]
      %v5791 = vld [vmem:[%s12 + $0x84] sm:$0xf]
      %v5792 = vld [vmem:[%s12 + $0x88] sm:$0xf]
      %v5793 = vld [vmem:[%s12 + $0x8c] sm:$0xf]
      %v5794 = vld [vmem:[%s12 + $0x90] sm:$0xf]
      %v5795 = vld [vmem:[%s12 + $0x94] sm:$0xf]
      %v5796 = vld [vmem:[%s12 + $0x98] sm:$0xf]
      %v5797 = vld [vmem:[%s12 + $0x9c] sm:$0xf]
      %v5798 = vld [vmem:[%s12 + $0xa0] sm:$0xf]
      %v5799 = vld [vmem:[%s12 + $0xa4] sm:$0xf]
      %v5800 = vld [vmem:[%s12 + $0xa8] sm:$0xf]
      %v5801 = vld [vmem:[%s12 + $0xac] sm:$0xf]
      %v5802 = vld [vmem:[%s12 + $0xb0] sm:$0xf]
      %v5803 = vld [vmem:[%s12 + $0xb4] sm:$0xf]
      %v5804 = vld [vmem:[%s12 + $0xb8] sm:$0xf]
      %v5805 = vld [vmem:[%s12 + $0xbc] sm:$0xf]
      %v5806 = vld [vmem:[%s12 + $0xc0] sm:$0xf]
      %v5807 = vld [vmem:[%s12 + $0xc4] sm:$0xf]
      %v5808 = vld [vmem:[%s12 + $0xc8] sm:$0xf]
      %v5809 = vld [vmem:[%s12 + $0xcc] sm:$0xf]
      %v5810 = vld [vmem:[%s12 + $0xd0] sm:$0xf]
      %v5811 = vld [vmem:[%s12 + $0xd4] sm:$0xf]
      %v5812 = vld [vmem:[%s12 + $0xd8] sm:$0xf]
      %v5813 = vld [vmem:[%s12 + $0xdc] sm:$0xf]
      %v5814 = vld [vmem:[%s12 + $0xe0] sm:$0xf]
      %v5815 = vld [vmem:[%s12 + $0xe4] sm:$0xf]
      %v5816 = vld [vmem:[%s12 + $0xe8] sm:$0xf]
      %v5817 = vld [vmem:[%s12 + $0xec] sm:$0xf]
      %v5818 = vld [vmem:[%s12 + $0xf0] sm:$0xf]
      %v5819 = vld [vmem:[%s12 + $0xf4] sm:$0xf]
      %v5820 = vld [vmem:[%s12 + $0xf8] sm:$0xf]
      %v5821 = vld [vmem:[%s12 + $0xfc] sm:$0xf]
      %v5822 = vld [vmem:[%s12 + $0x100] sm:$0xf]
      %v5823 = vld [vmem:[%s12 + $0x104] sm:$0xf]
      %v5824 = vld [vmem:[%s12 + $0x108] sm:$0xf]
      %v5825 = vld [vmem:[%s12 + $0x10c] sm:$0xf]
      %v5826 = vld [vmem:[%s12 + $0x110] sm:$0xf]
      %v5827 = vld [vmem:[%s12 + $0x114] sm:$0xf]
      %v5828 = vld [vmem:[%s12 + $0x118] sm:$0xf]
      %v5829 = vld [vmem:[%s12 + $0x11c] sm:$0xf]
      %v5830 = vld [vmem:[%s12 + $0x120] sm:$0xf]
      %v5831 = vld [vmem:[%s12 + $0x124] sm:$0xf]
      %v5832 = vld [vmem:[%s12 + $0x128] sm:$0xf]
      %v5833 = vld [vmem:[%s12 + $0x12c] sm:$0xf]
      %v5834 = vld [vmem:[%s13] sm:$0x1]
      %v5836 = vlaneseq
      %v5837 = vshrl.u32 %v5836, 7
      %v5838 = vsub.s32 0, %v5837
      %v5839 = vrot.slane %v5834, %v5838
      %v5937 = vunpack.c.l.b16 %v5662
      %v5938 = vunpack.c.h.b16 %v5662
      %v5939 = vunpack.c.l.b16 %v5663
      %v5940 = vunpack.c.h.b16 %v5663
      %v5941 = vunpack.c.l.b16 %v5664
      %v5942 = vunpack.c.l.b16 %v5665
      %v5943 = vunpack.c.h.b16 %v5665
      %v5944 = vunpack.c.l.b16 %v5666
      %v5945 = vunpack.c.h.b16 %v5666
      %v5946 = vunpack.c.l.b16 %v5667
      %v5947 = vunpack.c.l.b16 %v5668
      %v5948 = vunpack.c.h.b16 %v5668
      %v5949 = vunpack.c.l.b16 %v5669
      %v5950 = vunpack.c.h.b16 %v5669
      %v5951 = vunpack.c.l.b16 %v5670
      %v5952 = vunpack.c.l.b16 %v5671
      %v5953 = vunpack.c.h.b16 %v5671
      %v5954 = vunpack.c.l.b16 %v5672
      %v5955 = vunpack.c.h.b16 %v5672
      %v5956 = vunpack.c.l.b16 %v5673
      %v5957 = vunpack.c.l.b16 %v5674
      %v5958 = vunpack.c.h.b16 %v5674
      %v5959 = vunpack.c.l.b16 %v5675
      %v5960 = vunpack.c.h.b16 %v5675
      %v5961 = vunpack.c.l.b16 %v5676
      %v5962 = vunpack.c.l.b16 %v5677
      %v5963 = vunpack.c.h.b16 %v5677
      %v5964 = vunpack.c.l.b16 %v5678
      %v5965 = vunpack.c.h.b16 %v5678
      %v5966 = vunpack.c.l.b16 %v5679
      %v5967 = vunpack.c.l.b16 %v5680
      %v5968 = vunpack.c.h.b16 %v5680
      %v5969 = vunpack.c.l.b16 %v5681
      %v5970 = vunpack.c.h.b16 %v5681
      %v5971 = vunpack.c.l.b16 %v5682
      %v5972 = vunpack.c.l.b16 %v5683
      %v5973 = vunpack.c.h.b16 %v5683
      %v5974 = vunpack.c.l.b16 %v5684
      %v5975 = vunpack.c.h.b16 %v5684
      %v5976 = vunpack.c.l.b16 %v5685
      %v5977 = vunpack.c.l.b16 %v5686
      %v5978 = vunpack.c.h.b16 %v5686
      %v5979 = vunpack.c.l.b16 %v5687
      %v5980 = vunpack.c.h.b16 %v5687
      %v5981 = vunpack.c.l.b16 %v5688
      %v5982 = vunpack.c.l.b16 %v5689
      %v5983 = vunpack.c.h.b16 %v5689
      %v5984 = vunpack.c.l.b16 %v5690
      %v5985 = vunpack.c.h.b16 %v5690
      %v5986 = vunpack.c.l.b16 %v5691
      %v5987 = vunpack.c.l.b16 %v5692
      %v5988 = vunpack.c.h.b16 %v5692
      %v5989 = vunpack.c.l.b16 %v5693
      %v5990 = vunpack.c.h.b16 %v5693
      %v5991 = vunpack.c.l.b16 %v5694
      %v5992 = vunpack.c.l.b16 %v5695
      %v5993 = vunpack.c.h.b16 %v5695
      %v5994 = vunpack.c.l.b16 %v5696
      %v5995 = vunpack.c.h.b16 %v5696
      %v5996 = vunpack.c.l.b16 %v5697
      %v5997 = vunpack.c.l.b16 %v5698
      %v5998 = vunpack.c.h.b16 %v5698
      %v5999 = vunpack.c.l.b16 %v5699
      %v6000 = vunpack.c.h.b16 %v5699
      %v6001 = vunpack.c.l.b16 %v5700
      %v6002 = vunpack.c.l.b16 %v5701
      %v6003 = vunpack.c.h.b16 %v5701
      %v6004 = vunpack.c.l.b16 %v5702
      %v6005 = vunpack.c.h.b16 %v5702
      %v6006 = vunpack.c.l.b16 %v5703
      %v6007 = vunpack.c.l.b16 %v5704
      %v6008 = vunpack.c.h.b16 %v5704
      %v6009 = vunpack.c.l.b16 %v5705
      %v6010 = vunpack.c.h.b16 %v5705
      %v6011 = vunpack.c.l.b16 %v5706
      %v6012 = vunpack.c.l.b16 %v5707
      %v6013 = vunpack.c.h.b16 %v5707
      %v6014 = vunpack.c.l.b16 %v5708
      %v6015 = vunpack.c.h.b16 %v5708
      %v6016 = vunpack.c.l.b16 %v5709
      %v6017 = vunpack.c.l.b16 %v5710
      %v6018 = vunpack.c.h.b16 %v5710
      %v6019 = vunpack.c.l.b16 %v5711
      %v6020 = vunpack.c.h.b16 %v5711
      %v6021 = vunpack.c.l.b16 %v5712
      %v6022 = vunpack.c.l.b16 %v5713
      %v6023 = vunpack.c.h.b16 %v5713
      %v6024 = vunpack.c.l.b16 %v5714
      %v6025 = vunpack.c.h.b16 %v5714
      %v6026 = vunpack.c.l.b16 %v5715
      %v6027 = vunpack.c.l.b16 %v5716
      %v6028 = vunpack.c.h.b16 %v5716
      %v6029 = vunpack.c.l.b16 %v5717
      %v6030 = vunpack.c.h.b16 %v5717
      %v6031 = vunpack.c.l.b16 %v5718
      %v6032 = vunpack.c.l.b16 %v5719
      %v6033 = vunpack.c.h.b16 %v5719
      %v6034 = vunpack.c.l.b16 %v5720
      %v6035 = vunpack.c.h.b16 %v5720
      %v6036 = vunpack.c.l.b16 %v5721
      %v6037 = vunpack.c.l.b16 %v5722
      %v6038 = vunpack.c.h.b16 %v5722
      %v6039 = vunpack.c.l.b16 %v5723
      %v6040 = vunpack.c.h.b16 %v5723
      %v6041 = vunpack.c.l.b16 %v5724
      %v6042 = vunpack.c.l.b16 %v5725
      %v6043 = vunpack.c.h.b16 %v5725
      %v6044 = vunpack.c.l.b16 %v5726
      %v6045 = vunpack.c.h.b16 %v5726
      %v6046 = vunpack.c.l.b16 %v5727
      %v6047 = vunpack.c.l.b16 %v5728
      %v6048 = vunpack.c.h.b16 %v5728
      %v6049 = vunpack.c.l.b16 %v5729
      %v6050 = vunpack.c.h.b16 %v5729
      %v6051 = vunpack.c.l.b16 %v5730
      %v6052 = vunpack.c.l.b16 %v5731
      %v6053 = vunpack.c.h.b16 %v5731
      %v6054 = vunpack.c.l.b16 %v5732
      %v6055 = vunpack.c.h.b16 %v5732
      %v6056 = vunpack.c.l.b16 %v5733
      %v6057 = vunpack.c.l.b16 %v5734
      %v6058 = vunpack.c.h.b16 %v5734
      %v6059 = vunpack.c.l.b16 %v5735
      %v6060 = vunpack.c.h.b16 %v5735
      %v6061 = vunpack.c.l.b16 %v5736
      %v6062 = vunpack.c.l.b16 %v5737
      %v6063 = vunpack.c.h.b16 %v5737
      %v6064 = vunpack.c.l.b16 %v5738
      %v6065 = vunpack.c.h.b16 %v5738
      %v6066 = vunpack.c.l.b16 %v5739
      %v6067 = vunpack.c.l.b16 %v5740
      %v6068 = vunpack.c.h.b16 %v5740
      %v6069 = vunpack.c.l.b16 %v5741
      %v6070 = vunpack.c.h.b16 %v5741
      %v6071 = vunpack.c.l.b16 %v5742
      %v6072 = vunpack.c.l.b16 %v5743
      %v6073 = vunpack.c.h.b16 %v5743
      %v6074 = vunpack.c.l.b16 %v5744
      %v6075 = vunpack.c.h.b16 %v5744
      %v6076 = vunpack.c.l.b16 %v5745
      %v6077 = vunpack.c.l.b16 %v5746
      %v6078 = vunpack.c.h.b16 %v5746
      %v6079 = vunpack.c.l.b16 %v5747
      %v6080 = vunpack.c.h.b16 %v5747
      %v6081 = vunpack.c.l.b16 %v5748
      %v6082 = vunpack.c.l.b16 %v5749
      %v6083 = vunpack.c.h.b16 %v5749
      %v6084 = vunpack.c.l.b16 %v5750
      %v6085 = vunpack.c.h.b16 %v5750
      %v6086 = vunpack.c.l.b16 %v5751
      %v6087 = vunpack.c.l.b16 %v5752
      %v6088 = vunpack.c.h.b16 %v5752
      %v6089 = vunpack.c.l.b16 %v5753
      %v6090 = vunpack.c.h.b16 %v5753
      %v6091 = vunpack.c.l.b16 %v5754
      %v6092 = vunpack.c.l.b16 %v5755
      %v6093 = vunpack.c.h.b16 %v5755
      %v6094 = vunpack.c.l.b16 %v5756
      %v6095 = vunpack.c.h.b16 %v5756
      %v6096 = vunpack.c.l.b16 %v5757
      %v6097 = vpack.c.b16 %v5942, %v5937
      %v6098 = vpack.c.b16 %v5943, %v5938
      %v6099 = vpack.c.b16 %v5944, %v5939
      %v6100 = vpack.c.b16 %v5945, %v5940
      %v6101 = vpack.c.b16 %v5946, %v5941
      %v6102 = vpack.c.b16 %v5952, %v5947
      %v6103 = vpack.c.b16 %v5953, %v5948
      %v6104 = vpack.c.b16 %v5954, %v5949
      %v6105 = vpack.c.b16 %v5955, %v5950
      %v6106 = vpack.c.b16 %v5956, %v5951
      %v6107 = vpack.c.b16 %v5962, %v5957
      %v6108 = vpack.c.b16 %v5963, %v5958
      %v6109 = vpack.c.b16 %v5964, %v5959
      %v6110 = vpack.c.b16 %v5965, %v5960
      %v6111 = vpack.c.b16 %v5966, %v5961
      %v6112 = vpack.c.b16 %v5972, %v5967
      %v6113 = vpack.c.b16 %v5973, %v5968
      %v6114 = vpack.c.b16 %v5974, %v5969
      %v6115 = vpack.c.b16 %v5975, %v5970
      %v6116 = vpack.c.b16 %v5976, %v5971
      %v6117 = vpack.c.b16 %v5982, %v5977
      %v6118 = vpack.c.b16 %v5983, %v5978
      %v6119 = vpack.c.b16 %v5984, %v5979
      %v6120 = vpack.c.b16 %v5985, %v5980
      %v6121 = vpack.c.b16 %v5986, %v5981
      %v6122 = vpack.c.b16 %v5992, %v5987
      %v6123 = vpack.c.b16 %v5993, %v5988
      %v6124 = vpack.c.b16 %v5994, %v5989
      %v6125 = vpack.c.b16 %v5995, %v5990
      %v6126 = vpack.c.b16 %v5996, %v5991
      %v6127 = vpack.c.b16 %v6002, %v5997
      %v6128 = vpack.c.b16 %v6003, %v5998
      %v6129 = vpack.c.b16 %v6004, %v5999
      %v6130 = vpack.c.b16 %v6005, %v6000
      %v6131 = vpack.c.b16 %v6006, %v6001
      %v6132 = vpack.c.b16 %v6012, %v6007
      %v6133 = vpack.c.b16 %v6013, %v6008
      %v6134 = vpack.c.b16 %v6014, %v6009
      %v6135 = vpack.c.b16 %v6015, %v6010
      %v6136 = vpack.c.b16 %v6016, %v6011
      %v6137 = vpack.c.b16 %v6022, %v6017
      %v6138 = vpack.c.b16 %v6023, %v6018
      %v6139 = vpack.c.b16 %v6024, %v6019
      %v6140 = vpack.c.b16 %v6025, %v6020
      %v6141 = vpack.c.b16 %v6026, %v6021
      %v6142 = vpack.c.b16 %v6032, %v6027
      %v6143 = vpack.c.b16 %v6033, %v6028
      %v6144 = vpack.c.b16 %v6034, %v6029
      %v6145 = vpack.c.b16 %v6035, %v6030
      %v6146 = vpack.c.b16 %v6036, %v6031
      %v6147 = vpack.c.b16 %v6042, %v6037
      %v6148 = vpack.c.b16 %v6043, %v6038
      %v6149 = vpack.c.b16 %v6044, %v6039
      %v6150 = vpack.c.b16 %v6045, %v6040
      %v6151 = vpack.c.b16 %v6046, %v6041
      %v6152 = vpack.c.b16 %v6052, %v6047
      %v6153 = vpack.c.b16 %v6053, %v6048
      %v6154 = vpack.c.b16 %v6054, %v6049
      %v6155 = vpack.c.b16 %v6055, %v6050
      %v6156 = vpack.c.b16 %v6056, %v6051
      %v6157 = vpack.c.b16 %v6062, %v6057
      %v6158 = vpack.c.b16 %v6063, %v6058
      %v6159 = vpack.c.b16 %v6064, %v6059
      %v6160 = vpack.c.b16 %v6065, %v6060
      %v6161 = vpack.c.b16 %v6066, %v6061
      %v6162 = vpack.c.b16 %v6072, %v6067
      %v6163 = vpack.c.b16 %v6073, %v6068
      %v6164 = vpack.c.b16 %v6074, %v6069
      %v6165 = vpack.c.b16 %v6075, %v6070
      %v6166 = vpack.c.b16 %v6076, %v6071
      %v6167 = vpack.c.b16 %v6082, %v6077
      %v6168 = vpack.c.b16 %v6083, %v6078
      %v6169 = vpack.c.b16 %v6084, %v6079
      %v6170 = vpack.c.b16 %v6085, %v6080
      %v6171 = vpack.c.b16 %v6086, %v6081
      %v6172 = vpack.c.b16 %v6092, %v6087
      %v6173 = vpack.c.b16 %v6093, %v6088
      %v6174 = vpack.c.b16 %v6094, %v6089
      %v6175 = vpack.c.b16 %v6095, %v6090
      %v6176 = vpack.c.b16 %v6096, %v6091
      %v6317 = vunpack.c.l.b16 %v5758
      %v6318 = vunpack.c.l.b16 %v5759
      %v6319 = vunpack.c.l.b16 %v5760
      %v6320 = vunpack.c.l.b16 %v5761
      %v6321 = vunpack.c.l.b16 %v5762
      %v6322 = vunpack.c.l.b16 %v5763
      %v6323 = vunpack.c.l.b16 %v5764
      %v6324 = vunpack.c.l.b16 %v5765
      %v6325 = vunpack.c.l.b16 %v5766
      %v6326 = vunpack.c.l.b16 %v5767
      %v6327 = vunpack.c.l.b16 %v5768
      %v6328 = vunpack.c.l.b16 %v5769
      %v6329 = vunpack.c.l.b16 %v5770
      %v6330 = vunpack.c.l.b16 %v5771
      %v6331 = vunpack.c.l.b16 %v5772
      %v6332 = vunpack.c.l.b16 %v5773
      %v6333 = vunpack.c.l.b16 %v5774
      %v6334 = vunpack.c.l.b16 %v5775
      %v6335 = vunpack.c.l.b16 %v5776
      %v6336 = vunpack.c.l.b16 %v5777
      %v6337 = vunpack.c.l.b16 %v5778
      %v6338 = vunpack.c.l.b16 %v5779
      %v6339 = vunpack.c.l.b16 %v5780
      %v6340 = vunpack.c.l.b16 %v5781
      %v6341 = vunpack.c.l.b16 %v5782
      %v6342 = vunpack.c.l.b16 %v5783
      %v6343 = vunpack.c.l.b16 %v5784
      %v6344 = vunpack.c.l.b16 %v5785
      %v6345 = vunpack.c.l.b16 %v5786
      %v6346 = vunpack.c.l.b16 %v5787
      %v6347 = vunpack.c.l.b16 %v5788
      %v6348 = vunpack.c.l.b16 %v5789
      %v6349 = vunpack.c.l.b16 %v5790
      %v6350 = vunpack.c.l.b16 %v5791
      %v6351 = vunpack.c.l.b16 %v5792
      %v6352 = vunpack.c.l.b16 %v5793
      %v6353 = vunpack.c.l.b16 %v5794
      %v6354 = vunpack.c.l.b16 %v5795
      %v6355 = vunpack.c.l.b16 %v5796
      %v6356 = vunpack.c.l.b16 %v5797
      %v6357 = vunpack.c.l.b16 %v5798
      %v6358 = vunpack.c.l.b16 %v5799
      %v6359 = vunpack.c.l.b16 %v5800
      %v6360 = vunpack.c.l.b16 %v5801
      %v6361 = vunpack.c.l.b16 %v5802
      %v6362 = vunpack.c.l.b16 %v5803
      %v6363 = vunpack.c.l.b16 %v5804
      %v6364 = vunpack.c.l.b16 %v5805
      %v6365 = vunpack.c.l.b16 %v5806
      %v6366 = vunpack.c.l.b16 %v5807
      %v6367 = vunpack.c.l.b16 %v5808
      %v6368 = vunpack.c.l.b16 %v5809
      %v6369 = vunpack.c.l.b16 %v5810
      %v6370 = vunpack.c.l.b16 %v5811
      %v6371 = vunpack.c.l.b16 %v5812
      %v6372 = vunpack.c.l.b16 %v5813
      %v6373 = vunpack.c.l.b16 %v5814
      %v6374 = vunpack.c.l.b16 %v5815
      %v6375 = vunpack.c.l.b16 %v5816
      %v6376 = vunpack.c.l.b16 %v5817
      %v6377 = vunpack.c.l.b16 %v5818
      %v6378 = vunpack.c.l.b16 %v5819
      %v6379 = vunpack.c.l.b16 %v5820
      %v6380 = vunpack.c.l.b16 %v5821
      %v6381 = vunpack.c.l.b16 %v5822
      %v6382 = vunpack.c.l.b16 %v5823
      %v6383 = vunpack.c.l.b16 %v5824
      %v6384 = vunpack.c.l.b16 %v5825
      %v6385 = vunpack.c.l.b16 %v5826
      %v6386 = vunpack.c.l.b16 %v5827
      %v6387 = vunpack.c.l.b16 %v5828
      %v6388 = vunpack.c.l.b16 %v5829
      %v6389 = vunpack.c.l.b16 %v5830
      %v6390 = vunpack.c.l.b16 %v5831
      %v6391 = vunpack.c.l.b16 %v5832
      %v6392 = vunpack.c.l.b16 %v5833
      %v6393 = vpack.c.b16 %v6318, %v6317
      %v6394 = vpack.c.b16 %v6320, %v6319
      %v6395 = vpack.c.b16 %v6322, %v6321
      %v6396 = vpack.c.b16 %v6324, %v6323
      %v6397 = vpack.c.b16 %v6326, %v6325
      %v6398 = vpack.c.b16 %v6328, %v6327
      %v6399 = vpack.c.b16 %v6330, %v6329
      %v6400 = vpack.c.b16 %v6332, %v6331
      %v6401 = vpack.c.b16 %v6334, %v6333
      %v6402 = vpack.c.b16 %v6336, %v6335
      %v6403 = vpack.c.b16 %v6338, %v6337
      %v6404 = vpack.c.b16 %v6340, %v6339
      %v6405 = vpack.c.b16 %v6342, %v6341
      %v6406 = vpack.c.b16 %v6344, %v6343
      %v6407 = vpack.c.b16 %v6346, %v6345
      %v6408 = vpack.c.b16 %v6348, %v6347
      %v6409 = vpack.c.b16 %v6350, %v6349
      %v6410 = vpack.c.b16 %v6352, %v6351
      %v6411 = vpack.c.b16 %v6354, %v6353
      %v6412 = vpack.c.b16 %v6356, %v6355
      %v6413 = vpack.c.b16 %v6358, %v6357
      %v6414 = vpack.c.b16 %v6360, %v6359
      %v6415 = vpack.c.b16 %v6362, %v6361
      %v6416 = vpack.c.b16 %v6364, %v6363
      %v6417 = vpack.c.b16 %v6366, %v6365
      %v6418 = vpack.c.b16 %v6368, %v6367
      %v6419 = vpack.c.b16 %v6370, %v6369
      %v6420 = vpack.c.b16 %v6372, %v6371
      %v6421 = vpack.c.b16 %v6374, %v6373
      %v6422 = vpack.c.b16 %v6376, %v6375
      %v6423 = vpack.c.b16 %v6378, %v6377
      %v6424 = vpack.c.b16 %v6380, %v6379
      %v6425 = vpack.c.b16 %v6382, %v6381
      %v6426 = vpack.c.b16 %v6384, %v6383
      %v6427 = vpack.c.b16 %v6386, %v6385
      %v6428 = vpack.c.b16 %v6388, %v6387
      %v6429 = vpack.c.b16 %v6390, %v6389
      %v6430 = vpack.c.b16 %v6392, %v6391
      %vm6469 = vcmask 785408
      %v6471 = vsel %vm6469, %v6101, 0
      %v6474 = vsel %vm6469, %v6106, 0
      %v6477 = vsel %vm6469, %v6111, 0
      %v6480 = vsel %vm6469, %v6116, 0
      %v6483 = vsel %vm6469, %v6121, 0
      %v6486 = vsel %vm6469, %v6126, 0
      %v6489 = vsel %vm6469, %v6131, 0
      %v6492 = vsel %vm6469, %v6136, 0
      %v6495 = vsel %vm6469, %v6141, 0
      %v6498 = vsel %vm6469, %v6146, 0
      %v6501 = vsel %vm6469, %v6151, 0
      %v6504 = vsel %vm6469, %v6156, 0
      %v6507 = vsel %vm6469, %v6161, 0
      %v6510 = vsel %vm6469, %v6166, 0
      %v6513 = vsel %vm6469, %v6171, 0
      %v6516 = vsel %vm6469, %v6176, 0
      %6518 = vmatprep.subr.bf16.mxu0 0
      %6519 = vmatpush1.bf16.msra.mxu0 %v6400
      %6520 = vmatprep.subr.bf16.mxu0 0
      %6521 = vmatpush1.bf16.msra.mxu0 %v6399
      %6522 = vmatprep.subr.bf16.mxu0 0
      %6523 = vmatpush1.bf16.msra.mxu0 %v6398
      %6524 = vmatprep.subr.bf16.mxu0 0
      %6525 = vmatpush1.bf16.msra.mxu0 %v6397
      %6526 = vmatprep.subr.bf16.mxu0 0
      %6527 = vmatpush1.bf16.msra.mxu0 %v6396
      %6528 = vmatprep.subr.bf16.mxu0 0
      %6529 = vmatpush1.bf16.msra.mxu0 %v6395
      %6530 = vmatprep.subr.bf16.mxu0 0
      %6531 = vmatpush1.bf16.msra.mxu0 %v6394
      %6532 = vmatprep.subr.bf16.mxu0 0
      %6533 = vmatpush1.bf16.msra.mxu0 %v6393
      %6534 = vmatprep.subr.bf16.mxu0 0
      %6535 = vmatpush2.bf16.msra.mxu0 %v6408
      %6536 = vmatprep.subr.bf16.mxu0 0
      %6537 = vmatpush2.bf16.msra.mxu0 %v6407
      %6538 = vmatprep.subr.bf16.mxu0 0
      %6539 = vmatpush2.bf16.msra.mxu0 %v6406
      %6540 = vmatprep.subr.bf16.mxu0 0
      %6541 = vmatpush2.bf16.msra.mxu0 %v6405
      %6542 = vmatprep.subr.bf16.mxu0 0
      %6543 = vmatpush2.bf16.msra.mxu0 %v6404
      %6544 = vmatprep.subr.bf16.mxu0 0
      %6545 = vmatpush2.bf16.msra.mxu0 %v6403
      %6546 = vmatprep.subr.bf16.mxu0 0
      %6547 = vmatpush2.bf16.msra.mxu0 %v6402
      %6548 = vmatprep.subr.bf16.mxu0 0
      %6549 = vmatpush2.bf16.msra.mxu0 %v6401
      %6550 = vmatprep.mubr.bf16.mxu0 %v6098
      %6551 = vmatmul.mubr.bf16.gmra.mxu0 %v6097
      %v6552 = vpop.f32.mrf.mxu0
      %v6553 = vadd.f32 %v5839, %v6552
      %v6554 = vpop.f32.mrf.mxu0
      %v6555 = vpop.f32.mrf.mxu0
      %v6556 = vadd.f32 %v5839, %v6555
      %v6557 = vpop.f32.mrf.mxu0
      %6558 = vmatprep.mubr.bf16.mxu0 %v6103
      %6559 = vmatmul.mubr.bf16.gmra.mxu0 %v6102
      %v6560 = vpop.f32.mrf.mxu0
      %v6561 = vadd.f32 %v5839, %v6560
      %v6562 = vpop.f32.mrf.mxu0
      %v6563 = vpop.f32.mrf.mxu0
      %v6564 = vadd.f32 %v5839, %v6563
      %v6565 = vpop.f32.mrf.mxu0
      %6566 = vmatprep.mubr.bf16.mxu0 %v6108
      %6567 = vmatmul.mubr.bf16.gmra.mxu0 %v6107
      %v6568 = vpop.f32.mrf.mxu0
      %v6569 = vadd.f32 %v5839, %v6568
      %v6570 = vpop.f32.mrf.mxu0
      %v6571 = vpop.f32.mrf.mxu0
      %v6572 = vadd.f32 %v5839, %v6571
      %v6573 = vpop.f32.mrf.mxu0
      %6574 = vmatprep.mubr.bf16.mxu0 %v6113
      %6575 = vmatmul.mubr.bf16.gmra.mxu0 %v6112
      %v6576 = vpop.f32.mrf.mxu0
      %v6577 = vadd.f32 %v5839, %v6576
      %v6578 = vpop.f32.mrf.mxu0
      %v6579 = vpop.f32.mrf.mxu0
      %v6580 = vadd.f32 %v5839, %v6579
      %v6581 = vpop.f32.mrf.mxu0
      %6582 = vmatprep.mubr.bf16.mxu0 %v6118
      %6583 = vmatmul.mubr.bf16.gmra.mxu0 %v6117
      %v6584 = vpop.f32.mrf.mxu0
      %v6585 = vadd.f32 %v5839, %v6584
      %v6586 = vpop.f32.mrf.mxu0
      %v6587 = vpop.f32.mrf.mxu0
      %v6588 = vadd.f32 %v5839, %v6587
      %v6589 = vpop.f32.mrf.mxu0
      %6590 = vmatprep.mubr.bf16.mxu0 %v6123
      %6591 = vmatmul.mubr.bf16.gmra.mxu0 %v6122
      %v6592 = vpop.f32.mrf.mxu0
      %v6593 = vadd.f32 %v5839, %v6592
      %v6594 = vpop.f32.mrf.mxu0
      %v6595 = vpop.f32.mrf.mxu0
      %v6596 = vadd.f32 %v5839, %v6595
      %v6597 = vpop.f32.mrf.mxu0
      %6598 = vmatprep.mubr.bf16.mxu0 %v6128
      %6599 = vmatmul.mubr.bf16.gmra.mxu0 %v6127
      %v6600 = vpop.f32.mrf.mxu0
      %v6601 = vadd.f32 %v5839, %v6600
      %v6602 = vpop.f32.mrf.mxu0
      %v6603 = vpop.f32.mrf.mxu0
      %v6604 = vadd.f32 %v5839, %v6603
      %v6605 = vpop.f32.mrf.mxu0
      %6606 = vmatprep.mubr.bf16.mxu0 %v6133
      %6607 = vmatmul.mubr.bf16.gmra.mxu0 %v6132
      %v6608 = vpop.f32.mrf.mxu0
      %v6609 = vadd.f32 %v5839, %v6608
      %v6610 = vpop.f32.mrf.mxu0
      %v6611 = vpop.f32.mrf.mxu0
      %v6612 = vadd.f32 %v5839, %v6611
      %v6613 = vpop.f32.mrf.mxu0
      %6614 = vmatprep.mubr.bf16.mxu0 %v6138
      %6615 = vmatmul.mubr.bf16.gmra.mxu0 %v6137
      %v6616 = vpop.f32.mrf.mxu0
      %v6617 = vadd.f32 %v5839, %v6616
      %v6618 = vpop.f32.mrf.mxu0
      %v6619 = vpop.f32.mrf.mxu0
      %v6620 = vadd.f32 %v5839, %v6619
      %v6621 = vpop.f32.mrf.mxu0
      %6622 = vmatprep.mubr.bf16.mxu0 %v6143
      %6623 = vmatmul.mubr.bf16.gmra.mxu0 %v6142
      %v6624 = vpop.f32.mrf.mxu0
      %v6625 = vadd.f32 %v5839, %v6624
      %v6626 = vpop.f32.mrf.mxu0
      %v6627 = vpop.f32.mrf.mxu0
      %v6628 = vadd.f32 %v5839, %v6627
      %v6629 = vpop.f32.mrf.mxu0
      %6630 = vmatprep.mubr.bf16.mxu0 %v6148
      %6631 = vmatmul.mubr.bf16.gmra.mxu0 %v6147
      %v6632 = vpop.f32.mrf.mxu0
      %v6633 = vadd.f32 %v5839, %v6632
      %v6634 = vpop.f32.mrf.mxu0
      %v6635 = vpop.f32.mrf.mxu0
      %v6636 = vadd.f32 %v5839, %v6635
      %v6637 = vpop.f32.mrf.mxu0
      %6638 = vmatprep.mubr.bf16.mxu0 %v6153
      %6639 = vmatmul.mubr.bf16.gmra.mxu0 %v6152
      %v6640 = vpop.f32.mrf.mxu0
      %v6641 = vadd.f32 %v5839, %v6640
      %v6642 = vpop.f32.mrf.mxu0
      %v6643 = vpop.f32.mrf.mxu0
      %v6644 = vadd.f32 %v5839, %v6643
      %v6645 = vpop.f32.mrf.mxu0
      %6646 = vmatprep.mubr.bf16.mxu0 %v6158
      %6647 = vmatmul.mubr.bf16.gmra.mxu0 %v6157
      %v6648 = vpop.f32.mrf.mxu0
      %v6649 = vadd.f32 %v5839, %v6648
      %v6650 = vpop.f32.mrf.mxu0
      %v6651 = vpop.f32.mrf.mxu0
      %v6652 = vadd.f32 %v5839, %v6651
      %v6653 = vpop.f32.mrf.mxu0
      %6654 = vmatprep.mubr.bf16.mxu0 %v6163
      %6655 = vmatmul.mubr.bf16.gmra.mxu0 %v6162
      %v6656 = vpop.f32.mrf.mxu0
      %v6657 = vadd.f32 %v5839, %v6656
      %v6658 = vpop.f32.mrf.mxu0
      %v6659 = vpop.f32.mrf.mxu0
      %v6660 = vadd.f32 %v5839, %v6659
      %v6661 = vpop.f32.mrf.mxu0
      %6662 = vmatprep.mubr.bf16.mxu0 %v6168
      %6663 = vmatmul.mubr.bf16.gmra.mxu0 %v6167
      %v6664 = vpop.f32.mrf.mxu0
      %v6665 = vadd.f32 %v5839, %v6664
      %v6666 = vpop.f32.mrf.mxu0
      %v6667 = vpop.f32.mrf.mxu0
      %v6668 = vadd.f32 %v5839, %v6667
      %v6669 = vpop.f32.mrf.mxu0
      %6670 = vmatprep.mubr.bf16.mxu0 %v6173
      %6671 = vmatmul.mubr.bf16.gmra.mxu0 %v6172
      %v6672 = vpop.f32.mrf.mxu0
      %v6673 = vadd.f32 %v5839, %v6672
      %v6674 = vpop.f32.mrf.mxu0
      %v6675 = vpop.f32.mrf.mxu0
      %v6676 = vadd.f32 %v5839, %v6675
      %v6677 = vpop.f32.mrf.mxu0
      %6678 = vdwg.mxu0
      %6679 = vmatprep.subr.bf16.mxu0 0
      %6680 = vmatpush1.bf16.msra.mxu0 %v6416
      %6681 = vmatprep.subr.bf16.mxu0 0
      %6682 = vmatpush1.bf16.msra.mxu0 %v6415
      %6683 = vmatprep.subr.bf16.mxu0 0
      %6684 = vmatpush1.bf16.msra.mxu0 %v6414
      %6685 = vmatprep.subr.bf16.mxu0 0
      %6686 = vmatpush1.bf16.msra.mxu0 %v6413
      %6687 = vmatprep.subr.bf16.mxu0 0
      %6688 = vmatpush1.bf16.msra.mxu0 %v6412
      %6689 = vmatprep.subr.bf16.mxu0 0
      %6690 = vmatpush1.bf16.msra.mxu0 %v6411
      %6691 = vmatprep.subr.bf16.mxu0 0
      %6692 = vmatpush1.bf16.msra.mxu0 %v6410
      %6693 = vmatprep.subr.bf16.mxu0 0
      %6694 = vmatpush1.bf16.msra.mxu0 %v6409
      %6695 = vmatprep.subr.bf16.mxu0 0
      %6696 = vmatpush2.bf16.msra.mxu0 %v6424
      %6697 = vmatprep.subr.bf16.mxu0 0
      %6698 = vmatpush2.bf16.msra.mxu0 %v6423
      %6699 = vmatprep.subr.bf16.mxu0 0
      %6700 = vmatpush2.bf16.msra.mxu0 %v6422
      %6701 = vmatprep.subr.bf16.mxu0 0
      %6702 = vmatpush2.bf16.msra.mxu0 %v6421
      %6703 = vmatprep.subr.bf16.mxu0 0
      %6704 = vmatpush2.bf16.msra.mxu0 %v6420
      %6705 = vmatprep.subr.bf16.mxu0 0
      %6706 = vmatpush2.bf16.msra.mxu0 %v6419
      %6707 = vmatprep.subr.bf16.mxu0 0
      %6708 = vmatpush2.bf16.msra.mxu0 %v6418
      %6709 = vmatprep.subr.bf16.mxu0 0
      %6710 = vmatpush2.bf16.msra.mxu0 %v6417
      %6711 = vmatprep.mubr.bf16.mxu0 %v6100
      %6712 = vmatmul.mubr.bf16.gmra.mxu0 %v6099
      %v6713 = vpop.f32.mrf.mxu0
      %v6714 = vadd.f32 %v6553, %v6713
      %v6715 = vpop.f32.mrf.mxu0
      %v6716 = vpop.f32.mrf.mxu0
      %v6717 = vadd.f32 %v6556, %v6716
      %v6718 = vpop.f32.mrf.mxu0
      %6719 = vmatprep.mubr.bf16.mxu0 %v6105
      %6720 = vmatmul.mubr.bf16.gmra.mxu0 %v6104
      %v6721 = vpop.f32.mrf.mxu0
      %v6722 = vadd.f32 %v6561, %v6721
      %v6723 = vpop.f32.mrf.mxu0
      %v6724 = vpop.f32.mrf.mxu0
      %v6725 = vadd.f32 %v6564, %v6724
      %v6726 = vpop.f32.mrf.mxu0
      %6727 = vmatprep.mubr.bf16.mxu0 %v6110
      %6728 = vmatmul.mubr.bf16.gmra.mxu0 %v6109
      %v6729 = vpop.f32.mrf.mxu0
      %v6730 = vadd.f32 %v6569, %v6729
      %v6731 = vpop.f32.mrf.mxu0
      %v6732 = vpop.f32.mrf.mxu0
      %v6733 = vadd.f32 %v6572, %v6732
      %v6734 = vpop.f32.mrf.mxu0
      %6735 = vmatprep.mubr.bf16.mxu0 %v6115
      %6736 = vmatmul.mubr.bf16.gmra.mxu0 %v6114
      %v6737 = vpop.f32.mrf.mxu0
      %v6738 = vadd.f32 %v6577, %v6737
      %v6739 = vpop.f32.mrf.mxu0
      %v6740 = vpop.f32.mrf.mxu0
      %v6741 = vadd.f32 %v6580, %v6740
      %v6742 = vpop.f32.mrf.mxu0
      %6743 = vmatprep.mubr.bf16.mxu0 %v6120
      %6744 = vmatmul.mubr.bf16.gmra.mxu0 %v6119
      %v6745 = vpop.f32.mrf.mxu0
      %v6746 = vadd.f32 %v6585, %v6745
      %v6747 = vpop.f32.mrf.mxu0
      %v6748 = vpop.f32.mrf.mxu0
      %v6749 = vadd.f32 %v6588, %v6748
      %v6750 = vpop.f32.mrf.mxu0
      %6751 = vmatprep.mubr.bf16.mxu0 %v6125
      %6752 = vmatmul.mubr.bf16.gmra.mxu0 %v6124
      %v6753 = vpop.f32.mrf.mxu0
      %v6754 = vadd.f32 %v6593, %v6753
      %v6755 = vpop.f32.mrf.mxu0
      %v6756 = vpop.f32.mrf.mxu0
      %v6757 = vadd.f32 %v6596, %v6756
      %v6758 = vpop.f32.mrf.mxu0
      %6759 = vmatprep.mubr.bf16.mxu0 %v6130
      %6760 = vmatmul.mubr.bf16.gmra.mxu0 %v6129
      %v6761 = vpop.f32.mrf.mxu0
      %v6762 = vadd.f32 %v6601, %v6761
      %v6763 = vpop.f32.mrf.mxu0
      %v6764 = vpop.f32.mrf.mxu0
      %v6765 = vadd.f32 %v6604, %v6764
      %v6766 = vpop.f32.mrf.mxu0
      %6767 = vmatprep.mubr.bf16.mxu0 %v6135
      %6768 = vmatmul.mubr.bf16.gmra.mxu0 %v6134
      %v6769 = vpop.f32.mrf.mxu0
      %v6770 = vadd.f32 %v6609, %v6769
      %v6771 = vpop.f32.mrf.mxu0
      %v6772 = vpop.f32.mrf.mxu0
      %v6773 = vadd.f32 %v6612, %v6772
      %v6774 = vpop.f32.mrf.mxu0
      %6775 = vmatprep.mubr.bf16.mxu0 %v6140
      %6776 = vmatmul.mubr.bf16.gmra.mxu0 %v6139
      %v6777 = vpop.f32.mrf.mxu0
      %v6778 = vadd.f32 %v6617, %v6777
      %v6779 = vpop.f32.mrf.mxu0
      %v6780 = vpop.f32.mrf.mxu0
      %v6781 = vadd.f32 %v6620, %v6780
      %v6782 = vpop.f32.mrf.mxu0
      %6783 = vmatprep.mubr.bf16.mxu0 %v6145
      %6784 = vmatmul.mubr.bf16.gmra.mxu0 %v6144
      %v6785 = vpop.f32.mrf.mxu0
      %v6786 = vadd.f32 %v6625, %v6785
      %v6787 = vpop.f32.mrf.mxu0
      %v6788 = vpop.f32.mrf.mxu0
      %v6789 = vadd.f32 %v6628, %v6788
      %v6790 = vpop.f32.mrf.mxu0
      %6791 = vmatprep.mubr.bf16.mxu0 %v6150
      %6792 = vmatmul.mubr.bf16.gmra.mxu0 %v6149
      %v6793 = vpop.f32.mrf.mxu0
      %v6794 = vadd.f32 %v6633, %v6793
      %v6795 = vpop.f32.mrf.mxu0
      %v6796 = vpop.f32.mrf.mxu0
      %v6797 = vadd.f32 %v6636, %v6796
      %v6798 = vpop.f32.mrf.mxu0
      %6799 = vmatprep.mubr.bf16.mxu0 %v6155
      %6800 = vmatmul.mubr.bf16.gmra.mxu0 %v6154
      %v6801 = vpop.f32.mrf.mxu0
      %v6802 = vadd.f32 %v6641, %v6801
      %v6803 = vpop.f32.mrf.mxu0
      %v6804 = vpop.f32.mrf.mxu0
      %v6805 = vadd.f32 %v6644, %v6804
      %v6806 = vpop.f32.mrf.mxu0
      %6807 = vmatprep.mubr.bf16.mxu0 %v6160
      %6808 = vmatmul.mubr.bf16.gmra.mxu0 %v6159
      %v6809 = vpop.f32.mrf.mxu0
      %v6810 = vadd.f32 %v6649, %v6809
      %v6811 = vpop.f32.mrf.mxu0
      %v6812 = vpop.f32.mrf.mxu0
      %v6813 = vadd.f32 %v6652, %v6812
      %v6814 = vpop.f32.mrf.mxu0
      %6815 = vmatprep.mubr.bf16.mxu0 %v6165
      %6816 = vmatmul.mubr.bf16.gmra.mxu0 %v6164
      %v6817 = vpop.f32.mrf.mxu0
      %v6818 = vadd.f32 %v6657, %v6817
      %v6819 = vpop.f32.mrf.mxu0
      %v6820 = vpop.f32.mrf.mxu0
      %v6821 = vadd.f32 %v6660, %v6820
      %v6822 = vpop.f32.mrf.mxu0
      %6823 = vmatprep.mubr.bf16.mxu0 %v6170
      %6824 = vmatmul.mubr.bf16.gmra.mxu0 %v6169
      %v6825 = vpop.f32.mrf.mxu0
      %v6826 = vadd.f32 %v6665, %v6825
      %v6827 = vpop.f32.mrf.mxu0
      %v6828 = vpop.f32.mrf.mxu0
      %v6829 = vadd.f32 %v6668, %v6828
      %v6830 = vpop.f32.mrf.mxu0
      %6831 = vmatprep.mubr.bf16.mxu0 %v6175
      %6832 = vmatmul.mubr.bf16.gmra.mxu0 %v6174
      %v6833 = vpop.f32.mrf.mxu0
      %v6834 = vadd.f32 %v6673, %v6833
      %v6835 = vpop.f32.mrf.mxu0
      %v6836 = vpop.f32.mrf.mxu0
      %v6837 = vadd.f32 %v6676, %v6836
      %v6838 = vpop.f32.mrf.mxu0
      %6839 = vdwg.mxu0
      %6840 = vmatprep.subr.bf16.mxu0 0
      %6841 = vmatpush1.bf16.msra.mxu0 0
      %6842 = vmatprep.subr.bf16.mxu0 0
      %6843 = vmatpush1.bf16.msra.mxu0 0
      %6844 = vmatprep.subr.bf16.mxu0 0
      %6845 = vmatpush1.bf16.msra.mxu0 %v6430
      %6846 = vmatprep.subr.bf16.mxu0 0
      %6847 = vmatpush1.bf16.msra.mxu0 %v6429
      %6848 = vmatprep.subr.bf16.mxu0 0
      %6849 = vmatpush1.bf16.msra.mxu0 %v6428
      %6850 = vmatprep.subr.bf16.mxu0 0
      %6851 = vmatpush1.bf16.msra.mxu0 %v6427
      %6852 = vmatprep.subr.bf16.mxu0 0
      %6853 = vmatpush1.bf16.msra.mxu0 %v6426
      %6854 = vmatprep.subr.bf16.mxu0 0
      %6855 = vmatpush1.bf16.msra.mxu0 %v6425
      %6856 = vmatprep.subr.bf16.mxu0 0
      %6857 = vmatpush2.bf16.msra.mxu0 0
      %6858 = vmatprep.subr.bf16.mxu0 0
      %6859 = vmatpush2.bf16.msra.mxu0 0
      %6860 = vmatprep.subr.bf16.mxu0 0
      %6861 = vmatpush2.bf16.msra.mxu0 0
      %6862 = vmatprep.subr.bf16.mxu0 0
      %6863 = vmatpush2.bf16.msra.mxu0 0
      %6864 = vmatprep.subr.bf16.mxu0 0
      %6865 = vmatpush2.bf16.msra.mxu0 0
      %6866 = vmatprep.subr.bf16.mxu0 0
      %6867 = vmatpush2.bf16.msra.mxu0 0
      %6868 = vmatprep.subr.bf16.mxu0 0
      %6869 = vmatpush2.bf16.msra.mxu0 0
      %6870 = vmatprep.subr.bf16.mxu0 0
      %6871 = vmatpush2.bf16.msra.mxu0 0
      %6872 = vmatprep.mubr.bf16.mxu0 0
      %6873 = vmatmul.mubr.bf16.gmra.mxu0 %v6471
      %v6874 = vpop.f32.mrf.mxu0
      %v6875 = vadd.f32 %v6714, %v6874
      %v6876 = vpop.f32.mrf.mxu0
      %v6877 = vpop.f32.mrf.mxu0
      %v6878 = vadd.f32 %v6717, %v6877
      %v6879 = vpop.f32.mrf.mxu0
      %6880 = vmatprep.mubr.bf16.mxu0 0
      %6881 = vmatmul.mubr.bf16.gmra.mxu0 %v6474
      %v6882 = vpop.f32.mrf.mxu0
      %v6883 = vadd.f32 %v6722, %v6882
      %v6884 = vpop.f32.mrf.mxu0
      %v6885 = vpop.f32.mrf.mxu0
      %v6886 = vadd.f32 %v6725, %v6885
      %v6887 = vpop.f32.mrf.mxu0
      %6888 = vmatprep.mubr.bf16.mxu0 0
      %6889 = vmatmul.mubr.bf16.gmra.mxu0 %v6477
      %v6890 = vpop.f32.mrf.mxu0
      %v6891 = vadd.f32 %v6730, %v6890
      %v6892 = vpop.f32.mrf.mxu0
      %v6893 = vpop.f32.mrf.mxu0
      %v6894 = vadd.f32 %v6733, %v6893
      %v6895 = vpop.f32.mrf.mxu0
      %6896 = vmatprep.mubr.bf16.mxu0 0
      %6897 = vmatmul.mubr.bf16.gmra.mxu0 %v6480
      %v6898 = vpop.f32.mrf.mxu0
      %v6899 = vadd.f32 %v6738, %v6898
      %v6900 = vpop.f32.mrf.mxu0
      %v6901 = vpop.f32.mrf.mxu0
      %v6902 = vadd.f32 %v6741, %v6901
      %v6903 = vpop.f32.mrf.mxu0
      %6904 = vmatprep.mubr.bf16.mxu0 0
      %6905 = vmatmul.mubr.bf16.gmra.mxu0 %v6483
      %v6906 = vpop.f32.mrf.mxu0
      %v6907 = vadd.f32 %v6746, %v6906
      %v6908 = vpop.f32.mrf.mxu0
      %v6909 = vpop.f32.mrf.mxu0
      %v6910 = vadd.f32 %v6749, %v6909
      %v6911 = vpop.f32.mrf.mxu0
      %6912 = vmatprep.mubr.bf16.mxu0 0
      %6913 = vmatmul.mubr.bf16.gmra.mxu0 %v6486
      %v6914 = vpop.f32.mrf.mxu0
      %v6915 = vadd.f32 %v6754, %v6914
      %v6916 = vpop.f32.mrf.mxu0
      %v6917 = vpop.f32.mrf.mxu0
      %v6918 = vadd.f32 %v6757, %v6917
      %v6919 = vpop.f32.mrf.mxu0
      %6920 = vmatprep.mubr.bf16.mxu0 0
      %6921 = vmatmul.mubr.bf16.gmra.mxu0 %v6489
      %v6922 = vpop.f32.mrf.mxu0
      %v6923 = vadd.f32 %v6762, %v6922
      %v6924 = vpop.f32.mrf.mxu0
      %v6925 = vpop.f32.mrf.mxu0
      %v6926 = vadd.f32 %v6765, %v6925
      %v6927 = vpop.f32.mrf.mxu0
      %6928 = vmatprep.mubr.bf16.mxu0 0
      %6929 = vmatmul.mubr.bf16.gmra.mxu0 %v6492
      %v6930 = vpop.f32.mrf.mxu0
      %v6931 = vadd.f32 %v6770, %v6930
      %v6932 = vpop.f32.mrf.mxu0
      %v6933 = vpop.f32.mrf.mxu0
      %v6934 = vadd.f32 %v6773, %v6933
      %v6935 = vpop.f32.mrf.mxu0
      %6936 = vmatprep.mubr.bf16.mxu0 0
      %6937 = vmatmul.mubr.bf16.gmra.mxu0 %v6495
      %v6938 = vpop.f32.mrf.mxu0
      %v6939 = vadd.f32 %v6778, %v6938
      %v6940 = vpop.f32.mrf.mxu0
      %v6941 = vpop.f32.mrf.mxu0
      %v6942 = vadd.f32 %v6781, %v6941
      %v6943 = vpop.f32.mrf.mxu0
      %6944 = vmatprep.mubr.bf16.mxu0 0
      %6945 = vmatmul.mubr.bf16.gmra.mxu0 %v6498
      %v6946 = vpop.f32.mrf.mxu0
      %v6947 = vadd.f32 %v6786, %v6946
      %v6948 = vpop.f32.mrf.mxu0
      %v6949 = vpop.f32.mrf.mxu0
      %v6950 = vadd.f32 %v6789, %v6949
      %v6951 = vpop.f32.mrf.mxu0
      %6952 = vmatprep.mubr.bf16.mxu0 0
      %6953 = vmatmul.mubr.bf16.gmra.mxu0 %v6501
      %v6954 = vpop.f32.mrf.mxu0
      %v6955 = vadd.f32 %v6794, %v6954
      %v6956 = vpop.f32.mrf.mxu0
      %v6957 = vpop.f32.mrf.mxu0
      %v6958 = vadd.f32 %v6797, %v6957
      %v6959 = vpop.f32.mrf.mxu0
      %6960 = vmatprep.mubr.bf16.mxu0 0
      %6961 = vmatmul.mubr.bf16.gmra.mxu0 %v6504
      %v6962 = vpop.f32.mrf.mxu0
      %v6963 = vadd.f32 %v6802, %v6962
      %v6964 = vpop.f32.mrf.mxu0
      %v6965 = vpop.f32.mrf.mxu0
      %v6966 = vadd.f32 %v6805, %v6965
      %v6967 = vpop.f32.mrf.mxu0
      %6968 = vmatprep.mubr.bf16.mxu0 0
      %6969 = vmatmul.mubr.bf16.gmra.mxu0 %v6507
      %v6970 = vpop.f32.mrf.mxu0
      %v6971 = vadd.f32 %v6810, %v6970
      %v6972 = vpop.f32.mrf.mxu0
      %v6973 = vpop.f32.mrf.mxu0
      %v6974 = vadd.f32 %v6813, %v6973
      %v6975 = vpop.f32.mrf.mxu0
      %6976 = vmatprep.mubr.bf16.mxu0 0
      %6977 = vmatmul.mubr.bf16.gmra.mxu0 %v6510
      %v6978 = vpop.f32.mrf.mxu0
      %v6979 = vadd.f32 %v6818, %v6978
      %v6980 = vpop.f32.mrf.mxu0
      %v6981 = vpop.f32.mrf.mxu0
      %v6982 = vadd.f32 %v6821, %v6981
      %v6983 = vpop.f32.mrf.mxu0
      %6984 = vmatprep.mubr.bf16.mxu0 0
      %6985 = vmatmul.mubr.bf16.gmra.mxu0 %v6513
      %v6986 = vpop.f32.mrf.mxu0
      %v6987 = vadd.f32 %v6826, %v6986
      %v6988 = vpop.f32.mrf.mxu0
      %v6989 = vpop.f32.mrf.mxu0
      %v6990 = vadd.f32 %v6829, %v6989
      %v6991 = vpop.f32.mrf.mxu0
      %6992 = vmatprep.mubr.bf16.mxu0 0
      %6993 = vmatmul.mubr.bf16.gmra.mxu0 %v6516
      %v6994 = vpop.f32.mrf.mxu0
      %v6995 = vadd.f32 %v6834, %v6994
      %v6996 = vpop.f32.mrf.mxu0
      %v6997 = vpop.f32.mrf.mxu0
      %v6998 = vadd.f32 %v6837, %v6997
      %v6999 = vpop.f32.mrf.mxu0
      %7000 = vdwg.mxu0
      %7001 = vst.msk [vmem:[%s469] sm:$0xff] %vm3669, %v6875
      %7002 = vst.msk [vmem:[%s469 + $0x8] sm:$0xff] %vm3669, %v6878
      %7003 = vst.msk [vmem:[%s469 + $0x10] sm:$0xff] %vm3669, %v6883
      %7004 = vst.msk [vmem:[%s469 + $0x18] sm:$0xff] %vm3669, %v6886
      %7005 = vst.msk [vmem:[%s469 + $0x20] sm:$0xff] %vm3669, %v6891
      %7006 = vst.msk [vmem:[%s469 + $0x28] sm:$0xff] %vm3669, %v6894
      %7007 = vst.msk [vmem:[%s469 + $0x30] sm:$0xff] %vm3669, %v6899
      %7008 = vst.msk [vmem:[%s469 + $0x38] sm:$0xff] %vm3669, %v6902
      %7009 = vst.msk [vmem:[%s469 + $0x40] sm:$0xff] %vm3669, %v6907
      %7010 = vst.msk [vmem:[%s469 + $0x48] sm:$0xff] %vm3669, %v6910
      %7011 = vst.msk [vmem:[%s469 + $0x50] sm:$0xff] %vm3669, %v6915
      %7012 = vst.msk [vmem:[%s469 + $0x58] sm:$0xff] %vm3669, %v6918
      %7013 = vst.msk [vmem:[%s469 + $0x60] sm:$0xff] %vm3669, %v6923
      %7014 = vst.msk [vmem:[%s469 + $0x68] sm:$0xff] %vm3669, %v6926
      %7015 = vst.msk [vmem:[%s469 + $0x70] sm:$0xff] %vm3669, %v6931
      %7016 = vst.msk [vmem:[%s469 + $0x78] sm:$0xff] %vm3669, %v6934
      %7017 = vst.msk [vmem:[%s469 + $0x80] sm:$0xff] %vm3669, %v6939
      %7018 = vst.msk [vmem:[%s469 + $0x88] sm:$0xff] %vm3669, %v6942
      %7019 = vst.msk [vmem:[%s469 + $0x90] sm:$0xff] %vm3669, %v6947
      %7020 = vst.msk [vmem:[%s469 + $0x98] sm:$0xff] %vm3669, %v6950
      %7021 = vst.msk [vmem:[%s469 + $0xa0] sm:$0xff] %vm3669, %v6955
      %7022 = vst.msk [vmem:[%s469 + $0xa8] sm:$0xff] %vm3669, %v6958
      %7023 = vst.msk [vmem:[%s469 + $0xb0] sm:$0xff] %vm3669, %v6963
      %7024 = vst.msk [vmem:[%s469 + $0xb8] sm:$0xff] %vm3669, %v6966
      %7025 = vst.msk [vmem:[%s469 + $0xc0] sm:$0xff] %vm3669, %v6971
      %7026 = vst.msk [vmem:[%s469 + $0xc8] sm:$0xff] %vm3669, %v6974
      %7027 = vst.msk [vmem:[%s469 + $0xd0] sm:$0xff] %vm3669, %v6979
      %7028 = vst.msk [vmem:[%s469 + $0xd8] sm:$0xff] %vm3669, %v6982
      %7029 = vst.msk [vmem:[%s469 + $0xe0] sm:$0xff] %vm3669, %v6987
      %7030 = vst.msk [vmem:[%s469 + $0xe8] sm:$0xff] %vm3669, %v6990
      %7031 = vst.msk [vmem:[%s469 + $0xf0] sm:$0xff] %vm3669, %v6995
      %7032 = vst.msk [vmem:[%s469 + $0xf8] sm:$0xff] %vm3669, %v6998
      %s7033 = smul.u32 32, %s25
      %p7034 = scmp.lt.s32.totalorder %s7033, 63
      %s7035 = scalar_select %p7034, %s7033, 63
      %s7036 = smul.addr %s7035, 8
      %s7037 = scalar_lea.vmem %s14, %s7036
      // Predicated region
      $region77: #{tpu_custom_call.1} parent=75 // pred_check
        %p7038 = pneg %p342
      $region78: #{tpu_custom_call.1} parent=75 // pred_check_branch
        %7040 = sbr.rel (%p7038) target = $region80
      $region79: #{tpu_custom_call.1} parent=75 // pred_region
        %s7041 = smul.u32 32, %s25
      $region80: #{tpu_custom_call.1} parent=75 // pred_fallthru
        _
    $region76: #{tpu_custom_call.1} parent=5 // pred_fallthru
      _
    %p7042 = scmp.le.s32.totalorder 2, %s20
    // Predicated region
    $region81: #{tpu_custom_call.1} parent=5 // pred_check
      %p7043 = pneg %p7042
    $region82: #{tpu_custom_call.1} parent=5 // pred_check_branch
      %7045 = sbr.rel (%p7043) target = $region84
    $region83: #{tpu_custom_call.1} parent=5 // pred_region
      %s7046 = ssub.s32 %s20, 2
      // Predicated region
      $region85: #{tpu_custom_call.1} parent=83 // pred_check
        %p7047 = pneg %p348
      $region86: #{tpu_custom_call.1} parent=83 // pred_check_branch
        %7049 = sbr.rel (%p7047) target = $region88
      $region87: #{tpu_custom_call.1} parent=83 // pred_region
        %s7050 = smul.u32 32, %s26
        %p7051 = scmp.lt.s32.totalorder %s7050, 63
        %s7052 = scalar_select %p7051, %s7050, 63
        %s7053 = smul.addr %s7052, 8
        %s7054 = scalar_lea.vmem %s14, %s7053
      $region88: #{tpu_custom_call.1} parent=83 // pred_fallthru
        _
    $region84: #{tpu_custom_call.1} parent=5 // pred_fallthru
      _
  $region6: #{tpu_custom_call.1} parent=0 // loop_footer
    %s24 = sadd.s32 1, %s20
  $region7: #{tpu_custom_call.1} parent=0 // loop_footer_branch
    %19 = sbr.rel target = $region3
  $region8: #{tpu_custom_call.1} parent=0 // loop_exit
    _

</llo_original>
